<compile_context>
chip_gen: v7x
topology: tpu7x:2x2x1
jax: 0.10.0
libtpu: 0.0.40
codegen_flags: <defaults>
</compile_context>

<pallas_src>
import functools
import math

import jax
import jax.numpy as jnp
from jax.experimental import pallas as pl
from jax.experimental.pallas import tpu as pltpu


# ----------------------------------------------------------------------------
# Pallas kernels
# ----------------------------------------------------------------------------
def _round_up(x, m):
    return ((x + m - 1) // m) * m


def _choose_tm(m):
    """M tile: as big as possible (<=512 rows) while keeping >=2 grid steps."""
    if m >= 1024:
        return 512
    if m >= 16 and m % 16 == 0:
        return m // 2            # two grid steps keep both v7x TensorCores busy
    return m


def _fused_matmul_kernel(*refs, has_act, has_res):
    """o = [relu](((a @ b) [+ residual]) [* scale + shift]) with f32 accum."""
    a_ref, b_ref = refs[0], refs[1]
    i = 2
    if has_act:
        s_ref, t_ref = refs[i], refs[i + 1]
        i += 2
    if has_res:
        r_ref = refs[i]
        i += 1
    o_ref = refs[i]
    acc = jnp.dot(a_ref[...], b_ref[...], preferred_element_type=jnp.float32)
    if has_res:
        acc = acc + r_ref[...].astype(jnp.float32)
    if has_act:
        acc = jnp.maximum(acc * s_ref[...] + t_ref[...], 0.0)
    o_ref[...] = acc.astype(o_ref.dtype)


def fused_matmul(a, b, scale=None, shift=None, residual=None,
                 out_dtype=jnp.bfloat16):
    """(M,K)@(K,N) in bf16 on the MXU (f32 accumulation) with a fused epilogue:
    optional residual add, then optional per-column scale/shift + ReLU."""
    M, K = a.shape
    K2, N = b.shape
    assert K == K2
    has_act = scale is not None
    has_res = residual is not None

    tm = _choose_tm(M)
    M_pad = _round_up(M, tm)
    a = a.astype(jnp.bfloat16)
    b = b.astype(jnp.bfloat16)
    if M_pad != M:
        a = jnp.pad(a, ((0, M_pad - M), (0, 0)))
        if has_res:
            residual = jnp.pad(residual, ((0, M_pad - M), (0, 0)))

    inputs = [a, b]
    in_specs = [pl.BlockSpec((tm, K), lambda i: (i, 0)),
                pl.BlockSpec((K, N), lambda i: (0, 0))]
    if has_act:
        inputs += [scale.reshape(1, N).astype(jnp.float32),
                   shift.reshape(1, N).astype(jnp.float32)]
        in_specs += [pl.BlockSpec((1, N), lambda i: (0, 0)),
                     pl.BlockSpec((1, N), lambda i: (0, 0))]
    if has_res:
        inputs.append(residual.astype(jnp.bfloat16))
        in_specs.append(pl.BlockSpec((tm, N), lambda i: (i, 0)))

    out = pl.pallas_call(
        functools.partial(_fused_matmul_kernel,
                          has_act=has_act, has_res=has_res),
        out_shape=jax.ShapeDtypeStruct((M_pad, N), out_dtype),
        grid=(M_pad // tm,),
        in_specs=in_specs,
        out_specs=pl.BlockSpec((tm, N), lambda i: (i, 0)),
        compiler_params=pltpu.CompilerParams(
            dimension_semantics=("parallel",)),
    )(*inputs)
    return out[:M] if M_pad != M else out


def _bn_relu_kernel(x_ref, s_ref, t_ref, o_ref):
    o_ref[...] = jnp.maximum(
        x_ref[...].astype(jnp.float32) * s_ref[...] + t_ref[...], 0.0
    ).astype(o_ref.dtype)


def pallas_bn_relu(x_flat, scale, shift, out_dtype=jnp.bfloat16):
    """y = relu(x * scale + shift), per-channel scale/shift, x: (M, C)."""
    M, C = x_flat.shape
    tm = _choose_tm(M)
    M_pad = _round_up(M, tm)
    x = x_flat.astype(jnp.bfloat16)
    if M_pad != M:
        x = jnp.pad(x, ((0, M_pad - M), (0, 0)))
    out = pl.pallas_call(
        _bn_relu_kernel,
        out_shape=jax.ShapeDtypeStruct((M_pad, C), out_dtype),
        grid=(M_pad // tm,),
        in_specs=[pl.BlockSpec((tm, C), lambda i: (i, 0)),
                  pl.BlockSpec((1, C), lambda i: (0, 0)),
                  pl.BlockSpec((1, C), lambda i: (0, 0))],
        out_specs=pl.BlockSpec((tm, C), lambda i: (i, 0)),
        compiler_params=pltpu.CompilerParams(
            dimension_semantics=("parallel",)),
    )(x, scale.reshape(1, C).astype(jnp.float32),
      shift.reshape(1, C).astype(jnp.float32))
    return out[:M] if M_pad != M else out


# ----------------------------------------------------------------------------
# Plain-JAX glue: im2col, conv wrapper, BN / gate helpers
# ----------------------------------------------------------------------------
def im2col(x, k, stride, padding):
    """x: (N,H,W,C) -> (N*Ho*Wo, k*k*C) patches, (kh,kw,C) column order."""
    # TODO(synk): the k*k patch expansion could be moved in-kernel (per-tap
    # accumulation over shifted windows) to cut conv-input HBM traffic further.
    N, H, W, C = x.shape
    if padding > 0:
        x = jnp.pad(x, ((0, 0), (padding, padding), (padding, padding), (0, 0)))
    Ho = (H + 2 * padding - k) // stride + 1
    Wo = (W + 2 * padding - k) // stride + 1
    taps = []
    for di in range(k):
        for dj in range(k):
            taps.append(x[:, di:di + stride * Ho:stride,
                          dj:dj + stride * Wo:stride, :])
    cols = taps[0] if k == 1 else jnp.concatenate(taps, axis=-1)
    return cols.reshape(N * Ho * Wo, k * k * C), Ho, Wo


def conv2d_pallas(x, w2, k, stride, padding, gate=None, scale_shift=None,
                  residual_flat=None, out_dtype=jnp.bfloat16):
    """Conv (NHWC) via im2col + fused Pallas matmul.  w2: (k*k*Cin, Cout)."""
    cols, Ho, Wo = im2col(x, k, stride, padding)
    if gate is not None:
        w2 = w2 * gate[None, :]        # eval-mode L0 gate folded into columns
    scale, shift = scale_shift if scale_shift is not None else (None, None)
    y = fused_matmul(cols, w2, scale=scale, shift=shift,
                     residual=residual_flat, out_dtype=out_dtype)
    return y.reshape(x.shape[0], Ho, Wo, w2.shape[1])


def bn_scale_shift(bn):
    gamma, beta, mean, var, eps = bn
    scale = gamma / jnp.sqrt(var + eps)
    shift = beta - mean * scale
    return scale, shift


def hard_concrete_gate(qz_loga, gamma=-0.1, zeta=1.1):
    """Deterministic (eval) L0 gate: clamp(sigmoid(loga)*(zeta-gamma)+gamma,0,1)."""
    z = jax.nn.sigmoid(qz_loga) * (zeta - gamma) + gamma
    return jnp.clip(z, 0.0, 1.0)


# ----------------------------------------------------------------------------
# Parameter construction (deterministic, synthetic)
# ----------------------------------------------------------------------------
def make_bn(c):
    # nn.BatchNorm2d with weight=1, bias=0 (enforced by the module __init__),
    # default running stats mean=0, var=1, eps=1e-5 (eval mode).
    return (jnp.ones((c,), jnp.float32), jnp.zeros((c,), jnp.float32),
            jnp.zeros((c,), jnp.float32), jnp.ones((c,), jnp.float32), 1e-5)


def conv_weight(key, k, cin, cout):
    std = (2.0 / (k * k * cin)) ** 0.5
    return std * jax.random.normal(key, (k * k * cin, cout), jnp.float32)


def make_model(key, depth=10, num_classes=10, widen_factor=1,
               droprate_init=0.3):
    """Returns (params, cfg). params = arrays only (jit-traceable pytree);
    cfg = static Python structure with per-block 'equal' / 'stride'."""
    assert (depth - 4) % 6 == 0
    n = (depth - 4) // 6
    nC = [16, 16 * widen_factor, 32 * widen_factor, 64 * widen_factor]
    keys = jax.random.split(key, 2 + 4 * (3 * n))

    params = {"conv1_w": conv_weight(keys[0], 3, 3, nC[0])}      # MAPConv2d
    blocks, cfg = [], []
    ki = 1
    loga0 = math.log(1.0 - droprate_init) - math.log(droprate_init)
    for cin, cout, stride in [(nC[0], nC[1], 1), (nC[1], nC[2], 2),
                              (nC[2], nC[3], 2)]:
        for j in range(n):
            b_in = cin if j == 0 else cout
            b_stride = stride if j == 0 else 1
            equal = b_in == cout
            k1, k2, k3, k4 = keys[ki:ki + 4]
            ki += 4
            bp = {
                "bn1": make_bn(b_in),
                "conv1_w": conv_weight(k1, 3, b_in, cout),        # L0Conv2d
                "qz_loga": loga0 + 1e-2 * jax.random.normal(
                    k2, (cout,), jnp.float32),
                "bn2": make_bn(cout),
                "conv2_w": conv_weight(k3, 3, cout, cout),        # MAPConv2d
            }
            if not equal:
                bp["short_w"] = conv_weight(k4, 1, b_in, cout)    # 1x1 shortcut
            blocks.append(bp)
            cfg.append({"equal": equal, "stride": b_stride})
    params["blocks"] = blocks
    params["bn"] = make_bn(nC[3])
    params["fc_w"] = ((1.0 / nC[3]) ** 0.5
                      * jax.random.normal(keys[ki], (nC[3], num_classes),
                                          jnp.float32))
    params["fc_b"] = jnp.zeros((num_classes,), jnp.float32)
    return params, cfg


# ----------------------------------------------------------------------------
# Forward pass (mirrors L0WideResNet.forward in eval mode)
# ----------------------------------------------------------------------------
def l0_wide_resnet_forward(cfg, params, x_nchw):
    x = jnp.transpose(x_nchw, (0, 2, 3, 1)).astype(jnp.bfloat16)   # NHWC
    blocks = params["blocks"]
    nb = len(cfg)

    def consumer_epilogue(i):
        # BN+ReLU of the consumer that can be fused into the producer's matmul
        # epilogue; None if the consumer also needs the raw pre-BN tensor
        # (identity-residual blocks).
        if i == nb:
            return bn_scale_shift(params["bn"])      # final BN before pooling
        if cfg[i]["equal"]:
            return None
        return bn_scale_shift(blocks[i]["bn1"])

    # conv1 (MAPConv2d 3->16); fuse the next consumer's bn+relu when possible.
    h = conv2d_pallas(x, params["conv1_w"], k=3, stride=1, padding=1,
                      scale_shift=consumer_epilogue(0))

    for i in range(nb):
        c, bp = cfg[i], blocks[i]
        if c["equal"]:
            # h is the raw block input (also the identity residual).
            s1, t1 = bn_scale_shift(bp["bn1"])
            a = pallas_bn_relu(h.reshape(-1, h.shape[-1]), s1, t1
                               ).reshape(h.shape)
            res = h.reshape(-1, h.shape[-1])
        else:
            # h already equals relu(bn1(raw)) (fused into producer's epilogue).
            a = h
            res = None

        # L0Conv2d (eval gate folded into weight columns) + fused bn2 + relu.
        gate = hard_concrete_gate(bp["qz_loga"])
        a2 = conv2d_pallas(a, bp["conv1_w"], k=3, stride=1, padding=1,
                           gate=gate, scale_shift=bn_scale_shift(bp["bn2"]))

        if not c["equal"]:
            sc = conv2d_pallas(a, bp["short_w"], k=1, stride=c["stride"],
                               padding=0)
            res = sc.reshape(-1, sc.shape[-1])

        # conv2 (MAPConv2d) + residual add + next consumer's BN+ReLU, fused.
        h = conv2d_pallas(a2, bp["conv2_w"], k=3, stride=c["stride"],
                          padding=1, residual_flat=res,
                          scale_shift=consumer_epilogue(i + 1))

    # h already equals relu(bn(out)); F.avg_pool2d(out, 8) on 8x8 == mean.
    pooled = jnp.mean(h.astype(jnp.float32), axis=(1, 2))           # (N, C)
    # MAPDense: tiny (2x64)@(64x10) -> plain XLA dot beats a pallas launch.
    return pooled @ params["fc_w"] + params["fc_b"][None, :]


# ----------------------------------------------------------------------------
# Main
# ----------------------------------------------------------------------------
if __name__ == "__main__":
    key = jax.random.PRNGKey(0)
    k_params, k_x = jax.random.split(key)

    # depth=10 -> 1 BasicBlock per stage; widen_factor=1; num_classes=10.
    params, cfg = make_model(k_params, depth=10, num_classes=10, widen_factor=1)

    # NCHW input as in PyTorch; spatial 32 so the final avg_pool2d(8) sees 8x8.
    x = jax.random.normal(k_x, (2, 3, 32, 32), jnp.float32)

    fwd = jax.jit(functools.partial(l0_wide_resnet_forward, cfg))
    logits = fwd(params, x)
    jax.block_until_ready(logits)

    assert logits.shape == (2, 10)
    assert bool(jnp.all(jnp.isfinite(logits)))
    print("KERNEL_OK")
</pallas_src>

<mosaic_0001>
module attributes {stable_mosaic.version = 11 : i64} {
  func.func @_bn_relu_kernel(%arg0: i32, %arg1: memref<512x16xbf16, #tpu.memory_space<vmem>>, %arg2: memref<1x16xf32, #tpu.memory_space<vmem>>, %arg3: memref<1x16xf32, #tpu.memory_space<vmem>>, %arg4: memref<512x16xbf16, #tpu.memory_space<vmem>>) attributes {dimension_semantics = [#tpu.dimension_semantics<parallel>], iteration_bounds = array<i64: 4>, scalar_prefetch = 0 : i64, scratch_operands = 0 : i64, tpu.core_type = #tpu.core_type<tc>, window_params = [{transform_indices = @transform_0, window_bounds = array<i64: 512, 16>}, {pipeline_mode = #tpu.pipeline_mode<synchronous>, transform_indices = @transform_1, window_bounds = array<i64: 1, 16>}, {pipeline_mode = #tpu.pipeline_mode<synchronous>, transform_indices = @transform_2, window_bounds = array<i64: 1, 16>}, {transform_indices = @transform_3, window_bounds = array<i64: 512, 16>}]} {
    %c0 = arith.constant 0 : index
    %c0_0 = arith.constant 0 : index
    %0 = vector.load %arg1[%c0, %c0_0] : memref<512x16xbf16, #tpu.memory_space<vmem>>, vector<512x16xbf16>
    %1 = arith.extf %0 : vector<512x16xbf16> to vector<512x16xf32>
    %c0_1 = arith.constant 0 : index
    %c0_2 = arith.constant 0 : index
    %2 = vector.load %arg2[%c0_1, %c0_2] : memref<1x16xf32, #tpu.memory_space<vmem>>, vector<1x16xf32>
    %3 = vector.broadcast %2 : vector<1x16xf32> to vector<512x16xf32>
    %4 = arith.mulf %1, %3 : vector<512x16xf32>
    %c0_3 = arith.constant 0 : index
    %c0_4 = arith.constant 0 : index
    %5 = vector.load %arg3[%c0_3, %c0_4] : memref<1x16xf32, #tpu.memory_space<vmem>>, vector<1x16xf32>
    %6 = vector.broadcast %5 : vector<1x16xf32> to vector<512x16xf32>
    %7 = arith.addf %4, %6 : vector<512x16xf32>
    %cst = arith.constant 0.000000e+00 : f32
    %8 = vector.broadcast %cst : f32 to vector<512x16xf32>
    %9 = arith.maximumf %7, %8 : vector<512x16xf32>
    %10 = arith.truncf %9 : vector<512x16xf32> to vector<512x16xbf16>
    %c0_5 = arith.constant 0 : index
    %c0_6 = arith.constant 0 : index
    %11 = vector.load %arg4[%c0_5, %c0_6] : memref<512x16xbf16, #tpu.memory_space<vmem>>, vector<512x16xbf16>
    tpu.vector_store %arg4[%c0_5, %c0_6], %10 {strides = array<i32>} : memref<512x16xbf16, #tpu.memory_space<vmem>>, vector<512x16xbf16>,
    return
  }
  func.func @transform_0(%arg0: i32) -> (i32, i32) {
    %c0_i32 = arith.constant 0 : i32
    %c0_i32_0 = arith.constant 0 : i32
    return %arg0, %c0_i32 : i32, i32
  }
  func.func @transform_1(%arg0: i32) -> (i32, i32) {
    %c0_i32 = arith.constant 0 : i32
    %c0_i32_0 = arith.constant 0 : i32
    %c0_i32_1 = arith.constant 0 : i32
    return %c0_i32, %c0_i32_0 : i32, i32
  }
  func.func @transform_2(%arg0: i32) -> (i32, i32) {
    %c0_i32 = arith.constant 0 : i32
    %c0_i32_0 = arith.constant 0 : i32
    %c0_i32_1 = arith.constant 0 : i32
    return %c0_i32, %c0_i32_0 : i32, i32
  }
  func.func @transform_3(%arg0: i32) -> (i32, i32) {
    %c0_i32 = arith.constant 0 : i32
    %c0_i32_0 = arith.constant 0 : i32
    return %arg0, %c0_i32 : i32, i32
  }
}

module attributes {stable_mosaic.version = 11 : i64} {
  func.func @_fused_matmul_kernel(%arg0: i32, %arg1: memref<512x27xbf16, #tpu.memory_space<vmem>>, %arg2: memref<27x16xbf16, #tpu.memory_space<vmem>>, %arg3: memref<512x16xbf16, #tpu.memory_space<vmem>>) attributes {dimension_semantics = [#tpu.dimension_semantics<parallel>], iteration_bounds = array<i64: 4>, scalar_prefetch = 0 : i64, scratch_operands = 0 : i64, tpu.core_type = #tpu.core_type<tc>, window_params = [{transform_indices = @transform_0, window_bounds = array<i64: 512, 27>}, {pipeline_mode = #tpu.pipeline_mode<synchronous>, transform_indices = @transform_1, window_bounds = array<i64: 27, 16>}, {transform_indices = @transform_2, window_bounds = array<i64: 512, 16>}]} {
    %c0 = arith.constant 0 : index
    %c0_0 = arith.constant 0 : index
    %0 = vector.load %arg1[%c0, %c0_0] : memref<512x27xbf16, #tpu.memory_space<vmem>>, vector<512x27xbf16>
    %c0_1 = arith.constant 0 : index
    %c0_2 = arith.constant 0 : index
    %1 = vector.load %arg2[%c0_1, %c0_2] : memref<27x16xbf16, #tpu.memory_space<vmem>>, vector<27x16xbf16>
    %cst = arith.constant dense<0.000000e+00> : vector<512x16xf32>
    %2 = tpu.matmul %0, %1, %cst {dimension_numbers = #tpu.dot_dimension_numbers<[1], [0], [0], [1], [0, 0, 1, 1], [], []>} : vector<512x27xbf16>, vector<27x16xbf16>, vector<512x16xf32> -> vector<512x16xf32>
    %3 = arith.truncf %2 : vector<512x16xf32> to vector<512x16xbf16>
    %c0_3 = arith.constant 0 : index
    %c0_4 = arith.constant 0 : index
    %4 = vector.load %arg3[%c0_3, %c0_4] : memref<512x16xbf16, #tpu.memory_space<vmem>>, vector<512x16xbf16>
    tpu.vector_store %arg3[%c0_3, %c0_4], %3 {strides = array<i32>} : memref<512x16xbf16, #tpu.memory_space<vmem>>, vector<512x16xbf16>,
    return
  }
  func.func @transform_0(%arg0: i32) -> (i32, i32) {
    %c0_i32 = arith.constant 0 : i32
    %c0_i32_0 = arith.constant 0 : i32
    return %arg0, %c0_i32 : i32, i32
  }
  func.func @transform_1(%arg0: i32) -> (i32, i32) {
    %c0_i32 = arith.constant 0 : i32
    %c0_i32_0 = arith.constant 0 : i32
    %c0_i32_1 = arith.constant 0 : i32
    return %c0_i32, %c0_i32_0 : i32, i32
  }
  func.func @transform_2(%arg0: i32) -> (i32, i32) {
    %c0_i32 = arith.constant 0 : i32
    %c0_i32_0 = arith.constant 0 : i32
    return %arg0, %c0_i32 : i32, i32
  }
}

module attributes {stable_mosaic.version = 11 : i64} {
  func.func @_fused_matmul_kernel(%arg0: i32, %arg1: memref<512x144xbf16, #tpu.memory_space<vmem>>, %arg2: memref<144x16xbf16, #tpu.memory_space<vmem>>, %arg3: memref<1x16xf32, #tpu.memory_space<vmem>>, %arg4: memref<1x16xf32, #tpu.memory_space<vmem>>, %arg5: memref<512x16xbf16, #tpu.memory_space<vmem>>) attributes {dimension_semantics = [#tpu.dimension_semantics<parallel>], iteration_bounds = array<i64: 4>, scalar_prefetch = 0 : i64, scratch_operands = 0 : i64, tpu.core_type = #tpu.core_type<tc>, window_params = [{transform_indices = @transform_0, window_bounds = array<i64: 512, 144>}, {pipeline_mode = #tpu.pipeline_mode<synchronous>, transform_indices = @transform_1, window_bounds = array<i64: 144, 16>}, {pipeline_mode = #tpu.pipeline_mode<synchronous>, transform_indices = @transform_2, window_bounds = array<i64: 1, 16>}, {pipeline_mode = #tpu.pipeline_mode<synchronous>, transform_indices = @transform_3, window_bounds = array<i64: 1, 16>}, {transform_indices = @transform_4, window_bounds = array<i64: 512, 16>}]} {
    %c0 = arith.constant 0 : index
    %c0_0 = arith.constant 0 : index
    %0 = vector.load %arg1[%c0, %c0_0] : memref<512x144xbf16, #tpu.memory_space<vmem>>, vector<512x144xbf16>
    %c0_1 = arith.constant 0 : index
    %c0_2 = arith.constant 0 : index
    %1 = vector.load %arg2[%c0_1, %c0_2] : memref<144x16xbf16, #tpu.memory_space<vmem>>, vector<144x16xbf16>
    %cst = arith.constant dense<0.000000e+00> : vector<512x16xf32>
    %2 = tpu.matmul %0, %1, %cst {dimension_numbers = #tpu.dot_dimension_numbers<[1], [0], [0], [1], [0, 0, 1, 1], [], []>} : vector<512x144xbf16>, vector<144x16xbf16>, vector<512x16xf32> -> vector<512x16xf32>
    %c0_3 = arith.constant 0 : index
    %c0_4 = arith.constant 0 : index
    %3 = vector.load %arg3[%c0_3, %c0_4] : memref<1x16xf32, #tpu.memory_space<vmem>>, vector<1x16xf32>
    %4 = vector.broadcast %3 : vector<1x16xf32> to vector<512x16xf32>
    %5 = arith.mulf %2, %4 : vector<512x16xf32>
    %c0_5 = arith.constant 0 : index
    %c0_6 = arith.constant 0 : index
    %6 = vector.load %arg4[%c0_5, %c0_6] : memref<1x16xf32, #tpu.memory_space<vmem>>, vector<1x16xf32>
    %7 = vector.broadcast %6 : vector<1x16xf32> to vector<512x16xf32>
    %8 = arith.addf %5, %7 : vector<512x16xf32>
    %cst_7 = arith.constant 0.000000e+00 : f32
    %9 = vector.broadcast %cst_7 : f32 to vector<512x16xf32>
    %10 = arith.maximumf %8, %9 : vector<512x16xf32>
    %11 = arith.truncf %10 : vector<512x16xf32> to vector<512x16xbf16>
    %c0_8 = arith.constant 0 : index
    %c0_9 = arith.constant 0 : index
    %12 = vector.load %arg5[%c0_8, %c0_9] : memref<512x16xbf16, #tpu.memory_space<vmem>>, vector<512x16xbf16>
    tpu.vector_store %arg5[%c0_8, %c0_9], %11 {strides = array<i32>} : memref<512x16xbf16, #tpu.memory_space<vmem>>, vector<512x16xbf16>,
    return
  }
  func.func @transform_0(%arg0: i32) -> (i32, i32) {
    %c0_i32 = arith.constant 0 : i32
    %c0_i32_0 = arith.constant 0 : i32
    return %arg0, %c0_i32 : i32, i32
  }
  func.func @transform_1(%arg0: i32) -> (i32, i32) {
    %c0_i32 = arith.constant 0 : i32
    %c0_i32_0 = arith.constant 0 : i32
    %c0_i32_1 = arith.constant 0 : i32
    return %c0_i32, %c0_i32_0 : i32, i32
  }
  func.func @transform_2(%arg0: i32) -> (i32, i32) {
    %c0_i32 = arith.constant 0 : i32
    %c0_i32_0 = arith.constant 0 : i32
    %c0_i32_1 = arith.constant 0 : i32
    return %c0_i32, %c0_i32_0 : i32, i32
  }
  func.func @transform_3(%arg0: i32) -> (i32, i32) {
    %c0_i32 = arith.constant 0 : i32
    %c0_i32_0 = arith.constant 0 : i32
    %c0_i32_1 = arith.constant 0 : i32
    return %c0_i32, %c0_i32_0 : i32, i32
  }
  func.func @transform_4(%arg0: i32) -> (i32, i32) {
    %c0_i32 = arith.constant 0 : i32
    %c0_i32_0 = arith.constant 0 : i32
    return %arg0, %c0_i32 : i32, i32
  }
}

module attributes {stable_mosaic.version = 11 : i64} {
  func.func @_fused_matmul_kernel(%arg0: i32, %arg1: memref<512x144xbf16, #tpu.memory_space<vmem>>, %arg2: memref<144x16xbf16, #tpu.memory_space<vmem>>, %arg3: memref<1x16xf32, #tpu.memory_space<vmem>>, %arg4: memref<1x16xf32, #tpu.memory_space<vmem>>, %arg5: memref<512x16xbf16, #tpu.memory_space<vmem>>, %arg6: memref<512x16xbf16, #tpu.memory_space<vmem>>) attributes {dimension_semantics = [#tpu.dimension_semantics<parallel>], iteration_bounds = array<i64: 4>, scalar_prefetch = 0 : i64, scratch_operands = 0 : i64, tpu.core_type = #tpu.core_type<tc>, window_params = [{transform_indices = @transform_0, window_bounds = array<i64: 512, 144>}, {pipeline_mode = #tpu.pipeline_mode<synchronous>, transform_indices = @transform_1, window_bounds = array<i64: 144, 16>}, {pipeline_mode = #tpu.pipeline_mode<synchronous>, transform_indices = @transform_2, window_bounds = array<i64: 1, 16>}, {pipeline_mode = #tpu.pipeline_mode<synchronous>, transform_indices = @transform_3, window_bounds = array<i64: 1, 16>}, {transform_indices = @transform_4, window_bounds = array<i64: 512, 16>}, {transform_indices = @transform_5, window_bounds = array<i64: 512, 16>}]} {
    %c0 = arith.constant 0 : index
    %c0_0 = arith.constant 0 : index
    %0 = vector.load %arg1[%c0, %c0_0] : memref<512x144xbf16, #tpu.memory_space<vmem>>, vector<512x144xbf16>
    %c0_1 = arith.constant 0 : index
    %c0_2 = arith.constant 0 : index
    %1 = vector.load %arg2[%c0_1, %c0_2] : memref<144x16xbf16, #tpu.memory_space<vmem>>, vector<144x16xbf16>
    %cst = arith.constant dense<0.000000e+00> : vector<512x16xf32>
    %2 = tpu.matmul %0, %1, %cst {dimension_numbers = #tpu.dot_dimension_numbers<[1], [0], [0], [1], [0, 0, 1, 1], [], []>} : vector<512x144xbf16>, vector<144x16xbf16>, vector<512x16xf32> -> vector<512x16xf32>
    %c0_3 = arith.constant 0 : index
    %c0_4 = arith.constant 0 : index
    %3 = vector.load %arg5[%c0_3, %c0_4] : memref<512x16xbf16, #tpu.memory_space<vmem>>, vector<512x16xbf16>
    %4 = arith.extf %3 : vector<512x16xbf16> to vector<512x16xf32>
    %5 = arith.addf %2, %4 : vector<512x16xf32>
    %c0_5 = arith.constant 0 : index
    %c0_6 = arith.constant 0 : index
    %6 = vector.load %arg3[%c0_5, %c0_6] : memref<1x16xf32, #tpu.memory_space<vmem>>, vector<1x16xf32>
    %7 = vector.broadcast %6 : vector<1x16xf32> to vector<512x16xf32>
    %8 = arith.mulf %5, %7 : vector<512x16xf32>
    %c0_7 = arith.constant 0 : index
    %c0_8 = arith.constant 0 : index
    %9 = vector.load %arg4[%c0_7, %c0_8] : memref<1x16xf32, #tpu.memory_space<vmem>>, vector<1x16xf32>
    %10 = vector.broadcast %9 : vector<1x16xf32> to vector<512x16xf32>
    %11 = arith.addf %8, %10 : vector<512x16xf32>
    %cst_9 = arith.constant 0.000000e+00 : f32
    %12 = vector.broadcast %cst_9 : f32 to vector<512x16xf32>
    %13 = arith.maximumf %11, %12 : vector<512x16xf32>
    %14 = arith.truncf %13 : vector<512x16xf32> to vector<512x16xbf16>
    %c0_10 = arith.constant 0 : index
    %c0_11 = arith.constant 0 : index
    %15 = vector.load %arg6[%c0_10, %c0_11] : memref<512x16xbf16, #tpu.memory_space<vmem>>, vector<512x16xbf16>
    tpu.vector_store %arg6[%c0_10, %c0_11], %14 {strides = array<i32>} : memref<512x16xbf16, #tpu.memory_space<vmem>>, vector<512x16xbf16>,
    return
  }
  func.func @transform_0(%arg0: i32) -> (i32, i32) {
    %c0_i32 = arith.constant 0 : i32
    %c0_i32_0 = arith.constant 0 : i32
    return %arg0, %c0_i32 : i32, i32
  }
  func.func @transform_1(%arg0: i32) -> (i32, i32) {
    %c0_i32 = arith.constant 0 : i32
    %c0_i32_0 = arith.constant 0 : i32
    %c0_i32_1 = arith.constant 0 : i32
    return %c0_i32, %c0_i32_0 : i32, i32
  }
  func.func @transform_2(%arg0: i32) -> (i32, i32) {
    %c0_i32 = arith.constant 0 : i32
    %c0_i32_0 = arith.constant 0 : i32
    %c0_i32_1 = arith.constant 0 : i32
    return %c0_i32, %c0_i32_0 : i32, i32
  }
  func.func @transform_3(%arg0: i32) -> (i32, i32) {
    %c0_i32 = arith.constant 0 : i32
    %c0_i32_0 = arith.constant 0 : i32
    %c0_i32_1 = arith.constant 0 : i32
    return %c0_i32, %c0_i32_0 : i32, i32
  }
  func.func @transform_4(%arg0: i32) -> (i32, i32) {
    %c0_i32 = arith.constant 0 : i32
    %c0_i32_0 = arith.constant 0 : i32
    return %arg0, %c0_i32 : i32, i32
  }
  func.func @transform_5(%arg0: i32) -> (i32, i32) {
    %c0_i32 = arith.constant 0 : i32
    %c0_i32_0 = arith.constant 0 : i32
    return %arg0, %c0_i32 : i32, i32
  }
}

module attributes {stable_mosaic.version = 11 : i64} {
  func.func @_fused_matmul_kernel(%arg0: i32, %arg1: memref<512x144xbf16, #tpu.memory_space<vmem>>, %arg2: memref<144x32xbf16, #tpu.memory_space<vmem>>, %arg3: memref<1x32xf32, #tpu.memory_space<vmem>>, %arg4: memref<1x32xf32, #tpu.memory_space<vmem>>, %arg5: memref<512x32xbf16, #tpu.memory_space<vmem>>) attributes {dimension_semantics = [#tpu.dimension_semantics<parallel>], iteration_bounds = array<i64: 4>, scalar_prefetch = 0 : i64, scratch_operands = 0 : i64, tpu.core_type = #tpu.core_type<tc>, window_params = [{transform_indices = @transform_0, window_bounds = array<i64: 512, 144>}, {pipeline_mode = #tpu.pipeline_mode<synchronous>, transform_indices = @transform_1, window_bounds = array<i64: 144, 32>}, {pipeline_mode = #tpu.pipeline_mode<synchronous>, transform_indices = @transform_2, window_bounds = array<i64: 1, 32>}, {pipeline_mode = #tpu.pipeline_mode<synchronous>, transform_indices = @transform_3, window_bounds = array<i64: 1, 32>}, {transform_indices = @transform_4, window_bounds = array<i64: 512, 32>}]} {
    %c0 = arith.constant 0 : index
    %c0_0 = arith.constant 0 : index
    %0 = vector.load %arg1[%c0, %c0_0] : memref<512x144xbf16, #tpu.memory_space<vmem>>, vector<512x144xbf16>
    %c0_1 = arith.constant 0 : index
    %c0_2 = arith.constant 0 : index
    %1 = vector.load %arg2[%c0_1, %c0_2] : memref<144x32xbf16, #tpu.memory_space<vmem>>, vector<144x32xbf16>
    %cst = arith.constant dense<0.000000e+00> : vector<512x32xf32>
    %2 = tpu.matmul %0, %1, %cst {dimension_numbers = #tpu.dot_dimension_numbers<[1], [0], [0], [1], [0, 0, 1, 1], [], []>} : vector<512x144xbf16>, vector<144x32xbf16>, vector<512x32xf32> -> vector<512x32xf32>
    %c0_3 = arith.constant 0 : index
    %c0_4 = arith.constant 0 : index
    %3 = vector.load %arg3[%c0_3, %c0_4] : memref<1x32xf32, #tpu.memory_space<vmem>>, vector<1x32xf32>
    %4 = vector.broadcast %3 : vector<1x32xf32> to vector<512x32xf32>
    %5 = arith.mulf %2, %4 : vector<512x32xf32>
    %c0_5 = arith.constant 0 : index
    %c0_6 = arith.constant 0 : index
    %6 = vector.load %arg4[%c0_5, %c0_6] : memref<1x32xf32, #tpu.memory_space<vmem>>, vector<1x32xf32>
    %7 = vector.broadcast %6 : vector<1x32xf32> to vector<512x32xf32>
    %8 = arith.addf %5, %7 : vector<512x32xf32>
    %cst_7 = arith.constant 0.000000e+00 : f32
    %9 = vector.broadcast %cst_7 : f32 to vector<512x32xf32>
    %10 = arith.maximumf %8, %9 : vector<512x32xf32>
    %11 = arith.truncf %10 : vector<512x32xf32> to vector<512x32xbf16>
    %c0_8 = arith.constant 0 : index
    %c0_9 = arith.constant 0 : index
    %12 = vector.load %arg5[%c0_8, %c0_9] : memref<512x32xbf16, #tpu.memory_space<vmem>>, vector<512x32xbf16>
    tpu.vector_store %arg5[%c0_8, %c0_9], %11 {strides = array<i32>} : memref<512x32xbf16, #tpu.memory_space<vmem>>, vector<512x32xbf16>,
    return
  }
  func.func @transform_0(%arg0: i32) -> (i32, i32) {
    %c0_i32 = arith.constant 0 : i32
    %c0_i32_0 = arith.constant 0 : i32
    return %arg0, %c0_i32 : i32, i32
  }
  func.func @transform_1(%arg0: i32) -> (i32, i32) {
    %c0_i32 = arith.constant 0 : i32
    %c0_i32_0 = arith.constant 0 : i32
    %c0_i32_1 = arith.constant 0 : i32
    return %c0_i32, %c0_i32_0 : i32, i32
  }
  func.func @transform_2(%arg0: i32) -> (i32, i32) {
    %c0_i32 = arith.constant 0 : i32
    %c0_i32_0 = arith.constant 0 : i32
    %c0_i32_1 = arith.constant 0 : i32
    return %c0_i32, %c0_i32_0 : i32, i32
  }
  func.func @transform_3(%arg0: i32) -> (i32, i32) {
    %c0_i32 = arith.constant 0 : i32
    %c0_i32_0 = arith.constant 0 : i32
    %c0_i32_1 = arith.constant 0 : i32
    return %c0_i32, %c0_i32_0 : i32, i32
  }
  func.func @transform_4(%arg0: i32) -> (i32, i32) {
    %c0_i32 = arith.constant 0 : i32
    %c0_i32_0 = arith.constant 0 : i32
    return %arg0, %c0_i32 : i32, i32
  }
}

module attributes {stable_mosaic.version = 11 : i64} {
  func.func @_fused_matmul_kernel(%arg0: i32, %arg1: memref<256x16xbf16, #tpu.memory_space<vmem>>, %arg2: memref<16x32xbf16, #tpu.memory_space<vmem>>, %arg3: memref<256x32xbf16, #tpu.memory_space<vmem>>) attributes {dimension_semantics = [#tpu.dimension_semantics<parallel>], iteration_bounds = array<i64: 2>, scalar_prefetch = 0 : i64, scratch_operands = 0 : i64, tpu.core_type = #tpu.core_type<tc>, window_params = [{transform_indices = @transform_0, window_bounds = array<i64: 256, 16>}, {pipeline_mode = #tpu.pipeline_mode<synchronous>, transform_indices = @transform_1, window_bounds = array<i64: 16, 32>}, {transform_indices = @transform_2, window_bounds = array<i64: 256, 32>}]} {
    %c0 = arith.constant 0 : index
    %c0_0 = arith.constant 0 : index
    %0 = vector.load %arg1[%c0, %c0_0] : memref<256x16xbf16, #tpu.memory_space<vmem>>, vector<256x16xbf16>
    %c0_1 = arith.constant 0 : index
    %c0_2 = arith.constant 0 : index
    %1 = vector.load %arg2[%c0_1, %c0_2] : memref<16x32xbf16, #tpu.memory_space<vmem>>, vector<16x32xbf16>
    %cst = arith.constant dense<0.000000e+00> : vector<256x32xf32>
    %2 = tpu.matmul %0, %1, %cst {dimension_numbers = #tpu.dot_dimension_numbers<[1], [0], [0], [1], [0, 0, 1, 1], [], []>} : vector<256x16xbf16>, vector<16x32xbf16>, vector<256x32xf32> -> vector<256x32xf32>
    %3 = arith.truncf %2 : vector<256x32xf32> to vector<256x32xbf16>
    %c0_3 = arith.constant 0 : index
    %c0_4 = arith.constant 0 : index
    %4 = vector.load %arg3[%c0_3, %c0_4] : memref<256x32xbf16, #tpu.memory_space<vmem>>, vector<256x32xbf16>
    tpu.vector_store %arg3[%c0_3, %c0_4], %3 {strides = array<i32>} : memref<256x32xbf16, #tpu.memory_space<vmem>>, vector<256x32xbf16>,
    return
  }
  func.func @transform_0(%arg0: i32) -> (i32, i32) {
    %c0_i32 = arith.constant 0 : i32
    %c0_i32_0 = arith.constant 0 : i32
    return %arg0, %c0_i32 : i32, i32
  }
  func.func @transform_1(%arg0: i32) -> (i32, i32) {
    %c0_i32 = arith.constant 0 : i32
    %c0_i32_0 = arith.constant 0 : i32
    %c0_i32_1 = arith.constant 0 : i32
    return %c0_i32, %c0_i32_0 : i32, i32
  }
  func.func @transform_2(%arg0: i32) -> (i32, i32) {
    %c0_i32 = arith.constant 0 : i32
    %c0_i32_0 = arith.constant 0 : i32
    return %arg0, %c0_i32 : i32, i32
  }
}

module attributes {stable_mosaic.version = 11 : i64} {
  func.func @_fused_matmul_kernel(%arg0: i32, %arg1: memref<256x288xbf16, #tpu.memory_space<vmem>>, %arg2: memref<288x32xbf16, #tpu.memory_space<vmem>>, %arg3: memref<1x32xf32, #tpu.memory_space<vmem>>, %arg4: memref<1x32xf32, #tpu.memory_space<vmem>>, %arg5: memref<256x32xbf16, #tpu.memory_space<vmem>>, %arg6: memref<256x32xbf16, #tpu.memory_space<vmem>>) attributes {dimension_semantics = [#tpu.dimension_semantics<parallel>], iteration_bounds = array<i64: 2>, scalar_prefetch = 0 : i64, scratch_operands = 0 : i64, tpu.core_type = #tpu.core_type<tc>, window_params = [{transform_indices = @transform_0, window_bounds = array<i64: 256, 288>}, {pipeline_mode = #tpu.pipeline_mode<synchronous>, transform_indices = @transform_1, window_bounds = array<i64: 288, 32>}, {pipeline_mode = #tpu.pipeline_mode<synchronous>, transform_indices = @transform_2, window_bounds = array<i64: 1, 32>}, {pipeline_mode = #tpu.pipeline_mode<synchronous>, transform_indices = @transform_3, window_bounds = array<i64: 1, 32>}, {transform_indices = @transform_4, window_bounds = array<i64: 256, 32>}, {transform_indices = @transform_5, window_bounds = array<i64: 256, 32>}]} {
    %c0 = arith.constant 0 : index
    %c0_0 = arith.constant 0 : index
    %0 = vector.load %arg1[%c0, %c0_0] : memref<256x288xbf16, #tpu.memory_space<vmem>>, vector<256x288xbf16>
    %c0_1 = arith.constant 0 : index
    %c0_2 = arith.constant 0 : index
    %1 = vector.load %arg2[%c0_1, %c0_2] : memref<288x32xbf16, #tpu.memory_space<vmem>>, vector<288x32xbf16>
    %cst = arith.constant dense<0.000000e+00> : vector<256x32xf32>
    %2 = tpu.matmul %0, %1, %cst {dimension_numbers = #tpu.dot_dimension_numbers<[1], [0], [0], [1], [0, 0, 1, 1], [], []>} : vector<256x288xbf16>, vector<288x32xbf16>, vector<256x32xf32> -> vector<256x32xf32>
    %c0_3 = arith.constant 0 : index
    %c0_4 = arith.constant 0 : index
    %3 = vector.load %arg5[%c0_3, %c0_4] : memref<256x32xbf16, #tpu.memory_space<vmem>>, vector<256x32xbf16>
    %4 = arith.extf %3 : vector<256x32xbf16> to vector<256x32xf32>
    %5 = arith.addf %2, %4 : vector<256x32xf32>
    %c0_5 = arith.constant 0 : index
    %c0_6 = arith.constant 0 : index
    %6 = vector.load %arg3[%c0_5, %c0_6] : memref<1x32xf32, #tpu.memory_space<vmem>>, vector<1x32xf32>
    %7 = vector.broadcast %6 : vector<1x32xf32> to vector<256x32xf32>
    %8 = arith.mulf %5, %7 : vector<256x32xf32>
    %c0_7 = arith.constant 0 : index
    %c0_8 = arith.constant 0 : index
    %9 = vector.load %arg4[%c0_7, %c0_8] : memref<1x32xf32, #tpu.memory_space<vmem>>, vector<1x32xf32>
    %10 = vector.broadcast %9 : vector<1x32xf32> to vector<256x32xf32>
    %11 = arith.addf %8, %10 : vector<256x32xf32>
    %cst_9 = arith.constant 0.000000e+00 : f32
    %12 = vector.broadcast %cst_9 : f32 to vector<256x32xf32>
    %13 = arith.maximumf %11, %12 : vector<256x32xf32>
    %14 = arith.truncf %13 : vector<256x32xf32> to vector<256x32xbf16>
    %c0_10 = arith.constant 0 : index
    %c0_11 = arith.constant 0 : index
    %15 = vector.load %arg6[%c0_10, %c0_11] : memref<256x32xbf16, #tpu.memory_space<vmem>>, vector<256x32xbf16>
    tpu.vector_store %arg6[%c0_10, %c0_11], %14 {strides = array<i32>} : memref<256x32xbf16, #tpu.memory_space<vmem>>, vector<256x32xbf16>,
    return
  }
  func.func @transform_0(%arg0: i32) -> (i32, i32) {
    %c0_i32 = arith.constant 0 : i32
    %c0_i32_0 = arith.constant 0 : i32
    return %arg0, %c0_i32 : i32, i32
  }
  func.func @transform_1(%arg0: i32) -> (i32, i32) {
    %c0_i32 = arith.constant 0 : i32
    %c0_i32_0 = arith.constant 0 : i32
    %c0_i32_1 = arith.constant 0 : i32
    return %c0_i32, %c0_i32_0 : i32, i32
  }
  func.func @transform_2(%arg0: i32) -> (i32, i32) {
    %c0_i32 = arith.constant 0 : i32
    %c0_i32_0 = arith.constant 0 : i32
    %c0_i32_1 = arith.constant 0 : i32
    return %c0_i32, %c0_i32_0 : i32, i32
  }
  func.func @transform_3(%arg0: i32) -> (i32, i32) {
    %c0_i32 = arith.constant 0 : i32
    %c0_i32_0 = arith.constant 0 : i32
    %c0_i32_1 = arith.constant 0 : i32
    return %c0_i32, %c0_i32_0 : i32, i32
  }
  func.func @transform_4(%arg0: i32) -> (i32, i32) {
    %c0_i32 = arith.constant 0 : i32
    %c0_i32_0 = arith.constant 0 : i32
    return %arg0, %c0_i32 : i32, i32
  }
  func.func @transform_5(%arg0: i32) -> (i32, i32) {
    %c0_i32 = arith.constant 0 : i32
    %c0_i32_0 = arith.constant 0 : i32
    return %arg0, %c0_i32 : i32, i32
  }
}

module attributes {stable_mosaic.version = 11 : i64} {
  func.func @_fused_matmul_kernel(%arg0: i32, %arg1: memref<256x288xbf16, #tpu.memory_space<vmem>>, %arg2: memref<288x64xbf16, #tpu.memory_space<vmem>>, %arg3: memref<1x64xf32, #tpu.memory_space<vmem>>, %arg4: memref<1x64xf32, #tpu.memory_space<vmem>>, %arg5: memref<256x64xbf16, #tpu.memory_space<vmem>>) attributes {dimension_semantics = [#tpu.dimension_semantics<parallel>], iteration_bounds = array<i64: 2>, scalar_prefetch = 0 : i64, scratch_operands = 0 : i64, tpu.core_type = #tpu.core_type<tc>, window_params = [{transform_indices = @transform_0, window_bounds = array<i64: 256, 288>}, {pipeline_mode = #tpu.pipeline_mode<synchronous>, transform_indices = @transform_1, window_bounds = array<i64: 288, 64>}, {pipeline_mode = #tpu.pipeline_mode<synchronous>, transform_indices = @transform_2, window_bounds = array<i64: 1, 64>}, {pipeline_mode = #tpu.pipeline_mode<synchronous>, transform_indices = @transform_3, window_bounds = array<i64: 1, 64>}, {transform_indices = @transform_4, window_bounds = array<i64: 256, 64>}]} {
    %c0 = arith.constant 0 : index
    %c0_0 = arith.constant 0 : index
    %0 = vector.load %arg1[%c0, %c0_0] : memref<256x288xbf16, #tpu.memory_space<vmem>>, vector<256x288xbf16>
    %c0_1 = arith.constant 0 : index
    %c0_2 = arith.constant 0 : index
    %1 = vector.load %arg2[%c0_1, %c0_2] : memref<288x64xbf16, #tpu.memory_space<vmem>>, vector<288x64xbf16>
    %cst = arith.constant dense<0.000000e+00> : vector<256x64xf32>
    %2 = tpu.matmul %0, %1, %cst {dimension_numbers = #tpu.dot_dimension_numbers<[1], [0], [0], [1], [0, 0, 1, 1], [], []>} : vector<256x288xbf16>, vector<288x64xbf16>, vector<256x64xf32> -> vector<256x64xf32>
    %c0_3 = arith.constant 0 : index
    %c0_4 = arith.constant 0 : index
    %3 = vector.load %arg3[%c0_3, %c0_4] : memref<1x64xf32, #tpu.memory_space<vmem>>, vector<1x64xf32>
    %4 = vector.broadcast %3 : vector<1x64xf32> to vector<256x64xf32>
    %5 = arith.mulf %2, %4 : vector<256x64xf32>
    %c0_5 = arith.constant 0 : index
    %c0_6 = arith.constant 0 : index
    %6 = vector.load %arg4[%c0_5, %c0_6] : memref<1x64xf32, #tpu.memory_space<vmem>>, vector<1x64xf32>
    %7 = vector.broadcast %6 : vector<1x64xf32> to vector<256x64xf32>
    %8 = arith.addf %5, %7 : vector<256x64xf32>
    %cst_7 = arith.constant 0.000000e+00 : f32
    %9 = vector.broadcast %cst_7 : f32 to vector<256x64xf32>
    %10 = arith.maximumf %8, %9 : vector<256x64xf32>
    %11 = arith.truncf %10 : vector<256x64xf32> to vector<256x64xbf16>
    %c0_8 = arith.constant 0 : index
    %c0_9 = arith.constant 0 : index
    %12 = vector.load %arg5[%c0_8, %c0_9] : memref<256x64xbf16, #tpu.memory_space<vmem>>, vector<256x64xbf16>
    tpu.vector_store %arg5[%c0_8, %c0_9], %11 {strides = array<i32>} : memref<256x64xbf16, #tpu.memory_space<vmem>>, vector<256x64xbf16>,
    return
  }
  func.func @transform_0(%arg0: i32) -> (i32, i32) {
    %c0_i32 = arith.constant 0 : i32
    %c0_i32_0 = arith.constant 0 : i32
    return %arg0, %c0_i32 : i32, i32
  }
  func.func @transform_1(%arg0: i32) -> (i32, i32) {
    %c0_i32 = arith.constant 0 : i32
    %c0_i32_0 = arith.constant 0 : i32
    %c0_i32_1 = arith.constant 0 : i32
    return %c0_i32, %c0_i32_0 : i32, i32
  }
  func.func @transform_2(%arg0: i32) -> (i32, i32) {
    %c0_i32 = arith.constant 0 : i32
    %c0_i32_0 = arith.constant 0 : i32
    %c0_i32_1 = arith.constant 0 : i32
    return %c0_i32, %c0_i32_0 : i32, i32
  }
  func.func @transform_3(%arg0: i32) -> (i32, i32) {
    %c0_i32 = arith.constant 0 : i32
    %c0_i32_0 = arith.constant 0 : i32
    %c0_i32_1 = arith.constant 0 : i32
    return %c0_i32, %c0_i32_0 : i32, i32
  }
  func.func @transform_4(%arg0: i32) -> (i32, i32) {
    %c0_i32 = arith.constant 0 : i32
    %c0_i32_0 = arith.constant 0 : i32
    return %arg0, %c0_i32 : i32, i32
  }
}

module attributes {stable_mosaic.version = 11 : i64} {
  func.func @_fused_matmul_kernel(%arg0: i32, %arg1: memref<64x32xbf16, #tpu.memory_space<vmem>>, %arg2: memref<32x64xbf16, #tpu.memory_space<vmem>>, %arg3: memref<64x64xbf16, #tpu.memory_space<vmem>>) attributes {dimension_semantics = [#tpu.dimension_semantics<parallel>], iteration_bounds = array<i64: 2>, scalar_prefetch = 0 : i64, scratch_operands = 0 : i64, tpu.core_type = #tpu.core_type<tc>, window_params = [{transform_indices = @transform_0, window_bounds = array<i64: 64, 32>}, {pipeline_mode = #tpu.pipeline_mode<synchronous>, transform_indices = @transform_1, window_bounds = array<i64: 32, 64>}, {transform_indices = @transform_2, window_bounds = array<i64: 64, 64>}]} {
    %c0 = arith.constant 0 : index
    %c0_0 = arith.constant 0 : index
    %0 = vector.load %arg1[%c0, %c0_0] : memref<64x32xbf16, #tpu.memory_space<vmem>>, vector<64x32xbf16>
    %c0_1 = arith.constant 0 : index
    %c0_2 = arith.constant 0 : index
    %1 = vector.load %arg2[%c0_1, %c0_2] : memref<32x64xbf16, #tpu.memory_space<vmem>>, vector<32x64xbf16>
    %cst = arith.constant dense<0.000000e+00> : vector<64x64xf32>
    %2 = tpu.matmul %0, %1, %cst {dimension_numbers = #tpu.dot_dimension_numbers<[1], [0], [0], [1], [0, 0, 1, 1], [], []>} : vector<64x32xbf16>, vector<32x64xbf16>, vector<64x64xf32> -> vector<64x64xf32>
    %3 = arith.truncf %2 : vector<64x64xf32> to vector<64x64xbf16>
    %c0_3 = arith.constant 0 : index
    %c0_4 = arith.constant 0 : index
    %4 = vector.load %arg3[%c0_3, %c0_4] : memref<64x64xbf16, #tpu.memory_space<vmem>>, vector<64x64xbf16>
    tpu.vector_store %arg3[%c0_3, %c0_4], %3 {strides = array<i32>} : memref<64x64xbf16, #tpu.memory_space<vmem>>, vector<64x64xbf16>,
    return
  }
  func.func @transform_0(%arg0: i32) -> (i32, i32) {
    %c0_i32 = arith.constant 0 : i32
    %c0_i32_0 = arith.constant 0 : i32
    return %arg0, %c0_i32 : i32, i32
  }
  func.func @transform_1(%arg0: i32) -> (i32, i32) {
    %c0_i32 = arith.constant 0 : i32
    %c0_i32_0 = arith.constant 0 : i32
    %c0_i32_1 = arith.constant 0 : i32
    return %c0_i32, %c0_i32_0 : i32, i32
  }
  func.func @transform_2(%arg0: i32) -> (i32, i32) {
    %c0_i32 = arith.constant 0 : i32
    %c0_i32_0 = arith.constant 0 : i32
    return %arg0, %c0_i32 : i32, i32
  }
}

module attributes {stable_mosaic.version = 11 : i64} {
  func.func @_fused_matmul_kernel(%arg0: i32, %arg1: memref<64x576xbf16, #tpu.memory_space<vmem>>, %arg2: memref<576x64xbf16, #tpu.memory_space<vmem>>, %arg3: memref<1x64xf32, #tpu.memory_space<vmem>>, %arg4: memref<1x64xf32, #tpu.memory_space<vmem>>, %arg5: memref<64x64xbf16, #tpu.memory_space<vmem>>, %arg6: memref<64x64xbf16, #tpu.memory_space<vmem>>) attributes {dimension_semantics = [#tpu.dimension_semantics<parallel>], iteration_bounds = array<i64: 2>, scalar_prefetch = 0 : i64, scratch_operands = 0 : i64, tpu.core_type = #tpu.core_type<tc>, window_params = [{transform_indices = @transform_0, window_bounds = array<i64: 64, 576>}, {pipeline_mode = #tpu.pipeline_mode<synchronous>, transform_indices = @transform_1, window_bounds = array<i64: 576, 64>}, {pipeline_mode = #tpu.pipeline_mode<synchronous>, transform_indices = @transform_2, window_bounds = array<i64: 1, 64>}, {pipeline_mode = #tpu.pipeline_mode<synchronous>, transform_indices = @transform_3, window_bounds = array<i64: 1, 64>}, {transform_indices = @transform_4, window_bounds = array<i64: 64, 64>}, {transform_indices = @transform_5, window_bounds = array<i64: 64, 64>}]} {
    %c0 = arith.constant 0 : index
    %c0_0 = arith.constant 0 : index
    %0 = vector.load %arg1[%c0, %c0_0] : memref<64x576xbf16, #tpu.memory_space<vmem>>, vector<64x576xbf16>
    %c0_1 = arith.constant 0 : index
    %c0_2 = arith.constant 0 : index
    %1 = vector.load %arg2[%c0_1, %c0_2] : memref<576x64xbf16, #tpu.memory_space<vmem>>, vector<576x64xbf16>
    %cst = arith.constant dense<0.000000e+00> : vector<64x64xf32>
    %2 = tpu.matmul %0, %1, %cst {dimension_numbers = #tpu.dot_dimension_numbers<[1], [0], [0], [1], [0, 0, 1, 1], [], []>} : vector<64x576xbf16>, vector<576x64xbf16>, vector<64x64xf32> -> vector<64x64xf32>
    %c0_3 = arith.constant 0 : index
    %c0_4 = arith.constant 0 : index
    %3 = vector.load %arg5[%c0_3, %c0_4] : memref<64x64xbf16, #tpu.memory_space<vmem>>, vector<64x64xbf16>
    %4 = arith.extf %3 : vector<64x64xbf16> to vector<64x64xf32>
    %5 = arith.addf %2, %4 : vector<64x64xf32>
    %c0_5 = arith.constant 0 : index
    %c0_6 = arith.constant 0 : index
    %6 = vector.load %arg3[%c0_5, %c0_6] : memref<1x64xf32, #tpu.memory_space<vmem>>, vector<1x64xf32>
    %7 = vector.broadcast %6 : vector<1x64xf32> to vector<64x64xf32>
    %8 = arith.mulf %5, %7 : vector<64x64xf32>
    %c0_7 = arith.constant 0 : index
    %c0_8 = arith.constant 0 : index
    %9 = vector.load %arg4[%c0_7, %c0_8] : memref<1x64xf32, #tpu.memory_space<vmem>>, vector<1x64xf32>
    %10 = vector.broadcast %9 : vector<1x64xf32> to vector<64x64xf32>
    %11 = arith.addf %8, %10 : vector<64x64xf32>
    %cst_9 = arith.constant 0.000000e+00 : f32
    %12 = vector.broadcast %cst_9 : f32 to vector<64x64xf32>
    %13 = arith.maximumf %11, %12 : vector<64x64xf32>
    %14 = arith.truncf %13 : vector<64x64xf32> to vector<64x64xbf16>
    %c0_10 = arith.constant 0 : index
    %c0_11 = arith.constant 0 : index
    %15 = vector.load %arg6[%c0_10, %c0_11] : memref<64x64xbf16, #tpu.memory_space<vmem>>, vector<64x64xbf16>
    tpu.vector_store %arg6[%c0_10, %c0_11], %14 {strides = array<i32>} : memref<64x64xbf16, #tpu.memory_space<vmem>>, vector<64x64xbf16>,
    return
  }
  func.func @transform_0(%arg0: i32) -> (i32, i32) {
    %c0_i32 = arith.constant 0 : i32
    %c0_i32_0 = arith.constant 0 : i32
    return %arg0, %c0_i32 : i32, i32
  }
  func.func @transform_1(%arg0: i32) -> (i32, i32) {
    %c0_i32 = arith.constant 0 : i32
    %c0_i32_0 = arith.constant 0 : i32
    %c0_i32_1 = arith.constant 0 : i32
    return %c0_i32, %c0_i32_0 : i32, i32
  }
  func.func @transform_2(%arg0: i32) -> (i32, i32) {
    %c0_i32 = arith.constant 0 : i32
    %c0_i32_0 = arith.constant 0 : i32
    %c0_i32_1 = arith.constant 0 : i32
    return %c0_i32, %c0_i32_0 : i32, i32
  }
  func.func @transform_3(%arg0: i32) -> (i32, i32) {
    %c0_i32 = arith.constant 0 : i32
    %c0_i32_0 = arith.constant 0 : i32
    %c0_i32_1 = arith.constant 0 : i32
    return %c0_i32, %c0_i32_0 : i32, i32
  }
  func.func @transform_4(%arg0: i32) -> (i32, i32) {
    %c0_i32 = arith.constant 0 : i32
    %c0_i32_0 = arith.constant 0 : i32
    return %arg0, %c0_i32 : i32, i32
  }
  func.func @transform_5(%arg0: i32) -> (i32, i32) {
    %c0_i32 = arith.constant 0 : i32
    %c0_i32_0 = arith.constant 0 : i32
    return %arg0, %c0_i32 : i32, i32
  }
}

</mosaic_0001>

<llo_original>
// kernel: l0_wide_resnet_forward.11
$region0: #{l0_wide_resnet_forward.11}
  #allocation0 [shape = 'u32[]', space=smem, size = 0x4, offset = 0x4, fixed_abs, tag = 'smem constant byte address 0x4 - core index']
  #allocation1 [shape = 'u32[144,128]{1,0:T(1,128)}', space=vmem, size = 0x12000, scoped, tag = 'internal scratch']
  %s0 = inlined_call_operand.vmem [shape: bf16[2048,16], index: 0, kind: input, shape index: {}]
  %s1 = inlined_call_operand.vmem [shape: f32[1,16], index: 1, kind: input, shape index: {}]
  %s2 = inlined_call_operand.vmem [shape: f32[1,16], index: 2, kind: input, shape index: {}]
  %s3 = inlined_call_operand.vmem [shape: bf16[2048,16], index: 3, kind: output, shape index: {}]
  %s4 = sld [smem:[#allocation0]]
  $region45: #{l0_wide_resnet_forward.11} parent=0
    _
  %s6 = ssub.s32 1, %s4
  %s7 = scalar_select 0, %s6, %s4
  loop: start=0, step=1, limit=6
  $region2: #{l0_wide_resnet_forward.11} parent=0 // loop_pre_header
    _
  $region3: #{l0_wide_resnet_forward.11} parent=0 // loop_header
    %s9 = sphi 0, %s13
    %p10 = scmp.ge.s32.totalorder %s9, 6
    %s19 = sphi 0, %s21
    %s22 = sphi 0, %s19
    %s23 = sphi 0, %s22
    %s39 = sphi 0, %s23
    %s43 = sphi 0, %s43
    %s45 = sphi 0, %s43
    %s46 = sphi 0, %s45
    %s60 = sphi 0, %s46
    %s64 = sphi 0, %s64
    %s66 = sphi 0, %s64
    %s67 = sphi 0, %s66
    %s81 = sphi 0, %s67
    %s87 = sphi 0, %s89
    %s90 = sphi 0, %s87
    %s91 = sphi 0, %s90
    %s107 = sphi 0, %s91
  $region4: #{l0_wide_resnet_forward.11} parent=0 // loop_header_branch
    %12 = sbr.rel (%p10) target = $region8
  $region5: #{l0_wide_resnet_forward.11} parent=0 // loop_body
    %s14 = ssub.s32 %s9, 1
    %s15 = ssub.s32 %s9, 2
    %s16 = sadd.s32 %s9, 1
    %s17 = ssub.s32 %s9, %s16
    %p18 = scmp.eq.s32.totalorder %s17, 0
    %s20 = sadd.s32 %s19, 1
    %s21 = scalar_select %p18, %s19, %s20
    %p24 = pneg %p18
    %p25 = scmp.eq.s32.totalorder %s9, 3
    %p26 = por %p24, %p25
    %p27 = scmp.ne.s32.totalorder %s19, %s22
    %p28 = scmp.eq.s32.totalorder %s9, 0
    %p29 = por %p27, %p28
    %p30 = scmp.ne.s32.totalorder %s19, %s22
    %p31 = scmp.eq.s32.totalorder %s14, 3
    %p32 = por %p30, %p31
    %p33 = scmp.ne.s32.totalorder %s22, %s23
    %p34 = scmp.eq.s32.totalorder %s14, 0
    %p35 = por %p33, %p34
    %p36 = scmp.ne.s32.totalorder %s22, %s23
    %p37 = scmp.eq.s32.totalorder %s15, 3
    %p38 = por %p36, %p37
    %p40 = scmp.ne.s32.totalorder %s23, %s39
    %p41 = scmp.eq.s32.totalorder %s15, 0
    %p42 = por %p40, %p41
    %s44 = sadd.s32 %s43, 1
    %p47 = scmp.eq.s32.totalorder %s9, 3
    %p48 = scmp.ne.s32.totalorder %s43, %s45
    %p49 = scmp.eq.s32.totalorder %s9, 0
    %p50 = por %p48, %p49
    %p51 = scmp.ne.s32.totalorder %s43, %s45
    %p52 = scmp.eq.s32.totalorder %s14, 3
    %p53 = por %p51, %p52
    %p54 = scmp.ne.s32.totalorder %s45, %s46
    %p55 = scmp.eq.s32.totalorder %s14, 0
    %p56 = por %p54, %p55
    %p57 = scmp.ne.s32.totalorder %s45, %s46
    %p58 = scmp.eq.s32.totalorder %s15, 3
    %p59 = por %p57, %p58
    %p61 = scmp.ne.s32.totalorder %s46, %s60
    %p62 = scmp.eq.s32.totalorder %s15, 0
    %p63 = por %p61, %p62
    %s65 = sadd.s32 %s64, 1
    %p68 = scmp.eq.s32.totalorder %s9, 3
    %p69 = scmp.ne.s32.totalorder %s64, %s66
    %p70 = scmp.eq.s32.totalorder %s9, 0
    %p71 = por %p69, %p70
    %p72 = scmp.ne.s32.totalorder %s64, %s66
    %p73 = scmp.eq.s32.totalorder %s14, 3
    %p74 = por %p72, %p73
    %p75 = scmp.ne.s32.totalorder %s66, %s67
    %p76 = scmp.eq.s32.totalorder %s14, 0
    %p77 = por %p75, %p76
    %p78 = scmp.ne.s32.totalorder %s66, %s67
    %p79 = scmp.eq.s32.totalorder %s15, 3
    %p80 = por %p78, %p79
    %p82 = scmp.ne.s32.totalorder %s67, %s81
    %p83 = scmp.eq.s32.totalorder %s15, 0
    %p84 = por %p82, %p83
    %s85 = ssub.s32 %s9, %s16
    %p86 = scmp.eq.s32.totalorder %s85, 0
    %s88 = sadd.s32 %s87, 1
    %s89 = scalar_select %p86, %s87, %s88
    %p92 = pneg %p86
    %p93 = scmp.eq.s32.totalorder %s9, 3
    %p94 = por %p92, %p93
    %p95 = scmp.ne.s32.totalorder %s87, %s90
    %p96 = scmp.eq.s32.totalorder %s9, 0
    %p97 = por %p95, %p96
    %p98 = scmp.ne.s32.totalorder %s87, %s90
    %p99 = scmp.eq.s32.totalorder %s14, 3
    %p100 = por %p98, %p99
    %p101 = scmp.ne.s32.totalorder %s90, %s91
    %p102 = scmp.eq.s32.totalorder %s14, 0
    %p103 = por %p101, %p102
    %p104 = scmp.ne.s32.totalorder %s90, %s91
    %p105 = scmp.eq.s32.totalorder %s15, 3
    %p106 = por %p104, %p105
    %p108 = scmp.ne.s32.totalorder %s91, %s107
    %p109 = scmp.eq.s32.totalorder %s15, 0
    %p110 = por %p108, %p109
    %p111 = scmp.le.s32.totalorder 1, %s9
    %p112 = scmp.lt.s32.totalorder %s9, 5
    %p113 = pnand %p111, %p112
    %p114 = pneg %p113
    // Predicated region
    $region9: #{l0_wide_resnet_forward.11} parent=5 // pred_check
      _
    $region10: #{l0_wide_resnet_forward.11} parent=5 // pred_check_branch
      %116 = sbr.rel (%p113) target = $region12
    $region11: #{l0_wide_resnet_forward.11} parent=5 // pred_region
      %s117 = ssub.s32 %s9, 1
      // Predicated region
      $region13: #{l0_wide_resnet_forward.11} parent=11 // pred_check
        %p118 = pneg %p56
      $region14: #{l0_wide_resnet_forward.11} parent=11 // pred_check_branch
        %120 = sbr.rel (%p118) target = $region16
      $region15: #{l0_wide_resnet_forward.11} parent=11 // pred_region
        _
      $region16: #{l0_wide_resnet_forward.11} parent=11 // pred_fallthru
        _
      // Predicated region
      $region17: #{l0_wide_resnet_forward.11} parent=11 // pred_check
        %p121 = pneg %p77
      $region18: #{l0_wide_resnet_forward.11} parent=11 // pred_check_branch
        %123 = sbr.rel (%p121) target = $region20
      $region19: #{l0_wide_resnet_forward.11} parent=11 // pred_region
        _
      $region20: #{l0_wide_resnet_forward.11} parent=11 // pred_fallthru
        _
    $region12: #{l0_wide_resnet_forward.11} parent=5 // pred_fallthru
      _
    %p124 = scmp.lt.s32.totalorder %s9, 4
    // Predicated region
    $region21: #{l0_wide_resnet_forward.11} parent=5 // pred_check
      %p125 = pneg %p124
    $region22: #{l0_wide_resnet_forward.11} parent=5 // pred_check_branch
      %127 = sbr.rel (%p125) target = $region24
    $region23: #{l0_wide_resnet_forward.11} parent=5 // pred_region
      // Predicated region
      $region25: #{l0_wide_resnet_forward.11} parent=23 // pred_check
        %p128 = pneg %p29
      $region26: #{l0_wide_resnet_forward.11} parent=23 // pred_check_branch
        %130 = sbr.rel (%p128) target = $region28
      $region27: #{l0_wide_resnet_forward.11} parent=23 // pred_region
        %s131 = smul.u32 64, %s9
        %p132 = scmp.lt.s32.totalorder %s131, 255
        %s133 = scalar_select %p132, %s131, 255
        %s134 = smul.addr %s133, 4
        %s135 = scalar_lea.vmem %s0, %s134
        %s136 = smul.u32 64, %s9
      $region28: #{l0_wide_resnet_forward.11} parent=23 // pred_fallthru
        _
    $region24: #{l0_wide_resnet_forward.11} parent=5 // pred_fallthru
      _
    %p137 = scmp.le.s32.totalorder 1, %s9
    %p138 = scmp.lt.s32.totalorder %s9, 5
    %p139 = pnand %p137, %p138
    %p140 = pneg %p139
    // Predicated region
    $region29: #{l0_wide_resnet_forward.11} parent=5 // pred_check
      _
    $region30: #{l0_wide_resnet_forward.11} parent=5 // pred_check_branch
      %142 = sbr.rel (%p139) target = $region32
    $region31: #{l0_wide_resnet_forward.11} parent=5 // pred_region
      %s143 = ssub.s32 %s9, 1
      %s144 = smul.u32 64, %s14
      %p145 = scmp.lt.s32.totalorder %s144, 255
      %s146 = scalar_select %p145, %s144, 255
      %s147 = smul.addr %s146, 4
      %s148 = scalar_lea.vmem %s0, %s147
      %p149 = pneg %p35
      %p150 = pneg %p32
      %p151 = pneg %p56
      %p152 = pneg %p53
      %p153 = pneg %p77
      %p154 = pneg %p74
      %p155 = pneg %p103
      %p156 = pneg %p100
      %s157 = smul.u32 64, %s14
      %p158 = scmp.lt.s32.totalorder %s157, 255
      %s159 = scalar_select %p158, %s157, 255
      %s160 = smul.addr %s159, 4
      %s161 = scalar_lea.vmem %s3, %s160
      %s162 = smul.u32 64, %s14
      %p163 = scmp.lt.s32.totalorder %s162, 255
      %s164 = scalar_select %p163, %s162, 255
      %s165 = smul.addr %s164, 4
      %s166 = scalar_lea.vmem %s0, %s165
      %s167 = smul.u32 64, %s14
      %s168 = smul.u32 64, %s14
      %p169 = scmp.lt.s32.totalorder %s168, 255
      %s170 = scalar_select %p169, %s168, 255
      %s171 = smul.addr %s170, 4
      %s172 = scalar_lea.vmem %s3, %s171
      %s173 = smul.u32 64, %s14
      %v174 = vld [vmem:[%s166] sm:$0xf]
      %v175 = vld [vmem:[%s166 + $0x4] sm:$0xf]
      %v176 = vld [vmem:[%s166 + $0x8] sm:$0xf]
      %v177 = vld [vmem:[%s166 + $0xc] sm:$0xf]
      %v178 = vld [vmem:[%s166 + $0x10] sm:$0xf]
      %v179 = vld [vmem:[%s166 + $0x14] sm:$0xf]
      %v180 = vld [vmem:[%s166 + $0x18] sm:$0xf]
      %v181 = vld [vmem:[%s166 + $0x1c] sm:$0xf]
      %v182 = vld [vmem:[%s166 + $0x20] sm:$0xf]
      %v183 = vld [vmem:[%s166 + $0x24] sm:$0xf]
      %v184 = vld [vmem:[%s166 + $0x28] sm:$0xf]
      %v185 = vld [vmem:[%s166 + $0x2c] sm:$0xf]
      %v186 = vld [vmem:[%s166 + $0x30] sm:$0xf]
      %v187 = vld [vmem:[%s166 + $0x34] sm:$0xf]
      %v188 = vld [vmem:[%s166 + $0x38] sm:$0xf]
      %v189 = vld [vmem:[%s166 + $0x3c] sm:$0xf]
      %v190 = vld [vmem:[%s166 + $0x40] sm:$0xf]
      %v191 = vld [vmem:[%s166 + $0x44] sm:$0xf]
      %v192 = vld [vmem:[%s166 + $0x48] sm:$0xf]
      %v193 = vld [vmem:[%s166 + $0x4c] sm:$0xf]
      %v194 = vld [vmem:[%s166 + $0x50] sm:$0xf]
      %v195 = vld [vmem:[%s166 + $0x54] sm:$0xf]
      %v196 = vld [vmem:[%s166 + $0x58] sm:$0xf]
      %v197 = vld [vmem:[%s166 + $0x5c] sm:$0xf]
      %v198 = vld [vmem:[%s166 + $0x60] sm:$0xf]
      %v199 = vld [vmem:[%s166 + $0x64] sm:$0xf]
      %v200 = vld [vmem:[%s166 + $0x68] sm:$0xf]
      %v201 = vld [vmem:[%s166 + $0x6c] sm:$0xf]
      %v202 = vld [vmem:[%s166 + $0x70] sm:$0xf]
      %v203 = vld [vmem:[%s166 + $0x74] sm:$0xf]
      %v204 = vld [vmem:[%s166 + $0x78] sm:$0xf]
      %v205 = vld [vmem:[%s166 + $0x7c] sm:$0xf]
      %v206 = vld [vmem:[%s166 + $0x80] sm:$0xf]
      %v207 = vld [vmem:[%s166 + $0x84] sm:$0xf]
      %v208 = vld [vmem:[%s166 + $0x88] sm:$0xf]
      %v209 = vld [vmem:[%s166 + $0x8c] sm:$0xf]
      %v210 = vld [vmem:[%s166 + $0x90] sm:$0xf]
      %v211 = vld [vmem:[%s166 + $0x94] sm:$0xf]
      %v212 = vld [vmem:[%s166 + $0x98] sm:$0xf]
      %v213 = vld [vmem:[%s166 + $0x9c] sm:$0xf]
      %v214 = vld [vmem:[%s166 + $0xa0] sm:$0xf]
      %v215 = vld [vmem:[%s166 + $0xa4] sm:$0xf]
      %v216 = vld [vmem:[%s166 + $0xa8] sm:$0xf]
      %v217 = vld [vmem:[%s166 + $0xac] sm:$0xf]
      %v218 = vld [vmem:[%s166 + $0xb0] sm:$0xf]
      %v219 = vld [vmem:[%s166 + $0xb4] sm:$0xf]
      %v220 = vld [vmem:[%s166 + $0xb8] sm:$0xf]
      %v221 = vld [vmem:[%s166 + $0xbc] sm:$0xf]
      %v222 = vld [vmem:[%s166 + $0xc0] sm:$0xf]
      %v223 = vld [vmem:[%s166 + $0xc4] sm:$0xf]
      %v224 = vld [vmem:[%s166 + $0xc8] sm:$0xf]
      %v225 = vld [vmem:[%s166 + $0xcc] sm:$0xf]
      %v226 = vld [vmem:[%s166 + $0xd0] sm:$0xf]
      %v227 = vld [vmem:[%s166 + $0xd4] sm:$0xf]
      %v228 = vld [vmem:[%s166 + $0xd8] sm:$0xf]
      %v229 = vld [vmem:[%s166 + $0xdc] sm:$0xf]
      %v230 = vld [vmem:[%s166 + $0xe0] sm:$0xf]
      %v231 = vld [vmem:[%s166 + $0xe4] sm:$0xf]
      %v232 = vld [vmem:[%s166 + $0xe8] sm:$0xf]
      %v233 = vld [vmem:[%s166 + $0xec] sm:$0xf]
      %v234 = vld [vmem:[%s166 + $0xf0] sm:$0xf]
      %v235 = vld [vmem:[%s166 + $0xf4] sm:$0xf]
      %v236 = vld [vmem:[%s166 + $0xf8] sm:$0xf]
      %v237 = vld [vmem:[%s166 + $0xfc] sm:$0xf]
      %v238 = vunpack.c.l.bf16 %v174
      %v239 = vunpack.c.l.bf16 %v175
      %v240 = vunpack.c.l.bf16 %v176
      %v241 = vunpack.c.l.bf16 %v177
      %v242 = vunpack.c.l.bf16 %v178
      %v243 = vunpack.c.l.bf16 %v179
      %v244 = vunpack.c.l.bf16 %v180
      %v245 = vunpack.c.l.bf16 %v181
      %v246 = vunpack.c.l.bf16 %v182
      %v247 = vunpack.c.l.bf16 %v183
      %v248 = vunpack.c.l.bf16 %v184
      %v249 = vunpack.c.l.bf16 %v185
      %v250 = vunpack.c.l.bf16 %v186
      %v251 = vunpack.c.l.bf16 %v187
      %v252 = vunpack.c.l.bf16 %v188
      %v253 = vunpack.c.l.bf16 %v189
      %v254 = vunpack.c.l.bf16 %v190
      %v255 = vunpack.c.l.bf16 %v191
      %v256 = vunpack.c.l.bf16 %v192
      %v257 = vunpack.c.l.bf16 %v193
      %v258 = vunpack.c.l.bf16 %v194
      %v259 = vunpack.c.l.bf16 %v195
      %v260 = vunpack.c.l.bf16 %v196
      %v261 = vunpack.c.l.bf16 %v197
      %v262 = vunpack.c.l.bf16 %v198
      %v263 = vunpack.c.l.bf16 %v199
      %v264 = vunpack.c.l.bf16 %v200
      %v265 = vunpack.c.l.bf16 %v201
      %v266 = vunpack.c.l.bf16 %v202
      %v267 = vunpack.c.l.bf16 %v203
      %v268 = vunpack.c.l.bf16 %v204
      %v269 = vunpack.c.l.bf16 %v205
      %v270 = vunpack.c.l.bf16 %v206
      %v271 = vunpack.c.l.bf16 %v207
      %v272 = vunpack.c.l.bf16 %v208
      %v273 = vunpack.c.l.bf16 %v209
      %v274 = vunpack.c.l.bf16 %v210
      %v275 = vunpack.c.l.bf16 %v211
      %v276 = vunpack.c.l.bf16 %v212
      %v277 = vunpack.c.l.bf16 %v213
      %v278 = vunpack.c.l.bf16 %v214
      %v279 = vunpack.c.l.bf16 %v215
      %v280 = vunpack.c.l.bf16 %v216
      %v281 = vunpack.c.l.bf16 %v217
      %v282 = vunpack.c.l.bf16 %v218
      %v283 = vunpack.c.l.bf16 %v219
      %v284 = vunpack.c.l.bf16 %v220
      %v285 = vunpack.c.l.bf16 %v221
      %v286 = vunpack.c.l.bf16 %v222
      %v287 = vunpack.c.l.bf16 %v223
      %v288 = vunpack.c.l.bf16 %v224
      %v289 = vunpack.c.l.bf16 %v225
      %v290 = vunpack.c.l.bf16 %v226
      %v291 = vunpack.c.l.bf16 %v227
      %v292 = vunpack.c.l.bf16 %v228
      %v293 = vunpack.c.l.bf16 %v229
      %v294 = vunpack.c.l.bf16 %v230
      %v295 = vunpack.c.l.bf16 %v231
      %v296 = vunpack.c.l.bf16 %v232
      %v297 = vunpack.c.l.bf16 %v233
      %v298 = vunpack.c.l.bf16 %v234
      %v299 = vunpack.c.l.bf16 %v235
      %v300 = vunpack.c.l.bf16 %v236
      %v301 = vunpack.c.l.bf16 %v237
      %v302 = vld [vmem:[%s1] sm:$0x1]
      %v304 = vlaneseq
      %v305 = vshrl.u32 %v304, 7
      %v306 = vsub.s32 0, %v305
      %v307 = vrot.slane %v302, %v306
      %v309 = vmul.f32 %v238, %v307
      %v310 = vmul.f32 %v239, %v307
      %v311 = vmul.f32 %v240, %v307
      %v312 = vmul.f32 %v241, %v307
      %v313 = vmul.f32 %v242, %v307
      %v314 = vmul.f32 %v243, %v307
      %v315 = vmul.f32 %v244, %v307
      %v316 = vmul.f32 %v245, %v307
      %v317 = vmul.f32 %v246, %v307
      %v318 = vmul.f32 %v247, %v307
      %v319 = vmul.f32 %v248, %v307
      %v320 = vmul.f32 %v249, %v307
      %v321 = vmul.f32 %v250, %v307
      %v322 = vmul.f32 %v251, %v307
      %v323 = vmul.f32 %v252, %v307
      %v324 = vmul.f32 %v253, %v307
      %v325 = vmul.f32 %v254, %v307
      %v326 = vmul.f32 %v255, %v307
      %v327 = vmul.f32 %v256, %v307
      %v328 = vmul.f32 %v257, %v307
      %v329 = vmul.f32 %v258, %v307
      %v330 = vmul.f32 %v259, %v307
      %v331 = vmul.f32 %v260, %v307
      %v332 = vmul.f32 %v261, %v307
      %v333 = vmul.f32 %v262, %v307
      %v334 = vmul.f32 %v263, %v307
      %v335 = vmul.f32 %v264, %v307
      %v336 = vmul.f32 %v265, %v307
      %v337 = vmul.f32 %v266, %v307
      %v338 = vmul.f32 %v267, %v307
      %v339 = vmul.f32 %v268, %v307
      %v340 = vmul.f32 %v269, %v307
      %v341 = vmul.f32 %v270, %v307
      %v342 = vmul.f32 %v271, %v307
      %v343 = vmul.f32 %v272, %v307
      %v344 = vmul.f32 %v273, %v307
      %v345 = vmul.f32 %v274, %v307
      %v346 = vmul.f32 %v275, %v307
      %v347 = vmul.f32 %v276, %v307
      %v348 = vmul.f32 %v277, %v307
      %v349 = vmul.f32 %v278, %v307
      %v350 = vmul.f32 %v279, %v307
      %v351 = vmul.f32 %v280, %v307
      %v352 = vmul.f32 %v281, %v307
      %v353 = vmul.f32 %v282, %v307
      %v354 = vmul.f32 %v283, %v307
      %v355 = vmul.f32 %v284, %v307
      %v356 = vmul.f32 %v285, %v307
      %v357 = vmul.f32 %v286, %v307
      %v358 = vmul.f32 %v287, %v307
      %v359 = vmul.f32 %v288, %v307
      %v360 = vmul.f32 %v289, %v307
      %v361 = vmul.f32 %v290, %v307
      %v362 = vmul.f32 %v291, %v307
      %v363 = vmul.f32 %v292, %v307
      %v364 = vmul.f32 %v293, %v307
      %v365 = vmul.f32 %v294, %v307
      %v366 = vmul.f32 %v295, %v307
      %v367 = vmul.f32 %v296, %v307
      %v368 = vmul.f32 %v297, %v307
      %v369 = vmul.f32 %v298, %v307
      %v370 = vmul.f32 %v299, %v307
      %v371 = vmul.f32 %v300, %v307
      %v372 = vmul.f32 %v301, %v307
      %v373 = vld [vmem:[%s2] sm:$0x1]
      %v375 = vlaneseq
      %v376 = vshrl.u32 %v375, 7
      %v377 = vsub.s32 0, %v376
      %v378 = vrot.slane %v373, %v377
      %v380 = vadd.f32 %v309, %v378
      %v381 = vadd.f32 %v310, %v378
      %v382 = vadd.f32 %v311, %v378
      %v383 = vadd.f32 %v312, %v378
      %v384 = vadd.f32 %v313, %v378
      %v385 = vadd.f32 %v314, %v378
      %v386 = vadd.f32 %v315, %v378
      %v387 = vadd.f32 %v316, %v378
      %v388 = vadd.f32 %v317, %v378
      %v389 = vadd.f32 %v318, %v378
      %v390 = vadd.f32 %v319, %v378
      %v391 = vadd.f32 %v320, %v378
      %v392 = vadd.f32 %v321, %v378
      %v393 = vadd.f32 %v322, %v378
      %v394 = vadd.f32 %v323, %v378
      %v395 = vadd.f32 %v324, %v378
      %v396 = vadd.f32 %v325, %v378
      %v397 = vadd.f32 %v326, %v378
      %v398 = vadd.f32 %v327, %v378
      %v399 = vadd.f32 %v328, %v378
      %v400 = vadd.f32 %v329, %v378
      %v401 = vadd.f32 %v330, %v378
      %v402 = vadd.f32 %v331, %v378
      %v403 = vadd.f32 %v332, %v378
      %v404 = vadd.f32 %v333, %v378
      %v405 = vadd.f32 %v334, %v378
      %v406 = vadd.f32 %v335, %v378
      %v407 = vadd.f32 %v336, %v378
      %v408 = vadd.f32 %v337, %v378
      %v409 = vadd.f32 %v338, %v378
      %v410 = vadd.f32 %v339, %v378
      %v411 = vadd.f32 %v340, %v378
      %v412 = vadd.f32 %v341, %v378
      %v413 = vadd.f32 %v342, %v378
      %v414 = vadd.f32 %v343, %v378
      %v415 = vadd.f32 %v344, %v378
      %v416 = vadd.f32 %v345, %v378
      %v417 = vadd.f32 %v346, %v378
      %v418 = vadd.f32 %v347, %v378
      %v419 = vadd.f32 %v348, %v378
      %v420 = vadd.f32 %v349, %v378
      %v421 = vadd.f32 %v350, %v378
      %v422 = vadd.f32 %v351, %v378
      %v423 = vadd.f32 %v352, %v378
      %v424 = vadd.f32 %v353, %v378
      %v425 = vadd.f32 %v354, %v378
      %v426 = vadd.f32 %v355, %v378
      %v427 = vadd.f32 %v356, %v378
      %v428 = vadd.f32 %v357, %v378
      %v429 = vadd.f32 %v358, %v378
      %v430 = vadd.f32 %v359, %v378
      %v431 = vadd.f32 %v360, %v378
      %v432 = vadd.f32 %v361, %v378
      %v433 = vadd.f32 %v362, %v378
      %v434 = vadd.f32 %v363, %v378
      %v435 = vadd.f32 %v364, %v378
      %v436 = vadd.f32 %v365, %v378
      %v437 = vadd.f32 %v366, %v378
      %v438 = vadd.f32 %v367, %v378
      %v439 = vadd.f32 %v368, %v378
      %v440 = vadd.f32 %v369, %v378
      %v441 = vadd.f32 %v370, %v378
      %v442 = vadd.f32 %v371, %v378
      %v443 = vadd.f32 %v372, %v378
      %v444 = vmax.f32 %v380, 0.0
      %v445 = vmax.f32 %v381, 0.0
      %v446 = vmax.f32 %v382, 0.0
      %v447 = vmax.f32 %v383, 0.0
      %v448 = vmax.f32 %v384, 0.0
      %v449 = vmax.f32 %v385, 0.0
      %v450 = vmax.f32 %v386, 0.0
      %v451 = vmax.f32 %v387, 0.0
      %v452 = vmax.f32 %v388, 0.0
      %v453 = vmax.f32 %v389, 0.0
      %v454 = vmax.f32 %v390, 0.0
      %v455 = vmax.f32 %v391, 0.0
      %v456 = vmax.f32 %v392, 0.0
      %v457 = vmax.f32 %v393, 0.0
      %v458 = vmax.f32 %v394, 0.0
      %v459 = vmax.f32 %v395, 0.0
      %v460 = vmax.f32 %v396, 0.0
      %v461 = vmax.f32 %v397, 0.0
      %v462 = vmax.f32 %v398, 0.0
      %v463 = vmax.f32 %v399, 0.0
      %v464 = vmax.f32 %v400, 0.0
      %v465 = vmax.f32 %v401, 0.0
      %v466 = vmax.f32 %v402, 0.0
      %v467 = vmax.f32 %v403, 0.0
      %v468 = vmax.f32 %v404, 0.0
      %v469 = vmax.f32 %v405, 0.0
      %v470 = vmax.f32 %v406, 0.0
      %v471 = vmax.f32 %v407, 0.0
      %v472 = vmax.f32 %v408, 0.0
      %v473 = vmax.f32 %v409, 0.0
      %v474 = vmax.f32 %v410, 0.0
      %v475 = vmax.f32 %v411, 0.0
      %v476 = vmax.f32 %v412, 0.0
      %v477 = vmax.f32 %v413, 0.0
      %v478 = vmax.f32 %v414, 0.0
      %v479 = vmax.f32 %v415, 0.0
      %v480 = vmax.f32 %v416, 0.0
      %v481 = vmax.f32 %v417, 0.0
      %v482 = vmax.f32 %v418, 0.0
      %v483 = vmax.f32 %v419, 0.0
      %v484 = vmax.f32 %v420, 0.0
      %v485 = vmax.f32 %v421, 0.0
      %v486 = vmax.f32 %v422, 0.0
      %v487 = vmax.f32 %v423, 0.0
      %v488 = vmax.f32 %v424, 0.0
      %v489 = vmax.f32 %v425, 0.0
      %v490 = vmax.f32 %v426, 0.0
      %v491 = vmax.f32 %v427, 0.0
      %v492 = vmax.f32 %v428, 0.0
      %v493 = vmax.f32 %v429, 0.0
      %v494 = vmax.f32 %v430, 0.0
      %v495 = vmax.f32 %v431, 0.0
      %v496 = vmax.f32 %v432, 0.0
      %v497 = vmax.f32 %v433, 0.0
      %v498 = vmax.f32 %v434, 0.0
      %v499 = vmax.f32 %v435, 0.0
      %v500 = vmax.f32 %v436, 0.0
      %v501 = vmax.f32 %v437, 0.0
      %v502 = vmax.f32 %v438, 0.0
      %v503 = vmax.f32 %v439, 0.0
      %v504 = vmax.f32 %v440, 0.0
      %v505 = vmax.f32 %v441, 0.0
      %v506 = vmax.f32 %v442, 0.0
      %v507 = vmax.f32 %v443, 0.0
      %v508 = vpack.c.bf16 %v445, %v444
      %v509 = vpack.c.bf16 %v447, %v446
      %v510 = vpack.c.bf16 %v449, %v448
      %v511 = vpack.c.bf16 %v451, %v450
      %v512 = vpack.c.bf16 %v453, %v452
      %v513 = vpack.c.bf16 %v455, %v454
      %v514 = vpack.c.bf16 %v457, %v456
      %v515 = vpack.c.bf16 %v459, %v458
      %v516 = vpack.c.bf16 %v461, %v460
      %v517 = vpack.c.bf16 %v463, %v462
      %v518 = vpack.c.bf16 %v465, %v464
      %v519 = vpack.c.bf16 %v467, %v466
      %v520 = vpack.c.bf16 %v469, %v468
      %v521 = vpack.c.bf16 %v471, %v470
      %v522 = vpack.c.bf16 %v473, %v472
      %v523 = vpack.c.bf16 %v475, %v474
      %v524 = vpack.c.bf16 %v477, %v476
      %v525 = vpack.c.bf16 %v479, %v478
      %v526 = vpack.c.bf16 %v481, %v480
      %v527 = vpack.c.bf16 %v483, %v482
      %v528 = vpack.c.bf16 %v485, %v484
      %v529 = vpack.c.bf16 %v487, %v486
      %v530 = vpack.c.bf16 %v489, %v488
      %v531 = vpack.c.bf16 %v491, %v490
      %v532 = vpack.c.bf16 %v493, %v492
      %v533 = vpack.c.bf16 %v495, %v494
      %v534 = vpack.c.bf16 %v497, %v496
      %v535 = vpack.c.bf16 %v499, %v498
      %v536 = vpack.c.bf16 %v501, %v500
      %v537 = vpack.c.bf16 %v503, %v502
      %v538 = vpack.c.bf16 %v505, %v504
      %v539 = vpack.c.bf16 %v507, %v506
      %v572 = vunpack.c.l.b16 %v508
      %v573 = vunpack.c.h.b16 %v508
      %v574 = vunpack.c.l.b16 %v509
      %v575 = vunpack.c.h.b16 %v509
      %v576 = vunpack.c.l.b16 %v510
      %v577 = vunpack.c.h.b16 %v510
      %v578 = vunpack.c.l.b16 %v511
      %v579 = vunpack.c.h.b16 %v511
      %v580 = vunpack.c.l.b16 %v512
      %v581 = vunpack.c.h.b16 %v512
      %v582 = vunpack.c.l.b16 %v513
      %v583 = vunpack.c.h.b16 %v513
      %v584 = vunpack.c.l.b16 %v514
      %v585 = vunpack.c.h.b16 %v514
      %v586 = vunpack.c.l.b16 %v515
      %v587 = vunpack.c.h.b16 %v515
      %v588 = vunpack.c.l.b16 %v516
      %v589 = vunpack.c.h.b16 %v516
      %v590 = vunpack.c.l.b16 %v517
      %v591 = vunpack.c.h.b16 %v517
      %v592 = vunpack.c.l.b16 %v518
      %v593 = vunpack.c.h.b16 %v518
      %v594 = vunpack.c.l.b16 %v519
      %v595 = vunpack.c.h.b16 %v519
      %v596 = vunpack.c.l.b16 %v520
      %v597 = vunpack.c.h.b16 %v520
      %v598 = vunpack.c.l.b16 %v521
      %v599 = vunpack.c.h.b16 %v521
      %v600 = vunpack.c.l.b16 %v522
      %v601 = vunpack.c.h.b16 %v522
      %v602 = vunpack.c.l.b16 %v523
      %v603 = vunpack.c.h.b16 %v523
      %v604 = vunpack.c.l.b16 %v524
      %v605 = vunpack.c.h.b16 %v524
      %v606 = vunpack.c.l.b16 %v525
      %v607 = vunpack.c.h.b16 %v525
      %v608 = vunpack.c.l.b16 %v526
      %v609 = vunpack.c.h.b16 %v526
      %v610 = vunpack.c.l.b16 %v527
      %v611 = vunpack.c.h.b16 %v527
      %v612 = vunpack.c.l.b16 %v528
      %v613 = vunpack.c.h.b16 %v528
      %v614 = vunpack.c.l.b16 %v529
      %v615 = vunpack.c.h.b16 %v529
      %v616 = vunpack.c.l.b16 %v530
      %v617 = vunpack.c.h.b16 %v530
      %v618 = vunpack.c.l.b16 %v531
      %v619 = vunpack.c.h.b16 %v531
      %v620 = vunpack.c.l.b16 %v532
      %v621 = vunpack.c.h.b16 %v532
      %v622 = vunpack.c.l.b16 %v533
      %v623 = vunpack.c.h.b16 %v533
      %v624 = vunpack.c.l.b16 %v534
      %v625 = vunpack.c.h.b16 %v534
      %v626 = vunpack.c.l.b16 %v535
      %v627 = vunpack.c.h.b16 %v535
      %v628 = vunpack.c.l.b16 %v536
      %v629 = vunpack.c.h.b16 %v536
      %v630 = vunpack.c.l.b16 %v537
      %v631 = vunpack.c.h.b16 %v537
      %v632 = vunpack.c.l.b16 %v538
      %v633 = vunpack.c.h.b16 %v538
      %v634 = vunpack.c.l.b16 %v539
      %v635 = vunpack.c.h.b16 %v539
      %v636 = vpack.c.b16 %v572, %v572
      %v637 = vpack.c.b16 %v573, %v573
      %v638 = vpack.c.b16 %v574, %v574
      %v639 = vpack.c.b16 %v575, %v575
      %v640 = vpack.c.b16 %v576, %v576
      %v641 = vpack.c.b16 %v577, %v577
      %v642 = vpack.c.b16 %v578, %v578
      %v643 = vpack.c.b16 %v579, %v579
      %v644 = vpack.c.b16 %v580, %v580
      %v645 = vpack.c.b16 %v581, %v581
      %v646 = vpack.c.b16 %v582, %v582
      %v647 = vpack.c.b16 %v583, %v583
      %v648 = vpack.c.b16 %v584, %v584
      %v649 = vpack.c.b16 %v585, %v585
      %v650 = vpack.c.b16 %v586, %v586
      %v651 = vpack.c.b16 %v587, %v587
      %v652 = vpack.c.b16 %v588, %v588
      %v653 = vpack.c.b16 %v589, %v589
      %v654 = vpack.c.b16 %v590, %v590
      %v655 = vpack.c.b16 %v591, %v591
      %v656 = vpack.c.b16 %v592, %v592
      %v657 = vpack.c.b16 %v593, %v593
      %v658 = vpack.c.b16 %v594, %v594
      %v659 = vpack.c.b16 %v595, %v595
      %v660 = vpack.c.b16 %v596, %v596
      %v661 = vpack.c.b16 %v597, %v597
      %v662 = vpack.c.b16 %v598, %v598
      %v663 = vpack.c.b16 %v599, %v599
      %v664 = vpack.c.b16 %v600, %v600
      %v665 = vpack.c.b16 %v601, %v601
      %v666 = vpack.c.b16 %v602, %v602
      %v667 = vpack.c.b16 %v603, %v603
      %v668 = vpack.c.b16 %v604, %v604
      %v669 = vpack.c.b16 %v605, %v605
      %v670 = vpack.c.b16 %v606, %v606
      %v671 = vpack.c.b16 %v607, %v607
      %v672 = vpack.c.b16 %v608, %v608
      %v673 = vpack.c.b16 %v609, %v609
      %v674 = vpack.c.b16 %v610, %v610
      %v675 = vpack.c.b16 %v611, %v611
      %v676 = vpack.c.b16 %v612, %v612
      %v677 = vpack.c.b16 %v613, %v613
      %v678 = vpack.c.b16 %v614, %v614
      %v679 = vpack.c.b16 %v615, %v615
      %v680 = vpack.c.b16 %v616, %v616
      %v681 = vpack.c.b16 %v617, %v617
      %v682 = vpack.c.b16 %v618, %v618
      %v683 = vpack.c.b16 %v619, %v619
      %v684 = vpack.c.b16 %v620, %v620
      %v685 = vpack.c.b16 %v621, %v621
      %v686 = vpack.c.b16 %v622, %v622
      %v687 = vpack.c.b16 %v623, %v623
      %v688 = vpack.c.b16 %v624, %v624
      %v689 = vpack.c.b16 %v625, %v625
      %v690 = vpack.c.b16 %v626, %v626
      %v691 = vpack.c.b16 %v627, %v627
      %v692 = vpack.c.b16 %v628, %v628
      %v693 = vpack.c.b16 %v629, %v629
      %v694 = vpack.c.b16 %v630, %v630
      %v695 = vpack.c.b16 %v631, %v631
      %v696 = vpack.c.b16 %v632, %v632
      %v697 = vpack.c.b16 %v633, %v633
      %v698 = vpack.c.b16 %v634, %v634
      %v699 = vpack.c.b16 %v635, %v635
      %vm764 = vcmask 125952
      %765 = vst.msk [vmem:[%s172] sm:$0xf] %vm764, %v636
      %766 = vst.msk [vmem:[%s172 + $0x4] sm:$0xf] %vm764, %v637
      %767 = vst.msk [vmem:[%s172 + $0x8] sm:$0xf] %vm764, %v638
      %768 = vst.msk [vmem:[%s172 + $0xc] sm:$0xf] %vm764, %v639
      %769 = vst.msk [vmem:[%s172 + $0x10] sm:$0xf] %vm764, %v640
      %770 = vst.msk [vmem:[%s172 + $0x14] sm:$0xf] %vm764, %v641
      %771 = vst.msk [vmem:[%s172 + $0x18] sm:$0xf] %vm764, %v642
      %772 = vst.msk [vmem:[%s172 + $0x1c] sm:$0xf] %vm764, %v643
      %773 = vst.msk [vmem:[%s172 + $0x20] sm:$0xf] %vm764, %v644
      %774 = vst.msk [vmem:[%s172 + $0x24] sm:$0xf] %vm764, %v645
      %775 = vst.msk [vmem:[%s172 + $0x28] sm:$0xf] %vm764, %v646
      %776 = vst.msk [vmem:[%s172 + $0x2c] sm:$0xf] %vm764, %v647
      %777 = vst.msk [vmem:[%s172 + $0x30] sm:$0xf] %vm764, %v648
      %778 = vst.msk [vmem:[%s172 + $0x34] sm:$0xf] %vm764, %v649
      %779 = vst.msk [vmem:[%s172 + $0x38] sm:$0xf] %vm764, %v650
      %780 = vst.msk [vmem:[%s172 + $0x3c] sm:$0xf] %vm764, %v651
      %781 = vst.msk [vmem:[%s172 + $0x40] sm:$0xf] %vm764, %v652
      %782 = vst.msk [vmem:[%s172 + $0x44] sm:$0xf] %vm764, %v653
      %783 = vst.msk [vmem:[%s172 + $0x48] sm:$0xf] %vm764, %v654
      %784 = vst.msk [vmem:[%s172 + $0x4c] sm:$0xf] %vm764, %v655
      %785 = vst.msk [vmem:[%s172 + $0x50] sm:$0xf] %vm764, %v656
      %786 = vst.msk [vmem:[%s172 + $0x54] sm:$0xf] %vm764, %v657
      %787 = vst.msk [vmem:[%s172 + $0x58] sm:$0xf] %vm764, %v658
      %788 = vst.msk [vmem:[%s172 + $0x5c] sm:$0xf] %vm764, %v659
      %789 = vst.msk [vmem:[%s172 + $0x60] sm:$0xf] %vm764, %v660
      %790 = vst.msk [vmem:[%s172 + $0x64] sm:$0xf] %vm764, %v661
      %791 = vst.msk [vmem:[%s172 + $0x68] sm:$0xf] %vm764, %v662
      %792 = vst.msk [vmem:[%s172 + $0x6c] sm:$0xf] %vm764, %v663
      %793 = vst.msk [vmem:[%s172 + $0x70] sm:$0xf] %vm764, %v664
      %794 = vst.msk [vmem:[%s172 + $0x74] sm:$0xf] %vm764, %v665
      %795 = vst.msk [vmem:[%s172 + $0x78] sm:$0xf] %vm764, %v666
      %796 = vst.msk [vmem:[%s172 + $0x7c] sm:$0xf] %vm764, %v667
      %797 = vst.msk [vmem:[%s172 + $0x80] sm:$0xf] %vm764, %v668
      %798 = vst.msk [vmem:[%s172 + $0x84] sm:$0xf] %vm764, %v669
      %799 = vst.msk [vmem:[%s172 + $0x88] sm:$0xf] %vm764, %v670
      %800 = vst.msk [vmem:[%s172 + $0x8c] sm:$0xf] %vm764, %v671
      %801 = vst.msk [vmem:[%s172 + $0x90] sm:$0xf] %vm764, %v672
      %802 = vst.msk [vmem:[%s172 + $0x94] sm:$0xf] %vm764, %v673
      %803 = vst.msk [vmem:[%s172 + $0x98] sm:$0xf] %vm764, %v674
      %804 = vst.msk [vmem:[%s172 + $0x9c] sm:$0xf] %vm764, %v675
      %805 = vst.msk [vmem:[%s172 + $0xa0] sm:$0xf] %vm764, %v676
      %806 = vst.msk [vmem:[%s172 + $0xa4] sm:$0xf] %vm764, %v677
      %807 = vst.msk [vmem:[%s172 + $0xa8] sm:$0xf] %vm764, %v678
      %808 = vst.msk [vmem:[%s172 + $0xac] sm:$0xf] %vm764, %v679
      %809 = vst.msk [vmem:[%s172 + $0xb0] sm:$0xf] %vm764, %v680
      %810 = vst.msk [vmem:[%s172 + $0xb4] sm:$0xf] %vm764, %v681
      %811 = vst.msk [vmem:[%s172 + $0xb8] sm:$0xf] %vm764, %v682
      %812 = vst.msk [vmem:[%s172 + $0xbc] sm:$0xf] %vm764, %v683
      %813 = vst.msk [vmem:[%s172 + $0xc0] sm:$0xf] %vm764, %v684
      %814 = vst.msk [vmem:[%s172 + $0xc4] sm:$0xf] %vm764, %v685
      %815 = vst.msk [vmem:[%s172 + $0xc8] sm:$0xf] %vm764, %v686
      %816 = vst.msk [vmem:[%s172 + $0xcc] sm:$0xf] %vm764, %v687
      %817 = vst.msk [vmem:[%s172 + $0xd0] sm:$0xf] %vm764, %v688
      %818 = vst.msk [vmem:[%s172 + $0xd4] sm:$0xf] %vm764, %v689
      %819 = vst.msk [vmem:[%s172 + $0xd8] sm:$0xf] %vm764, %v690
      %820 = vst.msk [vmem:[%s172 + $0xdc] sm:$0xf] %vm764, %v691
      %821 = vst.msk [vmem:[%s172 + $0xe0] sm:$0xf] %vm764, %v692
      %822 = vst.msk [vmem:[%s172 + $0xe4] sm:$0xf] %vm764, %v693
      %823 = vst.msk [vmem:[%s172 + $0xe8] sm:$0xf] %vm764, %v694
      %824 = vst.msk [vmem:[%s172 + $0xec] sm:$0xf] %vm764, %v695
      %825 = vst.msk [vmem:[%s172 + $0xf0] sm:$0xf] %vm764, %v696
      %826 = vst.msk [vmem:[%s172 + $0xf4] sm:$0xf] %vm764, %v697
      %827 = vst.msk [vmem:[%s172 + $0xf8] sm:$0xf] %vm764, %v698
      %828 = vst.msk [vmem:[%s172 + $0xfc] sm:$0xf] %vm764, %v699
      %s829 = smul.u32 64, %s14
      %p830 = scmp.lt.s32.totalorder %s829, 255
      %s831 = scalar_select %p830, %s829, 255
      %s832 = smul.addr %s831, 4
      %s833 = scalar_lea.vmem %s3, %s832
      // Predicated region
      $region33: #{l0_wide_resnet_forward.11} parent=31 // pred_check
        %p834 = pneg %p100
      $region34: #{l0_wide_resnet_forward.11} parent=31 // pred_check_branch
        %836 = sbr.rel (%p834) target = $region36
      $region35: #{l0_wide_resnet_forward.11} parent=31 // pred_region
        %s837 = smul.u32 64, %s14
      $region36: #{l0_wide_resnet_forward.11} parent=31 // pred_fallthru
        _
    $region32: #{l0_wide_resnet_forward.11} parent=5 // pred_fallthru
      _
    %p838 = scmp.le.s32.totalorder 2, %s9
    // Predicated region
    $region37: #{l0_wide_resnet_forward.11} parent=5 // pred_check
      %p839 = pneg %p838
    $region38: #{l0_wide_resnet_forward.11} parent=5 // pred_check_branch
      %841 = sbr.rel (%p839) target = $region40
    $region39: #{l0_wide_resnet_forward.11} parent=5 // pred_region
      %s842 = ssub.s32 %s9, 2
      // Predicated region
      $region41: #{l0_wide_resnet_forward.11} parent=39 // pred_check
        %p843 = pneg %p106
      $region42: #{l0_wide_resnet_forward.11} parent=39 // pred_check_branch
        %845 = sbr.rel (%p843) target = $region44
      $region43: #{l0_wide_resnet_forward.11} parent=39 // pred_region
        %s846 = smul.u32 64, %s15
        %p847 = scmp.lt.s32.totalorder %s846, 255
        %s848 = scalar_select %p847, %s846, 255
        %s849 = smul.addr %s848, 4
        %s850 = scalar_lea.vmem %s3, %s849
      $region44: #{l0_wide_resnet_forward.11} parent=39 // pred_fallthru
        _
    $region40: #{l0_wide_resnet_forward.11} parent=5 // pred_fallthru
      _
  $region6: #{l0_wide_resnet_forward.11} parent=0 // loop_footer
    %s13 = sadd.s32 1, %s9
  $region7: #{l0_wide_resnet_forward.11} parent=0 // loop_footer_branch
    %8 = sbr.rel target = $region3
  $region8: #{l0_wide_resnet_forward.11} parent=0 // loop_exit
    _

// kernel: l0_wide_resnet_forward.10
$region0: #{l0_wide_resnet_forward.10}
  #allocation0 [shape = 'u32[]', space=smem, size = 0x4, offset = 0x4, fixed_abs, tag = 'smem constant byte address 0x4 - core index']
  #allocation1 [shape = 'u32[144,128]{1,0:T(1,128)}', space=vmem, size = 0x12000, scoped, tag = 'internal scratch']
  %s0 = inlined_call_operand.vmem [shape: bf16[2048,27], index: 0, kind: input, shape index: {}]
  %s1 = inlined_call_operand.vmem [shape: bf16[27,16], index: 1, kind: input, shape index: {}]
  %s2 = inlined_call_operand.vmem [shape: bf16[2048,16], index: 2, kind: output, shape index: {}]
  %s3 = sld [smem:[#allocation0]]
  $region41: #{l0_wide_resnet_forward.10} parent=0
    _
  %s5 = ssub.s32 1, %s3
  %s6 = scalar_select 0, %s5, %s3
  loop: start=0, step=1, limit=6
  $region2: #{l0_wide_resnet_forward.10} parent=0 // loop_pre_header
    _
  $region3: #{l0_wide_resnet_forward.10} parent=0 // loop_header
    %s8 = sphi 0, %s12
    %p9 = scmp.ge.s32.totalorder %s8, 6
    %s18 = sphi 0, %s20
    %s21 = sphi 0, %s18
    %s22 = sphi 0, %s21
    %s38 = sphi 0, %s22
    %s42 = sphi 0, %s42
    %s44 = sphi 0, %s42
    %s45 = sphi 0, %s44
    %s59 = sphi 0, %s45
    %s65 = sphi 0, %s67
    %s68 = sphi 0, %s65
    %s69 = sphi 0, %s68
    %s85 = sphi 0, %s69
  $region4: #{l0_wide_resnet_forward.10} parent=0 // loop_header_branch
    %11 = sbr.rel (%p9) target = $region8
  $region5: #{l0_wide_resnet_forward.10} parent=0 // loop_body
    %s13 = ssub.s32 %s8, 1
    %s14 = ssub.s32 %s8, 2
    %s15 = sadd.s32 %s8, 1
    %s16 = ssub.s32 %s8, %s15
    %p17 = scmp.eq.s32.totalorder %s16, 0
    %s19 = sadd.s32 %s18, 1
    %s20 = scalar_select %p17, %s18, %s19
    %p23 = pneg %p17
    %p24 = scmp.eq.s32.totalorder %s8, 3
    %p25 = por %p23, %p24
    %p26 = scmp.ne.s32.totalorder %s18, %s21
    %p27 = scmp.eq.s32.totalorder %s8, 0
    %p28 = por %p26, %p27
    %p29 = scmp.ne.s32.totalorder %s18, %s21
    %p30 = scmp.eq.s32.totalorder %s13, 3
    %p31 = por %p29, %p30
    %p32 = scmp.ne.s32.totalorder %s21, %s22
    %p33 = scmp.eq.s32.totalorder %s13, 0
    %p34 = por %p32, %p33
    %p35 = scmp.ne.s32.totalorder %s21, %s22
    %p36 = scmp.eq.s32.totalorder %s14, 3
    %p37 = por %p35, %p36
    %p39 = scmp.ne.s32.totalorder %s22, %s38
    %p40 = scmp.eq.s32.totalorder %s14, 0
    %p41 = por %p39, %p40
    %s43 = sadd.s32 %s42, 1
    %p46 = scmp.eq.s32.totalorder %s8, 3
    %p47 = scmp.ne.s32.totalorder %s42, %s44
    %p48 = scmp.eq.s32.totalorder %s8, 0
    %p49 = por %p47, %p48
    %p50 = scmp.ne.s32.totalorder %s42, %s44
    %p51 = scmp.eq.s32.totalorder %s13, 3
    %p52 = por %p50, %p51
    %p53 = scmp.ne.s32.totalorder %s44, %s45
    %p54 = scmp.eq.s32.totalorder %s13, 0
    %p55 = por %p53, %p54
    %p56 = scmp.ne.s32.totalorder %s44, %s45
    %p57 = scmp.eq.s32.totalorder %s14, 3
    %p58 = por %p56, %p57
    %p60 = scmp.ne.s32.totalorder %s45, %s59
    %p61 = scmp.eq.s32.totalorder %s14, 0
    %p62 = por %p60, %p61
    %s63 = ssub.s32 %s8, %s15
    %p64 = scmp.eq.s32.totalorder %s63, 0
    %s66 = sadd.s32 %s65, 1
    %s67 = scalar_select %p64, %s65, %s66
    %p70 = pneg %p64
    %p71 = scmp.eq.s32.totalorder %s8, 3
    %p72 = por %p70, %p71
    %p73 = scmp.ne.s32.totalorder %s65, %s68
    %p74 = scmp.eq.s32.totalorder %s8, 0
    %p75 = por %p73, %p74
    %p76 = scmp.ne.s32.totalorder %s65, %s68
    %p77 = scmp.eq.s32.totalorder %s13, 3
    %p78 = por %p76, %p77
    %p79 = scmp.ne.s32.totalorder %s68, %s69
    %p80 = scmp.eq.s32.totalorder %s13, 0
    %p81 = por %p79, %p80
    %p82 = scmp.ne.s32.totalorder %s68, %s69
    %p83 = scmp.eq.s32.totalorder %s14, 3
    %p84 = por %p82, %p83
    %p86 = scmp.ne.s32.totalorder %s69, %s85
    %p87 = scmp.eq.s32.totalorder %s14, 0
    %p88 = por %p86, %p87
    %p89 = scmp.le.s32.totalorder 1, %s8
    %p90 = scmp.lt.s32.totalorder %s8, 5
    %p91 = pnand %p89, %p90
    %p92 = pneg %p91
    // Predicated region
    $region9: #{l0_wide_resnet_forward.10} parent=5 // pred_check
      _
    $region10: #{l0_wide_resnet_forward.10} parent=5 // pred_check_branch
      %94 = sbr.rel (%p91) target = $region12
    $region11: #{l0_wide_resnet_forward.10} parent=5 // pred_region
      %s95 = ssub.s32 %s8, 1
      // Predicated region
      $region13: #{l0_wide_resnet_forward.10} parent=11 // pred_check
        %p96 = pneg %p55
      $region14: #{l0_wide_resnet_forward.10} parent=11 // pred_check_branch
        %98 = sbr.rel (%p96) target = $region16
      $region15: #{l0_wide_resnet_forward.10} parent=11 // pred_region
        _
      $region16: #{l0_wide_resnet_forward.10} parent=11 // pred_fallthru
        _
    $region12: #{l0_wide_resnet_forward.10} parent=5 // pred_fallthru
      _
    %p99 = scmp.lt.s32.totalorder %s8, 4
    // Predicated region
    $region17: #{l0_wide_resnet_forward.10} parent=5 // pred_check
      %p100 = pneg %p99
    $region18: #{l0_wide_resnet_forward.10} parent=5 // pred_check_branch
      %102 = sbr.rel (%p100) target = $region20
    $region19: #{l0_wide_resnet_forward.10} parent=5 // pred_region
      // Predicated region
      $region21: #{l0_wide_resnet_forward.10} parent=19 // pred_check
        %p103 = pneg %p28
      $region22: #{l0_wide_resnet_forward.10} parent=19 // pred_check_branch
        %105 = sbr.rel (%p103) target = $region24
      $region23: #{l0_wide_resnet_forward.10} parent=19 // pred_region
        %s106 = smul.u32 64, %s8
        %p107 = scmp.lt.s32.totalorder %s106, 255
        %s108 = scalar_select %p107, %s106, 255
        %s109 = smul.addr %s108, 4
        %s110 = scalar_lea.vmem %s0, %s109
        %s111 = smul.u32 64, %s8
      $region24: #{l0_wide_resnet_forward.10} parent=19 // pred_fallthru
        _
    $region20: #{l0_wide_resnet_forward.10} parent=5 // pred_fallthru
      _
    %p112 = scmp.le.s32.totalorder 1, %s8
    %p113 = scmp.lt.s32.totalorder %s8, 5
    %p114 = pnand %p112, %p113
    %p115 = pneg %p114
    // Predicated region
    $region25: #{l0_wide_resnet_forward.10} parent=5 // pred_check
      _
    $region26: #{l0_wide_resnet_forward.10} parent=5 // pred_check_branch
      %117 = sbr.rel (%p114) target = $region28
    $region27: #{l0_wide_resnet_forward.10} parent=5 // pred_region
      %s118 = ssub.s32 %s8, 1
      %s119 = smul.u32 64, %s13
      %p120 = scmp.lt.s32.totalorder %s119, 255
      %s121 = scalar_select %p120, %s119, 255
      %s122 = smul.addr %s121, 4
      %s123 = scalar_lea.vmem %s0, %s122
      %p124 = pneg %p34
      %p125 = pneg %p31
      %p126 = pneg %p55
      %p127 = pneg %p52
      %p128 = pneg %p81
      %p129 = pneg %p78
      %s130 = smul.u32 64, %s13
      %p131 = scmp.lt.s32.totalorder %s130, 255
      %s132 = scalar_select %p131, %s130, 255
      %s133 = smul.addr %s132, 4
      %s134 = scalar_lea.vmem %s2, %s133
      %s135 = smul.u32 64, %s13
      %p136 = scmp.lt.s32.totalorder %s135, 255
      %s137 = scalar_select %p136, %s135, 255
      %s138 = smul.addr %s137, 4
      %s139 = scalar_lea.vmem %s0, %s138
      %s140 = smul.u32 64, %s13
      %s141 = smul.u32 64, %s13
      %p142 = scmp.lt.s32.totalorder %s141, 255
      %s143 = scalar_select %p142, %s141, 255
      %s144 = smul.addr %s143, 4
      %s145 = scalar_lea.vmem %s2, %s144
      %s146 = smul.u32 64, %s13
      %v148 = vld [vmem:[%s139] sm:$0xf]
      %v149 = vld [vmem:[%s139 + $0x4] sm:$0xf]
      %v150 = vld [vmem:[%s139 + $0x8] sm:$0xf]
      %v151 = vld [vmem:[%s139 + $0xc] sm:$0xf]
      %v152 = vld [vmem:[%s139 + $0x10] sm:$0xf]
      %v153 = vld [vmem:[%s139 + $0x14] sm:$0xf]
      %v154 = vld [vmem:[%s139 + $0x18] sm:$0xf]
      %v155 = vld [vmem:[%s139 + $0x1c] sm:$0xf]
      %v156 = vld [vmem:[%s139 + $0x20] sm:$0xf]
      %v157 = vld [vmem:[%s139 + $0x24] sm:$0xf]
      %v158 = vld [vmem:[%s139 + $0x28] sm:$0xf]
      %v159 = vld [vmem:[%s139 + $0x2c] sm:$0xf]
      %v160 = vld [vmem:[%s139 + $0x30] sm:$0xf]
      %v161 = vld [vmem:[%s139 + $0x34] sm:$0xf]
      %v162 = vld [vmem:[%s139 + $0x38] sm:$0xf]
      %v163 = vld [vmem:[%s139 + $0x3c] sm:$0xf]
      %v164 = vld [vmem:[%s139 + $0x40] sm:$0xf]
      %v165 = vld [vmem:[%s139 + $0x44] sm:$0xf]
      %v166 = vld [vmem:[%s139 + $0x48] sm:$0xf]
      %v167 = vld [vmem:[%s139 + $0x4c] sm:$0xf]
      %v168 = vld [vmem:[%s139 + $0x50] sm:$0xf]
      %v169 = vld [vmem:[%s139 + $0x54] sm:$0xf]
      %v170 = vld [vmem:[%s139 + $0x58] sm:$0xf]
      %v171 = vld [vmem:[%s139 + $0x5c] sm:$0xf]
      %v172 = vld [vmem:[%s139 + $0x60] sm:$0xf]
      %v173 = vld [vmem:[%s139 + $0x64] sm:$0xf]
      %v174 = vld [vmem:[%s139 + $0x68] sm:$0xf]
      %v175 = vld [vmem:[%s139 + $0x6c] sm:$0xf]
      %v176 = vld [vmem:[%s139 + $0x70] sm:$0xf]
      %v177 = vld [vmem:[%s139 + $0x74] sm:$0xf]
      %v178 = vld [vmem:[%s139 + $0x78] sm:$0xf]
      %v179 = vld [vmem:[%s139 + $0x7c] sm:$0xf]
      %v180 = vld [vmem:[%s139 + $0x80] sm:$0xf]
      %v181 = vld [vmem:[%s139 + $0x84] sm:$0xf]
      %v182 = vld [vmem:[%s139 + $0x88] sm:$0xf]
      %v183 = vld [vmem:[%s139 + $0x8c] sm:$0xf]
      %v184 = vld [vmem:[%s139 + $0x90] sm:$0xf]
      %v185 = vld [vmem:[%s139 + $0x94] sm:$0xf]
      %v186 = vld [vmem:[%s139 + $0x98] sm:$0xf]
      %v187 = vld [vmem:[%s139 + $0x9c] sm:$0xf]
      %v188 = vld [vmem:[%s139 + $0xa0] sm:$0xf]
      %v189 = vld [vmem:[%s139 + $0xa4] sm:$0xf]
      %v190 = vld [vmem:[%s139 + $0xa8] sm:$0xf]
      %v191 = vld [vmem:[%s139 + $0xac] sm:$0xf]
      %v192 = vld [vmem:[%s139 + $0xb0] sm:$0xf]
      %v193 = vld [vmem:[%s139 + $0xb4] sm:$0xf]
      %v194 = vld [vmem:[%s139 + $0xb8] sm:$0xf]
      %v195 = vld [vmem:[%s139 + $0xbc] sm:$0xf]
      %v196 = vld [vmem:[%s139 + $0xc0] sm:$0xf]
      %v197 = vld [vmem:[%s139 + $0xc4] sm:$0xf]
      %v198 = vld [vmem:[%s139 + $0xc8] sm:$0xf]
      %v199 = vld [vmem:[%s139 + $0xcc] sm:$0xf]
      %v200 = vld [vmem:[%s139 + $0xd0] sm:$0xf]
      %v201 = vld [vmem:[%s139 + $0xd4] sm:$0xf]
      %v202 = vld [vmem:[%s139 + $0xd8] sm:$0xf]
      %v203 = vld [vmem:[%s139 + $0xdc] sm:$0xf]
      %v204 = vld [vmem:[%s139 + $0xe0] sm:$0xf]
      %v205 = vld [vmem:[%s139 + $0xe4] sm:$0xf]
      %v206 = vld [vmem:[%s139 + $0xe8] sm:$0xf]
      %v207 = vld [vmem:[%s139 + $0xec] sm:$0xf]
      %v208 = vld [vmem:[%s139 + $0xf0] sm:$0xf]
      %v209 = vld [vmem:[%s139 + $0xf4] sm:$0xf]
      %v210 = vld [vmem:[%s139 + $0xf8] sm:$0xf]
      %v211 = vld [vmem:[%s139 + $0xfc] sm:$0xf]
      %v212 = vld [vmem:[%s1] sm:$0xf]
      %v213 = vld [vmem:[%s1 + $0x4] sm:$0xf]
      %v214 = vld [vmem:[%s1 + $0x8] sm:$0xf]
      %v215 = vld [vmem:[%s1 + $0xc] sm:$0x3]
      %v280 = vunpack.c.l.b16 %v148
      %v281 = vunpack.c.l.b16 %v149
      %v282 = vunpack.c.l.b16 %v150
      %v283 = vunpack.c.l.b16 %v151
      %v284 = vunpack.c.l.b16 %v152
      %v285 = vunpack.c.l.b16 %v153
      %v286 = vunpack.c.l.b16 %v154
      %v287 = vunpack.c.l.b16 %v155
      %v288 = vunpack.c.l.b16 %v156
      %v289 = vunpack.c.l.b16 %v157
      %v290 = vunpack.c.l.b16 %v158
      %v291 = vunpack.c.l.b16 %v159
      %v292 = vunpack.c.l.b16 %v160
      %v293 = vunpack.c.l.b16 %v161
      %v294 = vunpack.c.l.b16 %v162
      %v295 = vunpack.c.l.b16 %v163
      %v296 = vunpack.c.l.b16 %v164
      %v297 = vunpack.c.l.b16 %v165
      %v298 = vunpack.c.l.b16 %v166
      %v299 = vunpack.c.l.b16 %v167
      %v300 = vunpack.c.l.b16 %v168
      %v301 = vunpack.c.l.b16 %v169
      %v302 = vunpack.c.l.b16 %v170
      %v303 = vunpack.c.l.b16 %v171
      %v304 = vunpack.c.l.b16 %v172
      %v305 = vunpack.c.l.b16 %v173
      %v306 = vunpack.c.l.b16 %v174
      %v307 = vunpack.c.l.b16 %v175
      %v308 = vunpack.c.l.b16 %v176
      %v309 = vunpack.c.l.b16 %v177
      %v310 = vunpack.c.l.b16 %v178
      %v311 = vunpack.c.l.b16 %v179
      %v312 = vunpack.c.l.b16 %v180
      %v313 = vunpack.c.l.b16 %v181
      %v314 = vunpack.c.l.b16 %v182
      %v315 = vunpack.c.l.b16 %v183
      %v316 = vunpack.c.l.b16 %v184
      %v317 = vunpack.c.l.b16 %v185
      %v318 = vunpack.c.l.b16 %v186
      %v319 = vunpack.c.l.b16 %v187
      %v320 = vunpack.c.l.b16 %v188
      %v321 = vunpack.c.l.b16 %v189
      %v322 = vunpack.c.l.b16 %v190
      %v323 = vunpack.c.l.b16 %v191
      %v324 = vunpack.c.l.b16 %v192
      %v325 = vunpack.c.l.b16 %v193
      %v326 = vunpack.c.l.b16 %v194
      %v327 = vunpack.c.l.b16 %v195
      %v328 = vunpack.c.l.b16 %v196
      %v329 = vunpack.c.l.b16 %v197
      %v330 = vunpack.c.l.b16 %v198
      %v331 = vunpack.c.l.b16 %v199
      %v332 = vunpack.c.l.b16 %v200
      %v333 = vunpack.c.l.b16 %v201
      %v334 = vunpack.c.l.b16 %v202
      %v335 = vunpack.c.l.b16 %v203
      %v336 = vunpack.c.l.b16 %v204
      %v337 = vunpack.c.l.b16 %v205
      %v338 = vunpack.c.l.b16 %v206
      %v339 = vunpack.c.l.b16 %v207
      %v340 = vunpack.c.l.b16 %v208
      %v341 = vunpack.c.l.b16 %v209
      %v342 = vunpack.c.l.b16 %v210
      %v343 = vunpack.c.l.b16 %v211
      %v344 = vpack.c.b16 %v281, %v280
      %v345 = vpack.c.b16 %v283, %v282
      %v346 = vpack.c.b16 %v285, %v284
      %v347 = vpack.c.b16 %v287, %v286
      %v348 = vpack.c.b16 %v289, %v288
      %v349 = vpack.c.b16 %v291, %v290
      %v350 = vpack.c.b16 %v293, %v292
      %v351 = vpack.c.b16 %v295, %v294
      %v352 = vpack.c.b16 %v297, %v296
      %v353 = vpack.c.b16 %v299, %v298
      %v354 = vpack.c.b16 %v301, %v300
      %v355 = vpack.c.b16 %v303, %v302
      %v356 = vpack.c.b16 %v305, %v304
      %v357 = vpack.c.b16 %v307, %v306
      %v358 = vpack.c.b16 %v309, %v308
      %v359 = vpack.c.b16 %v311, %v310
      %v360 = vpack.c.b16 %v313, %v312
      %v361 = vpack.c.b16 %v315, %v314
      %v362 = vpack.c.b16 %v317, %v316
      %v363 = vpack.c.b16 %v319, %v318
      %v364 = vpack.c.b16 %v321, %v320
      %v365 = vpack.c.b16 %v323, %v322
      %v366 = vpack.c.b16 %v325, %v324
      %v367 = vpack.c.b16 %v327, %v326
      %v368 = vpack.c.b16 %v329, %v328
      %v369 = vpack.c.b16 %v331, %v330
      %v370 = vpack.c.b16 %v333, %v332
      %v371 = vpack.c.b16 %v335, %v334
      %v372 = vpack.c.b16 %v337, %v336
      %v373 = vpack.c.b16 %v339, %v338
      %v374 = vpack.c.b16 %v341, %v340
      %v375 = vpack.c.b16 %v343, %v342
      %v380 = vunpack.c.l.b16 %v212
      %v381 = vunpack.c.l.b16 %v213
      %v382 = vunpack.c.l.b16 %v214
      %v383 = vunpack.c.l.b16 %v215
      %v384 = vpack.c.b16 %v381, %v380
      %v385 = vpack.c.b16 %v383, %v382
      %vm387 = vcmask 220160
      %v389 = vsel %vm387, %v344, 0
      %v392 = vsel %vm387, %v345, 0
      %v395 = vsel %vm387, %v346, 0
      %v398 = vsel %vm387, %v347, 0
      %v401 = vsel %vm387, %v348, 0
      %v404 = vsel %vm387, %v349, 0
      %v407 = vsel %vm387, %v350, 0
      %v410 = vsel %vm387, %v351, 0
      %v413 = vsel %vm387, %v352, 0
      %v416 = vsel %vm387, %v353, 0
      %v419 = vsel %vm387, %v354, 0
      %v422 = vsel %vm387, %v355, 0
      %v425 = vsel %vm387, %v356, 0
      %v428 = vsel %vm387, %v357, 0
      %v431 = vsel %vm387, %v358, 0
      %v434 = vsel %vm387, %v359, 0
      %v437 = vsel %vm387, %v360, 0
      %v440 = vsel %vm387, %v361, 0
      %v443 = vsel %vm387, %v362, 0
      %v446 = vsel %vm387, %v363, 0
      %v449 = vsel %vm387, %v364, 0
      %v452 = vsel %vm387, %v365, 0
      %v455 = vsel %vm387, %v366, 0
      %v458 = vsel %vm387, %v367, 0
      %v461 = vsel %vm387, %v368, 0
      %v464 = vsel %vm387, %v369, 0
      %v467 = vsel %vm387, %v370, 0
      %v470 = vsel %vm387, %v371, 0
      %v473 = vsel %vm387, %v372, 0
      %v476 = vsel %vm387, %v373, 0
      %v479 = vsel %vm387, %v374, 0
      %v482 = vsel %vm387, %v375, 0
      %vm484 = vcmask 1044480
      %vm485 = vcmask 1045504
      %v486 = vsel %vm484, 4294967295, 65535
      %v487 = vsel %vm485, %v486, 0
      %v489 = vand.u32 %v385, %v487
      %491 = vmatprep.subr.bf16.mxu0 0
      %492 = vmatpush1.bf16.msra.mxu0 %v384
      %493 = vmatprep.subr.bf16.mxu0 0
      %494 = vmatpush1.bf16.msra.mxu0 %v489
      %495 = vmatprep.subr.bf16.mxu0 0
      %496 = vmatpush1.bf16.msra.mxu0 0
      %497 = vmatprep.subr.bf16.mxu0 0
      %498 = vmatpush1.bf16.msra.mxu0 0
      %499 = vmatprep.subr.bf16.mxu0 0
      %500 = vmatpush1.bf16.msra.mxu0 0
      %501 = vmatprep.subr.bf16.mxu0 0
      %502 = vmatpush1.bf16.msra.mxu0 0
      %503 = vmatprep.subr.bf16.mxu0 0
      %504 = vmatpush1.bf16.msra.mxu0 0
      %505 = vmatprep.subr.bf16.mxu0 0
      %506 = vmatpush1.bf16.msra.mxu0 0
      %507 = vmatprep.subr.bf16.mxu0 0
      %508 = vmatpush1.bf16.msra.mxu0 0
      %509 = vmatprep.subr.bf16.mxu0 0
      %510 = vmatpush1.bf16.msra.mxu0 0
      %511 = vmatprep.subr.bf16.mxu0 0
      %512 = vmatpush1.bf16.msra.mxu0 0
      %513 = vmatprep.subr.bf16.mxu0 0
      %514 = vmatpush1.bf16.msra.mxu0 0
      %515 = vmatprep.subr.bf16.mxu0 0
      %516 = vmatpush1.bf16.msra.mxu0 0
      %517 = vmatprep.subr.bf16.mxu0 0
      %518 = vmatpush1.bf16.msra.mxu0 0
      %519 = vmatprep.subr.bf16.mxu0 0
      %520 = vmatpush1.bf16.msra.mxu0 0
      %521 = vmatprep.subr.bf16.mxu0 0
      %522 = vmatpush1.bf16.msra.mxu0 0
      %523 = vmatprep.mubr.bf16.mxu0 0
      %524 = vmatmul.mubr.bf16.gmra.mrb[0].mxu0 %v389
      %v525 = vpop.f32.mrb[0].mxu0
      %v526 = vadd.f32 0.0, %v525
      %v527 = vpop.f32.mrb[0].mxu0
      %v528 = vpop.f32.mrb[0].mxu0
      %v529 = vadd.f32 0.0, %v528
      %v530 = vpop.f32.mrb[0].mxu0
      %531 = vmatprep.mubr.bf16.mxu0 0
      %532 = vmatmul.mubr.bf16.gmra.mrb[0].mxu0 %v392
      %v533 = vpop.f32.mrb[0].mxu0
      %v534 = vadd.f32 0.0, %v533
      %v535 = vpop.f32.mrb[0].mxu0
      %v536 = vpop.f32.mrb[0].mxu0
      %v537 = vadd.f32 0.0, %v536
      %v538 = vpop.f32.mrb[0].mxu0
      %539 = vmatprep.mubr.bf16.mxu0 0
      %540 = vmatmul.mubr.bf16.gmra.mrb[0].mxu0 %v395
      %v541 = vpop.f32.mrb[0].mxu0
      %v542 = vadd.f32 0.0, %v541
      %v543 = vpop.f32.mrb[0].mxu0
      %v544 = vpop.f32.mrb[0].mxu0
      %v545 = vadd.f32 0.0, %v544
      %v546 = vpop.f32.mrb[0].mxu0
      %547 = vmatprep.mubr.bf16.mxu0 0
      %548 = vmatmul.mubr.bf16.gmra.mrb[0].mxu0 %v398
      %v549 = vpop.f32.mrb[0].mxu0
      %v550 = vadd.f32 0.0, %v549
      %v551 = vpop.f32.mrb[0].mxu0
      %v552 = vpop.f32.mrb[0].mxu0
      %v553 = vadd.f32 0.0, %v552
      %v554 = vpop.f32.mrb[0].mxu0
      %555 = vmatprep.mubr.bf16.mxu0 0
      %556 = vmatmul.mubr.bf16.gmra.mrb[0].mxu0 %v401
      %v557 = vpop.f32.mrb[0].mxu0
      %v558 = vadd.f32 0.0, %v557
      %v559 = vpop.f32.mrb[0].mxu0
      %v560 = vpop.f32.mrb[0].mxu0
      %v561 = vadd.f32 0.0, %v560
      %v562 = vpop.f32.mrb[0].mxu0
      %563 = vmatprep.mubr.bf16.mxu0 0
      %564 = vmatmul.mubr.bf16.gmra.mrb[0].mxu0 %v404
      %v565 = vpop.f32.mrb[0].mxu0
      %v566 = vadd.f32 0.0, %v565
      %v567 = vpop.f32.mrb[0].mxu0
      %v568 = vpop.f32.mrb[0].mxu0
      %v569 = vadd.f32 0.0, %v568
      %v570 = vpop.f32.mrb[0].mxu0
      %571 = vmatprep.mubr.bf16.mxu0 0
      %572 = vmatmul.mubr.bf16.gmra.mrb[0].mxu0 %v407
      %v573 = vpop.f32.mrb[0].mxu0
      %v574 = vadd.f32 0.0, %v573
      %v575 = vpop.f32.mrb[0].mxu0
      %v576 = vpop.f32.mrb[0].mxu0
      %v577 = vadd.f32 0.0, %v576
      %v578 = vpop.f32.mrb[0].mxu0
      %579 = vmatprep.mubr.bf16.mxu0 0
      %580 = vmatmul.mubr.bf16.gmra.mrb[0].mxu0 %v410
      %v581 = vpop.f32.mrb[0].mxu0
      %v582 = vadd.f32 0.0, %v581
      %v583 = vpop.f32.mrb[0].mxu0
      %v584 = vpop.f32.mrb[0].mxu0
      %v585 = vadd.f32 0.0, %v584
      %v586 = vpop.f32.mrb[0].mxu0
      %587 = vmatprep.mubr.bf16.mxu0 0
      %588 = vmatmul.mubr.bf16.gmra.mrb[0].mxu0 %v413
      %v589 = vpop.f32.mrb[0].mxu0
      %v590 = vadd.f32 0.0, %v589
      %v591 = vpop.f32.mrb[0].mxu0
      %v592 = vpop.f32.mrb[0].mxu0
      %v593 = vadd.f32 0.0, %v592
      %v594 = vpop.f32.mrb[0].mxu0
      %595 = vmatprep.mubr.bf16.mxu0 0
      %596 = vmatmul.mubr.bf16.gmra.mrb[0].mxu0 %v416
      %v597 = vpop.f32.mrb[0].mxu0
      %v598 = vadd.f32 0.0, %v597
      %v599 = vpop.f32.mrb[0].mxu0
      %v600 = vpop.f32.mrb[0].mxu0
      %v601 = vadd.f32 0.0, %v600
      %v602 = vpop.f32.mrb[0].mxu0
      %603 = vmatprep.mubr.bf16.mxu0 0
      %604 = vmatmul.mubr.bf16.gmra.mrb[0].mxu0 %v419
      %v605 = vpop.f32.mrb[0].mxu0
      %v606 = vadd.f32 0.0, %v605
      %v607 = vpop.f32.mrb[0].mxu0
      %v608 = vpop.f32.mrb[0].mxu0
      %v609 = vadd.f32 0.0, %v608
      %v610 = vpop.f32.mrb[0].mxu0
      %611 = vmatprep.mubr.bf16.mxu0 0
      %612 = vmatmul.mubr.bf16.gmra.mrb[0].mxu0 %v422
      %v613 = vpop.f32.mrb[0].mxu0
      %v614 = vadd.f32 0.0, %v613
      %v615 = vpop.f32.mrb[0].mxu0
      %v616 = vpop.f32.mrb[0].mxu0
      %v617 = vadd.f32 0.0, %v616
      %v618 = vpop.f32.mrb[0].mxu0
      %619 = vmatprep.mubr.bf16.mxu0 0
      %620 = vmatmul.mubr.bf16.gmra.mrb[0].mxu0 %v425
      %v621 = vpop.f32.mrb[0].mxu0
      %v622 = vadd.f32 0.0, %v621
      %v623 = vpop.f32.mrb[0].mxu0
      %v624 = vpop.f32.mrb[0].mxu0
      %v625 = vadd.f32 0.0, %v624
      %v626 = vpop.f32.mrb[0].mxu0
      %627 = vmatprep.mubr.bf16.mxu0 0
      %628 = vmatmul.mubr.bf16.gmra.mrb[0].mxu0 %v428
      %v629 = vpop.f32.mrb[0].mxu0
      %v630 = vadd.f32 0.0, %v629
      %v631 = vpop.f32.mrb[0].mxu0
      %v632 = vpop.f32.mrb[0].mxu0
      %v633 = vadd.f32 0.0, %v632
      %v634 = vpop.f32.mrb[0].mxu0
      %635 = vmatprep.mubr.bf16.mxu0 0
      %636 = vmatmul.mubr.bf16.gmra.mrb[0].mxu0 %v431
      %v637 = vpop.f32.mrb[0].mxu0
      %v638 = vadd.f32 0.0, %v637
      %v639 = vpop.f32.mrb[0].mxu0
      %v640 = vpop.f32.mrb[0].mxu0
      %v641 = vadd.f32 0.0, %v640
      %v642 = vpop.f32.mrb[0].mxu0
      %643 = vmatprep.mubr.bf16.mxu0 0
      %644 = vmatmul.mubr.bf16.gmra.mrb[0].mxu0 %v434
      %v645 = vpop.f32.mrb[0].mxu0
      %v646 = vadd.f32 0.0, %v645
      %v647 = vpop.f32.mrb[0].mxu0
      %v648 = vpop.f32.mrb[0].mxu0
      %v649 = vadd.f32 0.0, %v648
      %v650 = vpop.f32.mrb[0].mxu0
      %651 = vmatprep.mubr.bf16.mxu0 0
      %652 = vmatmul.mubr.bf16.gmra.mrb[0].mxu0 %v437
      %v653 = vpop.f32.mrb[0].mxu0
      %v654 = vadd.f32 0.0, %v653
      %v655 = vpop.f32.mrb[0].mxu0
      %v656 = vpop.f32.mrb[0].mxu0
      %v657 = vadd.f32 0.0, %v656
      %v658 = vpop.f32.mrb[0].mxu0
      %659 = vmatprep.mubr.bf16.mxu0 0
      %660 = vmatmul.mubr.bf16.gmra.mrb[0].mxu0 %v440
      %v661 = vpop.f32.mrb[0].mxu0
      %v662 = vadd.f32 0.0, %v661
      %v663 = vpop.f32.mrb[0].mxu0
      %v664 = vpop.f32.mrb[0].mxu0
      %v665 = vadd.f32 0.0, %v664
      %v666 = vpop.f32.mrb[0].mxu0
      %667 = vmatprep.mubr.bf16.mxu0 0
      %668 = vmatmul.mubr.bf16.gmra.mrb[0].mxu0 %v443
      %v669 = vpop.f32.mrb[0].mxu0
      %v670 = vadd.f32 0.0, %v669
      %v671 = vpop.f32.mrb[0].mxu0
      %v672 = vpop.f32.mrb[0].mxu0
      %v673 = vadd.f32 0.0, %v672
      %v674 = vpop.f32.mrb[0].mxu0
      %675 = vmatprep.mubr.bf16.mxu0 0
      %676 = vmatmul.mubr.bf16.gmra.mrb[0].mxu0 %v446
      %v677 = vpop.f32.mrb[0].mxu0
      %v678 = vadd.f32 0.0, %v677
      %v679 = vpop.f32.mrb[0].mxu0
      %v680 = vpop.f32.mrb[0].mxu0
      %v681 = vadd.f32 0.0, %v680
      %v682 = vpop.f32.mrb[0].mxu0
      %683 = vmatprep.mubr.bf16.mxu0 0
      %684 = vmatmul.mubr.bf16.gmra.mrb[0].mxu0 %v449
      %v685 = vpop.f32.mrb[0].mxu0
      %v686 = vadd.f32 0.0, %v685
      %v687 = vpop.f32.mrb[0].mxu0
      %v688 = vpop.f32.mrb[0].mxu0
      %v689 = vadd.f32 0.0, %v688
      %v690 = vpop.f32.mrb[0].mxu0
      %691 = vmatprep.mubr.bf16.mxu0 0
      %692 = vmatmul.mubr.bf16.gmra.mrb[0].mxu0 %v452
      %v693 = vpop.f32.mrb[0].mxu0
      %v694 = vadd.f32 0.0, %v693
      %v695 = vpop.f32.mrb[0].mxu0
      %v696 = vpop.f32.mrb[0].mxu0
      %v697 = vadd.f32 0.0, %v696
      %v698 = vpop.f32.mrb[0].mxu0
      %699 = vmatprep.mubr.bf16.mxu0 0
      %700 = vmatmul.mubr.bf16.gmra.mrb[0].mxu0 %v455
      %v701 = vpop.f32.mrb[0].mxu0
      %v702 = vadd.f32 0.0, %v701
      %v703 = vpop.f32.mrb[0].mxu0
      %v704 = vpop.f32.mrb[0].mxu0
      %v705 = vadd.f32 0.0, %v704
      %v706 = vpop.f32.mrb[0].mxu0
      %707 = vmatprep.mubr.bf16.mxu0 0
      %708 = vmatmul.mubr.bf16.gmra.mrb[0].mxu0 %v458
      %v709 = vpop.f32.mrb[0].mxu0
      %v710 = vadd.f32 0.0, %v709
      %v711 = vpop.f32.mrb[0].mxu0
      %v712 = vpop.f32.mrb[0].mxu0
      %v713 = vadd.f32 0.0, %v712
      %v714 = vpop.f32.mrb[0].mxu0
      %715 = vmatprep.mubr.bf16.mxu0 0
      %716 = vmatmul.mubr.bf16.gmra.mrb[0].mxu0 %v461
      %v717 = vpop.f32.mrb[0].mxu0
      %v718 = vadd.f32 0.0, %v717
      %v719 = vpop.f32.mrb[0].mxu0
      %v720 = vpop.f32.mrb[0].mxu0
      %v721 = vadd.f32 0.0, %v720
      %v722 = vpop.f32.mrb[0].mxu0
      %723 = vmatprep.mubr.bf16.mxu0 0
      %724 = vmatmul.mubr.bf16.gmra.mrb[0].mxu0 %v464
      %v725 = vpop.f32.mrb[0].mxu0
      %v726 = vadd.f32 0.0, %v725
      %v727 = vpop.f32.mrb[0].mxu0
      %v728 = vpop.f32.mrb[0].mxu0
      %v729 = vadd.f32 0.0, %v728
      %v730 = vpop.f32.mrb[0].mxu0
      %731 = vmatprep.mubr.bf16.mxu0 0
      %732 = vmatmul.mubr.bf16.gmra.mrb[0].mxu0 %v467
      %v733 = vpop.f32.mrb[0].mxu0
      %v734 = vadd.f32 0.0, %v733
      %v735 = vpop.f32.mrb[0].mxu0
      %v736 = vpop.f32.mrb[0].mxu0
      %v737 = vadd.f32 0.0, %v736
      %v738 = vpop.f32.mrb[0].mxu0
      %739 = vmatprep.mubr.bf16.mxu0 0
      %740 = vmatmul.mubr.bf16.gmra.mrb[0].mxu0 %v470
      %v741 = vpop.f32.mrb[0].mxu0
      %v742 = vadd.f32 0.0, %v741
      %v743 = vpop.f32.mrb[0].mxu0
      %v744 = vpop.f32.mrb[0].mxu0
      %v745 = vadd.f32 0.0, %v744
      %v746 = vpop.f32.mrb[0].mxu0
      %747 = vmatprep.mubr.bf16.mxu0 0
      %748 = vmatmul.mubr.bf16.gmra.mrb[0].mxu0 %v473
      %v749 = vpop.f32.mrb[0].mxu0
      %v750 = vadd.f32 0.0, %v749
      %v751 = vpop.f32.mrb[0].mxu0
      %v752 = vpop.f32.mrb[0].mxu0
      %v753 = vadd.f32 0.0, %v752
      %v754 = vpop.f32.mrb[0].mxu0
      %755 = vmatprep.mubr.bf16.mxu0 0
      %756 = vmatmul.mubr.bf16.gmra.mrb[0].mxu0 %v476
      %v757 = vpop.f32.mrb[0].mxu0
      %v758 = vadd.f32 0.0, %v757
      %v759 = vpop.f32.mrb[0].mxu0
      %v760 = vpop.f32.mrb[0].mxu0
      %v761 = vadd.f32 0.0, %v760
      %v762 = vpop.f32.mrb[0].mxu0
      %763 = vmatprep.mubr.bf16.mxu0 0
      %764 = vmatmul.mubr.bf16.gmra.mrb[0].mxu0 %v479
      %v765 = vpop.f32.mrb[0].mxu0
      %v766 = vadd.f32 0.0, %v765
      %v767 = vpop.f32.mrb[0].mxu0
      %v768 = vpop.f32.mrb[0].mxu0
      %v769 = vadd.f32 0.0, %v768
      %v770 = vpop.f32.mrb[0].mxu0
      %771 = vmatprep.mubr.bf16.mxu0 0
      %772 = vmatmul.mubr.bf16.gmra.mrb[0].mxu0 %v482
      %v773 = vpop.f32.mrb[0].mxu0
      %v774 = vadd.f32 0.0, %v773
      %v775 = vpop.f32.mrb[0].mxu0
      %v776 = vpop.f32.mrb[0].mxu0
      %v777 = vadd.f32 0.0, %v776
      %v778 = vpop.f32.mrb[0].mxu0
      %779 = vdwg.mxu0
      %v780 = vpack.c.bf16 %v529, %v526
      %v781 = vpack.c.bf16 %v537, %v534
      %v782 = vpack.c.bf16 %v545, %v542
      %v783 = vpack.c.bf16 %v553, %v550
      %v784 = vpack.c.bf16 %v561, %v558
      %v785 = vpack.c.bf16 %v569, %v566
      %v786 = vpack.c.bf16 %v577, %v574
      %v787 = vpack.c.bf16 %v585, %v582
      %v788 = vpack.c.bf16 %v593, %v590
      %v789 = vpack.c.bf16 %v601, %v598
      %v790 = vpack.c.bf16 %v609, %v606
      %v791 = vpack.c.bf16 %v617, %v614
      %v792 = vpack.c.bf16 %v625, %v622
      %v793 = vpack.c.bf16 %v633, %v630
      %v794 = vpack.c.bf16 %v641, %v638
      %v795 = vpack.c.bf16 %v649, %v646
      %v796 = vpack.c.bf16 %v657, %v654
      %v797 = vpack.c.bf16 %v665, %v662
      %v798 = vpack.c.bf16 %v673, %v670
      %v799 = vpack.c.bf16 %v681, %v678
      %v800 = vpack.c.bf16 %v689, %v686
      %v801 = vpack.c.bf16 %v697, %v694
      %v802 = vpack.c.bf16 %v705, %v702
      %v803 = vpack.c.bf16 %v713, %v710
      %v804 = vpack.c.bf16 %v721, %v718
      %v805 = vpack.c.bf16 %v729, %v726
      %v806 = vpack.c.bf16 %v737, %v734
      %v807 = vpack.c.bf16 %v745, %v742
      %v808 = vpack.c.bf16 %v753, %v750
      %v809 = vpack.c.bf16 %v761, %v758
      %v810 = vpack.c.bf16 %v769, %v766
      %v811 = vpack.c.bf16 %v777, %v774
      %v844 = vunpack.c.l.b16 %v780
      %v845 = vunpack.c.h.b16 %v780
      %v846 = vunpack.c.l.b16 %v781
      %v847 = vunpack.c.h.b16 %v781
      %v848 = vunpack.c.l.b16 %v782
      %v849 = vunpack.c.h.b16 %v782
      %v850 = vunpack.c.l.b16 %v783
      %v851 = vunpack.c.h.b16 %v783
      %v852 = vunpack.c.l.b16 %v784
      %v853 = vunpack.c.h.b16 %v784
      %v854 = vunpack.c.l.b16 %v785
      %v855 = vunpack.c.h.b16 %v785
      %v856 = vunpack.c.l.b16 %v786
      %v857 = vunpack.c.h.b16 %v786
      %v858 = vunpack.c.l.b16 %v787
      %v859 = vunpack.c.h.b16 %v787
      %v860 = vunpack.c.l.b16 %v788
      %v861 = vunpack.c.h.b16 %v788
      %v862 = vunpack.c.l.b16 %v789
      %v863 = vunpack.c.h.b16 %v789
      %v864 = vunpack.c.l.b16 %v790
      %v865 = vunpack.c.h.b16 %v790
      %v866 = vunpack.c.l.b16 %v791
      %v867 = vunpack.c.h.b16 %v791
      %v868 = vunpack.c.l.b16 %v792
      %v869 = vunpack.c.h.b16 %v792
      %v870 = vunpack.c.l.b16 %v793
      %v871 = vunpack.c.h.b16 %v793
      %v872 = vunpack.c.l.b16 %v794
      %v873 = vunpack.c.h.b16 %v794
      %v874 = vunpack.c.l.b16 %v795
      %v875 = vunpack.c.h.b16 %v795
      %v876 = vunpack.c.l.b16 %v796
      %v877 = vunpack.c.h.b16 %v796
      %v878 = vunpack.c.l.b16 %v797
      %v879 = vunpack.c.h.b16 %v797
      %v880 = vunpack.c.l.b16 %v798
      %v881 = vunpack.c.h.b16 %v798
      %v882 = vunpack.c.l.b16 %v799
      %v883 = vunpack.c.h.b16 %v799
      %v884 = vunpack.c.l.b16 %v800
      %v885 = vunpack.c.h.b16 %v800
      %v886 = vunpack.c.l.b16 %v801
      %v887 = vunpack.c.h.b16 %v801
      %v888 = vunpack.c.l.b16 %v802
      %v889 = vunpack.c.h.b16 %v802
      %v890 = vunpack.c.l.b16 %v803
      %v891 = vunpack.c.h.b16 %v803
      %v892 = vunpack.c.l.b16 %v804
      %v893 = vunpack.c.h.b16 %v804
      %v894 = vunpack.c.l.b16 %v805
      %v895 = vunpack.c.h.b16 %v805
      %v896 = vunpack.c.l.b16 %v806
      %v897 = vunpack.c.h.b16 %v806
      %v898 = vunpack.c.l.b16 %v807
      %v899 = vunpack.c.h.b16 %v807
      %v900 = vunpack.c.l.b16 %v808
      %v901 = vunpack.c.h.b16 %v808
      %v902 = vunpack.c.l.b16 %v809
      %v903 = vunpack.c.h.b16 %v809
      %v904 = vunpack.c.l.b16 %v810
      %v905 = vunpack.c.h.b16 %v810
      %v906 = vunpack.c.l.b16 %v811
      %v907 = vunpack.c.h.b16 %v811
      %v908 = vpack.c.b16 %v844, %v844
      %v909 = vpack.c.b16 %v845, %v845
      %v910 = vpack.c.b16 %v846, %v846
      %v911 = vpack.c.b16 %v847, %v847
      %v912 = vpack.c.b16 %v848, %v848
      %v913 = vpack.c.b16 %v849, %v849
      %v914 = vpack.c.b16 %v850, %v850
      %v915 = vpack.c.b16 %v851, %v851
      %v916 = vpack.c.b16 %v852, %v852
      %v917 = vpack.c.b16 %v853, %v853
      %v918 = vpack.c.b16 %v854, %v854
      %v919 = vpack.c.b16 %v855, %v855
      %v920 = vpack.c.b16 %v856, %v856
      %v921 = vpack.c.b16 %v857, %v857
      %v922 = vpack.c.b16 %v858, %v858
      %v923 = vpack.c.b16 %v859, %v859
      %v924 = vpack.c.b16 %v860, %v860
      %v925 = vpack.c.b16 %v861, %v861
      %v926 = vpack.c.b16 %v862, %v862
      %v927 = vpack.c.b16 %v863, %v863
      %v928 = vpack.c.b16 %v864, %v864
      %v929 = vpack.c.b16 %v865, %v865
      %v930 = vpack.c.b16 %v866, %v866
      %v931 = vpack.c.b16 %v867, %v867
      %v932 = vpack.c.b16 %v868, %v868
      %v933 = vpack.c.b16 %v869, %v869
      %v934 = vpack.c.b16 %v870, %v870
      %v935 = vpack.c.b16 %v871, %v871
      %v936 = vpack.c.b16 %v872, %v872
      %v937 = vpack.c.b16 %v873, %v873
      %v938 = vpack.c.b16 %v874, %v874
      %v939 = vpack.c.b16 %v875, %v875
      %v940 = vpack.c.b16 %v876, %v876
      %v941 = vpack.c.b16 %v877, %v877
      %v942 = vpack.c.b16 %v878, %v878
      %v943 = vpack.c.b16 %v879, %v879
      %v944 = vpack.c.b16 %v880, %v880
      %v945 = vpack.c.b16 %v881, %v881
      %v946 = vpack.c.b16 %v882, %v882
      %v947 = vpack.c.b16 %v883, %v883
      %v948 = vpack.c.b16 %v884, %v884
      %v949 = vpack.c.b16 %v885, %v885
      %v950 = vpack.c.b16 %v886, %v886
      %v951 = vpack.c.b16 %v887, %v887
      %v952 = vpack.c.b16 %v888, %v888
      %v953 = vpack.c.b16 %v889, %v889
      %v954 = vpack.c.b16 %v890, %v890
      %v955 = vpack.c.b16 %v891, %v891
      %v956 = vpack.c.b16 %v892, %v892
      %v957 = vpack.c.b16 %v893, %v893
      %v958 = vpack.c.b16 %v894, %v894
      %v959 = vpack.c.b16 %v895, %v895
      %v960 = vpack.c.b16 %v896, %v896
      %v961 = vpack.c.b16 %v897, %v897
      %v962 = vpack.c.b16 %v898, %v898
      %v963 = vpack.c.b16 %v899, %v899
      %v964 = vpack.c.b16 %v900, %v900
      %v965 = vpack.c.b16 %v901, %v901
      %v966 = vpack.c.b16 %v902, %v902
      %v967 = vpack.c.b16 %v903, %v903
      %v968 = vpack.c.b16 %v904, %v904
      %v969 = vpack.c.b16 %v905, %v905
      %v970 = vpack.c.b16 %v906, %v906
      %v971 = vpack.c.b16 %v907, %v907
      %vm1036 = vcmask 125952
      %1037 = vst.msk [vmem:[%s145] sm:$0xf] %vm1036, %v908
      %1038 = vst.msk [vmem:[%s145 + $0x4] sm:$0xf] %vm1036, %v909
      %1039 = vst.msk [vmem:[%s145 + $0x8] sm:$0xf] %vm1036, %v910
      %1040 = vst.msk [vmem:[%s145 + $0xc] sm:$0xf] %vm1036, %v911
      %1041 = vst.msk [vmem:[%s145 + $0x10] sm:$0xf] %vm1036, %v912
      %1042 = vst.msk [vmem:[%s145 + $0x14] sm:$0xf] %vm1036, %v913
      %1043 = vst.msk [vmem:[%s145 + $0x18] sm:$0xf] %vm1036, %v914
      %1044 = vst.msk [vmem:[%s145 + $0x1c] sm:$0xf] %vm1036, %v915
      %1045 = vst.msk [vmem:[%s145 + $0x20] sm:$0xf] %vm1036, %v916
      %1046 = vst.msk [vmem:[%s145 + $0x24] sm:$0xf] %vm1036, %v917
      %1047 = vst.msk [vmem:[%s145 + $0x28] sm:$0xf] %vm1036, %v918
      %1048 = vst.msk [vmem:[%s145 + $0x2c] sm:$0xf] %vm1036, %v919
      %1049 = vst.msk [vmem:[%s145 + $0x30] sm:$0xf] %vm1036, %v920
      %1050 = vst.msk [vmem:[%s145 + $0x34] sm:$0xf] %vm1036, %v921
      %1051 = vst.msk [vmem:[%s145 + $0x38] sm:$0xf] %vm1036, %v922
      %1052 = vst.msk [vmem:[%s145 + $0x3c] sm:$0xf] %vm1036, %v923
      %1053 = vst.msk [vmem:[%s145 + $0x40] sm:$0xf] %vm1036, %v924
      %1054 = vst.msk [vmem:[%s145 + $0x44] sm:$0xf] %vm1036, %v925
      %1055 = vst.msk [vmem:[%s145 + $0x48] sm:$0xf] %vm1036, %v926
      %1056 = vst.msk [vmem:[%s145 + $0x4c] sm:$0xf] %vm1036, %v927
      %1057 = vst.msk [vmem:[%s145 + $0x50] sm:$0xf] %vm1036, %v928
      %1058 = vst.msk [vmem:[%s145 + $0x54] sm:$0xf] %vm1036, %v929
      %1059 = vst.msk [vmem:[%s145 + $0x58] sm:$0xf] %vm1036, %v930
      %1060 = vst.msk [vmem:[%s145 + $0x5c] sm:$0xf] %vm1036, %v931
      %1061 = vst.msk [vmem:[%s145 + $0x60] sm:$0xf] %vm1036, %v932
      %1062 = vst.msk [vmem:[%s145 + $0x64] sm:$0xf] %vm1036, %v933
      %1063 = vst.msk [vmem:[%s145 + $0x68] sm:$0xf] %vm1036, %v934
      %1064 = vst.msk [vmem:[%s145 + $0x6c] sm:$0xf] %vm1036, %v935
      %1065 = vst.msk [vmem:[%s145 + $0x70] sm:$0xf] %vm1036, %v936
      %1066 = vst.msk [vmem:[%s145 + $0x74] sm:$0xf] %vm1036, %v937
      %1067 = vst.msk [vmem:[%s145 + $0x78] sm:$0xf] %vm1036, %v938
      %1068 = vst.msk [vmem:[%s145 + $0x7c] sm:$0xf] %vm1036, %v939
      %1069 = vst.msk [vmem:[%s145 + $0x80] sm:$0xf] %vm1036, %v940
      %1070 = vst.msk [vmem:[%s145 + $0x84] sm:$0xf] %vm1036, %v941
      %1071 = vst.msk [vmem:[%s145 + $0x88] sm:$0xf] %vm1036, %v942
      %1072 = vst.msk [vmem:[%s145 + $0x8c] sm:$0xf] %vm1036, %v943
      %1073 = vst.msk [vmem:[%s145 + $0x90] sm:$0xf] %vm1036, %v944
      %1074 = vst.msk [vmem:[%s145 + $0x94] sm:$0xf] %vm1036, %v945
      %1075 = vst.msk [vmem:[%s145 + $0x98] sm:$0xf] %vm1036, %v946
      %1076 = vst.msk [vmem:[%s145 + $0x9c] sm:$0xf] %vm1036, %v947
      %1077 = vst.msk [vmem:[%s145 + $0xa0] sm:$0xf] %vm1036, %v948
      %1078 = vst.msk [vmem:[%s145 + $0xa4] sm:$0xf] %vm1036, %v949
      %1079 = vst.msk [vmem:[%s145 + $0xa8] sm:$0xf] %vm1036, %v950
      %1080 = vst.msk [vmem:[%s145 + $0xac] sm:$0xf] %vm1036, %v951
      %1081 = vst.msk [vmem:[%s145 + $0xb0] sm:$0xf] %vm1036, %v952
      %1082 = vst.msk [vmem:[%s145 + $0xb4] sm:$0xf] %vm1036, %v953
      %1083 = vst.msk [vmem:[%s145 + $0xb8] sm:$0xf] %vm1036, %v954
      %1084 = vst.msk [vmem:[%s145 + $0xbc] sm:$0xf] %vm1036, %v955
      %1085 = vst.msk [vmem:[%s145 + $0xc0] sm:$0xf] %vm1036, %v956
      %1086 = vst.msk [vmem:[%s145 + $0xc4] sm:$0xf] %vm1036, %v957
      %1087 = vst.msk [vmem:[%s145 + $0xc8] sm:$0xf] %vm1036, %v958
      %1088 = vst.msk [vmem:[%s145 + $0xcc] sm:$0xf] %vm1036, %v959
      %1089 = vst.msk [vmem:[%s145 + $0xd0] sm:$0xf] %vm1036, %v960
      %1090 = vst.msk [vmem:[%s145 + $0xd4] sm:$0xf] %vm1036, %v961
      %1091 = vst.msk [vmem:[%s145 + $0xd8] sm:$0xf] %vm1036, %v962
      %1092 = vst.msk [vmem:[%s145 + $0xdc] sm:$0xf] %vm1036, %v963
      %1093 = vst.msk [vmem:[%s145 + $0xe0] sm:$0xf] %vm1036, %v964
      %1094 = vst.msk [vmem:[%s145 + $0xe4] sm:$0xf] %vm1036, %v965
      %1095 = vst.msk [vmem:[%s145 + $0xe8] sm:$0xf] %vm1036, %v966
      %1096 = vst.msk [vmem:[%s145 + $0xec] sm:$0xf] %vm1036, %v967
      %1097 = vst.msk [vmem:[%s145 + $0xf0] sm:$0xf] %vm1036, %v968
      %1098 = vst.msk [vmem:[%s145 + $0xf4] sm:$0xf] %vm1036, %v969
      %1099 = vst.msk [vmem:[%s145 + $0xf8] sm:$0xf] %vm1036, %v970
      %1100 = vst.msk [vmem:[%s145 + $0xfc] sm:$0xf] %vm1036, %v971
      %s1101 = smul.u32 64, %s13
      %p1102 = scmp.lt.s32.totalorder %s1101, 255
      %s1103 = scalar_select %p1102, %s1101, 255
      %s1104 = smul.addr %s1103, 4
      %s1105 = scalar_lea.vmem %s2, %s1104
      // Predicated region
      $region29: #{l0_wide_resnet_forward.10} parent=27 // pred_check
        %p1106 = pneg %p78
      $region30: #{l0_wide_resnet_forward.10} parent=27 // pred_check_branch
        %1108 = sbr.rel (%p1106) target = $region32
      $region31: #{l0_wide_resnet_forward.10} parent=27 // pred_region
        %s1109 = smul.u32 64, %s13
      $region32: #{l0_wide_resnet_forward.10} parent=27 // pred_fallthru
        _
    $region28: #{l0_wide_resnet_forward.10} parent=5 // pred_fallthru
      _
    %p1110 = scmp.le.s32.totalorder 2, %s8
    // Predicated region
    $region33: #{l0_wide_resnet_forward.10} parent=5 // pred_check
      %p1111 = pneg %p1110
    $region34: #{l0_wide_resnet_forward.10} parent=5 // pred_check_branch
      %1113 = sbr.rel (%p1111) target = $region36
    $region35: #{l0_wide_resnet_forward.10} parent=5 // pred_region
      %s1114 = ssub.s32 %s8, 2
      // Predicated region
      $region37: #{l0_wide_resnet_forward.10} parent=35 // pred_check
        %p1115 = pneg %p84
      $region38: #{l0_wide_resnet_forward.10} parent=35 // pred_check_branch
        %1117 = sbr.rel (%p1115) target = $region40
      $region39: #{l0_wide_resnet_forward.10} parent=35 // pred_region
        %s1118 = smul.u32 64, %s14
        %p1119 = scmp.lt.s32.totalorder %s1118, 255
        %s1120 = scalar_select %p1119, %s1118, 255
        %s1121 = smul.addr %s1120, 4
        %s1122 = scalar_lea.vmem %s2, %s1121
      $region40: #{l0_wide_resnet_forward.10} parent=35 // pred_fallthru
        _
    $region36: #{l0_wide_resnet_forward.10} parent=5 // pred_fallthru
      _
  $region6: #{l0_wide_resnet_forward.10} parent=0 // loop_footer
    %s12 = sadd.s32 1, %s8
  $region7: #{l0_wide_resnet_forward.10} parent=0 // loop_footer_branch
    %7 = sbr.rel target = $region3
  $region8: #{l0_wide_resnet_forward.10} parent=0 // loop_exit
    _

// kernel: l0_wide_resnet_forward.12
$region0: #{l0_wide_resnet_forward.12}
  #allocation0 [shape = 'u32[]', space=smem, size = 0x4, offset = 0x4, fixed_abs, tag = 'smem constant byte address 0x4 - core index']
  #allocation1 [shape = 'u32[144,128]{1,0:T(1,128)}', space=vmem, size = 0x12000, scoped, tag = 'internal scratch']
  %s0 = inlined_call_operand.vmem [shape: bf16[2048,144], index: 0, kind: input, shape index: {}]
  %s1 = inlined_call_operand.vmem [shape: bf16[144,16], index: 1, kind: input, shape index: {}]
  %s2 = inlined_call_operand.vmem [shape: f32[1,16], index: 2, kind: input, shape index: {}]
  %s3 = inlined_call_operand.vmem [shape: f32[1,16], index: 3, kind: input, shape index: {}]
  %s4 = inlined_call_operand.vmem [shape: bf16[2048,16], index: 4, kind: output, shape index: {}]
  %s5 = sld [smem:[#allocation0]]
  $region49: #{l0_wide_resnet_forward.12} parent=0
    _
  %s7 = ssub.s32 1, %s5
  %s8 = scalar_select 0, %s7, %s5
  loop: start=0, step=1, limit=6
  $region2: #{l0_wide_resnet_forward.12} parent=0 // loop_pre_header
    _
  $region3: #{l0_wide_resnet_forward.12} parent=0 // loop_header
    %s10 = sphi 0, %s14
    %p11 = scmp.ge.s32.totalorder %s10, 6
    %s20 = sphi 0, %s22
    %s23 = sphi 0, %s20
    %s24 = sphi 0, %s23
    %s40 = sphi 0, %s24
    %s44 = sphi 0, %s44
    %s46 = sphi 0, %s44
    %s47 = sphi 0, %s46
    %s61 = sphi 0, %s47
    %s65 = sphi 0, %s65
    %s67 = sphi 0, %s65
    %s68 = sphi 0, %s67
    %s82 = sphi 0, %s68
    %s86 = sphi 0, %s86
    %s88 = sphi 0, %s86
    %s89 = sphi 0, %s88
    %s103 = sphi 0, %s89
    %s109 = sphi 0, %s111
    %s112 = sphi 0, %s109
    %s113 = sphi 0, %s112
    %s129 = sphi 0, %s113
  $region4: #{l0_wide_resnet_forward.12} parent=0 // loop_header_branch
    %13 = sbr.rel (%p11) target = $region8
  $region5: #{l0_wide_resnet_forward.12} parent=0 // loop_body
    %s15 = ssub.s32 %s10, 1
    %s16 = ssub.s32 %s10, 2
    %s17 = sadd.s32 %s10, 1
    %s18 = ssub.s32 %s10, %s17
    %p19 = scmp.eq.s32.totalorder %s18, 0
    %s21 = sadd.s32 %s20, 1
    %s22 = scalar_select %p19, %s20, %s21
    %p25 = pneg %p19
    %p26 = scmp.eq.s32.totalorder %s10, 3
    %p27 = por %p25, %p26
    %p28 = scmp.ne.s32.totalorder %s20, %s23
    %p29 = scmp.eq.s32.totalorder %s10, 0
    %p30 = por %p28, %p29
    %p31 = scmp.ne.s32.totalorder %s20, %s23
    %p32 = scmp.eq.s32.totalorder %s15, 3
    %p33 = por %p31, %p32
    %p34 = scmp.ne.s32.totalorder %s23, %s24
    %p35 = scmp.eq.s32.totalorder %s15, 0
    %p36 = por %p34, %p35
    %p37 = scmp.ne.s32.totalorder %s23, %s24
    %p38 = scmp.eq.s32.totalorder %s16, 3
    %p39 = por %p37, %p38
    %p41 = scmp.ne.s32.totalorder %s24, %s40
    %p42 = scmp.eq.s32.totalorder %s16, 0
    %p43 = por %p41, %p42
    %s45 = sadd.s32 %s44, 1
    %p48 = scmp.eq.s32.totalorder %s10, 3
    %p49 = scmp.ne.s32.totalorder %s44, %s46
    %p50 = scmp.eq.s32.totalorder %s10, 0
    %p51 = por %p49, %p50
    %p52 = scmp.ne.s32.totalorder %s44, %s46
    %p53 = scmp.eq.s32.totalorder %s15, 3
    %p54 = por %p52, %p53
    %p55 = scmp.ne.s32.totalorder %s46, %s47
    %p56 = scmp.eq.s32.totalorder %s15, 0
    %p57 = por %p55, %p56
    %p58 = scmp.ne.s32.totalorder %s46, %s47
    %p59 = scmp.eq.s32.totalorder %s16, 3
    %p60 = por %p58, %p59
    %p62 = scmp.ne.s32.totalorder %s47, %s61
    %p63 = scmp.eq.s32.totalorder %s16, 0
    %p64 = por %p62, %p63
    %s66 = sadd.s32 %s65, 1
    %p69 = scmp.eq.s32.totalorder %s10, 3
    %p70 = scmp.ne.s32.totalorder %s65, %s67
    %p71 = scmp.eq.s32.totalorder %s10, 0
    %p72 = por %p70, %p71
    %p73 = scmp.ne.s32.totalorder %s65, %s67
    %p74 = scmp.eq.s32.totalorder %s15, 3
    %p75 = por %p73, %p74
    %p76 = scmp.ne.s32.totalorder %s67, %s68
    %p77 = scmp.eq.s32.totalorder %s15, 0
    %p78 = por %p76, %p77
    %p79 = scmp.ne.s32.totalorder %s67, %s68
    %p80 = scmp.eq.s32.totalorder %s16, 3
    %p81 = por %p79, %p80
    %p83 = scmp.ne.s32.totalorder %s68, %s82
    %p84 = scmp.eq.s32.totalorder %s16, 0
    %p85 = por %p83, %p84
    %s87 = sadd.s32 %s86, 1
    %p90 = scmp.eq.s32.totalorder %s10, 3
    %p91 = scmp.ne.s32.totalorder %s86, %s88
    %p92 = scmp.eq.s32.totalorder %s10, 0
    %p93 = por %p91, %p92
    %p94 = scmp.ne.s32.totalorder %s86, %s88
    %p95 = scmp.eq.s32.totalorder %s15, 3
    %p96 = por %p94, %p95
    %p97 = scmp.ne.s32.totalorder %s88, %s89
    %p98 = scmp.eq.s32.totalorder %s15, 0
    %p99 = por %p97, %p98
    %p100 = scmp.ne.s32.totalorder %s88, %s89
    %p101 = scmp.eq.s32.totalorder %s16, 3
    %p102 = por %p100, %p101
    %p104 = scmp.ne.s32.totalorder %s89, %s103
    %p105 = scmp.eq.s32.totalorder %s16, 0
    %p106 = por %p104, %p105
    %s107 = ssub.s32 %s10, %s17
    %p108 = scmp.eq.s32.totalorder %s107, 0
    %s110 = sadd.s32 %s109, 1
    %s111 = scalar_select %p108, %s109, %s110
    %p114 = pneg %p108
    %p115 = scmp.eq.s32.totalorder %s10, 3
    %p116 = por %p114, %p115
    %p117 = scmp.ne.s32.totalorder %s109, %s112
    %p118 = scmp.eq.s32.totalorder %s10, 0
    %p119 = por %p117, %p118
    %p120 = scmp.ne.s32.totalorder %s109, %s112
    %p121 = scmp.eq.s32.totalorder %s15, 3
    %p122 = por %p120, %p121
    %p123 = scmp.ne.s32.totalorder %s112, %s113
    %p124 = scmp.eq.s32.totalorder %s15, 0
    %p125 = por %p123, %p124
    %p126 = scmp.ne.s32.totalorder %s112, %s113
    %p127 = scmp.eq.s32.totalorder %s16, 3
    %p128 = por %p126, %p127
    %p130 = scmp.ne.s32.totalorder %s113, %s129
    %p131 = scmp.eq.s32.totalorder %s16, 0
    %p132 = por %p130, %p131
    %p133 = scmp.le.s32.totalorder 1, %s10
    %p134 = scmp.lt.s32.totalorder %s10, 5
    %p135 = pnand %p133, %p134
    %p136 = pneg %p135
    // Predicated region
    $region9: #{l0_wide_resnet_forward.12} parent=5 // pred_check
      _
    $region10: #{l0_wide_resnet_forward.12} parent=5 // pred_check_branch
      %138 = sbr.rel (%p135) target = $region12
    $region11: #{l0_wide_resnet_forward.12} parent=5 // pred_region
      %s139 = ssub.s32 %s10, 1
      // Predicated region
      $region13: #{l0_wide_resnet_forward.12} parent=11 // pred_check
        %p140 = pneg %p57
      $region14: #{l0_wide_resnet_forward.12} parent=11 // pred_check_branch
        %142 = sbr.rel (%p140) target = $region16
      $region15: #{l0_wide_resnet_forward.12} parent=11 // pred_region
        _
      $region16: #{l0_wide_resnet_forward.12} parent=11 // pred_fallthru
        _
      // Predicated region
      $region17: #{l0_wide_resnet_forward.12} parent=11 // pred_check
        %p143 = pneg %p78
      $region18: #{l0_wide_resnet_forward.12} parent=11 // pred_check_branch
        %145 = sbr.rel (%p143) target = $region20
      $region19: #{l0_wide_resnet_forward.12} parent=11 // pred_region
        _
      $region20: #{l0_wide_resnet_forward.12} parent=11 // pred_fallthru
        _
      // Predicated region
      $region21: #{l0_wide_resnet_forward.12} parent=11 // pred_check
        %p146 = pneg %p99
      $region22: #{l0_wide_resnet_forward.12} parent=11 // pred_check_branch
        %148 = sbr.rel (%p146) target = $region24
      $region23: #{l0_wide_resnet_forward.12} parent=11 // pred_region
        _
      $region24: #{l0_wide_resnet_forward.12} parent=11 // pred_fallthru
        _
    $region12: #{l0_wide_resnet_forward.12} parent=5 // pred_fallthru
      _
    %p149 = scmp.lt.s32.totalorder %s10, 4
    // Predicated region
    $region25: #{l0_wide_resnet_forward.12} parent=5 // pred_check
      %p150 = pneg %p149
    $region26: #{l0_wide_resnet_forward.12} parent=5 // pred_check_branch
      %152 = sbr.rel (%p150) target = $region28
    $region27: #{l0_wide_resnet_forward.12} parent=5 // pred_region
      // Predicated region
      $region29: #{l0_wide_resnet_forward.12} parent=27 // pred_check
        %p153 = pneg %p30
      $region30: #{l0_wide_resnet_forward.12} parent=27 // pred_check_branch
        %155 = sbr.rel (%p153) target = $region32
      $region31: #{l0_wide_resnet_forward.12} parent=27 // pred_region
        %s156 = smul.u32 64, %s10
        %p157 = scmp.lt.s32.totalorder %s156, 255
        %s158 = scalar_select %p157, %s156, 255
        %s159 = smul.addr %s158, 2
        %s160 = smul.addr %s159, 4
        %s161 = scalar_lea.vmem %s0, %s160
        %s162 = smul.u32 64, %s10
      $region32: #{l0_wide_resnet_forward.12} parent=27 // pred_fallthru
        _
    $region28: #{l0_wide_resnet_forward.12} parent=5 // pred_fallthru
      _
    %p163 = scmp.le.s32.totalorder 1, %s10
    %p164 = scmp.lt.s32.totalorder %s10, 5
    %p165 = pnand %p163, %p164
    %p166 = pneg %p165
    // Predicated region
    $region33: #{l0_wide_resnet_forward.12} parent=5 // pred_check
      _
    $region34: #{l0_wide_resnet_forward.12} parent=5 // pred_check_branch
      %168 = sbr.rel (%p165) target = $region36
    $region35: #{l0_wide_resnet_forward.12} parent=5 // pred_region
      %s169 = ssub.s32 %s10, 1
      %s170 = smul.u32 64, %s15
      %p171 = scmp.lt.s32.totalorder %s170, 255
      %s172 = scalar_select %p171, %s170, 255
      %s173 = smul.addr %s172, 2
      %s174 = smul.addr %s173, 4
      %s175 = scalar_lea.vmem %s0, %s174
      %p176 = pneg %p36
      %p177 = pneg %p33
      %p178 = pneg %p57
      %p179 = pneg %p54
      %p180 = pneg %p78
      %p181 = pneg %p75
      %p182 = pneg %p99
      %p183 = pneg %p96
      %p184 = pneg %p125
      %p185 = pneg %p122
      %s186 = smul.u32 64, %s15
      %p187 = scmp.lt.s32.totalorder %s186, 255
      %s188 = scalar_select %p187, %s186, 255
      %s189 = smul.addr %s188, 4
      %s190 = scalar_lea.vmem %s4, %s189
      %s191 = smul.u32 64, %s15
      %p192 = scmp.lt.s32.totalorder %s191, 255
      %s193 = scalar_select %p192, %s191, 255
      %s194 = smul.addr %s193, 2
      %s195 = smul.addr %s194, 4
      %s196 = scalar_lea.vmem %s0, %s195
      %s197 = smul.u32 64, %s15
      %s198 = smul.u32 64, %s15
      %p199 = scmp.lt.s32.totalorder %s198, 255
      %s200 = scalar_select %p199, %s198, 255
      %s201 = smul.addr %s200, 4
      %s202 = scalar_lea.vmem %s4, %s201
      %s203 = smul.u32 64, %s15
      %v205 = vld [vmem:[%s196] sm:$0xff]
      %v206 = vld [vmem:[%s196 + $0x8] sm:$0xff]
      %v207 = vld [vmem:[%s196 + $0x10] sm:$0xff]
      %v208 = vld [vmem:[%s196 + $0x18] sm:$0xff]
      %v209 = vld [vmem:[%s196 + $0x20] sm:$0xff]
      %v210 = vld [vmem:[%s196 + $0x28] sm:$0xff]
      %v211 = vld [vmem:[%s196 + $0x30] sm:$0xff]
      %v212 = vld [vmem:[%s196 + $0x38] sm:$0xff]
      %v213 = vld [vmem:[%s196 + $0x40] sm:$0xff]
      %v214 = vld [vmem:[%s196 + $0x48] sm:$0xff]
      %v215 = vld [vmem:[%s196 + $0x50] sm:$0xff]
      %v216 = vld [vmem:[%s196 + $0x58] sm:$0xff]
      %v217 = vld [vmem:[%s196 + $0x60] sm:$0xff]
      %v218 = vld [vmem:[%s196 + $0x68] sm:$0xff]
      %v219 = vld [vmem:[%s196 + $0x70] sm:$0xff]
      %v220 = vld [vmem:[%s196 + $0x78] sm:$0xff]
      %v221 = vld [vmem:[%s196 + $0x80] sm:$0xff]
      %v222 = vld [vmem:[%s196 + $0x88] sm:$0xff]
      %v223 = vld [vmem:[%s196 + $0x90] sm:$0xff]
      %v224 = vld [vmem:[%s196 + $0x98] sm:$0xff]
      %v225 = vld [vmem:[%s196 + $0xa0] sm:$0xff]
      %v226 = vld [vmem:[%s196 + $0xa8] sm:$0xff]
      %v227 = vld [vmem:[%s196 + $0xb0] sm:$0xff]
      %v228 = vld [vmem:[%s196 + $0xb8] sm:$0xff]
      %v229 = vld [vmem:[%s196 + $0xc0] sm:$0xff]
      %v230 = vld [vmem:[%s196 + $0xc8] sm:$0xff]
      %v231 = vld [vmem:[%s196 + $0xd0] sm:$0xff]
      %v232 = vld [vmem:[%s196 + $0xd8] sm:$0xff]
      %v233 = vld [vmem:[%s196 + $0xe0] sm:$0xff]
      %v234 = vld [vmem:[%s196 + $0xe8] sm:$0xff]
      %v235 = vld [vmem:[%s196 + $0xf0] sm:$0xff]
      %v236 = vld [vmem:[%s196 + $0xf8] sm:$0xff]
      %v237 = vld [vmem:[%s196 + $0x100] sm:$0xff]
      %v238 = vld [vmem:[%s196 + $0x108] sm:$0xff]
      %v239 = vld [vmem:[%s196 + $0x110] sm:$0xff]
      %v240 = vld [vmem:[%s196 + $0x118] sm:$0xff]
      %v241 = vld [vmem:[%s196 + $0x120] sm:$0xff]
      %v242 = vld [vmem:[%s196 + $0x128] sm:$0xff]
      %v243 = vld [vmem:[%s196 + $0x130] sm:$0xff]
      %v244 = vld [vmem:[%s196 + $0x138] sm:$0xff]
      %v245 = vld [vmem:[%s196 + $0x140] sm:$0xff]
      %v246 = vld [vmem:[%s196 + $0x148] sm:$0xff]
      %v247 = vld [vmem:[%s196 + $0x150] sm:$0xff]
      %v248 = vld [vmem:[%s196 + $0x158] sm:$0xff]
      %v249 = vld [vmem:[%s196 + $0x160] sm:$0xff]
      %v250 = vld [vmem:[%s196 + $0x168] sm:$0xff]
      %v251 = vld [vmem:[%s196 + $0x170] sm:$0xff]
      %v252 = vld [vmem:[%s196 + $0x178] sm:$0xff]
      %v253 = vld [vmem:[%s196 + $0x180] sm:$0xff]
      %v254 = vld [vmem:[%s196 + $0x188] sm:$0xff]
      %v255 = vld [vmem:[%s196 + $0x190] sm:$0xff]
      %v256 = vld [vmem:[%s196 + $0x198] sm:$0xff]
      %v257 = vld [vmem:[%s196 + $0x1a0] sm:$0xff]
      %v258 = vld [vmem:[%s196 + $0x1a8] sm:$0xff]
      %v259 = vld [vmem:[%s196 + $0x1b0] sm:$0xff]
      %v260 = vld [vmem:[%s196 + $0x1b8] sm:$0xff]
      %v261 = vld [vmem:[%s196 + $0x1c0] sm:$0xff]
      %v262 = vld [vmem:[%s196 + $0x1c8] sm:$0xff]
      %v263 = vld [vmem:[%s196 + $0x1d0] sm:$0xff]
      %v264 = vld [vmem:[%s196 + $0x1d8] sm:$0xff]
      %v265 = vld [vmem:[%s196 + $0x1e0] sm:$0xff]
      %v266 = vld [vmem:[%s196 + $0x1e8] sm:$0xff]
      %v267 = vld [vmem:[%s196 + $0x1f0] sm:$0xff]
      %v268 = vld [vmem:[%s196 + $0x1f8] sm:$0xff]
      %v269 = vld [vmem:[%s1] sm:$0xf]
      %v270 = vld [vmem:[%s1 + $0x4] sm:$0xf]
      %v271 = vld [vmem:[%s1 + $0x8] sm:$0xf]
      %v272 = vld [vmem:[%s1 + $0xc] sm:$0xf]
      %v273 = vld [vmem:[%s1 + $0x10] sm:$0xf]
      %v274 = vld [vmem:[%s1 + $0x14] sm:$0xf]
      %v275 = vld [vmem:[%s1 + $0x18] sm:$0xf]
      %v276 = vld [vmem:[%s1 + $0x1c] sm:$0xf]
      %v277 = vld [vmem:[%s1 + $0x20] sm:$0xf]
      %v278 = vld [vmem:[%s1 + $0x24] sm:$0xf]
      %v279 = vld [vmem:[%s1 + $0x28] sm:$0xf]
      %v280 = vld [vmem:[%s1 + $0x2c] sm:$0xf]
      %v281 = vld [vmem:[%s1 + $0x30] sm:$0xf]
      %v282 = vld [vmem:[%s1 + $0x34] sm:$0xf]
      %v283 = vld [vmem:[%s1 + $0x38] sm:$0xf]
      %v284 = vld [vmem:[%s1 + $0x3c] sm:$0xf]
      %v285 = vld [vmem:[%s1 + $0x40] sm:$0xf]
      %v286 = vld [vmem:[%s1 + $0x44] sm:$0xf]
      %v351 = vunpack.c.l.b16 %v205
      %v352 = vunpack.c.h.b16 %v205
      %v353 = vunpack.c.l.b16 %v206
      %v354 = vunpack.c.h.b16 %v206
      %v355 = vunpack.c.l.b16 %v207
      %v356 = vunpack.c.h.b16 %v207
      %v357 = vunpack.c.l.b16 %v208
      %v358 = vunpack.c.h.b16 %v208
      %v359 = vunpack.c.l.b16 %v209
      %v360 = vunpack.c.h.b16 %v209
      %v361 = vunpack.c.l.b16 %v210
      %v362 = vunpack.c.h.b16 %v210
      %v363 = vunpack.c.l.b16 %v211
      %v364 = vunpack.c.h.b16 %v211
      %v365 = vunpack.c.l.b16 %v212
      %v366 = vunpack.c.h.b16 %v212
      %v367 = vunpack.c.l.b16 %v213
      %v368 = vunpack.c.h.b16 %v213
      %v369 = vunpack.c.l.b16 %v214
      %v370 = vunpack.c.h.b16 %v214
      %v371 = vunpack.c.l.b16 %v215
      %v372 = vunpack.c.h.b16 %v215
      %v373 = vunpack.c.l.b16 %v216
      %v374 = vunpack.c.h.b16 %v216
      %v375 = vunpack.c.l.b16 %v217
      %v376 = vunpack.c.h.b16 %v217
      %v377 = vunpack.c.l.b16 %v218
      %v378 = vunpack.c.h.b16 %v218
      %v379 = vunpack.c.l.b16 %v219
      %v380 = vunpack.c.h.b16 %v219
      %v381 = vunpack.c.l.b16 %v220
      %v382 = vunpack.c.h.b16 %v220
      %v383 = vunpack.c.l.b16 %v221
      %v384 = vunpack.c.h.b16 %v221
      %v385 = vunpack.c.l.b16 %v222
      %v386 = vunpack.c.h.b16 %v222
      %v387 = vunpack.c.l.b16 %v223
      %v388 = vunpack.c.h.b16 %v223
      %v389 = vunpack.c.l.b16 %v224
      %v390 = vunpack.c.h.b16 %v224
      %v391 = vunpack.c.l.b16 %v225
      %v392 = vunpack.c.h.b16 %v225
      %v393 = vunpack.c.l.b16 %v226
      %v394 = vunpack.c.h.b16 %v226
      %v395 = vunpack.c.l.b16 %v227
      %v396 = vunpack.c.h.b16 %v227
      %v397 = vunpack.c.l.b16 %v228
      %v398 = vunpack.c.h.b16 %v228
      %v399 = vunpack.c.l.b16 %v229
      %v400 = vunpack.c.h.b16 %v229
      %v401 = vunpack.c.l.b16 %v230
      %v402 = vunpack.c.h.b16 %v230
      %v403 = vunpack.c.l.b16 %v231
      %v404 = vunpack.c.h.b16 %v231
      %v405 = vunpack.c.l.b16 %v232
      %v406 = vunpack.c.h.b16 %v232
      %v407 = vunpack.c.l.b16 %v233
      %v408 = vunpack.c.h.b16 %v233
      %v409 = vunpack.c.l.b16 %v234
      %v410 = vunpack.c.h.b16 %v234
      %v411 = vunpack.c.l.b16 %v235
      %v412 = vunpack.c.h.b16 %v235
      %v413 = vunpack.c.l.b16 %v236
      %v414 = vunpack.c.h.b16 %v236
      %v415 = vunpack.c.l.b16 %v237
      %v416 = vunpack.c.h.b16 %v237
      %v417 = vunpack.c.l.b16 %v238
      %v418 = vunpack.c.h.b16 %v238
      %v419 = vunpack.c.l.b16 %v239
      %v420 = vunpack.c.h.b16 %v239
      %v421 = vunpack.c.l.b16 %v240
      %v422 = vunpack.c.h.b16 %v240
      %v423 = vunpack.c.l.b16 %v241
      %v424 = vunpack.c.h.b16 %v241
      %v425 = vunpack.c.l.b16 %v242
      %v426 = vunpack.c.h.b16 %v242
      %v427 = vunpack.c.l.b16 %v243
      %v428 = vunpack.c.h.b16 %v243
      %v429 = vunpack.c.l.b16 %v244
      %v430 = vunpack.c.h.b16 %v244
      %v431 = vunpack.c.l.b16 %v245
      %v432 = vunpack.c.h.b16 %v245
      %v433 = vunpack.c.l.b16 %v246
      %v434 = vunpack.c.h.b16 %v246
      %v435 = vunpack.c.l.b16 %v247
      %v436 = vunpack.c.h.b16 %v247
      %v437 = vunpack.c.l.b16 %v248
      %v438 = vunpack.c.h.b16 %v248
      %v439 = vunpack.c.l.b16 %v249
      %v440 = vunpack.c.h.b16 %v249
      %v441 = vunpack.c.l.b16 %v250
      %v442 = vunpack.c.h.b16 %v250
      %v443 = vunpack.c.l.b16 %v251
      %v444 = vunpack.c.h.b16 %v251
      %v445 = vunpack.c.l.b16 %v252
      %v446 = vunpack.c.h.b16 %v252
      %v447 = vunpack.c.l.b16 %v253
      %v448 = vunpack.c.h.b16 %v253
      %v449 = vunpack.c.l.b16 %v254
      %v450 = vunpack.c.h.b16 %v254
      %v451 = vunpack.c.l.b16 %v255
      %v452 = vunpack.c.h.b16 %v255
      %v453 = vunpack.c.l.b16 %v256
      %v454 = vunpack.c.h.b16 %v256
      %v455 = vunpack.c.l.b16 %v257
      %v456 = vunpack.c.h.b16 %v257
      %v457 = vunpack.c.l.b16 %v258
      %v458 = vunpack.c.h.b16 %v258
      %v459 = vunpack.c.l.b16 %v259
      %v460 = vunpack.c.h.b16 %v259
      %v461 = vunpack.c.l.b16 %v260
      %v462 = vunpack.c.h.b16 %v260
      %v463 = vunpack.c.l.b16 %v261
      %v464 = vunpack.c.h.b16 %v261
      %v465 = vunpack.c.l.b16 %v262
      %v466 = vunpack.c.h.b16 %v262
      %v467 = vunpack.c.l.b16 %v263
      %v468 = vunpack.c.h.b16 %v263
      %v469 = vunpack.c.l.b16 %v264
      %v470 = vunpack.c.h.b16 %v264
      %v471 = vunpack.c.l.b16 %v265
      %v472 = vunpack.c.h.b16 %v265
      %v473 = vunpack.c.l.b16 %v266
      %v474 = vunpack.c.h.b16 %v266
      %v475 = vunpack.c.l.b16 %v267
      %v476 = vunpack.c.h.b16 %v267
      %v477 = vunpack.c.l.b16 %v268
      %v478 = vunpack.c.h.b16 %v268
      %v479 = vpack.c.b16 %v353, %v351
      %v480 = vpack.c.b16 %v354, %v352
      %v481 = vpack.c.b16 %v357, %v355
      %v482 = vpack.c.b16 %v358, %v356
      %v483 = vpack.c.b16 %v361, %v359
      %v484 = vpack.c.b16 %v362, %v360
      %v485 = vpack.c.b16 %v365, %v363
      %v486 = vpack.c.b16 %v366, %v364
      %v487 = vpack.c.b16 %v369, %v367
      %v488 = vpack.c.b16 %v370, %v368
      %v489 = vpack.c.b16 %v373, %v371
      %v490 = vpack.c.b16 %v374, %v372
      %v491 = vpack.c.b16 %v377, %v375
      %v492 = vpack.c.b16 %v378, %v376
      %v493 = vpack.c.b16 %v381, %v379
      %v494 = vpack.c.b16 %v382, %v380
      %v495 = vpack.c.b16 %v385, %v383
      %v496 = vpack.c.b16 %v386, %v384
      %v497 = vpack.c.b16 %v389, %v387
      %v498 = vpack.c.b16 %v390, %v388
      %v499 = vpack.c.b16 %v393, %v391
      %v500 = vpack.c.b16 %v394, %v392
      %v501 = vpack.c.b16 %v397, %v395
      %v502 = vpack.c.b16 %v398, %v396
      %v503 = vpack.c.b16 %v401, %v399
      %v504 = vpack.c.b16 %v402, %v400
      %v505 = vpack.c.b16 %v405, %v403
      %v506 = vpack.c.b16 %v406, %v404
      %v507 = vpack.c.b16 %v409, %v407
      %v508 = vpack.c.b16 %v410, %v408
      %v509 = vpack.c.b16 %v413, %v411
      %v510 = vpack.c.b16 %v414, %v412
      %v511 = vpack.c.b16 %v417, %v415
      %v512 = vpack.c.b16 %v418, %v416
      %v513 = vpack.c.b16 %v421, %v419
      %v514 = vpack.c.b16 %v422, %v420
      %v515 = vpack.c.b16 %v425, %v423
      %v516 = vpack.c.b16 %v426, %v424
      %v517 = vpack.c.b16 %v429, %v427
      %v518 = vpack.c.b16 %v430, %v428
      %v519 = vpack.c.b16 %v433, %v431
      %v520 = vpack.c.b16 %v434, %v432
      %v521 = vpack.c.b16 %v437, %v435
      %v522 = vpack.c.b16 %v438, %v436
      %v523 = vpack.c.b16 %v441, %v439
      %v524 = vpack.c.b16 %v442, %v440
      %v525 = vpack.c.b16 %v445, %v443
      %v526 = vpack.c.b16 %v446, %v444
      %v527 = vpack.c.b16 %v449, %v447
      %v528 = vpack.c.b16 %v450, %v448
      %v529 = vpack.c.b16 %v453, %v451
      %v530 = vpack.c.b16 %v454, %v452
      %v531 = vpack.c.b16 %v457, %v455
      %v532 = vpack.c.b16 %v458, %v456
      %v533 = vpack.c.b16 %v461, %v459
      %v534 = vpack.c.b16 %v462, %v460
      %v535 = vpack.c.b16 %v465, %v463
      %v536 = vpack.c.b16 %v466, %v464
      %v537 = vpack.c.b16 %v469, %v467
      %v538 = vpack.c.b16 %v470, %v468
      %v539 = vpack.c.b16 %v473, %v471
      %v540 = vpack.c.b16 %v474, %v472
      %v541 = vpack.c.b16 %v477, %v475
      %v542 = vpack.c.b16 %v478, %v476
      %v593 = vunpack.c.l.b16 %v269
      %v594 = vunpack.c.l.b16 %v270
      %v595 = vunpack.c.l.b16 %v271
      %v596 = vunpack.c.l.b16 %v272
      %v597 = vunpack.c.l.b16 %v273
      %v598 = vunpack.c.l.b16 %v274
      %v599 = vunpack.c.l.b16 %v275
      %v600 = vunpack.c.l.b16 %v276
      %v601 = vunpack.c.l.b16 %v277
      %v602 = vunpack.c.l.b16 %v278
      %v603 = vunpack.c.l.b16 %v279
      %v604 = vunpack.c.l.b16 %v280
      %v605 = vunpack.c.l.b16 %v281
      %v606 = vunpack.c.l.b16 %v282
      %v607 = vunpack.c.l.b16 %v283
      %v608 = vunpack.c.l.b16 %v284
      %v609 = vunpack.c.l.b16 %v285
      %v610 = vunpack.c.l.b16 %v286
      %v611 = vpack.c.b16 %v594, %v593
      %v612 = vpack.c.b16 %v596, %v595
      %v613 = vpack.c.b16 %v598, %v597
      %v614 = vpack.c.b16 %v600, %v599
      %v615 = vpack.c.b16 %v602, %v601
      %v616 = vpack.c.b16 %v604, %v603
      %v617 = vpack.c.b16 %v606, %v605
      %v618 = vpack.c.b16 %v608, %v607
      %v619 = vpack.c.b16 %v610, %v609
      %vm629 = vcmask 130048
      %v631 = vsel %vm629, %v480, 0
      %v634 = vsel %vm629, %v482, 0
      %v637 = vsel %vm629, %v484, 0
      %v640 = vsel %vm629, %v486, 0
      %v643 = vsel %vm629, %v488, 0
      %v646 = vsel %vm629, %v490, 0
      %v649 = vsel %vm629, %v492, 0
      %v652 = vsel %vm629, %v494, 0
      %v655 = vsel %vm629, %v496, 0
      %v658 = vsel %vm629, %v498, 0
      %v661 = vsel %vm629, %v500, 0
      %v664 = vsel %vm629, %v502, 0
      %v667 = vsel %vm629, %v504, 0
      %v670 = vsel %vm629, %v506, 0
      %v673 = vsel %vm629, %v508, 0
      %v676 = vsel %vm629, %v510, 0
      %v679 = vsel %vm629, %v512, 0
      %v682 = vsel %vm629, %v514, 0
      %v685 = vsel %vm629, %v516, 0
      %v688 = vsel %vm629, %v518, 0
      %v691 = vsel %vm629, %v520, 0
      %v694 = vsel %vm629, %v522, 0
      %v697 = vsel %vm629, %v524, 0
      %v700 = vsel %vm629, %v526, 0
      %v703 = vsel %vm629, %v528, 0
      %v706 = vsel %vm629, %v530, 0
      %v709 = vsel %vm629, %v532, 0
      %v712 = vsel %vm629, %v534, 0
      %v715 = vsel %vm629, %v536, 0
      %v718 = vsel %vm629, %v538, 0
      %v721 = vsel %vm629, %v540, 0
      %v724 = vsel %vm629, %v542, 0
      %726 = vmatprep.subr.bf16.mxu0 0
      %727 = vmatpush1.bf16.msra.mxu0 %v611
      %728 = vmatprep.subr.bf16.mxu0 0
      %729 = vmatpush1.bf16.msra.mxu0 %v612
      %730 = vmatprep.subr.bf16.mxu0 0
      %731 = vmatpush1.bf16.msra.mxu0 %v613
      %732 = vmatprep.subr.bf16.mxu0 0
      %733 = vmatpush1.bf16.msra.mxu0 %v614
      %734 = vmatprep.subr.bf16.mxu0 0
      %735 = vmatpush1.bf16.msra.mxu0 %v615
      %736 = vmatprep.subr.bf16.mxu0 0
      %737 = vmatpush1.bf16.msra.mxu0 %v616
      %738 = vmatprep.subr.bf16.mxu0 0
      %739 = vmatpush1.bf16.msra.mxu0 %v617
      %740 = vmatprep.subr.bf16.mxu0 0
      %741 = vmatpush1.bf16.msra.mxu0 %v618
      %742 = vmatprep.subr.bf16.mxu0 0
      %743 = vmatpush1.bf16.msra.mxu0 %v619
      %744 = vmatprep.subr.bf16.mxu0 0
      %745 = vmatpush1.bf16.msra.mxu0 0
      %746 = vmatprep.subr.bf16.mxu0 0
      %747 = vmatpush1.bf16.msra.mxu0 0
      %748 = vmatprep.subr.bf16.mxu0 0
      %749 = vmatpush1.bf16.msra.mxu0 0
      %750 = vmatprep.subr.bf16.mxu0 0
      %751 = vmatpush1.bf16.msra.mxu0 0
      %752 = vmatprep.subr.bf16.mxu0 0
      %753 = vmatpush1.bf16.msra.mxu0 0
      %754 = vmatprep.subr.bf16.mxu0 0
      %755 = vmatpush1.bf16.msra.mxu0 0
      %756 = vmatprep.subr.bf16.mxu0 0
      %757 = vmatpush1.bf16.msra.mxu0 0
      %758 = vmatprep.mubr.bf16.mxu0 %v631
      %759 = vmatmul.mubr.bf16.gmra.mrb[0].mxu0 %v479
      %v760 = vpop.f32.mrb[0].mxu0
      %v761 = vadd.f32 0.0, %v760
      %v762 = vpop.f32.mrb[0].mxu0
      %v763 = vpop.f32.mrb[0].mxu0
      %v764 = vadd.f32 0.0, %v763
      %v765 = vpop.f32.mrb[0].mxu0
      %766 = vmatprep.mubr.bf16.mxu0 %v634
      %767 = vmatmul.mubr.bf16.gmra.mrb[0].mxu0 %v481
      %v768 = vpop.f32.mrb[0].mxu0
      %v769 = vadd.f32 0.0, %v768
      %v770 = vpop.f32.mrb[0].mxu0
      %v771 = vpop.f32.mrb[0].mxu0
      %v772 = vadd.f32 0.0, %v771
      %v773 = vpop.f32.mrb[0].mxu0
      %774 = vmatprep.mubr.bf16.mxu0 %v637
      %775 = vmatmul.mubr.bf16.gmra.mrb[0].mxu0 %v483
      %v776 = vpop.f32.mrb[0].mxu0
      %v777 = vadd.f32 0.0, %v776
      %v778 = vpop.f32.mrb[0].mxu0
      %v779 = vpop.f32.mrb[0].mxu0
      %v780 = vadd.f32 0.0, %v779
      %v781 = vpop.f32.mrb[0].mxu0
      %782 = vmatprep.mubr.bf16.mxu0 %v640
      %783 = vmatmul.mubr.bf16.gmra.mrb[0].mxu0 %v485
      %v784 = vpop.f32.mrb[0].mxu0
      %v785 = vadd.f32 0.0, %v784
      %v786 = vpop.f32.mrb[0].mxu0
      %v787 = vpop.f32.mrb[0].mxu0
      %v788 = vadd.f32 0.0, %v787
      %v789 = vpop.f32.mrb[0].mxu0
      %790 = vmatprep.mubr.bf16.mxu0 %v643
      %791 = vmatmul.mubr.bf16.gmra.mrb[0].mxu0 %v487
      %v792 = vpop.f32.mrb[0].mxu0
      %v793 = vadd.f32 0.0, %v792
      %v794 = vpop.f32.mrb[0].mxu0
      %v795 = vpop.f32.mrb[0].mxu0
      %v796 = vadd.f32 0.0, %v795
      %v797 = vpop.f32.mrb[0].mxu0
      %798 = vmatprep.mubr.bf16.mxu0 %v646
      %799 = vmatmul.mubr.bf16.gmra.mrb[0].mxu0 %v489
      %v800 = vpop.f32.mrb[0].mxu0
      %v801 = vadd.f32 0.0, %v800
      %v802 = vpop.f32.mrb[0].mxu0
      %v803 = vpop.f32.mrb[0].mxu0
      %v804 = vadd.f32 0.0, %v803
      %v805 = vpop.f32.mrb[0].mxu0
      %806 = vmatprep.mubr.bf16.mxu0 %v649
      %807 = vmatmul.mubr.bf16.gmra.mrb[0].mxu0 %v491
      %v808 = vpop.f32.mrb[0].mxu0
      %v809 = vadd.f32 0.0, %v808
      %v810 = vpop.f32.mrb[0].mxu0
      %v811 = vpop.f32.mrb[0].mxu0
      %v812 = vadd.f32 0.0, %v811
      %v813 = vpop.f32.mrb[0].mxu0
      %814 = vmatprep.mubr.bf16.mxu0 %v652
      %815 = vmatmul.mubr.bf16.gmra.mrb[0].mxu0 %v493
      %v816 = vpop.f32.mrb[0].mxu0
      %v817 = vadd.f32 0.0, %v816
      %v818 = vpop.f32.mrb[0].mxu0
      %v819 = vpop.f32.mrb[0].mxu0
      %v820 = vadd.f32 0.0, %v819
      %v821 = vpop.f32.mrb[0].mxu0
      %822 = vmatprep.mubr.bf16.mxu0 %v655
      %823 = vmatmul.mubr.bf16.gmra.mrb[0].mxu0 %v495
      %v824 = vpop.f32.mrb[0].mxu0
      %v825 = vadd.f32 0.0, %v824
      %v826 = vpop.f32.mrb[0].mxu0
      %v827 = vpop.f32.mrb[0].mxu0
      %v828 = vadd.f32 0.0, %v827
      %v829 = vpop.f32.mrb[0].mxu0
      %830 = vmatprep.mubr.bf16.mxu0 %v658
      %831 = vmatmul.mubr.bf16.gmra.mrb[0].mxu0 %v497
      %v832 = vpop.f32.mrb[0].mxu0
      %v833 = vadd.f32 0.0, %v832
      %v834 = vpop.f32.mrb[0].mxu0
      %v835 = vpop.f32.mrb[0].mxu0
      %v836 = vadd.f32 0.0, %v835
      %v837 = vpop.f32.mrb[0].mxu0
      %838 = vmatprep.mubr.bf16.mxu0 %v661
      %839 = vmatmul.mubr.bf16.gmra.mrb[0].mxu0 %v499
      %v840 = vpop.f32.mrb[0].mxu0
      %v841 = vadd.f32 0.0, %v840
      %v842 = vpop.f32.mrb[0].mxu0
      %v843 = vpop.f32.mrb[0].mxu0
      %v844 = vadd.f32 0.0, %v843
      %v845 = vpop.f32.mrb[0].mxu0
      %846 = vmatprep.mubr.bf16.mxu0 %v664
      %847 = vmatmul.mubr.bf16.gmra.mrb[0].mxu0 %v501
      %v848 = vpop.f32.mrb[0].mxu0
      %v849 = vadd.f32 0.0, %v848
      %v850 = vpop.f32.mrb[0].mxu0
      %v851 = vpop.f32.mrb[0].mxu0
      %v852 = vadd.f32 0.0, %v851
      %v853 = vpop.f32.mrb[0].mxu0
      %854 = vmatprep.mubr.bf16.mxu0 %v667
      %855 = vmatmul.mubr.bf16.gmra.mrb[0].mxu0 %v503
      %v856 = vpop.f32.mrb[0].mxu0
      %v857 = vadd.f32 0.0, %v856
      %v858 = vpop.f32.mrb[0].mxu0
      %v859 = vpop.f32.mrb[0].mxu0
      %v860 = vadd.f32 0.0, %v859
      %v861 = vpop.f32.mrb[0].mxu0
      %862 = vmatprep.mubr.bf16.mxu0 %v670
      %863 = vmatmul.mubr.bf16.gmra.mrb[0].mxu0 %v505
      %v864 = vpop.f32.mrb[0].mxu0
      %v865 = vadd.f32 0.0, %v864
      %v866 = vpop.f32.mrb[0].mxu0
      %v867 = vpop.f32.mrb[0].mxu0
      %v868 = vadd.f32 0.0, %v867
      %v869 = vpop.f32.mrb[0].mxu0
      %870 = vmatprep.mubr.bf16.mxu0 %v673
      %871 = vmatmul.mubr.bf16.gmra.mrb[0].mxu0 %v507
      %v872 = vpop.f32.mrb[0].mxu0
      %v873 = vadd.f32 0.0, %v872
      %v874 = vpop.f32.mrb[0].mxu0
      %v875 = vpop.f32.mrb[0].mxu0
      %v876 = vadd.f32 0.0, %v875
      %v877 = vpop.f32.mrb[0].mxu0
      %878 = vmatprep.mubr.bf16.mxu0 %v676
      %879 = vmatmul.mubr.bf16.gmra.mrb[0].mxu0 %v509
      %v880 = vpop.f32.mrb[0].mxu0
      %v881 = vadd.f32 0.0, %v880
      %v882 = vpop.f32.mrb[0].mxu0
      %v883 = vpop.f32.mrb[0].mxu0
      %v884 = vadd.f32 0.0, %v883
      %v885 = vpop.f32.mrb[0].mxu0
      %886 = vmatprep.mubr.bf16.mxu0 %v679
      %887 = vmatmul.mubr.bf16.gmra.mrb[0].mxu0 %v511
      %v888 = vpop.f32.mrb[0].mxu0
      %v889 = vadd.f32 0.0, %v888
      %v890 = vpop.f32.mrb[0].mxu0
      %v891 = vpop.f32.mrb[0].mxu0
      %v892 = vadd.f32 0.0, %v891
      %v893 = vpop.f32.mrb[0].mxu0
      %894 = vmatprep.mubr.bf16.mxu0 %v682
      %895 = vmatmul.mubr.bf16.gmra.mrb[0].mxu0 %v513
      %v896 = vpop.f32.mrb[0].mxu0
      %v897 = vadd.f32 0.0, %v896
      %v898 = vpop.f32.mrb[0].mxu0
      %v899 = vpop.f32.mrb[0].mxu0
      %v900 = vadd.f32 0.0, %v899
      %v901 = vpop.f32.mrb[0].mxu0
      %902 = vmatprep.mubr.bf16.mxu0 %v685
      %903 = vmatmul.mubr.bf16.gmra.mrb[0].mxu0 %v515
      %v904 = vpop.f32.mrb[0].mxu0
      %v905 = vadd.f32 0.0, %v904
      %v906 = vpop.f32.mrb[0].mxu0
      %v907 = vpop.f32.mrb[0].mxu0
      %v908 = vadd.f32 0.0, %v907
      %v909 = vpop.f32.mrb[0].mxu0
      %910 = vmatprep.mubr.bf16.mxu0 %v688
      %911 = vmatmul.mubr.bf16.gmra.mrb[0].mxu0 %v517
      %v912 = vpop.f32.mrb[0].mxu0
      %v913 = vadd.f32 0.0, %v912
      %v914 = vpop.f32.mrb[0].mxu0
      %v915 = vpop.f32.mrb[0].mxu0
      %v916 = vadd.f32 0.0, %v915
      %v917 = vpop.f32.mrb[0].mxu0
      %918 = vmatprep.mubr.bf16.mxu0 %v691
      %919 = vmatmul.mubr.bf16.gmra.mrb[0].mxu0 %v519
      %v920 = vpop.f32.mrb[0].mxu0
      %v921 = vadd.f32 0.0, %v920
      %v922 = vpop.f32.mrb[0].mxu0
      %v923 = vpop.f32.mrb[0].mxu0
      %v924 = vadd.f32 0.0, %v923
      %v925 = vpop.f32.mrb[0].mxu0
      %926 = vmatprep.mubr.bf16.mxu0 %v694
      %927 = vmatmul.mubr.bf16.gmra.mrb[0].mxu0 %v521
      %v928 = vpop.f32.mrb[0].mxu0
      %v929 = vadd.f32 0.0, %v928
      %v930 = vpop.f32.mrb[0].mxu0
      %v931 = vpop.f32.mrb[0].mxu0
      %v932 = vadd.f32 0.0, %v931
      %v933 = vpop.f32.mrb[0].mxu0
      %934 = vmatprep.mubr.bf16.mxu0 %v697
      %935 = vmatmul.mubr.bf16.gmra.mrb[0].mxu0 %v523
      %v936 = vpop.f32.mrb[0].mxu0
      %v937 = vadd.f32 0.0, %v936
      %v938 = vpop.f32.mrb[0].mxu0
      %v939 = vpop.f32.mrb[0].mxu0
      %v940 = vadd.f32 0.0, %v939
      %v941 = vpop.f32.mrb[0].mxu0
      %942 = vmatprep.mubr.bf16.mxu0 %v700
      %943 = vmatmul.mubr.bf16.gmra.mrb[0].mxu0 %v525
      %v944 = vpop.f32.mrb[0].mxu0
      %v945 = vadd.f32 0.0, %v944
      %v946 = vpop.f32.mrb[0].mxu0
      %v947 = vpop.f32.mrb[0].mxu0
      %v948 = vadd.f32 0.0, %v947
      %v949 = vpop.f32.mrb[0].mxu0
      %950 = vmatprep.mubr.bf16.mxu0 %v703
      %951 = vmatmul.mubr.bf16.gmra.mrb[0].mxu0 %v527
      %v952 = vpop.f32.mrb[0].mxu0
      %v953 = vadd.f32 0.0, %v952
      %v954 = vpop.f32.mrb[0].mxu0
      %v955 = vpop.f32.mrb[0].mxu0
      %v956 = vadd.f32 0.0, %v955
      %v957 = vpop.f32.mrb[0].mxu0
      %958 = vmatprep.mubr.bf16.mxu0 %v706
      %959 = vmatmul.mubr.bf16.gmra.mrb[0].mxu0 %v529
      %v960 = vpop.f32.mrb[0].mxu0
      %v961 = vadd.f32 0.0, %v960
      %v962 = vpop.f32.mrb[0].mxu0
      %v963 = vpop.f32.mrb[0].mxu0
      %v964 = vadd.f32 0.0, %v963
      %v965 = vpop.f32.mrb[0].mxu0
      %966 = vmatprep.mubr.bf16.mxu0 %v709
      %967 = vmatmul.mubr.bf16.gmra.mrb[0].mxu0 %v531
      %v968 = vpop.f32.mrb[0].mxu0
      %v969 = vadd.f32 0.0, %v968
      %v970 = vpop.f32.mrb[0].mxu0
      %v971 = vpop.f32.mrb[0].mxu0
      %v972 = vadd.f32 0.0, %v971
      %v973 = vpop.f32.mrb[0].mxu0
      %974 = vmatprep.mubr.bf16.mxu0 %v712
      %975 = vmatmul.mubr.bf16.gmra.mrb[0].mxu0 %v533
      %v976 = vpop.f32.mrb[0].mxu0
      %v977 = vadd.f32 0.0, %v976
      %v978 = vpop.f32.mrb[0].mxu0
      %v979 = vpop.f32.mrb[0].mxu0
      %v980 = vadd.f32 0.0, %v979
      %v981 = vpop.f32.mrb[0].mxu0
      %982 = vmatprep.mubr.bf16.mxu0 %v715
      %983 = vmatmul.mubr.bf16.gmra.mrb[0].mxu0 %v535
      %v984 = vpop.f32.mrb[0].mxu0
      %v985 = vadd.f32 0.0, %v984
      %v986 = vpop.f32.mrb[0].mxu0
      %v987 = vpop.f32.mrb[0].mxu0
      %v988 = vadd.f32 0.0, %v987
      %v989 = vpop.f32.mrb[0].mxu0
      %990 = vmatprep.mubr.bf16.mxu0 %v718
      %991 = vmatmul.mubr.bf16.gmra.mrb[0].mxu0 %v537
      %v992 = vpop.f32.mrb[0].mxu0
      %v993 = vadd.f32 0.0, %v992
      %v994 = vpop.f32.mrb[0].mxu0
      %v995 = vpop.f32.mrb[0].mxu0
      %v996 = vadd.f32 0.0, %v995
      %v997 = vpop.f32.mrb[0].mxu0
      %998 = vmatprep.mubr.bf16.mxu0 %v721
      %999 = vmatmul.mubr.bf16.gmra.mrb[0].mxu0 %v539
      %v1000 = vpop.f32.mrb[0].mxu0
      %v1001 = vadd.f32 0.0, %v1000
      %v1002 = vpop.f32.mrb[0].mxu0
      %v1003 = vpop.f32.mrb[0].mxu0
      %v1004 = vadd.f32 0.0, %v1003
      %v1005 = vpop.f32.mrb[0].mxu0
      %1006 = vmatprep.mubr.bf16.mxu0 %v724
      %1007 = vmatmul.mubr.bf16.gmra.mrb[0].mxu0 %v541
      %v1008 = vpop.f32.mrb[0].mxu0
      %v1009 = vadd.f32 0.0, %v1008
      %v1010 = vpop.f32.mrb[0].mxu0
      %v1011 = vpop.f32.mrb[0].mxu0
      %v1012 = vadd.f32 0.0, %v1011
      %v1013 = vpop.f32.mrb[0].mxu0
      %1014 = vdwg.mxu0
      %v1015 = vld [vmem:[%s2] sm:$0x1]
      %v1017 = vlaneseq
      %v1018 = vshrl.u32 %v1017, 7
      %v1019 = vsub.s32 0, %v1018
      %v1020 = vrot.slane %v1015, %v1019
      %v1022 = vmul.f32 %v761, %v1020
      %v1023 = vmul.f32 %v764, %v1020
      %v1024 = vmul.f32 %v769, %v1020
      %v1025 = vmul.f32 %v772, %v1020
      %v1026 = vmul.f32 %v777, %v1020
      %v1027 = vmul.f32 %v780, %v1020
      %v1028 = vmul.f32 %v785, %v1020
      %v1029 = vmul.f32 %v788, %v1020
      %v1030 = vmul.f32 %v793, %v1020
      %v1031 = vmul.f32 %v796, %v1020
      %v1032 = vmul.f32 %v801, %v1020
      %v1033 = vmul.f32 %v804, %v1020
      %v1034 = vmul.f32 %v809, %v1020
      %v1035 = vmul.f32 %v812, %v1020
      %v1036 = vmul.f32 %v817, %v1020
      %v1037 = vmul.f32 %v820, %v1020
      %v1038 = vmul.f32 %v825, %v1020
      %v1039 = vmul.f32 %v828, %v1020
      %v1040 = vmul.f32 %v833, %v1020
      %v1041 = vmul.f32 %v836, %v1020
      %v1042 = vmul.f32 %v841, %v1020
      %v1043 = vmul.f32 %v844, %v1020
      %v1044 = vmul.f32 %v849, %v1020
      %v1045 = vmul.f32 %v852, %v1020
      %v1046 = vmul.f32 %v857, %v1020
      %v1047 = vmul.f32 %v860, %v1020
      %v1048 = vmul.f32 %v865, %v1020
      %v1049 = vmul.f32 %v868, %v1020
      %v1050 = vmul.f32 %v873, %v1020
      %v1051 = vmul.f32 %v876, %v1020
      %v1052 = vmul.f32 %v881, %v1020
      %v1053 = vmul.f32 %v884, %v1020
      %v1054 = vmul.f32 %v889, %v1020
      %v1055 = vmul.f32 %v892, %v1020
      %v1056 = vmul.f32 %v897, %v1020
      %v1057 = vmul.f32 %v900, %v1020
      %v1058 = vmul.f32 %v905, %v1020
      %v1059 = vmul.f32 %v908, %v1020
      %v1060 = vmul.f32 %v913, %v1020
      %v1061 = vmul.f32 %v916, %v1020
      %v1062 = vmul.f32 %v921, %v1020
      %v1063 = vmul.f32 %v924, %v1020
      %v1064 = vmul.f32 %v929, %v1020
      %v1065 = vmul.f32 %v932, %v1020
      %v1066 = vmul.f32 %v937, %v1020
      %v1067 = vmul.f32 %v940, %v1020
      %v1068 = vmul.f32 %v945, %v1020
      %v1069 = vmul.f32 %v948, %v1020
      %v1070 = vmul.f32 %v953, %v1020
      %v1071 = vmul.f32 %v956, %v1020
      %v1072 = vmul.f32 %v961, %v1020
      %v1073 = vmul.f32 %v964, %v1020
      %v1074 = vmul.f32 %v969, %v1020
      %v1075 = vmul.f32 %v972, %v1020
      %v1076 = vmul.f32 %v977, %v1020
      %v1077 = vmul.f32 %v980, %v1020
      %v1078 = vmul.f32 %v985, %v1020
      %v1079 = vmul.f32 %v988, %v1020
      %v1080 = vmul.f32 %v993, %v1020
      %v1081 = vmul.f32 %v996, %v1020
      %v1082 = vmul.f32 %v1001, %v1020
      %v1083 = vmul.f32 %v1004, %v1020
      %v1084 = vmul.f32 %v1009, %v1020
      %v1085 = vmul.f32 %v1012, %v1020
      %v1086 = vld [vmem:[%s3] sm:$0x1]
      %v1088 = vlaneseq
      %v1089 = vshrl.u32 %v1088, 7
      %v1090 = vsub.s32 0, %v1089
      %v1091 = vrot.slane %v1086, %v1090
      %v1093 = vadd.f32 %v1022, %v1091
      %v1094 = vadd.f32 %v1023, %v1091
      %v1095 = vadd.f32 %v1024, %v1091
      %v1096 = vadd.f32 %v1025, %v1091
      %v1097 = vadd.f32 %v1026, %v1091
      %v1098 = vadd.f32 %v1027, %v1091
      %v1099 = vadd.f32 %v1028, %v1091
      %v1100 = vadd.f32 %v1029, %v1091
      %v1101 = vadd.f32 %v1030, %v1091
      %v1102 = vadd.f32 %v1031, %v1091
      %v1103 = vadd.f32 %v1032, %v1091
      %v1104 = vadd.f32 %v1033, %v1091
      %v1105 = vadd.f32 %v1034, %v1091
      %v1106 = vadd.f32 %v1035, %v1091
      %v1107 = vadd.f32 %v1036, %v1091
      %v1108 = vadd.f32 %v1037, %v1091
      %v1109 = vadd.f32 %v1038, %v1091
      %v1110 = vadd.f32 %v1039, %v1091
      %v1111 = vadd.f32 %v1040, %v1091
      %v1112 = vadd.f32 %v1041, %v1091
      %v1113 = vadd.f32 %v1042, %v1091
      %v1114 = vadd.f32 %v1043, %v1091
      %v1115 = vadd.f32 %v1044, %v1091
      %v1116 = vadd.f32 %v1045, %v1091
      %v1117 = vadd.f32 %v1046, %v1091
      %v1118 = vadd.f32 %v1047, %v1091
      %v1119 = vadd.f32 %v1048, %v1091
      %v1120 = vadd.f32 %v1049, %v1091
      %v1121 = vadd.f32 %v1050, %v1091
      %v1122 = vadd.f32 %v1051, %v1091
      %v1123 = vadd.f32 %v1052, %v1091
      %v1124 = vadd.f32 %v1053, %v1091
      %v1125 = vadd.f32 %v1054, %v1091
      %v1126 = vadd.f32 %v1055, %v1091
      %v1127 = vadd.f32 %v1056, %v1091
      %v1128 = vadd.f32 %v1057, %v1091
      %v1129 = vadd.f32 %v1058, %v1091
      %v1130 = vadd.f32 %v1059, %v1091
      %v1131 = vadd.f32 %v1060, %v1091
      %v1132 = vadd.f32 %v1061, %v1091
      %v1133 = vadd.f32 %v1062, %v1091
      %v1134 = vadd.f32 %v1063, %v1091
      %v1135 = vadd.f32 %v1064, %v1091
      %v1136 = vadd.f32 %v1065, %v1091
      %v1137 = vadd.f32 %v1066, %v1091
      %v1138 = vadd.f32 %v1067, %v1091
      %v1139 = vadd.f32 %v1068, %v1091
      %v1140 = vadd.f32 %v1069, %v1091
      %v1141 = vadd.f32 %v1070, %v1091
      %v1142 = vadd.f32 %v1071, %v1091
      %v1143 = vadd.f32 %v1072, %v1091
      %v1144 = vadd.f32 %v1073, %v1091
      %v1145 = vadd.f32 %v1074, %v1091
      %v1146 = vadd.f32 %v1075, %v1091
      %v1147 = vadd.f32 %v1076, %v1091
      %v1148 = vadd.f32 %v1077, %v1091
      %v1149 = vadd.f32 %v1078, %v1091
      %v1150 = vadd.f32 %v1079, %v1091
      %v1151 = vadd.f32 %v1080, %v1091
      %v1152 = vadd.f32 %v1081, %v1091
      %v1153 = vadd.f32 %v1082, %v1091
      %v1154 = vadd.f32 %v1083, %v1091
      %v1155 = vadd.f32 %v1084, %v1091
      %v1156 = vadd.f32 %v1085, %v1091
      %v1157 = vmax.f32 %v1093, 0.0
      %v1158 = vmax.f32 %v1094, 0.0
      %v1159 = vmax.f32 %v1095, 0.0
      %v1160 = vmax.f32 %v1096, 0.0
      %v1161 = vmax.f32 %v1097, 0.0
      %v1162 = vmax.f32 %v1098, 0.0
      %v1163 = vmax.f32 %v1099, 0.0
      %v1164 = vmax.f32 %v1100, 0.0
      %v1165 = vmax.f32 %v1101, 0.0
      %v1166 = vmax.f32 %v1102, 0.0
      %v1167 = vmax.f32 %v1103, 0.0
      %v1168 = vmax.f32 %v1104, 0.0
      %v1169 = vmax.f32 %v1105, 0.0
      %v1170 = vmax.f32 %v1106, 0.0
      %v1171 = vmax.f32 %v1107, 0.0
      %v1172 = vmax.f32 %v1108, 0.0
      %v1173 = vmax.f32 %v1109, 0.0
      %v1174 = vmax.f32 %v1110, 0.0
      %v1175 = vmax.f32 %v1111, 0.0
      %v1176 = vmax.f32 %v1112, 0.0
      %v1177 = vmax.f32 %v1113, 0.0
      %v1178 = vmax.f32 %v1114, 0.0
      %v1179 = vmax.f32 %v1115, 0.0
      %v1180 = vmax.f32 %v1116, 0.0
      %v1181 = vmax.f32 %v1117, 0.0
      %v1182 = vmax.f32 %v1118, 0.0
      %v1183 = vmax.f32 %v1119, 0.0
      %v1184 = vmax.f32 %v1120, 0.0
      %v1185 = vmax.f32 %v1121, 0.0
      %v1186 = vmax.f32 %v1122, 0.0
      %v1187 = vmax.f32 %v1123, 0.0
      %v1188 = vmax.f32 %v1124, 0.0
      %v1189 = vmax.f32 %v1125, 0.0
      %v1190 = vmax.f32 %v1126, 0.0
      %v1191 = vmax.f32 %v1127, 0.0
      %v1192 = vmax.f32 %v1128, 0.0
      %v1193 = vmax.f32 %v1129, 0.0
      %v1194 = vmax.f32 %v1130, 0.0
      %v1195 = vmax.f32 %v1131, 0.0
      %v1196 = vmax.f32 %v1132, 0.0
      %v1197 = vmax.f32 %v1133, 0.0
      %v1198 = vmax.f32 %v1134, 0.0
      %v1199 = vmax.f32 %v1135, 0.0
      %v1200 = vmax.f32 %v1136, 0.0
      %v1201 = vmax.f32 %v1137, 0.0
      %v1202 = vmax.f32 %v1138, 0.0
      %v1203 = vmax.f32 %v1139, 0.0
      %v1204 = vmax.f32 %v1140, 0.0
      %v1205 = vmax.f32 %v1141, 0.0
      %v1206 = vmax.f32 %v1142, 0.0
      %v1207 = vmax.f32 %v1143, 0.0
      %v1208 = vmax.f32 %v1144, 0.0
      %v1209 = vmax.f32 %v1145, 0.0
      %v1210 = vmax.f32 %v1146, 0.0
      %v1211 = vmax.f32 %v1147, 0.0
      %v1212 = vmax.f32 %v1148, 0.0
      %v1213 = vmax.f32 %v1149, 0.0
      %v1214 = vmax.f32 %v1150, 0.0
      %v1215 = vmax.f32 %v1151, 0.0
      %v1216 = vmax.f32 %v1152, 0.0
      %v1217 = vmax.f32 %v1153, 0.0
      %v1218 = vmax.f32 %v1154, 0.0
      %v1219 = vmax.f32 %v1155, 0.0
      %v1220 = vmax.f32 %v1156, 0.0
      %v1221 = vpack.c.bf16 %v1158, %v1157
      %v1222 = vpack.c.bf16 %v1160, %v1159
      %v1223 = vpack.c.bf16 %v1162, %v1161
      %v1224 = vpack.c.bf16 %v1164, %v1163
      %v1225 = vpack.c.bf16 %v1166, %v1165
      %v1226 = vpack.c.bf16 %v1168, %v1167
      %v1227 = vpack.c.bf16 %v1170, %v1169
      %v1228 = vpack.c.bf16 %v1172, %v1171
      %v1229 = vpack.c.bf16 %v1174, %v1173
      %v1230 = vpack.c.bf16 %v1176, %v1175
      %v1231 = vpack.c.bf16 %v1178, %v1177
      %v1232 = vpack.c.bf16 %v1180, %v1179
      %v1233 = vpack.c.bf16 %v1182, %v1181
      %v1234 = vpack.c.bf16 %v1184, %v1183
      %v1235 = vpack.c.bf16 %v1186, %v1185
      %v1236 = vpack.c.bf16 %v1188, %v1187
      %v1237 = vpack.c.bf16 %v1190, %v1189
      %v1238 = vpack.c.bf16 %v1192, %v1191
      %v1239 = vpack.c.bf16 %v1194, %v1193
      %v1240 = vpack.c.bf16 %v1196, %v1195
      %v1241 = vpack.c.bf16 %v1198, %v1197
      %v1242 = vpack.c.bf16 %v1200, %v1199
      %v1243 = vpack.c.bf16 %v1202, %v1201
      %v1244 = vpack.c.bf16 %v1204, %v1203
      %v1245 = vpack.c.bf16 %v1206, %v1205
      %v1246 = vpack.c.bf16 %v1208, %v1207
      %v1247 = vpack.c.bf16 %v1210, %v1209
      %v1248 = vpack.c.bf16 %v1212, %v1211
      %v1249 = vpack.c.bf16 %v1214, %v1213
      %v1250 = vpack.c.bf16 %v1216, %v1215
      %v1251 = vpack.c.bf16 %v1218, %v1217
      %v1252 = vpack.c.bf16 %v1220, %v1219
      %v1285 = vunpack.c.l.b16 %v1221
      %v1286 = vunpack.c.h.b16 %v1221
      %v1287 = vunpack.c.l.b16 %v1222
      %v1288 = vunpack.c.h.b16 %v1222
      %v1289 = vunpack.c.l.b16 %v1223
      %v1290 = vunpack.c.h.b16 %v1223
      %v1291 = vunpack.c.l.b16 %v1224
      %v1292 = vunpack.c.h.b16 %v1224
      %v1293 = vunpack.c.l.b16 %v1225
      %v1294 = vunpack.c.h.b16 %v1225
      %v1295 = vunpack.c.l.b16 %v1226
      %v1296 = vunpack.c.h.b16 %v1226
      %v1297 = vunpack.c.l.b16 %v1227
      %v1298 = vunpack.c.h.b16 %v1227
      %v1299 = vunpack.c.l.b16 %v1228
      %v1300 = vunpack.c.h.b16 %v1228
      %v1301 = vunpack.c.l.b16 %v1229
      %v1302 = vunpack.c.h.b16 %v1229
      %v1303 = vunpack.c.l.b16 %v1230
      %v1304 = vunpack.c.h.b16 %v1230
      %v1305 = vunpack.c.l.b16 %v1231
      %v1306 = vunpack.c.h.b16 %v1231
      %v1307 = vunpack.c.l.b16 %v1232
      %v1308 = vunpack.c.h.b16 %v1232
      %v1309 = vunpack.c.l.b16 %v1233
      %v1310 = vunpack.c.h.b16 %v1233
      %v1311 = vunpack.c.l.b16 %v1234
      %v1312 = vunpack.c.h.b16 %v1234
      %v1313 = vunpack.c.l.b16 %v1235
      %v1314 = vunpack.c.h.b16 %v1235
      %v1315 = vunpack.c.l.b16 %v1236
      %v1316 = vunpack.c.h.b16 %v1236
      %v1317 = vunpack.c.l.b16 %v1237
      %v1318 = vunpack.c.h.b16 %v1237
      %v1319 = vunpack.c.l.b16 %v1238
      %v1320 = vunpack.c.h.b16 %v1238
      %v1321 = vunpack.c.l.b16 %v1239
      %v1322 = vunpack.c.h.b16 %v1239
      %v1323 = vunpack.c.l.b16 %v1240
      %v1324 = vunpack.c.h.b16 %v1240
      %v1325 = vunpack.c.l.b16 %v1241
      %v1326 = vunpack.c.h.b16 %v1241
      %v1327 = vunpack.c.l.b16 %v1242
      %v1328 = vunpack.c.h.b16 %v1242
      %v1329 = vunpack.c.l.b16 %v1243
      %v1330 = vunpack.c.h.b16 %v1243
      %v1331 = vunpack.c.l.b16 %v1244
      %v1332 = vunpack.c.h.b16 %v1244
      %v1333 = vunpack.c.l.b16 %v1245
      %v1334 = vunpack.c.h.b16 %v1245
      %v1335 = vunpack.c.l.b16 %v1246
      %v1336 = vunpack.c.h.b16 %v1246
      %v1337 = vunpack.c.l.b16 %v1247
      %v1338 = vunpack.c.h.b16 %v1247
      %v1339 = vunpack.c.l.b16 %v1248
      %v1340 = vunpack.c.h.b16 %v1248
      %v1341 = vunpack.c.l.b16 %v1249
      %v1342 = vunpack.c.h.b16 %v1249
      %v1343 = vunpack.c.l.b16 %v1250
      %v1344 = vunpack.c.h.b16 %v1250
      %v1345 = vunpack.c.l.b16 %v1251
      %v1346 = vunpack.c.h.b16 %v1251
      %v1347 = vunpack.c.l.b16 %v1252
      %v1348 = vunpack.c.h.b16 %v1252
      %v1349 = vpack.c.b16 %v1285, %v1285
      %v1350 = vpack.c.b16 %v1286, %v1286
      %v1351 = vpack.c.b16 %v1287, %v1287
      %v1352 = vpack.c.b16 %v1288, %v1288
      %v1353 = vpack.c.b16 %v1289, %v1289
      %v1354 = vpack.c.b16 %v1290, %v1290
      %v1355 = vpack.c.b16 %v1291, %v1291
      %v1356 = vpack.c.b16 %v1292, %v1292
      %v1357 = vpack.c.b16 %v1293, %v1293
      %v1358 = vpack.c.b16 %v1294, %v1294
      %v1359 = vpack.c.b16 %v1295, %v1295
      %v1360 = vpack.c.b16 %v1296, %v1296
      %v1361 = vpack.c.b16 %v1297, %v1297
      %v1362 = vpack.c.b16 %v1298, %v1298
      %v1363 = vpack.c.b16 %v1299, %v1299
      %v1364 = vpack.c.b16 %v1300, %v1300
      %v1365 = vpack.c.b16 %v1301, %v1301
      %v1366 = vpack.c.b16 %v1302, %v1302
      %v1367 = vpack.c.b16 %v1303, %v1303
      %v1368 = vpack.c.b16 %v1304, %v1304
      %v1369 = vpack.c.b16 %v1305, %v1305
      %v1370 = vpack.c.b16 %v1306, %v1306
      %v1371 = vpack.c.b16 %v1307, %v1307
      %v1372 = vpack.c.b16 %v1308, %v1308
      %v1373 = vpack.c.b16 %v1309, %v1309
      %v1374 = vpack.c.b16 %v1310, %v1310
      %v1375 = vpack.c.b16 %v1311, %v1311
      %v1376 = vpack.c.b16 %v1312, %v1312
      %v1377 = vpack.c.b16 %v1313, %v1313
      %v1378 = vpack.c.b16 %v1314, %v1314
      %v1379 = vpack.c.b16 %v1315, %v1315
      %v1380 = vpack.c.b16 %v1316, %v1316
      %v1381 = vpack.c.b16 %v1317, %v1317
      %v1382 = vpack.c.b16 %v1318, %v1318
      %v1383 = vpack.c.b16 %v1319, %v1319
      %v1384 = vpack.c.b16 %v1320, %v1320
      %v1385 = vpack.c.b16 %v1321, %v1321
      %v1386 = vpack.c.b16 %v1322, %v1322
      %v1387 = vpack.c.b16 %v1323, %v1323
      %v1388 = vpack.c.b16 %v1324, %v1324
      %v1389 = vpack.c.b16 %v1325, %v1325
      %v1390 = vpack.c.b16 %v1326, %v1326
      %v1391 = vpack.c.b16 %v1327, %v1327
      %v1392 = vpack.c.b16 %v1328, %v1328
      %v1393 = vpack.c.b16 %v1329, %v1329
      %v1394 = vpack.c.b16 %v1330, %v1330
      %v1395 = vpack.c.b16 %v1331, %v1331
      %v1396 = vpack.c.b16 %v1332, %v1332
      %v1397 = vpack.c.b16 %v1333, %v1333
      %v1398 = vpack.c.b16 %v1334, %v1334
      %v1399 = vpack.c.b16 %v1335, %v1335
      %v1400 = vpack.c.b16 %v1336, %v1336
      %v1401 = vpack.c.b16 %v1337, %v1337
      %v1402 = vpack.c.b16 %v1338, %v1338
      %v1403 = vpack.c.b16 %v1339, %v1339
      %v1404 = vpack.c.b16 %v1340, %v1340
      %v1405 = vpack.c.b16 %v1341, %v1341
      %v1406 = vpack.c.b16 %v1342, %v1342
      %v1407 = vpack.c.b16 %v1343, %v1343
      %v1408 = vpack.c.b16 %v1344, %v1344
      %v1409 = vpack.c.b16 %v1345, %v1345
      %v1410 = vpack.c.b16 %v1346, %v1346
      %v1411 = vpack.c.b16 %v1347, %v1347
      %v1412 = vpack.c.b16 %v1348, %v1348
      %vm1477 = vcmask 125952
      %1478 = vst.msk [vmem:[%s202] sm:$0xf] %vm1477, %v1349
      %1479 = vst.msk [vmem:[%s202 + $0x4] sm:$0xf] %vm1477, %v1350
      %1480 = vst.msk [vmem:[%s202 + $0x8] sm:$0xf] %vm1477, %v1351
      %1481 = vst.msk [vmem:[%s202 + $0xc] sm:$0xf] %vm1477, %v1352
      %1482 = vst.msk [vmem:[%s202 + $0x10] sm:$0xf] %vm1477, %v1353
      %1483 = vst.msk [vmem:[%s202 + $0x14] sm:$0xf] %vm1477, %v1354
      %1484 = vst.msk [vmem:[%s202 + $0x18] sm:$0xf] %vm1477, %v1355
      %1485 = vst.msk [vmem:[%s202 + $0x1c] sm:$0xf] %vm1477, %v1356
      %1486 = vst.msk [vmem:[%s202 + $0x20] sm:$0xf] %vm1477, %v1357
      %1487 = vst.msk [vmem:[%s202 + $0x24] sm:$0xf] %vm1477, %v1358
      %1488 = vst.msk [vmem:[%s202 + $0x28] sm:$0xf] %vm1477, %v1359
      %1489 = vst.msk [vmem:[%s202 + $0x2c] sm:$0xf] %vm1477, %v1360
      %1490 = vst.msk [vmem:[%s202 + $0x30] sm:$0xf] %vm1477, %v1361
      %1491 = vst.msk [vmem:[%s202 + $0x34] sm:$0xf] %vm1477, %v1362
      %1492 = vst.msk [vmem:[%s202 + $0x38] sm:$0xf] %vm1477, %v1363
      %1493 = vst.msk [vmem:[%s202 + $0x3c] sm:$0xf] %vm1477, %v1364
      %1494 = vst.msk [vmem:[%s202 + $0x40] sm:$0xf] %vm1477, %v1365
      %1495 = vst.msk [vmem:[%s202 + $0x44] sm:$0xf] %vm1477, %v1366
      %1496 = vst.msk [vmem:[%s202 + $0x48] sm:$0xf] %vm1477, %v1367
      %1497 = vst.msk [vmem:[%s202 + $0x4c] sm:$0xf] %vm1477, %v1368
      %1498 = vst.msk [vmem:[%s202 + $0x50] sm:$0xf] %vm1477, %v1369
      %1499 = vst.msk [vmem:[%s202 + $0x54] sm:$0xf] %vm1477, %v1370
      %1500 = vst.msk [vmem:[%s202 + $0x58] sm:$0xf] %vm1477, %v1371
      %1501 = vst.msk [vmem:[%s202 + $0x5c] sm:$0xf] %vm1477, %v1372
      %1502 = vst.msk [vmem:[%s202 + $0x60] sm:$0xf] %vm1477, %v1373
      %1503 = vst.msk [vmem:[%s202 + $0x64] sm:$0xf] %vm1477, %v1374
      %1504 = vst.msk [vmem:[%s202 + $0x68] sm:$0xf] %vm1477, %v1375
      %1505 = vst.msk [vmem:[%s202 + $0x6c] sm:$0xf] %vm1477, %v1376
      %1506 = vst.msk [vmem:[%s202 + $0x70] sm:$0xf] %vm1477, %v1377
      %1507 = vst.msk [vmem:[%s202 + $0x74] sm:$0xf] %vm1477, %v1378
      %1508 = vst.msk [vmem:[%s202 + $0x78] sm:$0xf] %vm1477, %v1379
      %1509 = vst.msk [vmem:[%s202 + $0x7c] sm:$0xf] %vm1477, %v1380
      %1510 = vst.msk [vmem:[%s202 + $0x80] sm:$0xf] %vm1477, %v1381
      %1511 = vst.msk [vmem:[%s202 + $0x84] sm:$0xf] %vm1477, %v1382
      %1512 = vst.msk [vmem:[%s202 + $0x88] sm:$0xf] %vm1477, %v1383
      %1513 = vst.msk [vmem:[%s202 + $0x8c] sm:$0xf] %vm1477, %v1384
      %1514 = vst.msk [vmem:[%s202 + $0x90] sm:$0xf] %vm1477, %v1385
      %1515 = vst.msk [vmem:[%s202 + $0x94] sm:$0xf] %vm1477, %v1386
      %1516 = vst.msk [vmem:[%s202 + $0x98] sm:$0xf] %vm1477, %v1387
      %1517 = vst.msk [vmem:[%s202 + $0x9c] sm:$0xf] %vm1477, %v1388
      %1518 = vst.msk [vmem:[%s202 + $0xa0] sm:$0xf] %vm1477, %v1389
      %1519 = vst.msk [vmem:[%s202 + $0xa4] sm:$0xf] %vm1477, %v1390
      %1520 = vst.msk [vmem:[%s202 + $0xa8] sm:$0xf] %vm1477, %v1391
      %1521 = vst.msk [vmem:[%s202 + $0xac] sm:$0xf] %vm1477, %v1392
      %1522 = vst.msk [vmem:[%s202 + $0xb0] sm:$0xf] %vm1477, %v1393
      %1523 = vst.msk [vmem:[%s202 + $0xb4] sm:$0xf] %vm1477, %v1394
      %1524 = vst.msk [vmem:[%s202 + $0xb8] sm:$0xf] %vm1477, %v1395
      %1525 = vst.msk [vmem:[%s202 + $0xbc] sm:$0xf] %vm1477, %v1396
      %1526 = vst.msk [vmem:[%s202 + $0xc0] sm:$0xf] %vm1477, %v1397
      %1527 = vst.msk [vmem:[%s202 + $0xc4] sm:$0xf] %vm1477, %v1398
      %1528 = vst.msk [vmem:[%s202 + $0xc8] sm:$0xf] %vm1477, %v1399
      %1529 = vst.msk [vmem:[%s202 + $0xcc] sm:$0xf] %vm1477, %v1400
      %1530 = vst.msk [vmem:[%s202 + $0xd0] sm:$0xf] %vm1477, %v1401
      %1531 = vst.msk [vmem:[%s202 + $0xd4] sm:$0xf] %vm1477, %v1402
      %1532 = vst.msk [vmem:[%s202 + $0xd8] sm:$0xf] %vm1477, %v1403
      %1533 = vst.msk [vmem:[%s202 + $0xdc] sm:$0xf] %vm1477, %v1404
      %1534 = vst.msk [vmem:[%s202 + $0xe0] sm:$0xf] %vm1477, %v1405
      %1535 = vst.msk [vmem:[%s202 + $0xe4] sm:$0xf] %vm1477, %v1406
      %1536 = vst.msk [vmem:[%s202 + $0xe8] sm:$0xf] %vm1477, %v1407
      %1537 = vst.msk [vmem:[%s202 + $0xec] sm:$0xf] %vm1477, %v1408
      %1538 = vst.msk [vmem:[%s202 + $0xf0] sm:$0xf] %vm1477, %v1409
      %1539 = vst.msk [vmem:[%s202 + $0xf4] sm:$0xf] %vm1477, %v1410
      %1540 = vst.msk [vmem:[%s202 + $0xf8] sm:$0xf] %vm1477, %v1411
      %1541 = vst.msk [vmem:[%s202 + $0xfc] sm:$0xf] %vm1477, %v1412
      %s1542 = smul.u32 64, %s15
      %p1543 = scmp.lt.s32.totalorder %s1542, 255
      %s1544 = scalar_select %p1543, %s1542, 255
      %s1545 = smul.addr %s1544, 4
      %s1546 = scalar_lea.vmem %s4, %s1545
      // Predicated region
      $region37: #{l0_wide_resnet_forward.12} parent=35 // pred_check
        %p1547 = pneg %p122
      $region38: #{l0_wide_resnet_forward.12} parent=35 // pred_check_branch
        %1549 = sbr.rel (%p1547) target = $region40
      $region39: #{l0_wide_resnet_forward.12} parent=35 // pred_region
        %s1550 = smul.u32 64, %s15
      $region40: #{l0_wide_resnet_forward.12} parent=35 // pred_fallthru
        _
    $region36: #{l0_wide_resnet_forward.12} parent=5 // pred_fallthru
      _
    %p1551 = scmp.le.s32.totalorder 2, %s10
    // Predicated region
    $region41: #{l0_wide_resnet_forward.12} parent=5 // pred_check
      %p1552 = pneg %p1551
    $region42: #{l0_wide_resnet_forward.12} parent=5 // pred_check_branch
      %1554 = sbr.rel (%p1552) target = $region44
    $region43: #{l0_wide_resnet_forward.12} parent=5 // pred_region
      %s1555 = ssub.s32 %s10, 2
      // Predicated region
      $region45: #{l0_wide_resnet_forward.12} parent=43 // pred_check
        %p1556 = pneg %p128
      $region46: #{l0_wide_resnet_forward.12} parent=43 // pred_check_branch
        %1558 = sbr.rel (%p1556) target = $region48
      $region47: #{l0_wide_resnet_forward.12} parent=43 // pred_region
        %s1559 = smul.u32 64, %s16
        %p1560 = scmp.lt.s32.totalorder %s1559, 255
        %s1561 = scalar_select %p1560, %s1559, 255
        %s1562 = smul.addr %s1561, 4
        %s1563 = scalar_lea.vmem %s4, %s1562
      $region48: #{l0_wide_resnet_forward.12} parent=43 // pred_fallthru
        _
    $region44: #{l0_wide_resnet_forward.12} parent=5 // pred_fallthru
      _
  $region6: #{l0_wide_resnet_forward.12} parent=0 // loop_footer
    %s14 = sadd.s32 1, %s10
  $region7: #{l0_wide_resnet_forward.12} parent=0 // loop_footer_branch
    %9 = sbr.rel target = $region3
  $region8: #{l0_wide_resnet_forward.12} parent=0 // loop_exit
    _

// kernel: l0_wide_resnet_forward.13
$region0: #{l0_wide_resnet_forward.13}
  #allocation0 [shape = 'u32[]', space=smem, size = 0x4, offset = 0x4, fixed_abs, tag = 'smem constant byte address 0x4 - core index']
  #allocation1 [shape = 'u32[144,128]{1,0:T(1,128)}', space=vmem, size = 0x12000, scoped, tag = 'internal scratch']
  %s0 = inlined_call_operand.vmem [shape: bf16[2048,144], index: 0, kind: input, shape index: {}]
  %s1 = inlined_call_operand.vmem [shape: bf16[144,16], index: 1, kind: input, shape index: {}]
  %s2 = inlined_call_operand.vmem [shape: f32[1,16], index: 2, kind: input, shape index: {}]
  %s3 = inlined_call_operand.vmem [shape: f32[1,16], index: 3, kind: input, shape index: {}]
  %s4 = inlined_call_operand.vmem [shape: bf16[2048,16], index: 4, kind: input, shape index: {}]
  %s5 = inlined_call_operand.vmem [shape: bf16[2048,16], index: 5, kind: output, shape index: {}]
  %s6 = sld [smem:[#allocation0]]
  $region53: #{l0_wide_resnet_forward.13} parent=0
    _
  %s8 = ssub.s32 1, %s6
  %s9 = scalar_select 0, %s8, %s6
  loop: start=0, step=1, limit=6
  $region2: #{l0_wide_resnet_forward.13} parent=0 // loop_pre_header
    _
  $region3: #{l0_wide_resnet_forward.13} parent=0 // loop_header
    %s11 = sphi 0, %s15
    %p12 = scmp.ge.s32.totalorder %s11, 6
    %s21 = sphi 0, %s23
    %s24 = sphi 0, %s21
    %s25 = sphi 0, %s24
    %s41 = sphi 0, %s25
    %s45 = sphi 0, %s45
    %s47 = sphi 0, %s45
    %s48 = sphi 0, %s47
    %s62 = sphi 0, %s48
    %s66 = sphi 0, %s66
    %s68 = sphi 0, %s66
    %s69 = sphi 0, %s68
    %s83 = sphi 0, %s69
    %s87 = sphi 0, %s87
    %s89 = sphi 0, %s87
    %s90 = sphi 0, %s89
    %s104 = sphi 0, %s90
    %s110 = sphi 0, %s112
    %s113 = sphi 0, %s110
    %s114 = sphi 0, %s113
    %s130 = sphi 0, %s114
    %s136 = sphi 0, %s138
    %s139 = sphi 0, %s136
    %s140 = sphi 0, %s139
    %s156 = sphi 0, %s140
  $region4: #{l0_wide_resnet_forward.13} parent=0 // loop_header_branch
    %14 = sbr.rel (%p12) target = $region8
  $region5: #{l0_wide_resnet_forward.13} parent=0 // loop_body
    %s16 = ssub.s32 %s11, 1
    %s17 = ssub.s32 %s11, 2
    %s18 = sadd.s32 %s11, 1
    %s19 = ssub.s32 %s11, %s18
    %p20 = scmp.eq.s32.totalorder %s19, 0
    %s22 = sadd.s32 %s21, 1
    %s23 = scalar_select %p20, %s21, %s22
    %p26 = pneg %p20
    %p27 = scmp.eq.s32.totalorder %s11, 3
    %p28 = por %p26, %p27
    %p29 = scmp.ne.s32.totalorder %s21, %s24
    %p30 = scmp.eq.s32.totalorder %s11, 0
    %p31 = por %p29, %p30
    %p32 = scmp.ne.s32.totalorder %s21, %s24
    %p33 = scmp.eq.s32.totalorder %s16, 3
    %p34 = por %p32, %p33
    %p35 = scmp.ne.s32.totalorder %s24, %s25
    %p36 = scmp.eq.s32.totalorder %s16, 0
    %p37 = por %p35, %p36
    %p38 = scmp.ne.s32.totalorder %s24, %s25
    %p39 = scmp.eq.s32.totalorder %s17, 3
    %p40 = por %p38, %p39
    %p42 = scmp.ne.s32.totalorder %s25, %s41
    %p43 = scmp.eq.s32.totalorder %s17, 0
    %p44 = por %p42, %p43
    %s46 = sadd.s32 %s45, 1
    %p49 = scmp.eq.s32.totalorder %s11, 3
    %p50 = scmp.ne.s32.totalorder %s45, %s47
    %p51 = scmp.eq.s32.totalorder %s11, 0
    %p52 = por %p50, %p51
    %p53 = scmp.ne.s32.totalorder %s45, %s47
    %p54 = scmp.eq.s32.totalorder %s16, 3
    %p55 = por %p53, %p54
    %p56 = scmp.ne.s32.totalorder %s47, %s48
    %p57 = scmp.eq.s32.totalorder %s16, 0
    %p58 = por %p56, %p57
    %p59 = scmp.ne.s32.totalorder %s47, %s48
    %p60 = scmp.eq.s32.totalorder %s17, 3
    %p61 = por %p59, %p60
    %p63 = scmp.ne.s32.totalorder %s48, %s62
    %p64 = scmp.eq.s32.totalorder %s17, 0
    %p65 = por %p63, %p64
    %s67 = sadd.s32 %s66, 1
    %p70 = scmp.eq.s32.totalorder %s11, 3
    %p71 = scmp.ne.s32.totalorder %s66, %s68
    %p72 = scmp.eq.s32.totalorder %s11, 0
    %p73 = por %p71, %p72
    %p74 = scmp.ne.s32.totalorder %s66, %s68
    %p75 = scmp.eq.s32.totalorder %s16, 3
    %p76 = por %p74, %p75
    %p77 = scmp.ne.s32.totalorder %s68, %s69
    %p78 = scmp.eq.s32.totalorder %s16, 0
    %p79 = por %p77, %p78
    %p80 = scmp.ne.s32.totalorder %s68, %s69
    %p81 = scmp.eq.s32.totalorder %s17, 3
    %p82 = por %p80, %p81
    %p84 = scmp.ne.s32.totalorder %s69, %s83
    %p85 = scmp.eq.s32.totalorder %s17, 0
    %p86 = por %p84, %p85
    %s88 = sadd.s32 %s87, 1
    %p91 = scmp.eq.s32.totalorder %s11, 3
    %p92 = scmp.ne.s32.totalorder %s87, %s89
    %p93 = scmp.eq.s32.totalorder %s11, 0
    %p94 = por %p92, %p93
    %p95 = scmp.ne.s32.totalorder %s87, %s89
    %p96 = scmp.eq.s32.totalorder %s16, 3
    %p97 = por %p95, %p96
    %p98 = scmp.ne.s32.totalorder %s89, %s90
    %p99 = scmp.eq.s32.totalorder %s16, 0
    %p100 = por %p98, %p99
    %p101 = scmp.ne.s32.totalorder %s89, %s90
    %p102 = scmp.eq.s32.totalorder %s17, 3
    %p103 = por %p101, %p102
    %p105 = scmp.ne.s32.totalorder %s90, %s104
    %p106 = scmp.eq.s32.totalorder %s17, 0
    %p107 = por %p105, %p106
    %s108 = ssub.s32 %s11, %s18
    %p109 = scmp.eq.s32.totalorder %s108, 0
    %s111 = sadd.s32 %s110, 1
    %s112 = scalar_select %p109, %s110, %s111
    %p115 = pneg %p109
    %p116 = scmp.eq.s32.totalorder %s11, 3
    %p117 = por %p115, %p116
    %p118 = scmp.ne.s32.totalorder %s110, %s113
    %p119 = scmp.eq.s32.totalorder %s11, 0
    %p120 = por %p118, %p119
    %p121 = scmp.ne.s32.totalorder %s110, %s113
    %p122 = scmp.eq.s32.totalorder %s16, 3
    %p123 = por %p121, %p122
    %p124 = scmp.ne.s32.totalorder %s113, %s114
    %p125 = scmp.eq.s32.totalorder %s16, 0
    %p126 = por %p124, %p125
    %p127 = scmp.ne.s32.totalorder %s113, %s114
    %p128 = scmp.eq.s32.totalorder %s17, 3
    %p129 = por %p127, %p128
    %p131 = scmp.ne.s32.totalorder %s114, %s130
    %p132 = scmp.eq.s32.totalorder %s17, 0
    %p133 = por %p131, %p132
    %s134 = ssub.s32 %s11, %s18
    %p135 = scmp.eq.s32.totalorder %s134, 0
    %s137 = sadd.s32 %s136, 1
    %s138 = scalar_select %p135, %s136, %s137
    %p141 = pneg %p135
    %p142 = scmp.eq.s32.totalorder %s11, 3
    %p143 = por %p141, %p142
    %p144 = scmp.ne.s32.totalorder %s136, %s139
    %p145 = scmp.eq.s32.totalorder %s11, 0
    %p146 = por %p144, %p145
    %p147 = scmp.ne.s32.totalorder %s136, %s139
    %p148 = scmp.eq.s32.totalorder %s16, 3
    %p149 = por %p147, %p148
    %p150 = scmp.ne.s32.totalorder %s139, %s140
    %p151 = scmp.eq.s32.totalorder %s16, 0
    %p152 = por %p150, %p151
    %p153 = scmp.ne.s32.totalorder %s139, %s140
    %p154 = scmp.eq.s32.totalorder %s17, 3
    %p155 = por %p153, %p154
    %p157 = scmp.ne.s32.totalorder %s140, %s156
    %p158 = scmp.eq.s32.totalorder %s17, 0
    %p159 = por %p157, %p158
    %p160 = scmp.le.s32.totalorder 1, %s11
    %p161 = scmp.lt.s32.totalorder %s11, 5
    %p162 = pnand %p160, %p161
    %p163 = pneg %p162
    // Predicated region
    $region9: #{l0_wide_resnet_forward.13} parent=5 // pred_check
      _
    $region10: #{l0_wide_resnet_forward.13} parent=5 // pred_check_branch
      %165 = sbr.rel (%p162) target = $region12
    $region11: #{l0_wide_resnet_forward.13} parent=5 // pred_region
      %s166 = ssub.s32 %s11, 1
      // Predicated region
      $region13: #{l0_wide_resnet_forward.13} parent=11 // pred_check
        %p167 = pneg %p58
      $region14: #{l0_wide_resnet_forward.13} parent=11 // pred_check_branch
        %169 = sbr.rel (%p167) target = $region16
      $region15: #{l0_wide_resnet_forward.13} parent=11 // pred_region
        _
      $region16: #{l0_wide_resnet_forward.13} parent=11 // pred_fallthru
        _
      // Predicated region
      $region17: #{l0_wide_resnet_forward.13} parent=11 // pred_check
        %p170 = pneg %p79
      $region18: #{l0_wide_resnet_forward.13} parent=11 // pred_check_branch
        %172 = sbr.rel (%p170) target = $region20
      $region19: #{l0_wide_resnet_forward.13} parent=11 // pred_region
        _
      $region20: #{l0_wide_resnet_forward.13} parent=11 // pred_fallthru
        _
      // Predicated region
      $region21: #{l0_wide_resnet_forward.13} parent=11 // pred_check
        %p173 = pneg %p100
      $region22: #{l0_wide_resnet_forward.13} parent=11 // pred_check_branch
        %175 = sbr.rel (%p173) target = $region24
      $region23: #{l0_wide_resnet_forward.13} parent=11 // pred_region
        _
      $region24: #{l0_wide_resnet_forward.13} parent=11 // pred_fallthru
        _
    $region12: #{l0_wide_resnet_forward.13} parent=5 // pred_fallthru
      _
    %p176 = scmp.lt.s32.totalorder %s11, 4
    // Predicated region
    $region25: #{l0_wide_resnet_forward.13} parent=5 // pred_check
      %p177 = pneg %p176
    $region26: #{l0_wide_resnet_forward.13} parent=5 // pred_check_branch
      %179 = sbr.rel (%p177) target = $region28
    $region27: #{l0_wide_resnet_forward.13} parent=5 // pred_region
      // Predicated region
      $region29: #{l0_wide_resnet_forward.13} parent=27 // pred_check
        %p180 = pneg %p31
      $region30: #{l0_wide_resnet_forward.13} parent=27 // pred_check_branch
        %182 = sbr.rel (%p180) target = $region32
      $region31: #{l0_wide_resnet_forward.13} parent=27 // pred_region
        %s183 = smul.u32 64, %s11
        %p184 = scmp.lt.s32.totalorder %s183, 255
        %s185 = scalar_select %p184, %s183, 255
        %s186 = smul.addr %s185, 2
        %s187 = smul.addr %s186, 4
        %s188 = scalar_lea.vmem %s0, %s187
        %s189 = smul.u32 64, %s11
      $region32: #{l0_wide_resnet_forward.13} parent=27 // pred_fallthru
        _
      // Predicated region
      $region33: #{l0_wide_resnet_forward.13} parent=27 // pred_check
        %p190 = pneg %p120
      $region34: #{l0_wide_resnet_forward.13} parent=27 // pred_check_branch
        %192 = sbr.rel (%p190) target = $region36
      $region35: #{l0_wide_resnet_forward.13} parent=27 // pred_region
        %s193 = smul.u32 64, %s11
        %p194 = scmp.lt.s32.totalorder %s193, 255
        %s195 = scalar_select %p194, %s193, 255
        %s196 = smul.addr %s195, 4
        %s197 = scalar_lea.vmem %s4, %s196
        %s198 = smul.u32 64, %s11
      $region36: #{l0_wide_resnet_forward.13} parent=27 // pred_fallthru
        _
    $region28: #{l0_wide_resnet_forward.13} parent=5 // pred_fallthru
      _
    %p199 = scmp.le.s32.totalorder 1, %s11
    %p200 = scmp.lt.s32.totalorder %s11, 5
    %p201 = pnand %p199, %p200
    %p202 = pneg %p201
    // Predicated region
    $region37: #{l0_wide_resnet_forward.13} parent=5 // pred_check
      _
    $region38: #{l0_wide_resnet_forward.13} parent=5 // pred_check_branch
      %204 = sbr.rel (%p201) target = $region40
    $region39: #{l0_wide_resnet_forward.13} parent=5 // pred_region
      %s205 = ssub.s32 %s11, 1
      %s206 = smul.u32 64, %s16
      %p207 = scmp.lt.s32.totalorder %s206, 255
      %s208 = scalar_select %p207, %s206, 255
      %s209 = smul.addr %s208, 2
      %s210 = smul.addr %s209, 4
      %s211 = scalar_lea.vmem %s0, %s210
      %p212 = pneg %p37
      %p213 = pneg %p34
      %p214 = pneg %p58
      %p215 = pneg %p55
      %p216 = pneg %p79
      %p217 = pneg %p76
      %p218 = pneg %p100
      %p219 = pneg %p97
      %s220 = smul.u32 64, %s16
      %p221 = scmp.lt.s32.totalorder %s220, 255
      %s222 = scalar_select %p221, %s220, 255
      %s223 = smul.addr %s222, 4
      %s224 = scalar_lea.vmem %s4, %s223
      %p225 = pneg %p126
      %p226 = pneg %p123
      %p227 = pneg %p152
      %p228 = pneg %p149
      %s229 = smul.u32 64, %s16
      %p230 = scmp.lt.s32.totalorder %s229, 255
      %s231 = scalar_select %p230, %s229, 255
      %s232 = smul.addr %s231, 4
      %s233 = scalar_lea.vmem %s5, %s232
      %s234 = smul.u32 64, %s16
      %p235 = scmp.lt.s32.totalorder %s234, 255
      %s236 = scalar_select %p235, %s234, 255
      %s237 = smul.addr %s236, 2
      %s238 = smul.addr %s237, 4
      %s239 = scalar_lea.vmem %s0, %s238
      %s240 = smul.u32 64, %s16
      %s241 = smul.u32 64, %s16
      %p242 = scmp.lt.s32.totalorder %s241, 255
      %s243 = scalar_select %p242, %s241, 255
      %s244 = smul.addr %s243, 4
      %s245 = scalar_lea.vmem %s4, %s244
      %s246 = smul.u32 64, %s16
      %s247 = smul.u32 64, %s16
      %p248 = scmp.lt.s32.totalorder %s247, 255
      %s249 = scalar_select %p248, %s247, 255
      %s250 = smul.addr %s249, 4
      %s251 = scalar_lea.vmem %s5, %s250
      %s252 = smul.u32 64, %s16
      %v254 = vld [vmem:[%s239] sm:$0xff]
      %v255 = vld [vmem:[%s239 + $0x8] sm:$0xff]
      %v256 = vld [vmem:[%s239 + $0x10] sm:$0xff]
      %v257 = vld [vmem:[%s239 + $0x18] sm:$0xff]
      %v258 = vld [vmem:[%s239 + $0x20] sm:$0xff]
      %v259 = vld [vmem:[%s239 + $0x28] sm:$0xff]
      %v260 = vld [vmem:[%s239 + $0x30] sm:$0xff]
      %v261 = vld [vmem:[%s239 + $0x38] sm:$0xff]
      %v262 = vld [vmem:[%s239 + $0x40] sm:$0xff]
      %v263 = vld [vmem:[%s239 + $0x48] sm:$0xff]
      %v264 = vld [vmem:[%s239 + $0x50] sm:$0xff]
      %v265 = vld [vmem:[%s239 + $0x58] sm:$0xff]
      %v266 = vld [vmem:[%s239 + $0x60] sm:$0xff]
      %v267 = vld [vmem:[%s239 + $0x68] sm:$0xff]
      %v268 = vld [vmem:[%s239 + $0x70] sm:$0xff]
      %v269 = vld [vmem:[%s239 + $0x78] sm:$0xff]
      %v270 = vld [vmem:[%s239 + $0x80] sm:$0xff]
      %v271 = vld [vmem:[%s239 + $0x88] sm:$0xff]
      %v272 = vld [vmem:[%s239 + $0x90] sm:$0xff]
      %v273 = vld [vmem:[%s239 + $0x98] sm:$0xff]
      %v274 = vld [vmem:[%s239 + $0xa0] sm:$0xff]
      %v275 = vld [vmem:[%s239 + $0xa8] sm:$0xff]
      %v276 = vld [vmem:[%s239 + $0xb0] sm:$0xff]
      %v277 = vld [vmem:[%s239 + $0xb8] sm:$0xff]
      %v278 = vld [vmem:[%s239 + $0xc0] sm:$0xff]
      %v279 = vld [vmem:[%s239 + $0xc8] sm:$0xff]
      %v280 = vld [vmem:[%s239 + $0xd0] sm:$0xff]
      %v281 = vld [vmem:[%s239 + $0xd8] sm:$0xff]
      %v282 = vld [vmem:[%s239 + $0xe0] sm:$0xff]
      %v283 = vld [vmem:[%s239 + $0xe8] sm:$0xff]
      %v284 = vld [vmem:[%s239 + $0xf0] sm:$0xff]
      %v285 = vld [vmem:[%s239 + $0xf8] sm:$0xff]
      %v286 = vld [vmem:[%s239 + $0x100] sm:$0xff]
      %v287 = vld [vmem:[%s239 + $0x108] sm:$0xff]
      %v288 = vld [vmem:[%s239 + $0x110] sm:$0xff]
      %v289 = vld [vmem:[%s239 + $0x118] sm:$0xff]
      %v290 = vld [vmem:[%s239 + $0x120] sm:$0xff]
      %v291 = vld [vmem:[%s239 + $0x128] sm:$0xff]
      %v292 = vld [vmem:[%s239 + $0x130] sm:$0xff]
      %v293 = vld [vmem:[%s239 + $0x138] sm:$0xff]
      %v294 = vld [vmem:[%s239 + $0x140] sm:$0xff]
      %v295 = vld [vmem:[%s239 + $0x148] sm:$0xff]
      %v296 = vld [vmem:[%s239 + $0x150] sm:$0xff]
      %v297 = vld [vmem:[%s239 + $0x158] sm:$0xff]
      %v298 = vld [vmem:[%s239 + $0x160] sm:$0xff]
      %v299 = vld [vmem:[%s239 + $0x168] sm:$0xff]
      %v300 = vld [vmem:[%s239 + $0x170] sm:$0xff]
      %v301 = vld [vmem:[%s239 + $0x178] sm:$0xff]
      %v302 = vld [vmem:[%s239 + $0x180] sm:$0xff]
      %v303 = vld [vmem:[%s239 + $0x188] sm:$0xff]
      %v304 = vld [vmem:[%s239 + $0x190] sm:$0xff]
      %v305 = vld [vmem:[%s239 + $0x198] sm:$0xff]
      %v306 = vld [vmem:[%s239 + $0x1a0] sm:$0xff]
      %v307 = vld [vmem:[%s239 + $0x1a8] sm:$0xff]
      %v308 = vld [vmem:[%s239 + $0x1b0] sm:$0xff]
      %v309 = vld [vmem:[%s239 + $0x1b8] sm:$0xff]
      %v310 = vld [vmem:[%s239 + $0x1c0] sm:$0xff]
      %v311 = vld [vmem:[%s239 + $0x1c8] sm:$0xff]
      %v312 = vld [vmem:[%s239 + $0x1d0] sm:$0xff]
      %v313 = vld [vmem:[%s239 + $0x1d8] sm:$0xff]
      %v314 = vld [vmem:[%s239 + $0x1e0] sm:$0xff]
      %v315 = vld [vmem:[%s239 + $0x1e8] sm:$0xff]
      %v316 = vld [vmem:[%s239 + $0x1f0] sm:$0xff]
      %v317 = vld [vmem:[%s239 + $0x1f8] sm:$0xff]
      %v318 = vld [vmem:[%s1] sm:$0xf]
      %v319 = vld [vmem:[%s1 + $0x4] sm:$0xf]
      %v320 = vld [vmem:[%s1 + $0x8] sm:$0xf]
      %v321 = vld [vmem:[%s1 + $0xc] sm:$0xf]
      %v322 = vld [vmem:[%s1 + $0x10] sm:$0xf]
      %v323 = vld [vmem:[%s1 + $0x14] sm:$0xf]
      %v324 = vld [vmem:[%s1 + $0x18] sm:$0xf]
      %v325 = vld [vmem:[%s1 + $0x1c] sm:$0xf]
      %v326 = vld [vmem:[%s1 + $0x20] sm:$0xf]
      %v327 = vld [vmem:[%s1 + $0x24] sm:$0xf]
      %v328 = vld [vmem:[%s1 + $0x28] sm:$0xf]
      %v329 = vld [vmem:[%s1 + $0x2c] sm:$0xf]
      %v330 = vld [vmem:[%s1 + $0x30] sm:$0xf]
      %v331 = vld [vmem:[%s1 + $0x34] sm:$0xf]
      %v332 = vld [vmem:[%s1 + $0x38] sm:$0xf]
      %v333 = vld [vmem:[%s1 + $0x3c] sm:$0xf]
      %v334 = vld [vmem:[%s1 + $0x40] sm:$0xf]
      %v335 = vld [vmem:[%s1 + $0x44] sm:$0xf]
      %v336 = vld [vmem:[%s245] sm:$0xf]
      %v337 = vld [vmem:[%s245 + $0x4] sm:$0xf]
      %v338 = vld [vmem:[%s245 + $0x8] sm:$0xf]
      %v339 = vld [vmem:[%s245 + $0xc] sm:$0xf]
      %v340 = vld [vmem:[%s245 + $0x10] sm:$0xf]
      %v341 = vld [vmem:[%s245 + $0x14] sm:$0xf]
      %v342 = vld [vmem:[%s245 + $0x18] sm:$0xf]
      %v343 = vld [vmem:[%s245 + $0x1c] sm:$0xf]
      %v344 = vld [vmem:[%s245 + $0x20] sm:$0xf]
      %v345 = vld [vmem:[%s245 + $0x24] sm:$0xf]
      %v346 = vld [vmem:[%s245 + $0x28] sm:$0xf]
      %v347 = vld [vmem:[%s245 + $0x2c] sm:$0xf]
      %v348 = vld [vmem:[%s245 + $0x30] sm:$0xf]
      %v349 = vld [vmem:[%s245 + $0x34] sm:$0xf]
      %v350 = vld [vmem:[%s245 + $0x38] sm:$0xf]
      %v351 = vld [vmem:[%s245 + $0x3c] sm:$0xf]
      %v352 = vld [vmem:[%s245 + $0x40] sm:$0xf]
      %v353 = vld [vmem:[%s245 + $0x44] sm:$0xf]
      %v354 = vld [vmem:[%s245 + $0x48] sm:$0xf]
      %v355 = vld [vmem:[%s245 + $0x4c] sm:$0xf]
      %v356 = vld [vmem:[%s245 + $0x50] sm:$0xf]
      %v357 = vld [vmem:[%s245 + $0x54] sm:$0xf]
      %v358 = vld [vmem:[%s245 + $0x58] sm:$0xf]
      %v359 = vld [vmem:[%s245 + $0x5c] sm:$0xf]
      %v360 = vld [vmem:[%s245 + $0x60] sm:$0xf]
      %v361 = vld [vmem:[%s245 + $0x64] sm:$0xf]
      %v362 = vld [vmem:[%s245 + $0x68] sm:$0xf]
      %v363 = vld [vmem:[%s245 + $0x6c] sm:$0xf]
      %v364 = vld [vmem:[%s245 + $0x70] sm:$0xf]
      %v365 = vld [vmem:[%s245 + $0x74] sm:$0xf]
      %v366 = vld [vmem:[%s245 + $0x78] sm:$0xf]
      %v367 = vld [vmem:[%s245 + $0x7c] sm:$0xf]
      %v368 = vld [vmem:[%s245 + $0x80] sm:$0xf]
      %v369 = vld [vmem:[%s245 + $0x84] sm:$0xf]
      %v370 = vld [vmem:[%s245 + $0x88] sm:$0xf]
      %v371 = vld [vmem:[%s245 + $0x8c] sm:$0xf]
      %v372 = vld [vmem:[%s245 + $0x90] sm:$0xf]
      %v373 = vld [vmem:[%s245 + $0x94] sm:$0xf]
      %v374 = vld [vmem:[%s245 + $0x98] sm:$0xf]
      %v375 = vld [vmem:[%s245 + $0x9c] sm:$0xf]
      %v376 = vld [vmem:[%s245 + $0xa0] sm:$0xf]
      %v377 = vld [vmem:[%s245 + $0xa4] sm:$0xf]
      %v378 = vld [vmem:[%s245 + $0xa8] sm:$0xf]
      %v379 = vld [vmem:[%s245 + $0xac] sm:$0xf]
      %v380 = vld [vmem:[%s245 + $0xb0] sm:$0xf]
      %v381 = vld [vmem:[%s245 + $0xb4] sm:$0xf]
      %v382 = vld [vmem:[%s245 + $0xb8] sm:$0xf]
      %v383 = vld [vmem:[%s245 + $0xbc] sm:$0xf]
      %v384 = vld [vmem:[%s245 + $0xc0] sm:$0xf]
      %v385 = vld [vmem:[%s245 + $0xc4] sm:$0xf]
      %v386 = vld [vmem:[%s245 + $0xc8] sm:$0xf]
      %v387 = vld [vmem:[%s245 + $0xcc] sm:$0xf]
      %v388 = vld [vmem:[%s245 + $0xd0] sm:$0xf]
      %v389 = vld [vmem:[%s245 + $0xd4] sm:$0xf]
      %v390 = vld [vmem:[%s245 + $0xd8] sm:$0xf]
      %v391 = vld [vmem:[%s245 + $0xdc] sm:$0xf]
      %v392 = vld [vmem:[%s245 + $0xe0] sm:$0xf]
      %v393 = vld [vmem:[%s245 + $0xe4] sm:$0xf]
      %v394 = vld [vmem:[%s245 + $0xe8] sm:$0xf]
      %v395 = vld [vmem:[%s245 + $0xec] sm:$0xf]
      %v396 = vld [vmem:[%s245 + $0xf0] sm:$0xf]
      %v397 = vld [vmem:[%s245 + $0xf4] sm:$0xf]
      %v398 = vld [vmem:[%s245 + $0xf8] sm:$0xf]
      %v399 = vld [vmem:[%s245 + $0xfc] sm:$0xf]
      %v400 = vunpack.c.l.bf16 %v336
      %v401 = vunpack.c.l.bf16 %v337
      %v402 = vunpack.c.l.bf16 %v338
      %v403 = vunpack.c.l.bf16 %v339
      %v404 = vunpack.c.l.bf16 %v340
      %v405 = vunpack.c.l.bf16 %v341
      %v406 = vunpack.c.l.bf16 %v342
      %v407 = vunpack.c.l.bf16 %v343
      %v408 = vunpack.c.l.bf16 %v344
      %v409 = vunpack.c.l.bf16 %v345
      %v410 = vunpack.c.l.bf16 %v346
      %v411 = vunpack.c.l.bf16 %v347
      %v412 = vunpack.c.l.bf16 %v348
      %v413 = vunpack.c.l.bf16 %v349
      %v414 = vunpack.c.l.bf16 %v350
      %v415 = vunpack.c.l.bf16 %v351
      %v416 = vunpack.c.l.bf16 %v352
      %v417 = vunpack.c.l.bf16 %v353
      %v418 = vunpack.c.l.bf16 %v354
      %v419 = vunpack.c.l.bf16 %v355
      %v420 = vunpack.c.l.bf16 %v356
      %v421 = vunpack.c.l.bf16 %v357
      %v422 = vunpack.c.l.bf16 %v358
      %v423 = vunpack.c.l.bf16 %v359
      %v424 = vunpack.c.l.bf16 %v360
      %v425 = vunpack.c.l.bf16 %v361
      %v426 = vunpack.c.l.bf16 %v362
      %v427 = vunpack.c.l.bf16 %v363
      %v428 = vunpack.c.l.bf16 %v364
      %v429 = vunpack.c.l.bf16 %v365
      %v430 = vunpack.c.l.bf16 %v366
      %v431 = vunpack.c.l.bf16 %v367
      %v432 = vunpack.c.l.bf16 %v368
      %v433 = vunpack.c.l.bf16 %v369
      %v434 = vunpack.c.l.bf16 %v370
      %v435 = vunpack.c.l.bf16 %v371
      %v436 = vunpack.c.l.bf16 %v372
      %v437 = vunpack.c.l.bf16 %v373
      %v438 = vunpack.c.l.bf16 %v374
      %v439 = vunpack.c.l.bf16 %v375
      %v440 = vunpack.c.l.bf16 %v376
      %v441 = vunpack.c.l.bf16 %v377
      %v442 = vunpack.c.l.bf16 %v378
      %v443 = vunpack.c.l.bf16 %v379
      %v444 = vunpack.c.l.bf16 %v380
      %v445 = vunpack.c.l.bf16 %v381
      %v446 = vunpack.c.l.bf16 %v382
      %v447 = vunpack.c.l.bf16 %v383
      %v448 = vunpack.c.l.bf16 %v384
      %v449 = vunpack.c.l.bf16 %v385
      %v450 = vunpack.c.l.bf16 %v386
      %v451 = vunpack.c.l.bf16 %v387
      %v452 = vunpack.c.l.bf16 %v388
      %v453 = vunpack.c.l.bf16 %v389
      %v454 = vunpack.c.l.bf16 %v390
      %v455 = vunpack.c.l.bf16 %v391
      %v456 = vunpack.c.l.bf16 %v392
      %v457 = vunpack.c.l.bf16 %v393
      %v458 = vunpack.c.l.bf16 %v394
      %v459 = vunpack.c.l.bf16 %v395
      %v460 = vunpack.c.l.bf16 %v396
      %v461 = vunpack.c.l.bf16 %v397
      %v462 = vunpack.c.l.bf16 %v398
      %v463 = vunpack.c.l.bf16 %v399
      %v528 = vunpack.c.l.b16 %v254
      %v529 = vunpack.c.h.b16 %v254
      %v530 = vunpack.c.l.b16 %v255
      %v531 = vunpack.c.h.b16 %v255
      %v532 = vunpack.c.l.b16 %v256
      %v533 = vunpack.c.h.b16 %v256
      %v534 = vunpack.c.l.b16 %v257
      %v535 = vunpack.c.h.b16 %v257
      %v536 = vunpack.c.l.b16 %v258
      %v537 = vunpack.c.h.b16 %v258
      %v538 = vunpack.c.l.b16 %v259
      %v539 = vunpack.c.h.b16 %v259
      %v540 = vunpack.c.l.b16 %v260
      %v541 = vunpack.c.h.b16 %v260
      %v542 = vunpack.c.l.b16 %v261
      %v543 = vunpack.c.h.b16 %v261
      %v544 = vunpack.c.l.b16 %v262
      %v545 = vunpack.c.h.b16 %v262
      %v546 = vunpack.c.l.b16 %v263
      %v547 = vunpack.c.h.b16 %v263
      %v548 = vunpack.c.l.b16 %v264
      %v549 = vunpack.c.h.b16 %v264
      %v550 = vunpack.c.l.b16 %v265
      %v551 = vunpack.c.h.b16 %v265
      %v552 = vunpack.c.l.b16 %v266
      %v553 = vunpack.c.h.b16 %v266
      %v554 = vunpack.c.l.b16 %v267
      %v555 = vunpack.c.h.b16 %v267
      %v556 = vunpack.c.l.b16 %v268
      %v557 = vunpack.c.h.b16 %v268
      %v558 = vunpack.c.l.b16 %v269
      %v559 = vunpack.c.h.b16 %v269
      %v560 = vunpack.c.l.b16 %v270
      %v561 = vunpack.c.h.b16 %v270
      %v562 = vunpack.c.l.b16 %v271
      %v563 = vunpack.c.h.b16 %v271
      %v564 = vunpack.c.l.b16 %v272
      %v565 = vunpack.c.h.b16 %v272
      %v566 = vunpack.c.l.b16 %v273
      %v567 = vunpack.c.h.b16 %v273
      %v568 = vunpack.c.l.b16 %v274
      %v569 = vunpack.c.h.b16 %v274
      %v570 = vunpack.c.l.b16 %v275
      %v571 = vunpack.c.h.b16 %v275
      %v572 = vunpack.c.l.b16 %v276
      %v573 = vunpack.c.h.b16 %v276
      %v574 = vunpack.c.l.b16 %v277
      %v575 = vunpack.c.h.b16 %v277
      %v576 = vunpack.c.l.b16 %v278
      %v577 = vunpack.c.h.b16 %v278
      %v578 = vunpack.c.l.b16 %v279
      %v579 = vunpack.c.h.b16 %v279
      %v580 = vunpack.c.l.b16 %v280
      %v581 = vunpack.c.h.b16 %v280
      %v582 = vunpack.c.l.b16 %v281
      %v583 = vunpack.c.h.b16 %v281
      %v584 = vunpack.c.l.b16 %v282
      %v585 = vunpack.c.h.b16 %v282
      %v586 = vunpack.c.l.b16 %v283
      %v587 = vunpack.c.h.b16 %v283
      %v588 = vunpack.c.l.b16 %v284
      %v589 = vunpack.c.h.b16 %v284
      %v590 = vunpack.c.l.b16 %v285
      %v591 = vunpack.c.h.b16 %v285
      %v592 = vunpack.c.l.b16 %v286
      %v593 = vunpack.c.h.b16 %v286
      %v594 = vunpack.c.l.b16 %v287
      %v595 = vunpack.c.h.b16 %v287
      %v596 = vunpack.c.l.b16 %v288
      %v597 = vunpack.c.h.b16 %v288
      %v598 = vunpack.c.l.b16 %v289
      %v599 = vunpack.c.h.b16 %v289
      %v600 = vunpack.c.l.b16 %v290
      %v601 = vunpack.c.h.b16 %v290
      %v602 = vunpack.c.l.b16 %v291
      %v603 = vunpack.c.h.b16 %v291
      %v604 = vunpack.c.l.b16 %v292
      %v605 = vunpack.c.h.b16 %v292
      %v606 = vunpack.c.l.b16 %v293
      %v607 = vunpack.c.h.b16 %v293
      %v608 = vunpack.c.l.b16 %v294
      %v609 = vunpack.c.h.b16 %v294
      %v610 = vunpack.c.l.b16 %v295
      %v611 = vunpack.c.h.b16 %v295
      %v612 = vunpack.c.l.b16 %v296
      %v613 = vunpack.c.h.b16 %v296
      %v614 = vunpack.c.l.b16 %v297
      %v615 = vunpack.c.h.b16 %v297
      %v616 = vunpack.c.l.b16 %v298
      %v617 = vunpack.c.h.b16 %v298
      %v618 = vunpack.c.l.b16 %v299
      %v619 = vunpack.c.h.b16 %v299
      %v620 = vunpack.c.l.b16 %v300
      %v621 = vunpack.c.h.b16 %v300
      %v622 = vunpack.c.l.b16 %v301
      %v623 = vunpack.c.h.b16 %v301
      %v624 = vunpack.c.l.b16 %v302
      %v625 = vunpack.c.h.b16 %v302
      %v626 = vunpack.c.l.b16 %v303
      %v627 = vunpack.c.h.b16 %v303
      %v628 = vunpack.c.l.b16 %v304
      %v629 = vunpack.c.h.b16 %v304
      %v630 = vunpack.c.l.b16 %v305
      %v631 = vunpack.c.h.b16 %v305
      %v632 = vunpack.c.l.b16 %v306
      %v633 = vunpack.c.h.b16 %v306
      %v634 = vunpack.c.l.b16 %v307
      %v635 = vunpack.c.h.b16 %v307
      %v636 = vunpack.c.l.b16 %v308
      %v637 = vunpack.c.h.b16 %v308
      %v638 = vunpack.c.l.b16 %v309
      %v639 = vunpack.c.h.b16 %v309
      %v640 = vunpack.c.l.b16 %v310
      %v641 = vunpack.c.h.b16 %v310
      %v642 = vunpack.c.l.b16 %v311
      %v643 = vunpack.c.h.b16 %v311
      %v644 = vunpack.c.l.b16 %v312
      %v645 = vunpack.c.h.b16 %v312
      %v646 = vunpack.c.l.b16 %v313
      %v647 = vunpack.c.h.b16 %v313
      %v648 = vunpack.c.l.b16 %v314
      %v649 = vunpack.c.h.b16 %v314
      %v650 = vunpack.c.l.b16 %v315
      %v651 = vunpack.c.h.b16 %v315
      %v652 = vunpack.c.l.b16 %v316
      %v653 = vunpack.c.h.b16 %v316
      %v654 = vunpack.c.l.b16 %v317
      %v655 = vunpack.c.h.b16 %v317
      %v656 = vpack.c.b16 %v530, %v528
      %v657 = vpack.c.b16 %v531, %v529
      %v658 = vpack.c.b16 %v534, %v532
      %v659 = vpack.c.b16 %v535, %v533
      %v660 = vpack.c.b16 %v538, %v536
      %v661 = vpack.c.b16 %v539, %v537
      %v662 = vpack.c.b16 %v542, %v540
      %v663 = vpack.c.b16 %v543, %v541
      %v664 = vpack.c.b16 %v546, %v544
      %v665 = vpack.c.b16 %v547, %v545
      %v666 = vpack.c.b16 %v550, %v548
      %v667 = vpack.c.b16 %v551, %v549
      %v668 = vpack.c.b16 %v554, %v552
      %v669 = vpack.c.b16 %v555, %v553
      %v670 = vpack.c.b16 %v558, %v556
      %v671 = vpack.c.b16 %v559, %v557
      %v672 = vpack.c.b16 %v562, %v560
      %v673 = vpack.c.b16 %v563, %v561
      %v674 = vpack.c.b16 %v566, %v564
      %v675 = vpack.c.b16 %v567, %v565
      %v676 = vpack.c.b16 %v570, %v568
      %v677 = vpack.c.b16 %v571, %v569
      %v678 = vpack.c.b16 %v574, %v572
      %v679 = vpack.c.b16 %v575, %v573
      %v680 = vpack.c.b16 %v578, %v576
      %v681 = vpack.c.b16 %v579, %v577
      %v682 = vpack.c.b16 %v582, %v580
      %v683 = vpack.c.b16 %v583, %v581
      %v684 = vpack.c.b16 %v586, %v584
      %v685 = vpack.c.b16 %v587, %v585
      %v686 = vpack.c.b16 %v590, %v588
      %v687 = vpack.c.b16 %v591, %v589
      %v688 = vpack.c.b16 %v594, %v592
      %v689 = vpack.c.b16 %v595, %v593
      %v690 = vpack.c.b16 %v598, %v596
      %v691 = vpack.c.b16 %v599, %v597
      %v692 = vpack.c.b16 %v602, %v600
      %v693 = vpack.c.b16 %v603, %v601
      %v694 = vpack.c.b16 %v606, %v604
      %v695 = vpack.c.b16 %v607, %v605
      %v696 = vpack.c.b16 %v610, %v608
      %v697 = vpack.c.b16 %v611, %v609
      %v698 = vpack.c.b16 %v614, %v612
      %v699 = vpack.c.b16 %v615, %v613
      %v700 = vpack.c.b16 %v618, %v616
      %v701 = vpack.c.b16 %v619, %v617
      %v702 = vpack.c.b16 %v622, %v620
      %v703 = vpack.c.b16 %v623, %v621
      %v704 = vpack.c.b16 %v626, %v624
      %v705 = vpack.c.b16 %v627, %v625
      %v706 = vpack.c.b16 %v630, %v628
      %v707 = vpack.c.b16 %v631, %v629
      %v708 = vpack.c.b16 %v634, %v632
      %v709 = vpack.c.b16 %v635, %v633
      %v710 = vpack.c.b16 %v638, %v636
      %v711 = vpack.c.b16 %v639, %v637
      %v712 = vpack.c.b16 %v642, %v640
      %v713 = vpack.c.b16 %v643, %v641
      %v714 = vpack.c.b16 %v646, %v644
      %v715 = vpack.c.b16 %v647, %v645
      %v716 = vpack.c.b16 %v650, %v648
      %v717 = vpack.c.b16 %v651, %v649
      %v718 = vpack.c.b16 %v654, %v652
      %v719 = vpack.c.b16 %v655, %v653
      %v770 = vunpack.c.l.b16 %v318
      %v771 = vunpack.c.l.b16 %v319
      %v772 = vunpack.c.l.b16 %v320
      %v773 = vunpack.c.l.b16 %v321
      %v774 = vunpack.c.l.b16 %v322
      %v775 = vunpack.c.l.b16 %v323
      %v776 = vunpack.c.l.b16 %v324
      %v777 = vunpack.c.l.b16 %v325
      %v778 = vunpack.c.l.b16 %v326
      %v779 = vunpack.c.l.b16 %v327
      %v780 = vunpack.c.l.b16 %v328
      %v781 = vunpack.c.l.b16 %v329
      %v782 = vunpack.c.l.b16 %v330
      %v783 = vunpack.c.l.b16 %v331
      %v784 = vunpack.c.l.b16 %v332
      %v785 = vunpack.c.l.b16 %v333
      %v786 = vunpack.c.l.b16 %v334
      %v787 = vunpack.c.l.b16 %v335
      %v788 = vpack.c.b16 %v771, %v770
      %v789 = vpack.c.b16 %v773, %v772
      %v790 = vpack.c.b16 %v775, %v774
      %v791 = vpack.c.b16 %v777, %v776
      %v792 = vpack.c.b16 %v779, %v778
      %v793 = vpack.c.b16 %v781, %v780
      %v794 = vpack.c.b16 %v783, %v782
      %v795 = vpack.c.b16 %v785, %v784
      %v796 = vpack.c.b16 %v787, %v786
      %vm806 = vcmask 130048
      %v808 = vsel %vm806, %v657, 0
      %v811 = vsel %vm806, %v659, 0
      %v814 = vsel %vm806, %v661, 0
      %v817 = vsel %vm806, %v663, 0
      %v820 = vsel %vm806, %v665, 0
      %v823 = vsel %vm806, %v667, 0
      %v826 = vsel %vm806, %v669, 0
      %v829 = vsel %vm806, %v671, 0
      %v832 = vsel %vm806, %v673, 0
      %v835 = vsel %vm806, %v675, 0
      %v838 = vsel %vm806, %v677, 0
      %v841 = vsel %vm806, %v679, 0
      %v844 = vsel %vm806, %v681, 0
      %v847 = vsel %vm806, %v683, 0
      %v850 = vsel %vm806, %v685, 0
      %v853 = vsel %vm806, %v687, 0
      %v856 = vsel %vm806, %v689, 0
      %v859 = vsel %vm806, %v691, 0
      %v862 = vsel %vm806, %v693, 0
      %v865 = vsel %vm806, %v695, 0
      %v868 = vsel %vm806, %v697, 0
      %v871 = vsel %vm806, %v699, 0
      %v874 = vsel %vm806, %v701, 0
      %v877 = vsel %vm806, %v703, 0
      %v880 = vsel %vm806, %v705, 0
      %v883 = vsel %vm806, %v707, 0
      %v886 = vsel %vm806, %v709, 0
      %v889 = vsel %vm806, %v711, 0
      %v892 = vsel %vm806, %v713, 0
      %v895 = vsel %vm806, %v715, 0
      %v898 = vsel %vm806, %v717, 0
      %v901 = vsel %vm806, %v719, 0
      %903 = vmatprep.subr.bf16.mxu0 0
      %904 = vmatpush1.bf16.msra.mxu0 %v788
      %905 = vmatprep.subr.bf16.mxu0 0
      %906 = vmatpush1.bf16.msra.mxu0 %v789
      %907 = vmatprep.subr.bf16.mxu0 0
      %908 = vmatpush1.bf16.msra.mxu0 %v790
      %909 = vmatprep.subr.bf16.mxu0 0
      %910 = vmatpush1.bf16.msra.mxu0 %v791
      %911 = vmatprep.subr.bf16.mxu0 0
      %912 = vmatpush1.bf16.msra.mxu0 %v792
      %913 = vmatprep.subr.bf16.mxu0 0
      %914 = vmatpush1.bf16.msra.mxu0 %v793
      %915 = vmatprep.subr.bf16.mxu0 0
      %916 = vmatpush1.bf16.msra.mxu0 %v794
      %917 = vmatprep.subr.bf16.mxu0 0
      %918 = vmatpush1.bf16.msra.mxu0 %v795
      %919 = vmatprep.subr.bf16.mxu0 0
      %920 = vmatpush1.bf16.msra.mxu0 %v796
      %921 = vmatprep.subr.bf16.mxu0 0
      %922 = vmatpush1.bf16.msra.mxu0 0
      %923 = vmatprep.subr.bf16.mxu0 0
      %924 = vmatpush1.bf16.msra.mxu0 0
      %925 = vmatprep.subr.bf16.mxu0 0
      %926 = vmatpush1.bf16.msra.mxu0 0
      %927 = vmatprep.subr.bf16.mxu0 0
      %928 = vmatpush1.bf16.msra.mxu0 0
      %929 = vmatprep.subr.bf16.mxu0 0
      %930 = vmatpush1.bf16.msra.mxu0 0
      %931 = vmatprep.subr.bf16.mxu0 0
      %932 = vmatpush1.bf16.msra.mxu0 0
      %933 = vmatprep.subr.bf16.mxu0 0
      %934 = vmatpush1.bf16.msra.mxu0 0
      %935 = vmatprep.mubr.bf16.mxu0 %v808
      %936 = vmatmul.mubr.bf16.gmra.mrb[0].mxu0 %v656
      %v937 = vpop.f32.mrb[0].mxu0
      %v938 = vadd.f32 %v400, %v937
      %v939 = vpop.f32.mrb[0].mxu0
      %v940 = vpop.f32.mrb[0].mxu0
      %v941 = vadd.f32 %v401, %v940
      %v942 = vpop.f32.mrb[0].mxu0
      %943 = vmatprep.mubr.bf16.mxu0 %v811
      %944 = vmatmul.mubr.bf16.gmra.mrb[0].mxu0 %v658
      %v945 = vpop.f32.mrb[0].mxu0
      %v946 = vadd.f32 %v402, %v945
      %v947 = vpop.f32.mrb[0].mxu0
      %v948 = vpop.f32.mrb[0].mxu0
      %v949 = vadd.f32 %v403, %v948
      %v950 = vpop.f32.mrb[0].mxu0
      %951 = vmatprep.mubr.bf16.mxu0 %v814
      %952 = vmatmul.mubr.bf16.gmra.mrb[0].mxu0 %v660
      %v953 = vpop.f32.mrb[0].mxu0
      %v954 = vadd.f32 %v404, %v953
      %v955 = vpop.f32.mrb[0].mxu0
      %v956 = vpop.f32.mrb[0].mxu0
      %v957 = vadd.f32 %v405, %v956
      %v958 = vpop.f32.mrb[0].mxu0
      %959 = vmatprep.mubr.bf16.mxu0 %v817
      %960 = vmatmul.mubr.bf16.gmra.mrb[0].mxu0 %v662
      %v961 = vpop.f32.mrb[0].mxu0
      %v962 = vadd.f32 %v406, %v961
      %v963 = vpop.f32.mrb[0].mxu0
      %v964 = vpop.f32.mrb[0].mxu0
      %v965 = vadd.f32 %v407, %v964
      %v966 = vpop.f32.mrb[0].mxu0
      %967 = vmatprep.mubr.bf16.mxu0 %v820
      %968 = vmatmul.mubr.bf16.gmra.mrb[0].mxu0 %v664
      %v969 = vpop.f32.mrb[0].mxu0
      %v970 = vadd.f32 %v408, %v969
      %v971 = vpop.f32.mrb[0].mxu0
      %v972 = vpop.f32.mrb[0].mxu0
      %v973 = vadd.f32 %v409, %v972
      %v974 = vpop.f32.mrb[0].mxu0
      %975 = vmatprep.mubr.bf16.mxu0 %v823
      %976 = vmatmul.mubr.bf16.gmra.mrb[0].mxu0 %v666
      %v977 = vpop.f32.mrb[0].mxu0
      %v978 = vadd.f32 %v410, %v977
      %v979 = vpop.f32.mrb[0].mxu0
      %v980 = vpop.f32.mrb[0].mxu0
      %v981 = vadd.f32 %v411, %v980
      %v982 = vpop.f32.mrb[0].mxu0
      %983 = vmatprep.mubr.bf16.mxu0 %v826
      %984 = vmatmul.mubr.bf16.gmra.mrb[0].mxu0 %v668
      %v985 = vpop.f32.mrb[0].mxu0
      %v986 = vadd.f32 %v412, %v985
      %v987 = vpop.f32.mrb[0].mxu0
      %v988 = vpop.f32.mrb[0].mxu0
      %v989 = vadd.f32 %v413, %v988
      %v990 = vpop.f32.mrb[0].mxu0
      %991 = vmatprep.mubr.bf16.mxu0 %v829
      %992 = vmatmul.mubr.bf16.gmra.mrb[0].mxu0 %v670
      %v993 = vpop.f32.mrb[0].mxu0
      %v994 = vadd.f32 %v414, %v993
      %v995 = vpop.f32.mrb[0].mxu0
      %v996 = vpop.f32.mrb[0].mxu0
      %v997 = vadd.f32 %v415, %v996
      %v998 = vpop.f32.mrb[0].mxu0
      %999 = vmatprep.mubr.bf16.mxu0 %v832
      %1000 = vmatmul.mubr.bf16.gmra.mrb[0].mxu0 %v672
      %v1001 = vpop.f32.mrb[0].mxu0
      %v1002 = vadd.f32 %v416, %v1001
      %v1003 = vpop.f32.mrb[0].mxu0
      %v1004 = vpop.f32.mrb[0].mxu0
      %v1005 = vadd.f32 %v417, %v1004
      %v1006 = vpop.f32.mrb[0].mxu0
      %1007 = vmatprep.mubr.bf16.mxu0 %v835
      %1008 = vmatmul.mubr.bf16.gmra.mrb[0].mxu0 %v674
      %v1009 = vpop.f32.mrb[0].mxu0
      %v1010 = vadd.f32 %v418, %v1009
      %v1011 = vpop.f32.mrb[0].mxu0
      %v1012 = vpop.f32.mrb[0].mxu0
      %v1013 = vadd.f32 %v419, %v1012
      %v1014 = vpop.f32.mrb[0].mxu0
      %1015 = vmatprep.mubr.bf16.mxu0 %v838
      %1016 = vmatmul.mubr.bf16.gmra.mrb[0].mxu0 %v676
      %v1017 = vpop.f32.mrb[0].mxu0
      %v1018 = vadd.f32 %v420, %v1017
      %v1019 = vpop.f32.mrb[0].mxu0
      %v1020 = vpop.f32.mrb[0].mxu0
      %v1021 = vadd.f32 %v421, %v1020
      %v1022 = vpop.f32.mrb[0].mxu0
      %1023 = vmatprep.mubr.bf16.mxu0 %v841
      %1024 = vmatmul.mubr.bf16.gmra.mrb[0].mxu0 %v678
      %v1025 = vpop.f32.mrb[0].mxu0
      %v1026 = vadd.f32 %v422, %v1025
      %v1027 = vpop.f32.mrb[0].mxu0
      %v1028 = vpop.f32.mrb[0].mxu0
      %v1029 = vadd.f32 %v423, %v1028
      %v1030 = vpop.f32.mrb[0].mxu0
      %1031 = vmatprep.mubr.bf16.mxu0 %v844
      %1032 = vmatmul.mubr.bf16.gmra.mrb[0].mxu0 %v680
      %v1033 = vpop.f32.mrb[0].mxu0
      %v1034 = vadd.f32 %v424, %v1033
      %v1035 = vpop.f32.mrb[0].mxu0
      %v1036 = vpop.f32.mrb[0].mxu0
      %v1037 = vadd.f32 %v425, %v1036
      %v1038 = vpop.f32.mrb[0].mxu0
      %1039 = vmatprep.mubr.bf16.mxu0 %v847
      %1040 = vmatmul.mubr.bf16.gmra.mrb[0].mxu0 %v682
      %v1041 = vpop.f32.mrb[0].mxu0
      %v1042 = vadd.f32 %v426, %v1041
      %v1043 = vpop.f32.mrb[0].mxu0
      %v1044 = vpop.f32.mrb[0].mxu0
      %v1045 = vadd.f32 %v427, %v1044
      %v1046 = vpop.f32.mrb[0].mxu0
      %1047 = vmatprep.mubr.bf16.mxu0 %v850
      %1048 = vmatmul.mubr.bf16.gmra.mrb[0].mxu0 %v684
      %v1049 = vpop.f32.mrb[0].mxu0
      %v1050 = vadd.f32 %v428, %v1049
      %v1051 = vpop.f32.mrb[0].mxu0
      %v1052 = vpop.f32.mrb[0].mxu0
      %v1053 = vadd.f32 %v429, %v1052
      %v1054 = vpop.f32.mrb[0].mxu0
      %1055 = vmatprep.mubr.bf16.mxu0 %v853
      %1056 = vmatmul.mubr.bf16.gmra.mrb[0].mxu0 %v686
      %v1057 = vpop.f32.mrb[0].mxu0
      %v1058 = vadd.f32 %v430, %v1057
      %v1059 = vpop.f32.mrb[0].mxu0
      %v1060 = vpop.f32.mrb[0].mxu0
      %v1061 = vadd.f32 %v431, %v1060
      %v1062 = vpop.f32.mrb[0].mxu0
      %1063 = vmatprep.mubr.bf16.mxu0 %v856
      %1064 = vmatmul.mubr.bf16.gmra.mrb[0].mxu0 %v688
      %v1065 = vpop.f32.mrb[0].mxu0
      %v1066 = vadd.f32 %v432, %v1065
      %v1067 = vpop.f32.mrb[0].mxu0
      %v1068 = vpop.f32.mrb[0].mxu0
      %v1069 = vadd.f32 %v433, %v1068
      %v1070 = vpop.f32.mrb[0].mxu0
      %1071 = vmatprep.mubr.bf16.mxu0 %v859
      %1072 = vmatmul.mubr.bf16.gmra.mrb[0].mxu0 %v690
      %v1073 = vpop.f32.mrb[0].mxu0
      %v1074 = vadd.f32 %v434, %v1073
      %v1075 = vpop.f32.mrb[0].mxu0
      %v1076 = vpop.f32.mrb[0].mxu0
      %v1077 = vadd.f32 %v435, %v1076
      %v1078 = vpop.f32.mrb[0].mxu0
      %1079 = vmatprep.mubr.bf16.mxu0 %v862
      %1080 = vmatmul.mubr.bf16.gmra.mrb[0].mxu0 %v692
      %v1081 = vpop.f32.mrb[0].mxu0
      %v1082 = vadd.f32 %v436, %v1081
      %v1083 = vpop.f32.mrb[0].mxu0
      %v1084 = vpop.f32.mrb[0].mxu0
      %v1085 = vadd.f32 %v437, %v1084
      %v1086 = vpop.f32.mrb[0].mxu0
      %1087 = vmatprep.mubr.bf16.mxu0 %v865
      %1088 = vmatmul.mubr.bf16.gmra.mrb[0].mxu0 %v694
      %v1089 = vpop.f32.mrb[0].mxu0
      %v1090 = vadd.f32 %v438, %v1089
      %v1091 = vpop.f32.mrb[0].mxu0
      %v1092 = vpop.f32.mrb[0].mxu0
      %v1093 = vadd.f32 %v439, %v1092
      %v1094 = vpop.f32.mrb[0].mxu0
      %1095 = vmatprep.mubr.bf16.mxu0 %v868
      %1096 = vmatmul.mubr.bf16.gmra.mrb[0].mxu0 %v696
      %v1097 = vpop.f32.mrb[0].mxu0
      %v1098 = vadd.f32 %v440, %v1097
      %v1099 = vpop.f32.mrb[0].mxu0
      %v1100 = vpop.f32.mrb[0].mxu0
      %v1101 = vadd.f32 %v441, %v1100
      %v1102 = vpop.f32.mrb[0].mxu0
      %1103 = vmatprep.mubr.bf16.mxu0 %v871
      %1104 = vmatmul.mubr.bf16.gmra.mrb[0].mxu0 %v698
      %v1105 = vpop.f32.mrb[0].mxu0
      %v1106 = vadd.f32 %v442, %v1105
      %v1107 = vpop.f32.mrb[0].mxu0
      %v1108 = vpop.f32.mrb[0].mxu0
      %v1109 = vadd.f32 %v443, %v1108
      %v1110 = vpop.f32.mrb[0].mxu0
      %1111 = vmatprep.mubr.bf16.mxu0 %v874
      %1112 = vmatmul.mubr.bf16.gmra.mrb[0].mxu0 %v700
      %v1113 = vpop.f32.mrb[0].mxu0
      %v1114 = vadd.f32 %v444, %v1113
      %v1115 = vpop.f32.mrb[0].mxu0
      %v1116 = vpop.f32.mrb[0].mxu0
      %v1117 = vadd.f32 %v445, %v1116
      %v1118 = vpop.f32.mrb[0].mxu0
      %1119 = vmatprep.mubr.bf16.mxu0 %v877
      %1120 = vmatmul.mubr.bf16.gmra.mrb[0].mxu0 %v702
      %v1121 = vpop.f32.mrb[0].mxu0
      %v1122 = vadd.f32 %v446, %v1121
      %v1123 = vpop.f32.mrb[0].mxu0
      %v1124 = vpop.f32.mrb[0].mxu0
      %v1125 = vadd.f32 %v447, %v1124
      %v1126 = vpop.f32.mrb[0].mxu0
      %1127 = vmatprep.mubr.bf16.mxu0 %v880
      %1128 = vmatmul.mubr.bf16.gmra.mrb[0].mxu0 %v704
      %v1129 = vpop.f32.mrb[0].mxu0
      %v1130 = vadd.f32 %v448, %v1129
      %v1131 = vpop.f32.mrb[0].mxu0
      %v1132 = vpop.f32.mrb[0].mxu0
      %v1133 = vadd.f32 %v449, %v1132
      %v1134 = vpop.f32.mrb[0].mxu0
      %1135 = vmatprep.mubr.bf16.mxu0 %v883
      %1136 = vmatmul.mubr.bf16.gmra.mrb[0].mxu0 %v706
      %v1137 = vpop.f32.mrb[0].mxu0
      %v1138 = vadd.f32 %v450, %v1137
      %v1139 = vpop.f32.mrb[0].mxu0
      %v1140 = vpop.f32.mrb[0].mxu0
      %v1141 = vadd.f32 %v451, %v1140
      %v1142 = vpop.f32.mrb[0].mxu0
      %1143 = vmatprep.mubr.bf16.mxu0 %v886
      %1144 = vmatmul.mubr.bf16.gmra.mrb[0].mxu0 %v708
      %v1145 = vpop.f32.mrb[0].mxu0
      %v1146 = vadd.f32 %v452, %v1145
      %v1147 = vpop.f32.mrb[0].mxu0
      %v1148 = vpop.f32.mrb[0].mxu0
      %v1149 = vadd.f32 %v453, %v1148
      %v1150 = vpop.f32.mrb[0].mxu0
      %1151 = vmatprep.mubr.bf16.mxu0 %v889
      %1152 = vmatmul.mubr.bf16.gmra.mrb[0].mxu0 %v710
      %v1153 = vpop.f32.mrb[0].mxu0
      %v1154 = vadd.f32 %v454, %v1153
      %v1155 = vpop.f32.mrb[0].mxu0
      %v1156 = vpop.f32.mrb[0].mxu0
      %v1157 = vadd.f32 %v455, %v1156
      %v1158 = vpop.f32.mrb[0].mxu0
      %1159 = vmatprep.mubr.bf16.mxu0 %v892
      %1160 = vmatmul.mubr.bf16.gmra.mrb[0].mxu0 %v712
      %v1161 = vpop.f32.mrb[0].mxu0
      %v1162 = vadd.f32 %v456, %v1161
      %v1163 = vpop.f32.mrb[0].mxu0
      %v1164 = vpop.f32.mrb[0].mxu0
      %v1165 = vadd.f32 %v457, %v1164
      %v1166 = vpop.f32.mrb[0].mxu0
      %1167 = vmatprep.mubr.bf16.mxu0 %v895
      %1168 = vmatmul.mubr.bf16.gmra.mrb[0].mxu0 %v714
      %v1169 = vpop.f32.mrb[0].mxu0
      %v1170 = vadd.f32 %v458, %v1169
      %v1171 = vpop.f32.mrb[0].mxu0
      %v1172 = vpop.f32.mrb[0].mxu0
      %v1173 = vadd.f32 %v459, %v1172
      %v1174 = vpop.f32.mrb[0].mxu0
      %1175 = vmatprep.mubr.bf16.mxu0 %v898
      %1176 = vmatmul.mubr.bf16.gmra.mrb[0].mxu0 %v716
      %v1177 = vpop.f32.mrb[0].mxu0
      %v1178 = vadd.f32 %v460, %v1177
      %v1179 = vpop.f32.mrb[0].mxu0
      %v1180 = vpop.f32.mrb[0].mxu0
      %v1181 = vadd.f32 %v461, %v1180
      %v1182 = vpop.f32.mrb[0].mxu0
      %1183 = vmatprep.mubr.bf16.mxu0 %v901
      %1184 = vmatmul.mubr.bf16.gmra.mrb[0].mxu0 %v718
      %v1185 = vpop.f32.mrb[0].mxu0
      %v1186 = vadd.f32 %v462, %v1185
      %v1187 = vpop.f32.mrb[0].mxu0
      %v1188 = vpop.f32.mrb[0].mxu0
      %v1189 = vadd.f32 %v463, %v1188
      %v1190 = vpop.f32.mrb[0].mxu0
      %1191 = vdwg.mxu0
      %v1192 = vld [vmem:[%s2] sm:$0x1]
      %v1194 = vlaneseq
      %v1195 = vshrl.u32 %v1194, 7
      %v1196 = vsub.s32 0, %v1195
      %v1197 = vrot.slane %v1192, %v1196
      %v1199 = vmul.f32 %v938, %v1197
      %v1200 = vmul.f32 %v941, %v1197
      %v1201 = vmul.f32 %v946, %v1197
      %v1202 = vmul.f32 %v949, %v1197
      %v1203 = vmul.f32 %v954, %v1197
      %v1204 = vmul.f32 %v957, %v1197
      %v1205 = vmul.f32 %v962, %v1197
      %v1206 = vmul.f32 %v965, %v1197
      %v1207 = vmul.f32 %v970, %v1197
      %v1208 = vmul.f32 %v973, %v1197
      %v1209 = vmul.f32 %v978, %v1197
      %v1210 = vmul.f32 %v981, %v1197
      %v1211 = vmul.f32 %v986, %v1197
      %v1212 = vmul.f32 %v989, %v1197
      %v1213 = vmul.f32 %v994, %v1197
      %v1214 = vmul.f32 %v997, %v1197
      %v1215 = vmul.f32 %v1002, %v1197
      %v1216 = vmul.f32 %v1005, %v1197
      %v1217 = vmul.f32 %v1010, %v1197
      %v1218 = vmul.f32 %v1013, %v1197
      %v1219 = vmul.f32 %v1018, %v1197
      %v1220 = vmul.f32 %v1021, %v1197
      %v1221 = vmul.f32 %v1026, %v1197
      %v1222 = vmul.f32 %v1029, %v1197
      %v1223 = vmul.f32 %v1034, %v1197
      %v1224 = vmul.f32 %v1037, %v1197
      %v1225 = vmul.f32 %v1042, %v1197
      %v1226 = vmul.f32 %v1045, %v1197
      %v1227 = vmul.f32 %v1050, %v1197
      %v1228 = vmul.f32 %v1053, %v1197
      %v1229 = vmul.f32 %v1058, %v1197
      %v1230 = vmul.f32 %v1061, %v1197
      %v1231 = vmul.f32 %v1066, %v1197
      %v1232 = vmul.f32 %v1069, %v1197
      %v1233 = vmul.f32 %v1074, %v1197
      %v1234 = vmul.f32 %v1077, %v1197
      %v1235 = vmul.f32 %v1082, %v1197
      %v1236 = vmul.f32 %v1085, %v1197
      %v1237 = vmul.f32 %v1090, %v1197
      %v1238 = vmul.f32 %v1093, %v1197
      %v1239 = vmul.f32 %v1098, %v1197
      %v1240 = vmul.f32 %v1101, %v1197
      %v1241 = vmul.f32 %v1106, %v1197
      %v1242 = vmul.f32 %v1109, %v1197
      %v1243 = vmul.f32 %v1114, %v1197
      %v1244 = vmul.f32 %v1117, %v1197
      %v1245 = vmul.f32 %v1122, %v1197
      %v1246 = vmul.f32 %v1125, %v1197
      %v1247 = vmul.f32 %v1130, %v1197
      %v1248 = vmul.f32 %v1133, %v1197
      %v1249 = vmul.f32 %v1138, %v1197
      %v1250 = vmul.f32 %v1141, %v1197
      %v1251 = vmul.f32 %v1146, %v1197
      %v1252 = vmul.f32 %v1149, %v1197
      %v1253 = vmul.f32 %v1154, %v1197
      %v1254 = vmul.f32 %v1157, %v1197
      %v1255 = vmul.f32 %v1162, %v1197
      %v1256 = vmul.f32 %v1165, %v1197
      %v1257 = vmul.f32 %v1170, %v1197
      %v1258 = vmul.f32 %v1173, %v1197
      %v1259 = vmul.f32 %v1178, %v1197
      %v1260 = vmul.f32 %v1181, %v1197
      %v1261 = vmul.f32 %v1186, %v1197
      %v1262 = vmul.f32 %v1189, %v1197
      %v1263 = vld [vmem:[%s3] sm:$0x1]
      %v1265 = vlaneseq
      %v1266 = vshrl.u32 %v1265, 7
      %v1267 = vsub.s32 0, %v1266
      %v1268 = vrot.slane %v1263, %v1267
      %v1270 = vadd.f32 %v1199, %v1268
      %v1271 = vadd.f32 %v1200, %v1268
      %v1272 = vadd.f32 %v1201, %v1268
      %v1273 = vadd.f32 %v1202, %v1268
      %v1274 = vadd.f32 %v1203, %v1268
      %v1275 = vadd.f32 %v1204, %v1268
      %v1276 = vadd.f32 %v1205, %v1268
      %v1277 = vadd.f32 %v1206, %v1268
      %v1278 = vadd.f32 %v1207, %v1268
      %v1279 = vadd.f32 %v1208, %v1268
      %v1280 = vadd.f32 %v1209, %v1268
      %v1281 = vadd.f32 %v1210, %v1268
      %v1282 = vadd.f32 %v1211, %v1268
      %v1283 = vadd.f32 %v1212, %v1268
      %v1284 = vadd.f32 %v1213, %v1268
      %v1285 = vadd.f32 %v1214, %v1268
      %v1286 = vadd.f32 %v1215, %v1268
      %v1287 = vadd.f32 %v1216, %v1268
      %v1288 = vadd.f32 %v1217, %v1268
      %v1289 = vadd.f32 %v1218, %v1268
      %v1290 = vadd.f32 %v1219, %v1268
      %v1291 = vadd.f32 %v1220, %v1268
      %v1292 = vadd.f32 %v1221, %v1268
      %v1293 = vadd.f32 %v1222, %v1268
      %v1294 = vadd.f32 %v1223, %v1268
      %v1295 = vadd.f32 %v1224, %v1268
      %v1296 = vadd.f32 %v1225, %v1268
      %v1297 = vadd.f32 %v1226, %v1268
      %v1298 = vadd.f32 %v1227, %v1268
      %v1299 = vadd.f32 %v1228, %v1268
      %v1300 = vadd.f32 %v1229, %v1268
      %v1301 = vadd.f32 %v1230, %v1268
      %v1302 = vadd.f32 %v1231, %v1268
      %v1303 = vadd.f32 %v1232, %v1268
      %v1304 = vadd.f32 %v1233, %v1268
      %v1305 = vadd.f32 %v1234, %v1268
      %v1306 = vadd.f32 %v1235, %v1268
      %v1307 = vadd.f32 %v1236, %v1268
      %v1308 = vadd.f32 %v1237, %v1268
      %v1309 = vadd.f32 %v1238, %v1268
      %v1310 = vadd.f32 %v1239, %v1268
      %v1311 = vadd.f32 %v1240, %v1268
      %v1312 = vadd.f32 %v1241, %v1268
      %v1313 = vadd.f32 %v1242, %v1268
      %v1314 = vadd.f32 %v1243, %v1268
      %v1315 = vadd.f32 %v1244, %v1268
      %v1316 = vadd.f32 %v1245, %v1268
      %v1317 = vadd.f32 %v1246, %v1268
      %v1318 = vadd.f32 %v1247, %v1268
      %v1319 = vadd.f32 %v1248, %v1268
      %v1320 = vadd.f32 %v1249, %v1268
      %v1321 = vadd.f32 %v1250, %v1268
      %v1322 = vadd.f32 %v1251, %v1268
      %v1323 = vadd.f32 %v1252, %v1268
      %v1324 = vadd.f32 %v1253, %v1268
      %v1325 = vadd.f32 %v1254, %v1268
      %v1326 = vadd.f32 %v1255, %v1268
      %v1327 = vadd.f32 %v1256, %v1268
      %v1328 = vadd.f32 %v1257, %v1268
      %v1329 = vadd.f32 %v1258, %v1268
      %v1330 = vadd.f32 %v1259, %v1268
      %v1331 = vadd.f32 %v1260, %v1268
      %v1332 = vadd.f32 %v1261, %v1268
      %v1333 = vadd.f32 %v1262, %v1268
      %v1334 = vmax.f32 %v1270, 0.0
      %v1335 = vmax.f32 %v1271, 0.0
      %v1336 = vmax.f32 %v1272, 0.0
      %v1337 = vmax.f32 %v1273, 0.0
      %v1338 = vmax.f32 %v1274, 0.0
      %v1339 = vmax.f32 %v1275, 0.0
      %v1340 = vmax.f32 %v1276, 0.0
      %v1341 = vmax.f32 %v1277, 0.0
      %v1342 = vmax.f32 %v1278, 0.0
      %v1343 = vmax.f32 %v1279, 0.0
      %v1344 = vmax.f32 %v1280, 0.0
      %v1345 = vmax.f32 %v1281, 0.0
      %v1346 = vmax.f32 %v1282, 0.0
      %v1347 = vmax.f32 %v1283, 0.0
      %v1348 = vmax.f32 %v1284, 0.0
      %v1349 = vmax.f32 %v1285, 0.0
      %v1350 = vmax.f32 %v1286, 0.0
      %v1351 = vmax.f32 %v1287, 0.0
      %v1352 = vmax.f32 %v1288, 0.0
      %v1353 = vmax.f32 %v1289, 0.0
      %v1354 = vmax.f32 %v1290, 0.0
      %v1355 = vmax.f32 %v1291, 0.0
      %v1356 = vmax.f32 %v1292, 0.0
      %v1357 = vmax.f32 %v1293, 0.0
      %v1358 = vmax.f32 %v1294, 0.0
      %v1359 = vmax.f32 %v1295, 0.0
      %v1360 = vmax.f32 %v1296, 0.0
      %v1361 = vmax.f32 %v1297, 0.0
      %v1362 = vmax.f32 %v1298, 0.0
      %v1363 = vmax.f32 %v1299, 0.0
      %v1364 = vmax.f32 %v1300, 0.0
      %v1365 = vmax.f32 %v1301, 0.0
      %v1366 = vmax.f32 %v1302, 0.0
      %v1367 = vmax.f32 %v1303, 0.0
      %v1368 = vmax.f32 %v1304, 0.0
      %v1369 = vmax.f32 %v1305, 0.0
      %v1370 = vmax.f32 %v1306, 0.0
      %v1371 = vmax.f32 %v1307, 0.0
      %v1372 = vmax.f32 %v1308, 0.0
      %v1373 = vmax.f32 %v1309, 0.0
      %v1374 = vmax.f32 %v1310, 0.0
      %v1375 = vmax.f32 %v1311, 0.0
      %v1376 = vmax.f32 %v1312, 0.0
      %v1377 = vmax.f32 %v1313, 0.0
      %v1378 = vmax.f32 %v1314, 0.0
      %v1379 = vmax.f32 %v1315, 0.0
      %v1380 = vmax.f32 %v1316, 0.0
      %v1381 = vmax.f32 %v1317, 0.0
      %v1382 = vmax.f32 %v1318, 0.0
      %v1383 = vmax.f32 %v1319, 0.0
      %v1384 = vmax.f32 %v1320, 0.0
      %v1385 = vmax.f32 %v1321, 0.0
      %v1386 = vmax.f32 %v1322, 0.0
      %v1387 = vmax.f32 %v1323, 0.0
      %v1388 = vmax.f32 %v1324, 0.0
      %v1389 = vmax.f32 %v1325, 0.0
      %v1390 = vmax.f32 %v1326, 0.0
      %v1391 = vmax.f32 %v1327, 0.0
      %v1392 = vmax.f32 %v1328, 0.0
      %v1393 = vmax.f32 %v1329, 0.0
      %v1394 = vmax.f32 %v1330, 0.0
      %v1395 = vmax.f32 %v1331, 0.0
      %v1396 = vmax.f32 %v1332, 0.0
      %v1397 = vmax.f32 %v1333, 0.0
      %v1398 = vpack.c.bf16 %v1335, %v1334
      %v1399 = vpack.c.bf16 %v1337, %v1336
      %v1400 = vpack.c.bf16 %v1339, %v1338
      %v1401 = vpack.c.bf16 %v1341, %v1340
      %v1402 = vpack.c.bf16 %v1343, %v1342
      %v1403 = vpack.c.bf16 %v1345, %v1344
      %v1404 = vpack.c.bf16 %v1347, %v1346
      %v1405 = vpack.c.bf16 %v1349, %v1348
      %v1406 = vpack.c.bf16 %v1351, %v1350
      %v1407 = vpack.c.bf16 %v1353, %v1352
      %v1408 = vpack.c.bf16 %v1355, %v1354
      %v1409 = vpack.c.bf16 %v1357, %v1356
      %v1410 = vpack.c.bf16 %v1359, %v1358
      %v1411 = vpack.c.bf16 %v1361, %v1360
      %v1412 = vpack.c.bf16 %v1363, %v1362
      %v1413 = vpack.c.bf16 %v1365, %v1364
      %v1414 = vpack.c.bf16 %v1367, %v1366
      %v1415 = vpack.c.bf16 %v1369, %v1368
      %v1416 = vpack.c.bf16 %v1371, %v1370
      %v1417 = vpack.c.bf16 %v1373, %v1372
      %v1418 = vpack.c.bf16 %v1375, %v1374
      %v1419 = vpack.c.bf16 %v1377, %v1376
      %v1420 = vpack.c.bf16 %v1379, %v1378
      %v1421 = vpack.c.bf16 %v1381, %v1380
      %v1422 = vpack.c.bf16 %v1383, %v1382
      %v1423 = vpack.c.bf16 %v1385, %v1384
      %v1424 = vpack.c.bf16 %v1387, %v1386
      %v1425 = vpack.c.bf16 %v1389, %v1388
      %v1426 = vpack.c.bf16 %v1391, %v1390
      %v1427 = vpack.c.bf16 %v1393, %v1392
      %v1428 = vpack.c.bf16 %v1395, %v1394
      %v1429 = vpack.c.bf16 %v1397, %v1396
      %v1462 = vunpack.c.l.b16 %v1398
      %v1463 = vunpack.c.h.b16 %v1398
      %v1464 = vunpack.c.l.b16 %v1399
      %v1465 = vunpack.c.h.b16 %v1399
      %v1466 = vunpack.c.l.b16 %v1400
      %v1467 = vunpack.c.h.b16 %v1400
      %v1468 = vunpack.c.l.b16 %v1401
      %v1469 = vunpack.c.h.b16 %v1401
      %v1470 = vunpack.c.l.b16 %v1402
      %v1471 = vunpack.c.h.b16 %v1402
      %v1472 = vunpack.c.l.b16 %v1403
      %v1473 = vunpack.c.h.b16 %v1403
      %v1474 = vunpack.c.l.b16 %v1404
      %v1475 = vunpack.c.h.b16 %v1404
      %v1476 = vunpack.c.l.b16 %v1405
      %v1477 = vunpack.c.h.b16 %v1405
      %v1478 = vunpack.c.l.b16 %v1406
      %v1479 = vunpack.c.h.b16 %v1406
      %v1480 = vunpack.c.l.b16 %v1407
      %v1481 = vunpack.c.h.b16 %v1407
      %v1482 = vunpack.c.l.b16 %v1408
      %v1483 = vunpack.c.h.b16 %v1408
      %v1484 = vunpack.c.l.b16 %v1409
      %v1485 = vunpack.c.h.b16 %v1409
      %v1486 = vunpack.c.l.b16 %v1410
      %v1487 = vunpack.c.h.b16 %v1410
      %v1488 = vunpack.c.l.b16 %v1411
      %v1489 = vunpack.c.h.b16 %v1411
      %v1490 = vunpack.c.l.b16 %v1412
      %v1491 = vunpack.c.h.b16 %v1412
      %v1492 = vunpack.c.l.b16 %v1413
      %v1493 = vunpack.c.h.b16 %v1413
      %v1494 = vunpack.c.l.b16 %v1414
      %v1495 = vunpack.c.h.b16 %v1414
      %v1496 = vunpack.c.l.b16 %v1415
      %v1497 = vunpack.c.h.b16 %v1415
      %v1498 = vunpack.c.l.b16 %v1416
      %v1499 = vunpack.c.h.b16 %v1416
      %v1500 = vunpack.c.l.b16 %v1417
      %v1501 = vunpack.c.h.b16 %v1417
      %v1502 = vunpack.c.l.b16 %v1418
      %v1503 = vunpack.c.h.b16 %v1418
      %v1504 = vunpack.c.l.b16 %v1419
      %v1505 = vunpack.c.h.b16 %v1419
      %v1506 = vunpack.c.l.b16 %v1420
      %v1507 = vunpack.c.h.b16 %v1420
      %v1508 = vunpack.c.l.b16 %v1421
      %v1509 = vunpack.c.h.b16 %v1421
      %v1510 = vunpack.c.l.b16 %v1422
      %v1511 = vunpack.c.h.b16 %v1422
      %v1512 = vunpack.c.l.b16 %v1423
      %v1513 = vunpack.c.h.b16 %v1423
      %v1514 = vunpack.c.l.b16 %v1424
      %v1515 = vunpack.c.h.b16 %v1424
      %v1516 = vunpack.c.l.b16 %v1425
      %v1517 = vunpack.c.h.b16 %v1425
      %v1518 = vunpack.c.l.b16 %v1426
      %v1519 = vunpack.c.h.b16 %v1426
      %v1520 = vunpack.c.l.b16 %v1427
      %v1521 = vunpack.c.h.b16 %v1427
      %v1522 = vunpack.c.l.b16 %v1428
      %v1523 = vunpack.c.h.b16 %v1428
      %v1524 = vunpack.c.l.b16 %v1429
      %v1525 = vunpack.c.h.b16 %v1429
      %v1526 = vpack.c.b16 %v1462, %v1462
      %v1527 = vpack.c.b16 %v1463, %v1463
      %v1528 = vpack.c.b16 %v1464, %v1464
      %v1529 = vpack.c.b16 %v1465, %v1465
      %v1530 = vpack.c.b16 %v1466, %v1466
      %v1531 = vpack.c.b16 %v1467, %v1467
      %v1532 = vpack.c.b16 %v1468, %v1468
      %v1533 = vpack.c.b16 %v1469, %v1469
      %v1534 = vpack.c.b16 %v1470, %v1470
      %v1535 = vpack.c.b16 %v1471, %v1471
      %v1536 = vpack.c.b16 %v1472, %v1472
      %v1537 = vpack.c.b16 %v1473, %v1473
      %v1538 = vpack.c.b16 %v1474, %v1474
      %v1539 = vpack.c.b16 %v1475, %v1475
      %v1540 = vpack.c.b16 %v1476, %v1476
      %v1541 = vpack.c.b16 %v1477, %v1477
      %v1542 = vpack.c.b16 %v1478, %v1478
      %v1543 = vpack.c.b16 %v1479, %v1479
      %v1544 = vpack.c.b16 %v1480, %v1480
      %v1545 = vpack.c.b16 %v1481, %v1481
      %v1546 = vpack.c.b16 %v1482, %v1482
      %v1547 = vpack.c.b16 %v1483, %v1483
      %v1548 = vpack.c.b16 %v1484, %v1484
      %v1549 = vpack.c.b16 %v1485, %v1485
      %v1550 = vpack.c.b16 %v1486, %v1486
      %v1551 = vpack.c.b16 %v1487, %v1487
      %v1552 = vpack.c.b16 %v1488, %v1488
      %v1553 = vpack.c.b16 %v1489, %v1489
      %v1554 = vpack.c.b16 %v1490, %v1490
      %v1555 = vpack.c.b16 %v1491, %v1491
      %v1556 = vpack.c.b16 %v1492, %v1492
      %v1557 = vpack.c.b16 %v1493, %v1493
      %v1558 = vpack.c.b16 %v1494, %v1494
      %v1559 = vpack.c.b16 %v1495, %v1495
      %v1560 = vpack.c.b16 %v1496, %v1496
      %v1561 = vpack.c.b16 %v1497, %v1497
      %v1562 = vpack.c.b16 %v1498, %v1498
      %v1563 = vpack.c.b16 %v1499, %v1499
      %v1564 = vpack.c.b16 %v1500, %v1500
      %v1565 = vpack.c.b16 %v1501, %v1501
      %v1566 = vpack.c.b16 %v1502, %v1502
      %v1567 = vpack.c.b16 %v1503, %v1503
      %v1568 = vpack.c.b16 %v1504, %v1504
      %v1569 = vpack.c.b16 %v1505, %v1505
      %v1570 = vpack.c.b16 %v1506, %v1506
      %v1571 = vpack.c.b16 %v1507, %v1507
      %v1572 = vpack.c.b16 %v1508, %v1508
      %v1573 = vpack.c.b16 %v1509, %v1509
      %v1574 = vpack.c.b16 %v1510, %v1510
      %v1575 = vpack.c.b16 %v1511, %v1511
      %v1576 = vpack.c.b16 %v1512, %v1512
      %v1577 = vpack.c.b16 %v1513, %v1513
      %v1578 = vpack.c.b16 %v1514, %v1514
      %v1579 = vpack.c.b16 %v1515, %v1515
      %v1580 = vpack.c.b16 %v1516, %v1516
      %v1581 = vpack.c.b16 %v1517, %v1517
      %v1582 = vpack.c.b16 %v1518, %v1518
      %v1583 = vpack.c.b16 %v1519, %v1519
      %v1584 = vpack.c.b16 %v1520, %v1520
      %v1585 = vpack.c.b16 %v1521, %v1521
      %v1586 = vpack.c.b16 %v1522, %v1522
      %v1587 = vpack.c.b16 %v1523, %v1523
      %v1588 = vpack.c.b16 %v1524, %v1524
      %v1589 = vpack.c.b16 %v1525, %v1525
      %vm1654 = vcmask 125952
      %1655 = vst.msk [vmem:[%s251] sm:$0xf] %vm1654, %v1526
      %1656 = vst.msk [vmem:[%s251 + $0x4] sm:$0xf] %vm1654, %v1527
      %1657 = vst.msk [vmem:[%s251 + $0x8] sm:$0xf] %vm1654, %v1528
      %1658 = vst.msk [vmem:[%s251 + $0xc] sm:$0xf] %vm1654, %v1529
      %1659 = vst.msk [vmem:[%s251 + $0x10] sm:$0xf] %vm1654, %v1530
      %1660 = vst.msk [vmem:[%s251 + $0x14] sm:$0xf] %vm1654, %v1531
      %1661 = vst.msk [vmem:[%s251 + $0x18] sm:$0xf] %vm1654, %v1532
      %1662 = vst.msk [vmem:[%s251 + $0x1c] sm:$0xf] %vm1654, %v1533
      %1663 = vst.msk [vmem:[%s251 + $0x20] sm:$0xf] %vm1654, %v1534
      %1664 = vst.msk [vmem:[%s251 + $0x24] sm:$0xf] %vm1654, %v1535
      %1665 = vst.msk [vmem:[%s251 + $0x28] sm:$0xf] %vm1654, %v1536
      %1666 = vst.msk [vmem:[%s251 + $0x2c] sm:$0xf] %vm1654, %v1537
      %1667 = vst.msk [vmem:[%s251 + $0x30] sm:$0xf] %vm1654, %v1538
      %1668 = vst.msk [vmem:[%s251 + $0x34] sm:$0xf] %vm1654, %v1539
      %1669 = vst.msk [vmem:[%s251 + $0x38] sm:$0xf] %vm1654, %v1540
      %1670 = vst.msk [vmem:[%s251 + $0x3c] sm:$0xf] %vm1654, %v1541
      %1671 = vst.msk [vmem:[%s251 + $0x40] sm:$0xf] %vm1654, %v1542
      %1672 = vst.msk [vmem:[%s251 + $0x44] sm:$0xf] %vm1654, %v1543
      %1673 = vst.msk [vmem:[%s251 + $0x48] sm:$0xf] %vm1654, %v1544
      %1674 = vst.msk [vmem:[%s251 + $0x4c] sm:$0xf] %vm1654, %v1545
      %1675 = vst.msk [vmem:[%s251 + $0x50] sm:$0xf] %vm1654, %v1546
      %1676 = vst.msk [vmem:[%s251 + $0x54] sm:$0xf] %vm1654, %v1547
      %1677 = vst.msk [vmem:[%s251 + $0x58] sm:$0xf] %vm1654, %v1548
      %1678 = vst.msk [vmem:[%s251 + $0x5c] sm:$0xf] %vm1654, %v1549
      %1679 = vst.msk [vmem:[%s251 + $0x60] sm:$0xf] %vm1654, %v1550
      %1680 = vst.msk [vmem:[%s251 + $0x64] sm:$0xf] %vm1654, %v1551
      %1681 = vst.msk [vmem:[%s251 + $0x68] sm:$0xf] %vm1654, %v1552
      %1682 = vst.msk [vmem:[%s251 + $0x6c] sm:$0xf] %vm1654, %v1553
      %1683 = vst.msk [vmem:[%s251 + $0x70] sm:$0xf] %vm1654, %v1554
      %1684 = vst.msk [vmem:[%s251 + $0x74] sm:$0xf] %vm1654, %v1555
      %1685 = vst.msk [vmem:[%s251 + $0x78] sm:$0xf] %vm1654, %v1556
      %1686 = vst.msk [vmem:[%s251 + $0x7c] sm:$0xf] %vm1654, %v1557
      %1687 = vst.msk [vmem:[%s251 + $0x80] sm:$0xf] %vm1654, %v1558
      %1688 = vst.msk [vmem:[%s251 + $0x84] sm:$0xf] %vm1654, %v1559
      %1689 = vst.msk [vmem:[%s251 + $0x88] sm:$0xf] %vm1654, %v1560
      %1690 = vst.msk [vmem:[%s251 + $0x8c] sm:$0xf] %vm1654, %v1561
      %1691 = vst.msk [vmem:[%s251 + $0x90] sm:$0xf] %vm1654, %v1562
      %1692 = vst.msk [vmem:[%s251 + $0x94] sm:$0xf] %vm1654, %v1563
      %1693 = vst.msk [vmem:[%s251 + $0x98] sm:$0xf] %vm1654, %v1564
      %1694 = vst.msk [vmem:[%s251 + $0x9c] sm:$0xf] %vm1654, %v1565
      %1695 = vst.msk [vmem:[%s251 + $0xa0] sm:$0xf] %vm1654, %v1566
      %1696 = vst.msk [vmem:[%s251 + $0xa4] sm:$0xf] %vm1654, %v1567
      %1697 = vst.msk [vmem:[%s251 + $0xa8] sm:$0xf] %vm1654, %v1568
      %1698 = vst.msk [vmem:[%s251 + $0xac] sm:$0xf] %vm1654, %v1569
      %1699 = vst.msk [vmem:[%s251 + $0xb0] sm:$0xf] %vm1654, %v1570
      %1700 = vst.msk [vmem:[%s251 + $0xb4] sm:$0xf] %vm1654, %v1571
      %1701 = vst.msk [vmem:[%s251 + $0xb8] sm:$0xf] %vm1654, %v1572
      %1702 = vst.msk [vmem:[%s251 + $0xbc] sm:$0xf] %vm1654, %v1573
      %1703 = vst.msk [vmem:[%s251 + $0xc0] sm:$0xf] %vm1654, %v1574
      %1704 = vst.msk [vmem:[%s251 + $0xc4] sm:$0xf] %vm1654, %v1575
      %1705 = vst.msk [vmem:[%s251 + $0xc8] sm:$0xf] %vm1654, %v1576
      %1706 = vst.msk [vmem:[%s251 + $0xcc] sm:$0xf] %vm1654, %v1577
      %1707 = vst.msk [vmem:[%s251 + $0xd0] sm:$0xf] %vm1654, %v1578
      %1708 = vst.msk [vmem:[%s251 + $0xd4] sm:$0xf] %vm1654, %v1579
      %1709 = vst.msk [vmem:[%s251 + $0xd8] sm:$0xf] %vm1654, %v1580
      %1710 = vst.msk [vmem:[%s251 + $0xdc] sm:$0xf] %vm1654, %v1581
      %1711 = vst.msk [vmem:[%s251 + $0xe0] sm:$0xf] %vm1654, %v1582
      %1712 = vst.msk [vmem:[%s251 + $0xe4] sm:$0xf] %vm1654, %v1583
      %1713 = vst.msk [vmem:[%s251 + $0xe8] sm:$0xf] %vm1654, %v1584
      %1714 = vst.msk [vmem:[%s251 + $0xec] sm:$0xf] %vm1654, %v1585
      %1715 = vst.msk [vmem:[%s251 + $0xf0] sm:$0xf] %vm1654, %v1586
      %1716 = vst.msk [vmem:[%s251 + $0xf4] sm:$0xf] %vm1654, %v1587
      %1717 = vst.msk [vmem:[%s251 + $0xf8] sm:$0xf] %vm1654, %v1588
      %1718 = vst.msk [vmem:[%s251 + $0xfc] sm:$0xf] %vm1654, %v1589
      %s1719 = smul.u32 64, %s16
      %p1720 = scmp.lt.s32.totalorder %s1719, 255
      %s1721 = scalar_select %p1720, %s1719, 255
      %s1722 = smul.addr %s1721, 4
      %s1723 = scalar_lea.vmem %s5, %s1722
      // Predicated region
      $region41: #{l0_wide_resnet_forward.13} parent=39 // pred_check
        %p1724 = pneg %p149
      $region42: #{l0_wide_resnet_forward.13} parent=39 // pred_check_branch
        %1726 = sbr.rel (%p1724) target = $region44
      $region43: #{l0_wide_resnet_forward.13} parent=39 // pred_region
        %s1727 = smul.u32 64, %s16
      $region44: #{l0_wide_resnet_forward.13} parent=39 // pred_fallthru
        _
    $region40: #{l0_wide_resnet_forward.13} parent=5 // pred_fallthru
      _
    %p1728 = scmp.le.s32.totalorder 2, %s11
    // Predicated region
    $region45: #{l0_wide_resnet_forward.13} parent=5 // pred_check
      %p1729 = pneg %p1728
    $region46: #{l0_wide_resnet_forward.13} parent=5 // pred_check_branch
      %1731 = sbr.rel (%p1729) target = $region48
    $region47: #{l0_wide_resnet_forward.13} parent=5 // pred_region
      %s1732 = ssub.s32 %s11, 2
      // Predicated region
      $region49: #{l0_wide_resnet_forward.13} parent=47 // pred_check
        %p1733 = pneg %p155
      $region50: #{l0_wide_resnet_forward.13} parent=47 // pred_check_branch
        %1735 = sbr.rel (%p1733) target = $region52
      $region51: #{l0_wide_resnet_forward.13} parent=47 // pred_region
        %s1736 = smul.u32 64, %s17
        %p1737 = scmp.lt.s32.totalorder %s1736, 255
        %s1738 = scalar_select %p1737, %s1736, 255
        %s1739 = smul.addr %s1738, 4
        %s1740 = scalar_lea.vmem %s5, %s1739
      $region52: #{l0_wide_resnet_forward.13} parent=47 // pred_fallthru
        _
    $region48: #{l0_wide_resnet_forward.13} parent=5 // pred_fallthru
      _
  $region6: #{l0_wide_resnet_forward.13} parent=0 // loop_footer
    %s15 = sadd.s32 1, %s11
  $region7: #{l0_wide_resnet_forward.13} parent=0 // loop_footer_branch
    %10 = sbr.rel target = $region3
  $region8: #{l0_wide_resnet_forward.13} parent=0 // loop_exit
    _

// kernel: l0_wide_resnet_forward.14
$region0: #{l0_wide_resnet_forward.14}
  #allocation0 [shape = 'u32[]', space=smem, size = 0x4, offset = 0x4, fixed_abs, tag = 'smem constant byte address 0x4 - core index']
  #allocation1 [shape = 'u32[144,128]{1,0:T(1,128)}', space=vmem, size = 0x12000, scoped, tag = 'internal scratch']
  %s0 = inlined_call_operand.vmem [shape: bf16[2048,144], index: 0, kind: input, shape index: {}]
  %s1 = inlined_call_operand.vmem [shape: bf16[144,32], index: 1, kind: input, shape index: {}]
  %s2 = inlined_call_operand.vmem [shape: f32[1,32], index: 2, kind: input, shape index: {}]
  %s3 = inlined_call_operand.vmem [shape: f32[1,32], index: 3, kind: input, shape index: {}]
  %s4 = inlined_call_operand.vmem [shape: bf16[2048,32], index: 4, kind: output, shape index: {}]
  %s5 = sld [smem:[#allocation0]]
  $region49: #{l0_wide_resnet_forward.14} parent=0
    _
  %s7 = ssub.s32 1, %s5
  %s8 = scalar_select 0, %s7, %s5
  loop: start=0, step=1, limit=6
  $region2: #{l0_wide_resnet_forward.14} parent=0 // loop_pre_header
    _
  $region3: #{l0_wide_resnet_forward.14} parent=0 // loop_header
    %s10 = sphi 0, %s14
    %p11 = scmp.ge.s32.totalorder %s10, 6
    %s20 = sphi 0, %s22
    %s23 = sphi 0, %s20
    %s24 = sphi 0, %s23
    %s40 = sphi 0, %s24
    %s44 = sphi 0, %s44
    %s46 = sphi 0, %s44
    %s47 = sphi 0, %s46
    %s61 = sphi 0, %s47
    %s65 = sphi 0, %s65
    %s67 = sphi 0, %s65
    %s68 = sphi 0, %s67
    %s82 = sphi 0, %s68
    %s86 = sphi 0, %s86
    %s88 = sphi 0, %s86
    %s89 = sphi 0, %s88
    %s103 = sphi 0, %s89
    %s109 = sphi 0, %s111
    %s112 = sphi 0, %s109
    %s113 = sphi 0, %s112
    %s129 = sphi 0, %s113
  $region4: #{l0_wide_resnet_forward.14} parent=0 // loop_header_branch
    %13 = sbr.rel (%p11) target = $region8
  $region5: #{l0_wide_resnet_forward.14} parent=0 // loop_body
    %s15 = ssub.s32 %s10, 1
    %s16 = ssub.s32 %s10, 2
    %s17 = sadd.s32 %s10, 1
    %s18 = ssub.s32 %s10, %s17
    %p19 = scmp.eq.s32.totalorder %s18, 0
    %s21 = sadd.s32 %s20, 1
    %s22 = scalar_select %p19, %s20, %s21
    %p25 = pneg %p19
    %p26 = scmp.eq.s32.totalorder %s10, 3
    %p27 = por %p25, %p26
    %p28 = scmp.ne.s32.totalorder %s20, %s23
    %p29 = scmp.eq.s32.totalorder %s10, 0
    %p30 = por %p28, %p29
    %p31 = scmp.ne.s32.totalorder %s20, %s23
    %p32 = scmp.eq.s32.totalorder %s15, 3
    %p33 = por %p31, %p32
    %p34 = scmp.ne.s32.totalorder %s23, %s24
    %p35 = scmp.eq.s32.totalorder %s15, 0
    %p36 = por %p34, %p35
    %p37 = scmp.ne.s32.totalorder %s23, %s24
    %p38 = scmp.eq.s32.totalorder %s16, 3
    %p39 = por %p37, %p38
    %p41 = scmp.ne.s32.totalorder %s24, %s40
    %p42 = scmp.eq.s32.totalorder %s16, 0
    %p43 = por %p41, %p42
    %s45 = sadd.s32 %s44, 1
    %p48 = scmp.eq.s32.totalorder %s10, 3
    %p49 = scmp.ne.s32.totalorder %s44, %s46
    %p50 = scmp.eq.s32.totalorder %s10, 0
    %p51 = por %p49, %p50
    %p52 = scmp.ne.s32.totalorder %s44, %s46
    %p53 = scmp.eq.s32.totalorder %s15, 3
    %p54 = por %p52, %p53
    %p55 = scmp.ne.s32.totalorder %s46, %s47
    %p56 = scmp.eq.s32.totalorder %s15, 0
    %p57 = por %p55, %p56
    %p58 = scmp.ne.s32.totalorder %s46, %s47
    %p59 = scmp.eq.s32.totalorder %s16, 3
    %p60 = por %p58, %p59
    %p62 = scmp.ne.s32.totalorder %s47, %s61
    %p63 = scmp.eq.s32.totalorder %s16, 0
    %p64 = por %p62, %p63
    %s66 = sadd.s32 %s65, 1
    %p69 = scmp.eq.s32.totalorder %s10, 3
    %p70 = scmp.ne.s32.totalorder %s65, %s67
    %p71 = scmp.eq.s32.totalorder %s10, 0
    %p72 = por %p70, %p71
    %p73 = scmp.ne.s32.totalorder %s65, %s67
    %p74 = scmp.eq.s32.totalorder %s15, 3
    %p75 = por %p73, %p74
    %p76 = scmp.ne.s32.totalorder %s67, %s68
    %p77 = scmp.eq.s32.totalorder %s15, 0
    %p78 = por %p76, %p77
    %p79 = scmp.ne.s32.totalorder %s67, %s68
    %p80 = scmp.eq.s32.totalorder %s16, 3
    %p81 = por %p79, %p80
    %p83 = scmp.ne.s32.totalorder %s68, %s82
    %p84 = scmp.eq.s32.totalorder %s16, 0
    %p85 = por %p83, %p84
    %s87 = sadd.s32 %s86, 1
    %p90 = scmp.eq.s32.totalorder %s10, 3
    %p91 = scmp.ne.s32.totalorder %s86, %s88
    %p92 = scmp.eq.s32.totalorder %s10, 0
    %p93 = por %p91, %p92
    %p94 = scmp.ne.s32.totalorder %s86, %s88
    %p95 = scmp.eq.s32.totalorder %s15, 3
    %p96 = por %p94, %p95
    %p97 = scmp.ne.s32.totalorder %s88, %s89
    %p98 = scmp.eq.s32.totalorder %s15, 0
    %p99 = por %p97, %p98
    %p100 = scmp.ne.s32.totalorder %s88, %s89
    %p101 = scmp.eq.s32.totalorder %s16, 3
    %p102 = por %p100, %p101
    %p104 = scmp.ne.s32.totalorder %s89, %s103
    %p105 = scmp.eq.s32.totalorder %s16, 0
    %p106 = por %p104, %p105
    %s107 = ssub.s32 %s10, %s17
    %p108 = scmp.eq.s32.totalorder %s107, 0
    %s110 = sadd.s32 %s109, 1
    %s111 = scalar_select %p108, %s109, %s110
    %p114 = pneg %p108
    %p115 = scmp.eq.s32.totalorder %s10, 3
    %p116 = por %p114, %p115
    %p117 = scmp.ne.s32.totalorder %s109, %s112
    %p118 = scmp.eq.s32.totalorder %s10, 0
    %p119 = por %p117, %p118
    %p120 = scmp.ne.s32.totalorder %s109, %s112
    %p121 = scmp.eq.s32.totalorder %s15, 3
    %p122 = por %p120, %p121
    %p123 = scmp.ne.s32.totalorder %s112, %s113
    %p124 = scmp.eq.s32.totalorder %s15, 0
    %p125 = por %p123, %p124
    %p126 = scmp.ne.s32.totalorder %s112, %s113
    %p127 = scmp.eq.s32.totalorder %s16, 3
    %p128 = por %p126, %p127
    %p130 = scmp.ne.s32.totalorder %s113, %s129
    %p131 = scmp.eq.s32.totalorder %s16, 0
    %p132 = por %p130, %p131
    %p133 = scmp.le.s32.totalorder 1, %s10
    %p134 = scmp.lt.s32.totalorder %s10, 5
    %p135 = pnand %p133, %p134
    %p136 = pneg %p135
    // Predicated region
    $region9: #{l0_wide_resnet_forward.14} parent=5 // pred_check
      _
    $region10: #{l0_wide_resnet_forward.14} parent=5 // pred_check_branch
      %138 = sbr.rel (%p135) target = $region12
    $region11: #{l0_wide_resnet_forward.14} parent=5 // pred_region
      %s139 = ssub.s32 %s10, 1
      // Predicated region
      $region13: #{l0_wide_resnet_forward.14} parent=11 // pred_check
        %p140 = pneg %p57
      $region14: #{l0_wide_resnet_forward.14} parent=11 // pred_check_branch
        %142 = sbr.rel (%p140) target = $region16
      $region15: #{l0_wide_resnet_forward.14} parent=11 // pred_region
        _
      $region16: #{l0_wide_resnet_forward.14} parent=11 // pred_fallthru
        _
      // Predicated region
      $region17: #{l0_wide_resnet_forward.14} parent=11 // pred_check
        %p143 = pneg %p78
      $region18: #{l0_wide_resnet_forward.14} parent=11 // pred_check_branch
        %145 = sbr.rel (%p143) target = $region20
      $region19: #{l0_wide_resnet_forward.14} parent=11 // pred_region
        _
      $region20: #{l0_wide_resnet_forward.14} parent=11 // pred_fallthru
        _
      // Predicated region
      $region21: #{l0_wide_resnet_forward.14} parent=11 // pred_check
        %p146 = pneg %p99
      $region22: #{l0_wide_resnet_forward.14} parent=11 // pred_check_branch
        %148 = sbr.rel (%p146) target = $region24
      $region23: #{l0_wide_resnet_forward.14} parent=11 // pred_region
        _
      $region24: #{l0_wide_resnet_forward.14} parent=11 // pred_fallthru
        _
    $region12: #{l0_wide_resnet_forward.14} parent=5 // pred_fallthru
      _
    %p149 = scmp.lt.s32.totalorder %s10, 4
    // Predicated region
    $region25: #{l0_wide_resnet_forward.14} parent=5 // pred_check
      %p150 = pneg %p149
    $region26: #{l0_wide_resnet_forward.14} parent=5 // pred_check_branch
      %152 = sbr.rel (%p150) target = $region28
    $region27: #{l0_wide_resnet_forward.14} parent=5 // pred_region
      // Predicated region
      $region29: #{l0_wide_resnet_forward.14} parent=27 // pred_check
        %p153 = pneg %p30
      $region30: #{l0_wide_resnet_forward.14} parent=27 // pred_check_branch
        %155 = sbr.rel (%p153) target = $region32
      $region31: #{l0_wide_resnet_forward.14} parent=27 // pred_region
        %s156 = smul.u32 64, %s10
        %p157 = scmp.lt.s32.totalorder %s156, 255
        %s158 = scalar_select %p157, %s156, 255
        %s159 = smul.addr %s158, 2
        %s160 = smul.addr %s159, 4
        %s161 = scalar_lea.vmem %s0, %s160
        %s162 = smul.u32 64, %s10
      $region32: #{l0_wide_resnet_forward.14} parent=27 // pred_fallthru
        _
    $region28: #{l0_wide_resnet_forward.14} parent=5 // pred_fallthru
      _
    %p163 = scmp.le.s32.totalorder 1, %s10
    %p164 = scmp.lt.s32.totalorder %s10, 5
    %p165 = pnand %p163, %p164
    %p166 = pneg %p165
    // Predicated region
    $region33: #{l0_wide_resnet_forward.14} parent=5 // pred_check
      _
    $region34: #{l0_wide_resnet_forward.14} parent=5 // pred_check_branch
      %168 = sbr.rel (%p165) target = $region36
    $region35: #{l0_wide_resnet_forward.14} parent=5 // pred_region
      %s169 = ssub.s32 %s10, 1
      %s170 = smul.u32 64, %s15
      %p171 = scmp.lt.s32.totalorder %s170, 255
      %s172 = scalar_select %p171, %s170, 255
      %s173 = smul.addr %s172, 2
      %s174 = smul.addr %s173, 4
      %s175 = scalar_lea.vmem %s0, %s174
      %p176 = pneg %p36
      %p177 = pneg %p33
      %p178 = pneg %p57
      %p179 = pneg %p54
      %p180 = pneg %p78
      %p181 = pneg %p75
      %p182 = pneg %p99
      %p183 = pneg %p96
      %p184 = pneg %p125
      %p185 = pneg %p122
      %s186 = smul.u32 64, %s15
      %p187 = scmp.lt.s32.totalorder %s186, 255
      %s188 = scalar_select %p187, %s186, 255
      %s189 = smul.addr %s188, 4
      %s190 = scalar_lea.vmem %s4, %s189
      %s191 = smul.u32 64, %s15
      %p192 = scmp.lt.s32.totalorder %s191, 255
      %s193 = scalar_select %p192, %s191, 255
      %s194 = smul.addr %s193, 2
      %s195 = smul.addr %s194, 4
      %s196 = scalar_lea.vmem %s0, %s195
      %s197 = smul.u32 64, %s15
      %s198 = smul.u32 64, %s15
      %p199 = scmp.lt.s32.totalorder %s198, 255
      %s200 = scalar_select %p199, %s198, 255
      %s201 = smul.addr %s200, 4
      %s202 = scalar_lea.vmem %s4, %s201
      %s203 = smul.u32 64, %s15
      %v205 = vld [vmem:[%s196] sm:$0xff]
      %v206 = vld [vmem:[%s196 + $0x8] sm:$0xff]
      %v207 = vld [vmem:[%s196 + $0x10] sm:$0xff]
      %v208 = vld [vmem:[%s196 + $0x18] sm:$0xff]
      %v209 = vld [vmem:[%s196 + $0x20] sm:$0xff]
      %v210 = vld [vmem:[%s196 + $0x28] sm:$0xff]
      %v211 = vld [vmem:[%s196 + $0x30] sm:$0xff]
      %v212 = vld [vmem:[%s196 + $0x38] sm:$0xff]
      %v213 = vld [vmem:[%s196 + $0x40] sm:$0xff]
      %v214 = vld [vmem:[%s196 + $0x48] sm:$0xff]
      %v215 = vld [vmem:[%s196 + $0x50] sm:$0xff]
      %v216 = vld [vmem:[%s196 + $0x58] sm:$0xff]
      %v217 = vld [vmem:[%s196 + $0x60] sm:$0xff]
      %v218 = vld [vmem:[%s196 + $0x68] sm:$0xff]
      %v219 = vld [vmem:[%s196 + $0x70] sm:$0xff]
      %v220 = vld [vmem:[%s196 + $0x78] sm:$0xff]
      %v221 = vld [vmem:[%s196 + $0x80] sm:$0xff]
      %v222 = vld [vmem:[%s196 + $0x88] sm:$0xff]
      %v223 = vld [vmem:[%s196 + $0x90] sm:$0xff]
      %v224 = vld [vmem:[%s196 + $0x98] sm:$0xff]
      %v225 = vld [vmem:[%s196 + $0xa0] sm:$0xff]
      %v226 = vld [vmem:[%s196 + $0xa8] sm:$0xff]
      %v227 = vld [vmem:[%s196 + $0xb0] sm:$0xff]
      %v228 = vld [vmem:[%s196 + $0xb8] sm:$0xff]
      %v229 = vld [vmem:[%s196 + $0xc0] sm:$0xff]
      %v230 = vld [vmem:[%s196 + $0xc8] sm:$0xff]
      %v231 = vld [vmem:[%s196 + $0xd0] sm:$0xff]
      %v232 = vld [vmem:[%s196 + $0xd8] sm:$0xff]
      %v233 = vld [vmem:[%s196 + $0xe0] sm:$0xff]
      %v234 = vld [vmem:[%s196 + $0xe8] sm:$0xff]
      %v235 = vld [vmem:[%s196 + $0xf0] sm:$0xff]
      %v236 = vld [vmem:[%s196 + $0xf8] sm:$0xff]
      %v237 = vld [vmem:[%s196 + $0x100] sm:$0xff]
      %v238 = vld [vmem:[%s196 + $0x108] sm:$0xff]
      %v239 = vld [vmem:[%s196 + $0x110] sm:$0xff]
      %v240 = vld [vmem:[%s196 + $0x118] sm:$0xff]
      %v241 = vld [vmem:[%s196 + $0x120] sm:$0xff]
      %v242 = vld [vmem:[%s196 + $0x128] sm:$0xff]
      %v243 = vld [vmem:[%s196 + $0x130] sm:$0xff]
      %v244 = vld [vmem:[%s196 + $0x138] sm:$0xff]
      %v245 = vld [vmem:[%s196 + $0x140] sm:$0xff]
      %v246 = vld [vmem:[%s196 + $0x148] sm:$0xff]
      %v247 = vld [vmem:[%s196 + $0x150] sm:$0xff]
      %v248 = vld [vmem:[%s196 + $0x158] sm:$0xff]
      %v249 = vld [vmem:[%s196 + $0x160] sm:$0xff]
      %v250 = vld [vmem:[%s196 + $0x168] sm:$0xff]
      %v251 = vld [vmem:[%s196 + $0x170] sm:$0xff]
      %v252 = vld [vmem:[%s196 + $0x178] sm:$0xff]
      %v253 = vld [vmem:[%s196 + $0x180] sm:$0xff]
      %v254 = vld [vmem:[%s196 + $0x188] sm:$0xff]
      %v255 = vld [vmem:[%s196 + $0x190] sm:$0xff]
      %v256 = vld [vmem:[%s196 + $0x198] sm:$0xff]
      %v257 = vld [vmem:[%s196 + $0x1a0] sm:$0xff]
      %v258 = vld [vmem:[%s196 + $0x1a8] sm:$0xff]
      %v259 = vld [vmem:[%s196 + $0x1b0] sm:$0xff]
      %v260 = vld [vmem:[%s196 + $0x1b8] sm:$0xff]
      %v261 = vld [vmem:[%s196 + $0x1c0] sm:$0xff]
      %v262 = vld [vmem:[%s196 + $0x1c8] sm:$0xff]
      %v263 = vld [vmem:[%s196 + $0x1d0] sm:$0xff]
      %v264 = vld [vmem:[%s196 + $0x1d8] sm:$0xff]
      %v265 = vld [vmem:[%s196 + $0x1e0] sm:$0xff]
      %v266 = vld [vmem:[%s196 + $0x1e8] sm:$0xff]
      %v267 = vld [vmem:[%s196 + $0x1f0] sm:$0xff]
      %v268 = vld [vmem:[%s196 + $0x1f8] sm:$0xff]
      %v269 = vld [vmem:[%s1] sm:$0xf]
      %v270 = vld [vmem:[%s1 + $0x4] sm:$0xf]
      %v271 = vld [vmem:[%s1 + $0x8] sm:$0xf]
      %v272 = vld [vmem:[%s1 + $0xc] sm:$0xf]
      %v273 = vld [vmem:[%s1 + $0x10] sm:$0xf]
      %v274 = vld [vmem:[%s1 + $0x14] sm:$0xf]
      %v275 = vld [vmem:[%s1 + $0x18] sm:$0xf]
      %v276 = vld [vmem:[%s1 + $0x1c] sm:$0xf]
      %v277 = vld [vmem:[%s1 + $0x20] sm:$0xf]
      %v278 = vld [vmem:[%s1 + $0x24] sm:$0xf]
      %v279 = vld [vmem:[%s1 + $0x28] sm:$0xf]
      %v280 = vld [vmem:[%s1 + $0x2c] sm:$0xf]
      %v281 = vld [vmem:[%s1 + $0x30] sm:$0xf]
      %v282 = vld [vmem:[%s1 + $0x34] sm:$0xf]
      %v283 = vld [vmem:[%s1 + $0x38] sm:$0xf]
      %v284 = vld [vmem:[%s1 + $0x3c] sm:$0xf]
      %v285 = vld [vmem:[%s1 + $0x40] sm:$0xf]
      %v286 = vld [vmem:[%s1 + $0x44] sm:$0xf]
      %v351 = vunpack.c.l.b16 %v205
      %v352 = vunpack.c.h.b16 %v205
      %v353 = vunpack.c.l.b16 %v206
      %v354 = vunpack.c.h.b16 %v206
      %v355 = vunpack.c.l.b16 %v207
      %v356 = vunpack.c.h.b16 %v207
      %v357 = vunpack.c.l.b16 %v208
      %v358 = vunpack.c.h.b16 %v208
      %v359 = vunpack.c.l.b16 %v209
      %v360 = vunpack.c.h.b16 %v209
      %v361 = vunpack.c.l.b16 %v210
      %v362 = vunpack.c.h.b16 %v210
      %v363 = vunpack.c.l.b16 %v211
      %v364 = vunpack.c.h.b16 %v211
      %v365 = vunpack.c.l.b16 %v212
      %v366 = vunpack.c.h.b16 %v212
      %v367 = vunpack.c.l.b16 %v213
      %v368 = vunpack.c.h.b16 %v213
      %v369 = vunpack.c.l.b16 %v214
      %v370 = vunpack.c.h.b16 %v214
      %v371 = vunpack.c.l.b16 %v215
      %v372 = vunpack.c.h.b16 %v215
      %v373 = vunpack.c.l.b16 %v216
      %v374 = vunpack.c.h.b16 %v216
      %v375 = vunpack.c.l.b16 %v217
      %v376 = vunpack.c.h.b16 %v217
      %v377 = vunpack.c.l.b16 %v218
      %v378 = vunpack.c.h.b16 %v218
      %v379 = vunpack.c.l.b16 %v219
      %v380 = vunpack.c.h.b16 %v219
      %v381 = vunpack.c.l.b16 %v220
      %v382 = vunpack.c.h.b16 %v220
      %v383 = vunpack.c.l.b16 %v221
      %v384 = vunpack.c.h.b16 %v221
      %v385 = vunpack.c.l.b16 %v222
      %v386 = vunpack.c.h.b16 %v222
      %v387 = vunpack.c.l.b16 %v223
      %v388 = vunpack.c.h.b16 %v223
      %v389 = vunpack.c.l.b16 %v224
      %v390 = vunpack.c.h.b16 %v224
      %v391 = vunpack.c.l.b16 %v225
      %v392 = vunpack.c.h.b16 %v225
      %v393 = vunpack.c.l.b16 %v226
      %v394 = vunpack.c.h.b16 %v226
      %v395 = vunpack.c.l.b16 %v227
      %v396 = vunpack.c.h.b16 %v227
      %v397 = vunpack.c.l.b16 %v228
      %v398 = vunpack.c.h.b16 %v228
      %v399 = vunpack.c.l.b16 %v229
      %v400 = vunpack.c.h.b16 %v229
      %v401 = vunpack.c.l.b16 %v230
      %v402 = vunpack.c.h.b16 %v230
      %v403 = vunpack.c.l.b16 %v231
      %v404 = vunpack.c.h.b16 %v231
      %v405 = vunpack.c.l.b16 %v232
      %v406 = vunpack.c.h.b16 %v232
      %v407 = vunpack.c.l.b16 %v233
      %v408 = vunpack.c.h.b16 %v233
      %v409 = vunpack.c.l.b16 %v234
      %v410 = vunpack.c.h.b16 %v234
      %v411 = vunpack.c.l.b16 %v235
      %v412 = vunpack.c.h.b16 %v235
      %v413 = vunpack.c.l.b16 %v236
      %v414 = vunpack.c.h.b16 %v236
      %v415 = vunpack.c.l.b16 %v237
      %v416 = vunpack.c.h.b16 %v237
      %v417 = vunpack.c.l.b16 %v238
      %v418 = vunpack.c.h.b16 %v238
      %v419 = vunpack.c.l.b16 %v239
      %v420 = vunpack.c.h.b16 %v239
      %v421 = vunpack.c.l.b16 %v240
      %v422 = vunpack.c.h.b16 %v240
      %v423 = vunpack.c.l.b16 %v241
      %v424 = vunpack.c.h.b16 %v241
      %v425 = vunpack.c.l.b16 %v242
      %v426 = vunpack.c.h.b16 %v242
      %v427 = vunpack.c.l.b16 %v243
      %v428 = vunpack.c.h.b16 %v243
      %v429 = vunpack.c.l.b16 %v244
      %v430 = vunpack.c.h.b16 %v244
      %v431 = vunpack.c.l.b16 %v245
      %v432 = vunpack.c.h.b16 %v245
      %v433 = vunpack.c.l.b16 %v246
      %v434 = vunpack.c.h.b16 %v246
      %v435 = vunpack.c.l.b16 %v247
      %v436 = vunpack.c.h.b16 %v247
      %v437 = vunpack.c.l.b16 %v248
      %v438 = vunpack.c.h.b16 %v248
      %v439 = vunpack.c.l.b16 %v249
      %v440 = vunpack.c.h.b16 %v249
      %v441 = vunpack.c.l.b16 %v250
      %v442 = vunpack.c.h.b16 %v250
      %v443 = vunpack.c.l.b16 %v251
      %v444 = vunpack.c.h.b16 %v251
      %v445 = vunpack.c.l.b16 %v252
      %v446 = vunpack.c.h.b16 %v252
      %v447 = vunpack.c.l.b16 %v253
      %v448 = vunpack.c.h.b16 %v253
      %v449 = vunpack.c.l.b16 %v254
      %v450 = vunpack.c.h.b16 %v254
      %v451 = vunpack.c.l.b16 %v255
      %v452 = vunpack.c.h.b16 %v255
      %v453 = vunpack.c.l.b16 %v256
      %v454 = vunpack.c.h.b16 %v256
      %v455 = vunpack.c.l.b16 %v257
      %v456 = vunpack.c.h.b16 %v257
      %v457 = vunpack.c.l.b16 %v258
      %v458 = vunpack.c.h.b16 %v258
      %v459 = vunpack.c.l.b16 %v259
      %v460 = vunpack.c.h.b16 %v259
      %v461 = vunpack.c.l.b16 %v260
      %v462 = vunpack.c.h.b16 %v260
      %v463 = vunpack.c.l.b16 %v261
      %v464 = vunpack.c.h.b16 %v261
      %v465 = vunpack.c.l.b16 %v262
      %v466 = vunpack.c.h.b16 %v262
      %v467 = vunpack.c.l.b16 %v263
      %v468 = vunpack.c.h.b16 %v263
      %v469 = vunpack.c.l.b16 %v264
      %v470 = vunpack.c.h.b16 %v264
      %v471 = vunpack.c.l.b16 %v265
      %v472 = vunpack.c.h.b16 %v265
      %v473 = vunpack.c.l.b16 %v266
      %v474 = vunpack.c.h.b16 %v266
      %v475 = vunpack.c.l.b16 %v267
      %v476 = vunpack.c.h.b16 %v267
      %v477 = vunpack.c.l.b16 %v268
      %v478 = vunpack.c.h.b16 %v268
      %v479 = vpack.c.b16 %v353, %v351
      %v480 = vpack.c.b16 %v354, %v352
      %v481 = vpack.c.b16 %v357, %v355
      %v482 = vpack.c.b16 %v358, %v356
      %v483 = vpack.c.b16 %v361, %v359
      %v484 = vpack.c.b16 %v362, %v360
      %v485 = vpack.c.b16 %v365, %v363
      %v486 = vpack.c.b16 %v366, %v364
      %v487 = vpack.c.b16 %v369, %v367
      %v488 = vpack.c.b16 %v370, %v368
      %v489 = vpack.c.b16 %v373, %v371
      %v490 = vpack.c.b16 %v374, %v372
      %v491 = vpack.c.b16 %v377, %v375
      %v492 = vpack.c.b16 %v378, %v376
      %v493 = vpack.c.b16 %v381, %v379
      %v494 = vpack.c.b16 %v382, %v380
      %v495 = vpack.c.b16 %v385, %v383
      %v496 = vpack.c.b16 %v386, %v384
      %v497 = vpack.c.b16 %v389, %v387
      %v498 = vpack.c.b16 %v390, %v388
      %v499 = vpack.c.b16 %v393, %v391
      %v500 = vpack.c.b16 %v394, %v392
      %v501 = vpack.c.b16 %v397, %v395
      %v502 = vpack.c.b16 %v398, %v396
      %v503 = vpack.c.b16 %v401, %v399
      %v504 = vpack.c.b16 %v402, %v400
      %v505 = vpack.c.b16 %v405, %v403
      %v506 = vpack.c.b16 %v406, %v404
      %v507 = vpack.c.b16 %v409, %v407
      %v508 = vpack.c.b16 %v410, %v408
      %v509 = vpack.c.b16 %v413, %v411
      %v510 = vpack.c.b16 %v414, %v412
      %v511 = vpack.c.b16 %v417, %v415
      %v512 = vpack.c.b16 %v418, %v416
      %v513 = vpack.c.b16 %v421, %v419
      %v514 = vpack.c.b16 %v422, %v420
      %v515 = vpack.c.b16 %v425, %v423
      %v516 = vpack.c.b16 %v426, %v424
      %v517 = vpack.c.b16 %v429, %v427
      %v518 = vpack.c.b16 %v430, %v428
      %v519 = vpack.c.b16 %v433, %v431
      %v520 = vpack.c.b16 %v434, %v432
      %v521 = vpack.c.b16 %v437, %v435
      %v522 = vpack.c.b16 %v438, %v436
      %v523 = vpack.c.b16 %v441, %v439
      %v524 = vpack.c.b16 %v442, %v440
      %v525 = vpack.c.b16 %v445, %v443
      %v526 = vpack.c.b16 %v446, %v444
      %v527 = vpack.c.b16 %v449, %v447
      %v528 = vpack.c.b16 %v450, %v448
      %v529 = vpack.c.b16 %v453, %v451
      %v530 = vpack.c.b16 %v454, %v452
      %v531 = vpack.c.b16 %v457, %v455
      %v532 = vpack.c.b16 %v458, %v456
      %v533 = vpack.c.b16 %v461, %v459
      %v534 = vpack.c.b16 %v462, %v460
      %v535 = vpack.c.b16 %v465, %v463
      %v536 = vpack.c.b16 %v466, %v464
      %v537 = vpack.c.b16 %v469, %v467
      %v538 = vpack.c.b16 %v470, %v468
      %v539 = vpack.c.b16 %v473, %v471
      %v540 = vpack.c.b16 %v474, %v472
      %v541 = vpack.c.b16 %v477, %v475
      %v542 = vpack.c.b16 %v478, %v476
      %v593 = vunpack.c.l.b16 %v269
      %v594 = vunpack.c.l.b16 %v270
      %v595 = vunpack.c.l.b16 %v271
      %v596 = vunpack.c.l.b16 %v272
      %v597 = vunpack.c.l.b16 %v273
      %v598 = vunpack.c.l.b16 %v274
      %v599 = vunpack.c.l.b16 %v275
      %v600 = vunpack.c.l.b16 %v276
      %v601 = vunpack.c.l.b16 %v277
      %v602 = vunpack.c.l.b16 %v278
      %v603 = vunpack.c.l.b16 %v279
      %v604 = vunpack.c.l.b16 %v280
      %v605 = vunpack.c.l.b16 %v281
      %v606 = vunpack.c.l.b16 %v282
      %v607 = vunpack.c.l.b16 %v283
      %v608 = vunpack.c.l.b16 %v284
      %v609 = vunpack.c.l.b16 %v285
      %v610 = vunpack.c.l.b16 %v286
      %v611 = vpack.c.b16 %v594, %v593
      %v612 = vpack.c.b16 %v596, %v595
      %v613 = vpack.c.b16 %v598, %v597
      %v614 = vpack.c.b16 %v600, %v599
      %v615 = vpack.c.b16 %v602, %v601
      %v616 = vpack.c.b16 %v604, %v603
      %v617 = vpack.c.b16 %v606, %v605
      %v618 = vpack.c.b16 %v608, %v607
      %v619 = vpack.c.b16 %v610, %v609
      %vm629 = vcmask 130048
      %v631 = vsel %vm629, %v480, 0
      %v634 = vsel %vm629, %v482, 0
      %v637 = vsel %vm629, %v484, 0
      %v640 = vsel %vm629, %v486, 0
      %v643 = vsel %vm629, %v488, 0
      %v646 = vsel %vm629, %v490, 0
      %v649 = vsel %vm629, %v492, 0
      %v652 = vsel %vm629, %v494, 0
      %v655 = vsel %vm629, %v496, 0
      %v658 = vsel %vm629, %v498, 0
      %v661 = vsel %vm629, %v500, 0
      %v664 = vsel %vm629, %v502, 0
      %v667 = vsel %vm629, %v504, 0
      %v670 = vsel %vm629, %v506, 0
      %v673 = vsel %vm629, %v508, 0
      %v676 = vsel %vm629, %v510, 0
      %v679 = vsel %vm629, %v512, 0
      %v682 = vsel %vm629, %v514, 0
      %v685 = vsel %vm629, %v516, 0
      %v688 = vsel %vm629, %v518, 0
      %v691 = vsel %vm629, %v520, 0
      %v694 = vsel %vm629, %v522, 0
      %v697 = vsel %vm629, %v524, 0
      %v700 = vsel %vm629, %v526, 0
      %v703 = vsel %vm629, %v528, 0
      %v706 = vsel %vm629, %v530, 0
      %v709 = vsel %vm629, %v532, 0
      %v712 = vsel %vm629, %v534, 0
      %v715 = vsel %vm629, %v536, 0
      %v718 = vsel %vm629, %v538, 0
      %v721 = vsel %vm629, %v540, 0
      %v724 = vsel %vm629, %v542, 0
      %726 = vmatprep.subr.bf16.mxu0 0
      %727 = vmatpush1.bf16.msra.mxu0 %v611
      %728 = vmatprep.subr.bf16.mxu0 0
      %729 = vmatpush1.bf16.msra.mxu0 %v612
      %730 = vmatprep.subr.bf16.mxu0 0
      %731 = vmatpush1.bf16.msra.mxu0 %v613
      %732 = vmatprep.subr.bf16.mxu0 0
      %733 = vmatpush1.bf16.msra.mxu0 %v614
      %734 = vmatprep.subr.bf16.mxu0 0
      %735 = vmatpush1.bf16.msra.mxu0 %v615
      %736 = vmatprep.subr.bf16.mxu0 0
      %737 = vmatpush1.bf16.msra.mxu0 %v616
      %738 = vmatprep.subr.bf16.mxu0 0
      %739 = vmatpush1.bf16.msra.mxu0 %v617
      %740 = vmatprep.subr.bf16.mxu0 0
      %741 = vmatpush1.bf16.msra.mxu0 %v618
      %742 = vmatprep.subr.bf16.mxu0 0
      %743 = vmatpush1.bf16.msra.mxu0 %v619
      %744 = vmatprep.subr.bf16.mxu0 0
      %745 = vmatpush1.bf16.msra.mxu0 0
      %746 = vmatprep.subr.bf16.mxu0 0
      %747 = vmatpush1.bf16.msra.mxu0 0
      %748 = vmatprep.subr.bf16.mxu0 0
      %749 = vmatpush1.bf16.msra.mxu0 0
      %750 = vmatprep.subr.bf16.mxu0 0
      %751 = vmatpush1.bf16.msra.mxu0 0
      %752 = vmatprep.subr.bf16.mxu0 0
      %753 = vmatpush1.bf16.msra.mxu0 0
      %754 = vmatprep.subr.bf16.mxu0 0
      %755 = vmatpush1.bf16.msra.mxu0 0
      %756 = vmatprep.subr.bf16.mxu0 0
      %757 = vmatpush1.bf16.msra.mxu0 0
      %758 = vmatprep.mubr.bf16.mxu0 %v631
      %759 = vmatmul.mubr.bf16.gmra.mrb[0].mxu0 %v479
      %v760 = vpop.f32.mrb[0].mxu0
      %v761 = vadd.f32 0.0, %v760
      %v762 = vpop.f32.mrb[0].mxu0
      %v763 = vpop.f32.mrb[0].mxu0
      %v764 = vadd.f32 0.0, %v763
      %v765 = vpop.f32.mrb[0].mxu0
      %766 = vmatprep.mubr.bf16.mxu0 %v634
      %767 = vmatmul.mubr.bf16.gmra.mrb[0].mxu0 %v481
      %v768 = vpop.f32.mrb[0].mxu0
      %v769 = vadd.f32 0.0, %v768
      %v770 = vpop.f32.mrb[0].mxu0
      %v771 = vpop.f32.mrb[0].mxu0
      %v772 = vadd.f32 0.0, %v771
      %v773 = vpop.f32.mrb[0].mxu0
      %774 = vmatprep.mubr.bf16.mxu0 %v637
      %775 = vmatmul.mubr.bf16.gmra.mrb[0].mxu0 %v483
      %v776 = vpop.f32.mrb[0].mxu0
      %v777 = vadd.f32 0.0, %v776
      %v778 = vpop.f32.mrb[0].mxu0
      %v779 = vpop.f32.mrb[0].mxu0
      %v780 = vadd.f32 0.0, %v779
      %v781 = vpop.f32.mrb[0].mxu0
      %782 = vmatprep.mubr.bf16.mxu0 %v640
      %783 = vmatmul.mubr.bf16.gmra.mrb[0].mxu0 %v485
      %v784 = vpop.f32.mrb[0].mxu0
      %v785 = vadd.f32 0.0, %v784
      %v786 = vpop.f32.mrb[0].mxu0
      %v787 = vpop.f32.mrb[0].mxu0
      %v788 = vadd.f32 0.0, %v787
      %v789 = vpop.f32.mrb[0].mxu0
      %790 = vmatprep.mubr.bf16.mxu0 %v643
      %791 = vmatmul.mubr.bf16.gmra.mrb[0].mxu0 %v487
      %v792 = vpop.f32.mrb[0].mxu0
      %v793 = vadd.f32 0.0, %v792
      %v794 = vpop.f32.mrb[0].mxu0
      %v795 = vpop.f32.mrb[0].mxu0
      %v796 = vadd.f32 0.0, %v795
      %v797 = vpop.f32.mrb[0].mxu0
      %798 = vmatprep.mubr.bf16.mxu0 %v646
      %799 = vmatmul.mubr.bf16.gmra.mrb[0].mxu0 %v489
      %v800 = vpop.f32.mrb[0].mxu0
      %v801 = vadd.f32 0.0, %v800
      %v802 = vpop.f32.mrb[0].mxu0
      %v803 = vpop.f32.mrb[0].mxu0
      %v804 = vadd.f32 0.0, %v803
      %v805 = vpop.f32.mrb[0].mxu0
      %806 = vmatprep.mubr.bf16.mxu0 %v649
      %807 = vmatmul.mubr.bf16.gmra.mrb[0].mxu0 %v491
      %v808 = vpop.f32.mrb[0].mxu0
      %v809 = vadd.f32 0.0, %v808
      %v810 = vpop.f32.mrb[0].mxu0
      %v811 = vpop.f32.mrb[0].mxu0
      %v812 = vadd.f32 0.0, %v811
      %v813 = vpop.f32.mrb[0].mxu0
      %814 = vmatprep.mubr.bf16.mxu0 %v652
      %815 = vmatmul.mubr.bf16.gmra.mrb[0].mxu0 %v493
      %v816 = vpop.f32.mrb[0].mxu0
      %v817 = vadd.f32 0.0, %v816
      %v818 = vpop.f32.mrb[0].mxu0
      %v819 = vpop.f32.mrb[0].mxu0
      %v820 = vadd.f32 0.0, %v819
      %v821 = vpop.f32.mrb[0].mxu0
      %822 = vmatprep.mubr.bf16.mxu0 %v655
      %823 = vmatmul.mubr.bf16.gmra.mrb[0].mxu0 %v495
      %v824 = vpop.f32.mrb[0].mxu0
      %v825 = vadd.f32 0.0, %v824
      %v826 = vpop.f32.mrb[0].mxu0
      %v827 = vpop.f32.mrb[0].mxu0
      %v828 = vadd.f32 0.0, %v827
      %v829 = vpop.f32.mrb[0].mxu0
      %830 = vmatprep.mubr.bf16.mxu0 %v658
      %831 = vmatmul.mubr.bf16.gmra.mrb[0].mxu0 %v497
      %v832 = vpop.f32.mrb[0].mxu0
      %v833 = vadd.f32 0.0, %v832
      %v834 = vpop.f32.mrb[0].mxu0
      %v835 = vpop.f32.mrb[0].mxu0
      %v836 = vadd.f32 0.0, %v835
      %v837 = vpop.f32.mrb[0].mxu0
      %838 = vmatprep.mubr.bf16.mxu0 %v661
      %839 = vmatmul.mubr.bf16.gmra.mrb[0].mxu0 %v499
      %v840 = vpop.f32.mrb[0].mxu0
      %v841 = vadd.f32 0.0, %v840
      %v842 = vpop.f32.mrb[0].mxu0
      %v843 = vpop.f32.mrb[0].mxu0
      %v844 = vadd.f32 0.0, %v843
      %v845 = vpop.f32.mrb[0].mxu0
      %846 = vmatprep.mubr.bf16.mxu0 %v664
      %847 = vmatmul.mubr.bf16.gmra.mrb[0].mxu0 %v501
      %v848 = vpop.f32.mrb[0].mxu0
      %v849 = vadd.f32 0.0, %v848
      %v850 = vpop.f32.mrb[0].mxu0
      %v851 = vpop.f32.mrb[0].mxu0
      %v852 = vadd.f32 0.0, %v851
      %v853 = vpop.f32.mrb[0].mxu0
      %854 = vmatprep.mubr.bf16.mxu0 %v667
      %855 = vmatmul.mubr.bf16.gmra.mrb[0].mxu0 %v503
      %v856 = vpop.f32.mrb[0].mxu0
      %v857 = vadd.f32 0.0, %v856
      %v858 = vpop.f32.mrb[0].mxu0
      %v859 = vpop.f32.mrb[0].mxu0
      %v860 = vadd.f32 0.0, %v859
      %v861 = vpop.f32.mrb[0].mxu0
      %862 = vmatprep.mubr.bf16.mxu0 %v670
      %863 = vmatmul.mubr.bf16.gmra.mrb[0].mxu0 %v505
      %v864 = vpop.f32.mrb[0].mxu0
      %v865 = vadd.f32 0.0, %v864
      %v866 = vpop.f32.mrb[0].mxu0
      %v867 = vpop.f32.mrb[0].mxu0
      %v868 = vadd.f32 0.0, %v867
      %v869 = vpop.f32.mrb[0].mxu0
      %870 = vmatprep.mubr.bf16.mxu0 %v673
      %871 = vmatmul.mubr.bf16.gmra.mrb[0].mxu0 %v507
      %v872 = vpop.f32.mrb[0].mxu0
      %v873 = vadd.f32 0.0, %v872
      %v874 = vpop.f32.mrb[0].mxu0
      %v875 = vpop.f32.mrb[0].mxu0
      %v876 = vadd.f32 0.0, %v875
      %v877 = vpop.f32.mrb[0].mxu0
      %878 = vmatprep.mubr.bf16.mxu0 %v676
      %879 = vmatmul.mubr.bf16.gmra.mrb[0].mxu0 %v509
      %v880 = vpop.f32.mrb[0].mxu0
      %v881 = vadd.f32 0.0, %v880
      %v882 = vpop.f32.mrb[0].mxu0
      %v883 = vpop.f32.mrb[0].mxu0
      %v884 = vadd.f32 0.0, %v883
      %v885 = vpop.f32.mrb[0].mxu0
      %886 = vmatprep.mubr.bf16.mxu0 %v679
      %887 = vmatmul.mubr.bf16.gmra.mrb[0].mxu0 %v511
      %v888 = vpop.f32.mrb[0].mxu0
      %v889 = vadd.f32 0.0, %v888
      %v890 = vpop.f32.mrb[0].mxu0
      %v891 = vpop.f32.mrb[0].mxu0
      %v892 = vadd.f32 0.0, %v891
      %v893 = vpop.f32.mrb[0].mxu0
      %894 = vmatprep.mubr.bf16.mxu0 %v682
      %895 = vmatmul.mubr.bf16.gmra.mrb[0].mxu0 %v513
      %v896 = vpop.f32.mrb[0].mxu0
      %v897 = vadd.f32 0.0, %v896
      %v898 = vpop.f32.mrb[0].mxu0
      %v899 = vpop.f32.mrb[0].mxu0
      %v900 = vadd.f32 0.0, %v899
      %v901 = vpop.f32.mrb[0].mxu0
      %902 = vmatprep.mubr.bf16.mxu0 %v685
      %903 = vmatmul.mubr.bf16.gmra.mrb[0].mxu0 %v515
      %v904 = vpop.f32.mrb[0].mxu0
      %v905 = vadd.f32 0.0, %v904
      %v906 = vpop.f32.mrb[0].mxu0
      %v907 = vpop.f32.mrb[0].mxu0
      %v908 = vadd.f32 0.0, %v907
      %v909 = vpop.f32.mrb[0].mxu0
      %910 = vmatprep.mubr.bf16.mxu0 %v688
      %911 = vmatmul.mubr.bf16.gmra.mrb[0].mxu0 %v517
      %v912 = vpop.f32.mrb[0].mxu0
      %v913 = vadd.f32 0.0, %v912
      %v914 = vpop.f32.mrb[0].mxu0
      %v915 = vpop.f32.mrb[0].mxu0
      %v916 = vadd.f32 0.0, %v915
      %v917 = vpop.f32.mrb[0].mxu0
      %918 = vmatprep.mubr.bf16.mxu0 %v691
      %919 = vmatmul.mubr.bf16.gmra.mrb[0].mxu0 %v519
      %v920 = vpop.f32.mrb[0].mxu0
      %v921 = vadd.f32 0.0, %v920
      %v922 = vpop.f32.mrb[0].mxu0
      %v923 = vpop.f32.mrb[0].mxu0
      %v924 = vadd.f32 0.0, %v923
      %v925 = vpop.f32.mrb[0].mxu0
      %926 = vmatprep.mubr.bf16.mxu0 %v694
      %927 = vmatmul.mubr.bf16.gmra.mrb[0].mxu0 %v521
      %v928 = vpop.f32.mrb[0].mxu0
      %v929 = vadd.f32 0.0, %v928
      %v930 = vpop.f32.mrb[0].mxu0
      %v931 = vpop.f32.mrb[0].mxu0
      %v932 = vadd.f32 0.0, %v931
      %v933 = vpop.f32.mrb[0].mxu0
      %934 = vmatprep.mubr.bf16.mxu0 %v697
      %935 = vmatmul.mubr.bf16.gmra.mrb[0].mxu0 %v523
      %v936 = vpop.f32.mrb[0].mxu0
      %v937 = vadd.f32 0.0, %v936
      %v938 = vpop.f32.mrb[0].mxu0
      %v939 = vpop.f32.mrb[0].mxu0
      %v940 = vadd.f32 0.0, %v939
      %v941 = vpop.f32.mrb[0].mxu0
      %942 = vmatprep.mubr.bf16.mxu0 %v700
      %943 = vmatmul.mubr.bf16.gmra.mrb[0].mxu0 %v525
      %v944 = vpop.f32.mrb[0].mxu0
      %v945 = vadd.f32 0.0, %v944
      %v946 = vpop.f32.mrb[0].mxu0
      %v947 = vpop.f32.mrb[0].mxu0
      %v948 = vadd.f32 0.0, %v947
      %v949 = vpop.f32.mrb[0].mxu0
      %950 = vmatprep.mubr.bf16.mxu0 %v703
      %951 = vmatmul.mubr.bf16.gmra.mrb[0].mxu0 %v527
      %v952 = vpop.f32.mrb[0].mxu0
      %v953 = vadd.f32 0.0, %v952
      %v954 = vpop.f32.mrb[0].mxu0
      %v955 = vpop.f32.mrb[0].mxu0
      %v956 = vadd.f32 0.0, %v955
      %v957 = vpop.f32.mrb[0].mxu0
      %958 = vmatprep.mubr.bf16.mxu0 %v706
      %959 = vmatmul.mubr.bf16.gmra.mrb[0].mxu0 %v529
      %v960 = vpop.f32.mrb[0].mxu0
      %v961 = vadd.f32 0.0, %v960
      %v962 = vpop.f32.mrb[0].mxu0
      %v963 = vpop.f32.mrb[0].mxu0
      %v964 = vadd.f32 0.0, %v963
      %v965 = vpop.f32.mrb[0].mxu0
      %966 = vmatprep.mubr.bf16.mxu0 %v709
      %967 = vmatmul.mubr.bf16.gmra.mrb[0].mxu0 %v531
      %v968 = vpop.f32.mrb[0].mxu0
      %v969 = vadd.f32 0.0, %v968
      %v970 = vpop.f32.mrb[0].mxu0
      %v971 = vpop.f32.mrb[0].mxu0
      %v972 = vadd.f32 0.0, %v971
      %v973 = vpop.f32.mrb[0].mxu0
      %974 = vmatprep.mubr.bf16.mxu0 %v712
      %975 = vmatmul.mubr.bf16.gmra.mrb[0].mxu0 %v533
      %v976 = vpop.f32.mrb[0].mxu0
      %v977 = vadd.f32 0.0, %v976
      %v978 = vpop.f32.mrb[0].mxu0
      %v979 = vpop.f32.mrb[0].mxu0
      %v980 = vadd.f32 0.0, %v979
      %v981 = vpop.f32.mrb[0].mxu0
      %982 = vmatprep.mubr.bf16.mxu0 %v715
      %983 = vmatmul.mubr.bf16.gmra.mrb[0].mxu0 %v535
      %v984 = vpop.f32.mrb[0].mxu0
      %v985 = vadd.f32 0.0, %v984
      %v986 = vpop.f32.mrb[0].mxu0
      %v987 = vpop.f32.mrb[0].mxu0
      %v988 = vadd.f32 0.0, %v987
      %v989 = vpop.f32.mrb[0].mxu0
      %990 = vmatprep.mubr.bf16.mxu0 %v718
      %991 = vmatmul.mubr.bf16.gmra.mrb[0].mxu0 %v537
      %v992 = vpop.f32.mrb[0].mxu0
      %v993 = vadd.f32 0.0, %v992
      %v994 = vpop.f32.mrb[0].mxu0
      %v995 = vpop.f32.mrb[0].mxu0
      %v996 = vadd.f32 0.0, %v995
      %v997 = vpop.f32.mrb[0].mxu0
      %998 = vmatprep.mubr.bf16.mxu0 %v721
      %999 = vmatmul.mubr.bf16.gmra.mrb[0].mxu0 %v539
      %v1000 = vpop.f32.mrb[0].mxu0
      %v1001 = vadd.f32 0.0, %v1000
      %v1002 = vpop.f32.mrb[0].mxu0
      %v1003 = vpop.f32.mrb[0].mxu0
      %v1004 = vadd.f32 0.0, %v1003
      %v1005 = vpop.f32.mrb[0].mxu0
      %1006 = vmatprep.mubr.bf16.mxu0 %v724
      %1007 = vmatmul.mubr.bf16.gmra.mrb[0].mxu0 %v541
      %v1008 = vpop.f32.mrb[0].mxu0
      %v1009 = vadd.f32 0.0, %v1008
      %v1010 = vpop.f32.mrb[0].mxu0
      %v1011 = vpop.f32.mrb[0].mxu0
      %v1012 = vadd.f32 0.0, %v1011
      %v1013 = vpop.f32.mrb[0].mxu0
      %1014 = vdwg.mxu0
      %v1015 = vld [vmem:[%s2] sm:$0x1]
      %v1017 = vlaneseq
      %v1018 = vshrl.u32 %v1017, 7
      %v1019 = vsub.s32 0, %v1018
      %v1020 = vrot.slane %v1015, %v1019
      %v1022 = vmul.f32 %v761, %v1020
      %v1023 = vmul.f32 %v764, %v1020
      %v1024 = vmul.f32 %v769, %v1020
      %v1025 = vmul.f32 %v772, %v1020
      %v1026 = vmul.f32 %v777, %v1020
      %v1027 = vmul.f32 %v780, %v1020
      %v1028 = vmul.f32 %v785, %v1020
      %v1029 = vmul.f32 %v788, %v1020
      %v1030 = vmul.f32 %v793, %v1020
      %v1031 = vmul.f32 %v796, %v1020
      %v1032 = vmul.f32 %v801, %v1020
      %v1033 = vmul.f32 %v804, %v1020
      %v1034 = vmul.f32 %v809, %v1020
      %v1035 = vmul.f32 %v812, %v1020
      %v1036 = vmul.f32 %v817, %v1020
      %v1037 = vmul.f32 %v820, %v1020
      %v1038 = vmul.f32 %v825, %v1020
      %v1039 = vmul.f32 %v828, %v1020
      %v1040 = vmul.f32 %v833, %v1020
      %v1041 = vmul.f32 %v836, %v1020
      %v1042 = vmul.f32 %v841, %v1020
      %v1043 = vmul.f32 %v844, %v1020
      %v1044 = vmul.f32 %v849, %v1020
      %v1045 = vmul.f32 %v852, %v1020
      %v1046 = vmul.f32 %v857, %v1020
      %v1047 = vmul.f32 %v860, %v1020
      %v1048 = vmul.f32 %v865, %v1020
      %v1049 = vmul.f32 %v868, %v1020
      %v1050 = vmul.f32 %v873, %v1020
      %v1051 = vmul.f32 %v876, %v1020
      %v1052 = vmul.f32 %v881, %v1020
      %v1053 = vmul.f32 %v884, %v1020
      %v1054 = vmul.f32 %v889, %v1020
      %v1055 = vmul.f32 %v892, %v1020
      %v1056 = vmul.f32 %v897, %v1020
      %v1057 = vmul.f32 %v900, %v1020
      %v1058 = vmul.f32 %v905, %v1020
      %v1059 = vmul.f32 %v908, %v1020
      %v1060 = vmul.f32 %v913, %v1020
      %v1061 = vmul.f32 %v916, %v1020
      %v1062 = vmul.f32 %v921, %v1020
      %v1063 = vmul.f32 %v924, %v1020
      %v1064 = vmul.f32 %v929, %v1020
      %v1065 = vmul.f32 %v932, %v1020
      %v1066 = vmul.f32 %v937, %v1020
      %v1067 = vmul.f32 %v940, %v1020
      %v1068 = vmul.f32 %v945, %v1020
      %v1069 = vmul.f32 %v948, %v1020
      %v1070 = vmul.f32 %v953, %v1020
      %v1071 = vmul.f32 %v956, %v1020
      %v1072 = vmul.f32 %v961, %v1020
      %v1073 = vmul.f32 %v964, %v1020
      %v1074 = vmul.f32 %v969, %v1020
      %v1075 = vmul.f32 %v972, %v1020
      %v1076 = vmul.f32 %v977, %v1020
      %v1077 = vmul.f32 %v980, %v1020
      %v1078 = vmul.f32 %v985, %v1020
      %v1079 = vmul.f32 %v988, %v1020
      %v1080 = vmul.f32 %v993, %v1020
      %v1081 = vmul.f32 %v996, %v1020
      %v1082 = vmul.f32 %v1001, %v1020
      %v1083 = vmul.f32 %v1004, %v1020
      %v1084 = vmul.f32 %v1009, %v1020
      %v1085 = vmul.f32 %v1012, %v1020
      %v1086 = vld [vmem:[%s3] sm:$0x1]
      %v1088 = vlaneseq
      %v1089 = vshrl.u32 %v1088, 7
      %v1090 = vsub.s32 0, %v1089
      %v1091 = vrot.slane %v1086, %v1090
      %v1093 = vadd.f32 %v1022, %v1091
      %v1094 = vadd.f32 %v1023, %v1091
      %v1095 = vadd.f32 %v1024, %v1091
      %v1096 = vadd.f32 %v1025, %v1091
      %v1097 = vadd.f32 %v1026, %v1091
      %v1098 = vadd.f32 %v1027, %v1091
      %v1099 = vadd.f32 %v1028, %v1091
      %v1100 = vadd.f32 %v1029, %v1091
      %v1101 = vadd.f32 %v1030, %v1091
      %v1102 = vadd.f32 %v1031, %v1091
      %v1103 = vadd.f32 %v1032, %v1091
      %v1104 = vadd.f32 %v1033, %v1091
      %v1105 = vadd.f32 %v1034, %v1091
      %v1106 = vadd.f32 %v1035, %v1091
      %v1107 = vadd.f32 %v1036, %v1091
      %v1108 = vadd.f32 %v1037, %v1091
      %v1109 = vadd.f32 %v1038, %v1091
      %v1110 = vadd.f32 %v1039, %v1091
      %v1111 = vadd.f32 %v1040, %v1091
      %v1112 = vadd.f32 %v1041, %v1091
      %v1113 = vadd.f32 %v1042, %v1091
      %v1114 = vadd.f32 %v1043, %v1091
      %v1115 = vadd.f32 %v1044, %v1091
      %v1116 = vadd.f32 %v1045, %v1091
      %v1117 = vadd.f32 %v1046, %v1091
      %v1118 = vadd.f32 %v1047, %v1091
      %v1119 = vadd.f32 %v1048, %v1091
      %v1120 = vadd.f32 %v1049, %v1091
      %v1121 = vadd.f32 %v1050, %v1091
      %v1122 = vadd.f32 %v1051, %v1091
      %v1123 = vadd.f32 %v1052, %v1091
      %v1124 = vadd.f32 %v1053, %v1091
      %v1125 = vadd.f32 %v1054, %v1091
      %v1126 = vadd.f32 %v1055, %v1091
      %v1127 = vadd.f32 %v1056, %v1091
      %v1128 = vadd.f32 %v1057, %v1091
      %v1129 = vadd.f32 %v1058, %v1091
      %v1130 = vadd.f32 %v1059, %v1091
      %v1131 = vadd.f32 %v1060, %v1091
      %v1132 = vadd.f32 %v1061, %v1091
      %v1133 = vadd.f32 %v1062, %v1091
      %v1134 = vadd.f32 %v1063, %v1091
      %v1135 = vadd.f32 %v1064, %v1091
      %v1136 = vadd.f32 %v1065, %v1091
      %v1137 = vadd.f32 %v1066, %v1091
      %v1138 = vadd.f32 %v1067, %v1091
      %v1139 = vadd.f32 %v1068, %v1091
      %v1140 = vadd.f32 %v1069, %v1091
      %v1141 = vadd.f32 %v1070, %v1091
      %v1142 = vadd.f32 %v1071, %v1091
      %v1143 = vadd.f32 %v1072, %v1091
      %v1144 = vadd.f32 %v1073, %v1091
      %v1145 = vadd.f32 %v1074, %v1091
      %v1146 = vadd.f32 %v1075, %v1091
      %v1147 = vadd.f32 %v1076, %v1091
      %v1148 = vadd.f32 %v1077, %v1091
      %v1149 = vadd.f32 %v1078, %v1091
      %v1150 = vadd.f32 %v1079, %v1091
      %v1151 = vadd.f32 %v1080, %v1091
      %v1152 = vadd.f32 %v1081, %v1091
      %v1153 = vadd.f32 %v1082, %v1091
      %v1154 = vadd.f32 %v1083, %v1091
      %v1155 = vadd.f32 %v1084, %v1091
      %v1156 = vadd.f32 %v1085, %v1091
      %v1157 = vmax.f32 %v1093, 0.0
      %v1158 = vmax.f32 %v1094, 0.0
      %v1159 = vmax.f32 %v1095, 0.0
      %v1160 = vmax.f32 %v1096, 0.0
      %v1161 = vmax.f32 %v1097, 0.0
      %v1162 = vmax.f32 %v1098, 0.0
      %v1163 = vmax.f32 %v1099, 0.0
      %v1164 = vmax.f32 %v1100, 0.0
      %v1165 = vmax.f32 %v1101, 0.0
      %v1166 = vmax.f32 %v1102, 0.0
      %v1167 = vmax.f32 %v1103, 0.0
      %v1168 = vmax.f32 %v1104, 0.0
      %v1169 = vmax.f32 %v1105, 0.0
      %v1170 = vmax.f32 %v1106, 0.0
      %v1171 = vmax.f32 %v1107, 0.0
      %v1172 = vmax.f32 %v1108, 0.0
      %v1173 = vmax.f32 %v1109, 0.0
      %v1174 = vmax.f32 %v1110, 0.0
      %v1175 = vmax.f32 %v1111, 0.0
      %v1176 = vmax.f32 %v1112, 0.0
      %v1177 = vmax.f32 %v1113, 0.0
      %v1178 = vmax.f32 %v1114, 0.0
      %v1179 = vmax.f32 %v1115, 0.0
      %v1180 = vmax.f32 %v1116, 0.0
      %v1181 = vmax.f32 %v1117, 0.0
      %v1182 = vmax.f32 %v1118, 0.0
      %v1183 = vmax.f32 %v1119, 0.0
      %v1184 = vmax.f32 %v1120, 0.0
      %v1185 = vmax.f32 %v1121, 0.0
      %v1186 = vmax.f32 %v1122, 0.0
      %v1187 = vmax.f32 %v1123, 0.0
      %v1188 = vmax.f32 %v1124, 0.0
      %v1189 = vmax.f32 %v1125, 0.0
      %v1190 = vmax.f32 %v1126, 0.0
      %v1191 = vmax.f32 %v1127, 0.0
      %v1192 = vmax.f32 %v1128, 0.0
      %v1193 = vmax.f32 %v1129, 0.0
      %v1194 = vmax.f32 %v1130, 0.0
      %v1195 = vmax.f32 %v1131, 0.0
      %v1196 = vmax.f32 %v1132, 0.0
      %v1197 = vmax.f32 %v1133, 0.0
      %v1198 = vmax.f32 %v1134, 0.0
      %v1199 = vmax.f32 %v1135, 0.0
      %v1200 = vmax.f32 %v1136, 0.0
      %v1201 = vmax.f32 %v1137, 0.0
      %v1202 = vmax.f32 %v1138, 0.0
      %v1203 = vmax.f32 %v1139, 0.0
      %v1204 = vmax.f32 %v1140, 0.0
      %v1205 = vmax.f32 %v1141, 0.0
      %v1206 = vmax.f32 %v1142, 0.0
      %v1207 = vmax.f32 %v1143, 0.0
      %v1208 = vmax.f32 %v1144, 0.0
      %v1209 = vmax.f32 %v1145, 0.0
      %v1210 = vmax.f32 %v1146, 0.0
      %v1211 = vmax.f32 %v1147, 0.0
      %v1212 = vmax.f32 %v1148, 0.0
      %v1213 = vmax.f32 %v1149, 0.0
      %v1214 = vmax.f32 %v1150, 0.0
      %v1215 = vmax.f32 %v1151, 0.0
      %v1216 = vmax.f32 %v1152, 0.0
      %v1217 = vmax.f32 %v1153, 0.0
      %v1218 = vmax.f32 %v1154, 0.0
      %v1219 = vmax.f32 %v1155, 0.0
      %v1220 = vmax.f32 %v1156, 0.0
      %v1221 = vpack.c.bf16 %v1158, %v1157
      %v1222 = vpack.c.bf16 %v1160, %v1159
      %v1223 = vpack.c.bf16 %v1162, %v1161
      %v1224 = vpack.c.bf16 %v1164, %v1163
      %v1225 = vpack.c.bf16 %v1166, %v1165
      %v1226 = vpack.c.bf16 %v1168, %v1167
      %v1227 = vpack.c.bf16 %v1170, %v1169
      %v1228 = vpack.c.bf16 %v1172, %v1171
      %v1229 = vpack.c.bf16 %v1174, %v1173
      %v1230 = vpack.c.bf16 %v1176, %v1175
      %v1231 = vpack.c.bf16 %v1178, %v1177
      %v1232 = vpack.c.bf16 %v1180, %v1179
      %v1233 = vpack.c.bf16 %v1182, %v1181
      %v1234 = vpack.c.bf16 %v1184, %v1183
      %v1235 = vpack.c.bf16 %v1186, %v1185
      %v1236 = vpack.c.bf16 %v1188, %v1187
      %v1237 = vpack.c.bf16 %v1190, %v1189
      %v1238 = vpack.c.bf16 %v1192, %v1191
      %v1239 = vpack.c.bf16 %v1194, %v1193
      %v1240 = vpack.c.bf16 %v1196, %v1195
      %v1241 = vpack.c.bf16 %v1198, %v1197
      %v1242 = vpack.c.bf16 %v1200, %v1199
      %v1243 = vpack.c.bf16 %v1202, %v1201
      %v1244 = vpack.c.bf16 %v1204, %v1203
      %v1245 = vpack.c.bf16 %v1206, %v1205
      %v1246 = vpack.c.bf16 %v1208, %v1207
      %v1247 = vpack.c.bf16 %v1210, %v1209
      %v1248 = vpack.c.bf16 %v1212, %v1211
      %v1249 = vpack.c.bf16 %v1214, %v1213
      %v1250 = vpack.c.bf16 %v1216, %v1215
      %v1251 = vpack.c.bf16 %v1218, %v1217
      %v1252 = vpack.c.bf16 %v1220, %v1219
      %v1285 = vunpack.c.l.b16 %v1221
      %v1286 = vunpack.c.h.b16 %v1221
      %v1287 = vunpack.c.l.b16 %v1222
      %v1288 = vunpack.c.h.b16 %v1222
      %v1289 = vunpack.c.l.b16 %v1223
      %v1290 = vunpack.c.h.b16 %v1223
      %v1291 = vunpack.c.l.b16 %v1224
      %v1292 = vunpack.c.h.b16 %v1224
      %v1293 = vunpack.c.l.b16 %v1225
      %v1294 = vunpack.c.h.b16 %v1225
      %v1295 = vunpack.c.l.b16 %v1226
      %v1296 = vunpack.c.h.b16 %v1226
      %v1297 = vunpack.c.l.b16 %v1227
      %v1298 = vunpack.c.h.b16 %v1227
      %v1299 = vunpack.c.l.b16 %v1228
      %v1300 = vunpack.c.h.b16 %v1228
      %v1301 = vunpack.c.l.b16 %v1229
      %v1302 = vunpack.c.h.b16 %v1229
      %v1303 = vunpack.c.l.b16 %v1230
      %v1304 = vunpack.c.h.b16 %v1230
      %v1305 = vunpack.c.l.b16 %v1231
      %v1306 = vunpack.c.h.b16 %v1231
      %v1307 = vunpack.c.l.b16 %v1232
      %v1308 = vunpack.c.h.b16 %v1232
      %v1309 = vunpack.c.l.b16 %v1233
      %v1310 = vunpack.c.h.b16 %v1233
      %v1311 = vunpack.c.l.b16 %v1234
      %v1312 = vunpack.c.h.b16 %v1234
      %v1313 = vunpack.c.l.b16 %v1235
      %v1314 = vunpack.c.h.b16 %v1235
      %v1315 = vunpack.c.l.b16 %v1236
      %v1316 = vunpack.c.h.b16 %v1236
      %v1317 = vunpack.c.l.b16 %v1237
      %v1318 = vunpack.c.h.b16 %v1237
      %v1319 = vunpack.c.l.b16 %v1238
      %v1320 = vunpack.c.h.b16 %v1238
      %v1321 = vunpack.c.l.b16 %v1239
      %v1322 = vunpack.c.h.b16 %v1239
      %v1323 = vunpack.c.l.b16 %v1240
      %v1324 = vunpack.c.h.b16 %v1240
      %v1325 = vunpack.c.l.b16 %v1241
      %v1326 = vunpack.c.h.b16 %v1241
      %v1327 = vunpack.c.l.b16 %v1242
      %v1328 = vunpack.c.h.b16 %v1242
      %v1329 = vunpack.c.l.b16 %v1243
      %v1330 = vunpack.c.h.b16 %v1243
      %v1331 = vunpack.c.l.b16 %v1244
      %v1332 = vunpack.c.h.b16 %v1244
      %v1333 = vunpack.c.l.b16 %v1245
      %v1334 = vunpack.c.h.b16 %v1245
      %v1335 = vunpack.c.l.b16 %v1246
      %v1336 = vunpack.c.h.b16 %v1246
      %v1337 = vunpack.c.l.b16 %v1247
      %v1338 = vunpack.c.h.b16 %v1247
      %v1339 = vunpack.c.l.b16 %v1248
      %v1340 = vunpack.c.h.b16 %v1248
      %v1341 = vunpack.c.l.b16 %v1249
      %v1342 = vunpack.c.h.b16 %v1249
      %v1343 = vunpack.c.l.b16 %v1250
      %v1344 = vunpack.c.h.b16 %v1250
      %v1345 = vunpack.c.l.b16 %v1251
      %v1346 = vunpack.c.h.b16 %v1251
      %v1347 = vunpack.c.l.b16 %v1252
      %v1348 = vunpack.c.h.b16 %v1252
      %v1349 = vpack.c.b16 %v1285, %v1285
      %v1350 = vpack.c.b16 %v1286, %v1286
      %v1351 = vpack.c.b16 %v1287, %v1287
      %v1352 = vpack.c.b16 %v1288, %v1288
      %v1353 = vpack.c.b16 %v1289, %v1289
      %v1354 = vpack.c.b16 %v1290, %v1290
      %v1355 = vpack.c.b16 %v1291, %v1291
      %v1356 = vpack.c.b16 %v1292, %v1292
      %v1357 = vpack.c.b16 %v1293, %v1293
      %v1358 = vpack.c.b16 %v1294, %v1294
      %v1359 = vpack.c.b16 %v1295, %v1295
      %v1360 = vpack.c.b16 %v1296, %v1296
      %v1361 = vpack.c.b16 %v1297, %v1297
      %v1362 = vpack.c.b16 %v1298, %v1298
      %v1363 = vpack.c.b16 %v1299, %v1299
      %v1364 = vpack.c.b16 %v1300, %v1300
      %v1365 = vpack.c.b16 %v1301, %v1301
      %v1366 = vpack.c.b16 %v1302, %v1302
      %v1367 = vpack.c.b16 %v1303, %v1303
      %v1368 = vpack.c.b16 %v1304, %v1304
      %v1369 = vpack.c.b16 %v1305, %v1305
      %v1370 = vpack.c.b16 %v1306, %v1306
      %v1371 = vpack.c.b16 %v1307, %v1307
      %v1372 = vpack.c.b16 %v1308, %v1308
      %v1373 = vpack.c.b16 %v1309, %v1309
      %v1374 = vpack.c.b16 %v1310, %v1310
      %v1375 = vpack.c.b16 %v1311, %v1311
      %v1376 = vpack.c.b16 %v1312, %v1312
      %v1377 = vpack.c.b16 %v1313, %v1313
      %v1378 = vpack.c.b16 %v1314, %v1314
      %v1379 = vpack.c.b16 %v1315, %v1315
      %v1380 = vpack.c.b16 %v1316, %v1316
      %v1381 = vpack.c.b16 %v1317, %v1317
      %v1382 = vpack.c.b16 %v1318, %v1318
      %v1383 = vpack.c.b16 %v1319, %v1319
      %v1384 = vpack.c.b16 %v1320, %v1320
      %v1385 = vpack.c.b16 %v1321, %v1321
      %v1386 = vpack.c.b16 %v1322, %v1322
      %v1387 = vpack.c.b16 %v1323, %v1323
      %v1388 = vpack.c.b16 %v1324, %v1324
      %v1389 = vpack.c.b16 %v1325, %v1325
      %v1390 = vpack.c.b16 %v1326, %v1326
      %v1391 = vpack.c.b16 %v1327, %v1327
      %v1392 = vpack.c.b16 %v1328, %v1328
      %v1393 = vpack.c.b16 %v1329, %v1329
      %v1394 = vpack.c.b16 %v1330, %v1330
      %v1395 = vpack.c.b16 %v1331, %v1331
      %v1396 = vpack.c.b16 %v1332, %v1332
      %v1397 = vpack.c.b16 %v1333, %v1333
      %v1398 = vpack.c.b16 %v1334, %v1334
      %v1399 = vpack.c.b16 %v1335, %v1335
      %v1400 = vpack.c.b16 %v1336, %v1336
      %v1401 = vpack.c.b16 %v1337, %v1337
      %v1402 = vpack.c.b16 %v1338, %v1338
      %v1403 = vpack.c.b16 %v1339, %v1339
      %v1404 = vpack.c.b16 %v1340, %v1340
      %v1405 = vpack.c.b16 %v1341, %v1341
      %v1406 = vpack.c.b16 %v1342, %v1342
      %v1407 = vpack.c.b16 %v1343, %v1343
      %v1408 = vpack.c.b16 %v1344, %v1344
      %v1409 = vpack.c.b16 %v1345, %v1345
      %v1410 = vpack.c.b16 %v1346, %v1346
      %v1411 = vpack.c.b16 %v1347, %v1347
      %v1412 = vpack.c.b16 %v1348, %v1348
      %vm1477 = vcmask 257024
      %1478 = vst.msk [vmem:[%s202] sm:$0xf] %vm1477, %v1349
      %1479 = vst.msk [vmem:[%s202 + $0x4] sm:$0xf] %vm1477, %v1350
      %1480 = vst.msk [vmem:[%s202 + $0x8] sm:$0xf] %vm1477, %v1351
      %1481 = vst.msk [vmem:[%s202 + $0xc] sm:$0xf] %vm1477, %v1352
      %1482 = vst.msk [vmem:[%s202 + $0x10] sm:$0xf] %vm1477, %v1353
      %1483 = vst.msk [vmem:[%s202 + $0x14] sm:$0xf] %vm1477, %v1354
      %1484 = vst.msk [vmem:[%s202 + $0x18] sm:$0xf] %vm1477, %v1355
      %1485 = vst.msk [vmem:[%s202 + $0x1c] sm:$0xf] %vm1477, %v1356
      %1486 = vst.msk [vmem:[%s202 + $0x20] sm:$0xf] %vm1477, %v1357
      %1487 = vst.msk [vmem:[%s202 + $0x24] sm:$0xf] %vm1477, %v1358
      %1488 = vst.msk [vmem:[%s202 + $0x28] sm:$0xf] %vm1477, %v1359
      %1489 = vst.msk [vmem:[%s202 + $0x2c] sm:$0xf] %vm1477, %v1360
      %1490 = vst.msk [vmem:[%s202 + $0x30] sm:$0xf] %vm1477, %v1361
      %1491 = vst.msk [vmem:[%s202 + $0x34] sm:$0xf] %vm1477, %v1362
      %1492 = vst.msk [vmem:[%s202 + $0x38] sm:$0xf] %vm1477, %v1363
      %1493 = vst.msk [vmem:[%s202 + $0x3c] sm:$0xf] %vm1477, %v1364
      %1494 = vst.msk [vmem:[%s202 + $0x40] sm:$0xf] %vm1477, %v1365
      %1495 = vst.msk [vmem:[%s202 + $0x44] sm:$0xf] %vm1477, %v1366
      %1496 = vst.msk [vmem:[%s202 + $0x48] sm:$0xf] %vm1477, %v1367
      %1497 = vst.msk [vmem:[%s202 + $0x4c] sm:$0xf] %vm1477, %v1368
      %1498 = vst.msk [vmem:[%s202 + $0x50] sm:$0xf] %vm1477, %v1369
      %1499 = vst.msk [vmem:[%s202 + $0x54] sm:$0xf] %vm1477, %v1370
      %1500 = vst.msk [vmem:[%s202 + $0x58] sm:$0xf] %vm1477, %v1371
      %1501 = vst.msk [vmem:[%s202 + $0x5c] sm:$0xf] %vm1477, %v1372
      %1502 = vst.msk [vmem:[%s202 + $0x60] sm:$0xf] %vm1477, %v1373
      %1503 = vst.msk [vmem:[%s202 + $0x64] sm:$0xf] %vm1477, %v1374
      %1504 = vst.msk [vmem:[%s202 + $0x68] sm:$0xf] %vm1477, %v1375
      %1505 = vst.msk [vmem:[%s202 + $0x6c] sm:$0xf] %vm1477, %v1376
      %1506 = vst.msk [vmem:[%s202 + $0x70] sm:$0xf] %vm1477, %v1377
      %1507 = vst.msk [vmem:[%s202 + $0x74] sm:$0xf] %vm1477, %v1378
      %1508 = vst.msk [vmem:[%s202 + $0x78] sm:$0xf] %vm1477, %v1379
      %1509 = vst.msk [vmem:[%s202 + $0x7c] sm:$0xf] %vm1477, %v1380
      %1510 = vst.msk [vmem:[%s202 + $0x80] sm:$0xf] %vm1477, %v1381
      %1511 = vst.msk [vmem:[%s202 + $0x84] sm:$0xf] %vm1477, %v1382
      %1512 = vst.msk [vmem:[%s202 + $0x88] sm:$0xf] %vm1477, %v1383
      %1513 = vst.msk [vmem:[%s202 + $0x8c] sm:$0xf] %vm1477, %v1384
      %1514 = vst.msk [vmem:[%s202 + $0x90] sm:$0xf] %vm1477, %v1385
      %1515 = vst.msk [vmem:[%s202 + $0x94] sm:$0xf] %vm1477, %v1386
      %1516 = vst.msk [vmem:[%s202 + $0x98] sm:$0xf] %vm1477, %v1387
      %1517 = vst.msk [vmem:[%s202 + $0x9c] sm:$0xf] %vm1477, %v1388
      %1518 = vst.msk [vmem:[%s202 + $0xa0] sm:$0xf] %vm1477, %v1389
      %1519 = vst.msk [vmem:[%s202 + $0xa4] sm:$0xf] %vm1477, %v1390
      %1520 = vst.msk [vmem:[%s202 + $0xa8] sm:$0xf] %vm1477, %v1391
      %1521 = vst.msk [vmem:[%s202 + $0xac] sm:$0xf] %vm1477, %v1392
      %1522 = vst.msk [vmem:[%s202 + $0xb0] sm:$0xf] %vm1477, %v1393
      %1523 = vst.msk [vmem:[%s202 + $0xb4] sm:$0xf] %vm1477, %v1394
      %1524 = vst.msk [vmem:[%s202 + $0xb8] sm:$0xf] %vm1477, %v1395
      %1525 = vst.msk [vmem:[%s202 + $0xbc] sm:$0xf] %vm1477, %v1396
      %1526 = vst.msk [vmem:[%s202 + $0xc0] sm:$0xf] %vm1477, %v1397
      %1527 = vst.msk [vmem:[%s202 + $0xc4] sm:$0xf] %vm1477, %v1398
      %1528 = vst.msk [vmem:[%s202 + $0xc8] sm:$0xf] %vm1477, %v1399
      %1529 = vst.msk [vmem:[%s202 + $0xcc] sm:$0xf] %vm1477, %v1400
      %1530 = vst.msk [vmem:[%s202 + $0xd0] sm:$0xf] %vm1477, %v1401
      %1531 = vst.msk [vmem:[%s202 + $0xd4] sm:$0xf] %vm1477, %v1402
      %1532 = vst.msk [vmem:[%s202 + $0xd8] sm:$0xf] %vm1477, %v1403
      %1533 = vst.msk [vmem:[%s202 + $0xdc] sm:$0xf] %vm1477, %v1404
      %1534 = vst.msk [vmem:[%s202 + $0xe0] sm:$0xf] %vm1477, %v1405
      %1535 = vst.msk [vmem:[%s202 + $0xe4] sm:$0xf] %vm1477, %v1406
      %1536 = vst.msk [vmem:[%s202 + $0xe8] sm:$0xf] %vm1477, %v1407
      %1537 = vst.msk [vmem:[%s202 + $0xec] sm:$0xf] %vm1477, %v1408
      %1538 = vst.msk [vmem:[%s202 + $0xf0] sm:$0xf] %vm1477, %v1409
      %1539 = vst.msk [vmem:[%s202 + $0xf4] sm:$0xf] %vm1477, %v1410
      %1540 = vst.msk [vmem:[%s202 + $0xf8] sm:$0xf] %vm1477, %v1411
      %1541 = vst.msk [vmem:[%s202 + $0xfc] sm:$0xf] %vm1477, %v1412
      %s1542 = smul.u32 64, %s15
      %p1543 = scmp.lt.s32.totalorder %s1542, 255
      %s1544 = scalar_select %p1543, %s1542, 255
      %s1545 = smul.addr %s1544, 4
      %s1546 = scalar_lea.vmem %s4, %s1545
      // Predicated region
      $region37: #{l0_wide_resnet_forward.14} parent=35 // pred_check
        %p1547 = pneg %p122
      $region38: #{l0_wide_resnet_forward.14} parent=35 // pred_check_branch
        %1549 = sbr.rel (%p1547) target = $region40
      $region39: #{l0_wide_resnet_forward.14} parent=35 // pred_region
        %s1550 = smul.u32 64, %s15
      $region40: #{l0_wide_resnet_forward.14} parent=35 // pred_fallthru
        _
    $region36: #{l0_wide_resnet_forward.14} parent=5 // pred_fallthru
      _
    %p1551 = scmp.le.s32.totalorder 2, %s10
    // Predicated region
    $region41: #{l0_wide_resnet_forward.14} parent=5 // pred_check
      %p1552 = pneg %p1551
    $region42: #{l0_wide_resnet_forward.14} parent=5 // pred_check_branch
      %1554 = sbr.rel (%p1552) target = $region44
    $region43: #{l0_wide_resnet_forward.14} parent=5 // pred_region
      %s1555 = ssub.s32 %s10, 2
      // Predicated region
      $region45: #{l0_wide_resnet_forward.14} parent=43 // pred_check
        %p1556 = pneg %p128
      $region46: #{l0_wide_resnet_forward.14} parent=43 // pred_check_branch
        %1558 = sbr.rel (%p1556) target = $region48
      $region47: #{l0_wide_resnet_forward.14} parent=43 // pred_region
        %s1559 = smul.u32 64, %s16
        %p1560 = scmp.lt.s32.totalorder %s1559, 255
        %s1561 = scalar_select %p1560, %s1559, 255
        %s1562 = smul.addr %s1561, 4
        %s1563 = scalar_lea.vmem %s4, %s1562
      $region48: #{l0_wide_resnet_forward.14} parent=43 // pred_fallthru
        _
    $region44: #{l0_wide_resnet_forward.14} parent=5 // pred_fallthru
      _
  $region6: #{l0_wide_resnet_forward.14} parent=0 // loop_footer
    %s14 = sadd.s32 1, %s10
  $region7: #{l0_wide_resnet_forward.14} parent=0 // loop_footer_branch
    %9 = sbr.rel target = $region3
  $region8: #{l0_wide_resnet_forward.14} parent=0 // loop_exit
    _

// kernel: l0_wide_resnet_forward.15
$region0: #{l0_wide_resnet_forward.15}
  #allocation0 [shape = 'u32[]', space=smem, size = 0x4, offset = 0x4, fixed_abs, tag = 'smem constant byte address 0x4 - core index']
  #allocation1 [shape = 'u32[144,128]{1,0:T(1,128)}', space=vmem, size = 0x12000, scoped, tag = 'internal scratch']
  %s0 = inlined_call_operand.vmem [shape: bf16[512,16], index: 0, kind: input, shape index: {}]
  %s1 = inlined_call_operand.vmem [shape: bf16[16,32], index: 1, kind: input, shape index: {}]
  %s2 = inlined_call_operand.vmem [shape: bf16[512,32], index: 2, kind: output, shape index: {}]
  %s3 = sld [smem:[#allocation0]]
  $region41: #{l0_wide_resnet_forward.15} parent=0
    _
  %s5 = ssub.s32 1, %s3
  %s6 = scalar_select 0, %s5, %s3
  loop: start=0, step=1, limit=4
  $region2: #{l0_wide_resnet_forward.15} parent=0 // loop_pre_header
    _
  $region3: #{l0_wide_resnet_forward.15} parent=0 // loop_header
    %s8 = sphi 0, %s12
    %p9 = scmp.ge.s32.totalorder %s8, 4
    %s18 = sphi 0, %s20
    %s21 = sphi 0, %s18
    %s22 = sphi 0, %s21
    %s38 = sphi 0, %s22
    %s42 = sphi 0, %s42
    %s44 = sphi 0, %s42
    %s45 = sphi 0, %s44
    %s59 = sphi 0, %s45
    %s65 = sphi 0, %s67
    %s68 = sphi 0, %s65
    %s69 = sphi 0, %s68
    %s85 = sphi 0, %s69
  $region4: #{l0_wide_resnet_forward.15} parent=0 // loop_header_branch
    %11 = sbr.rel (%p9) target = $region8
  $region5: #{l0_wide_resnet_forward.15} parent=0 // loop_body
    %s13 = ssub.s32 %s8, 1
    %s14 = ssub.s32 %s8, 2
    %s15 = sadd.s32 %s8, 1
    %s16 = ssub.s32 %s8, %s15
    %p17 = scmp.eq.s32.totalorder %s16, 0
    %s19 = sadd.s32 %s18, 1
    %s20 = scalar_select %p17, %s18, %s19
    %p23 = pneg %p17
    %p24 = scmp.eq.s32.totalorder %s8, 1
    %p25 = por %p23, %p24
    %p26 = scmp.ne.s32.totalorder %s18, %s21
    %p27 = scmp.eq.s32.totalorder %s8, 0
    %p28 = por %p26, %p27
    %p29 = scmp.ne.s32.totalorder %s18, %s21
    %p30 = scmp.eq.s32.totalorder %s13, 1
    %p31 = por %p29, %p30
    %p32 = scmp.ne.s32.totalorder %s21, %s22
    %p33 = scmp.eq.s32.totalorder %s13, 0
    %p34 = por %p32, %p33
    %p35 = scmp.ne.s32.totalorder %s21, %s22
    %p36 = scmp.eq.s32.totalorder %s14, 1
    %p37 = por %p35, %p36
    %p39 = scmp.ne.s32.totalorder %s22, %s38
    %p40 = scmp.eq.s32.totalorder %s14, 0
    %p41 = por %p39, %p40
    %s43 = sadd.s32 %s42, 1
    %p46 = scmp.eq.s32.totalorder %s8, 1
    %p47 = scmp.ne.s32.totalorder %s42, %s44
    %p48 = scmp.eq.s32.totalorder %s8, 0
    %p49 = por %p47, %p48
    %p50 = scmp.ne.s32.totalorder %s42, %s44
    %p51 = scmp.eq.s32.totalorder %s13, 1
    %p52 = por %p50, %p51
    %p53 = scmp.ne.s32.totalorder %s44, %s45
    %p54 = scmp.eq.s32.totalorder %s13, 0
    %p55 = por %p53, %p54
    %p56 = scmp.ne.s32.totalorder %s44, %s45
    %p57 = scmp.eq.s32.totalorder %s14, 1
    %p58 = por %p56, %p57
    %p60 = scmp.ne.s32.totalorder %s45, %s59
    %p61 = scmp.eq.s32.totalorder %s14, 0
    %p62 = por %p60, %p61
    %s63 = ssub.s32 %s8, %s15
    %p64 = scmp.eq.s32.totalorder %s63, 0
    %s66 = sadd.s32 %s65, 1
    %s67 = scalar_select %p64, %s65, %s66
    %p70 = pneg %p64
    %p71 = scmp.eq.s32.totalorder %s8, 1
    %p72 = por %p70, %p71
    %p73 = scmp.ne.s32.totalorder %s65, %s68
    %p74 = scmp.eq.s32.totalorder %s8, 0
    %p75 = por %p73, %p74
    %p76 = scmp.ne.s32.totalorder %s65, %s68
    %p77 = scmp.eq.s32.totalorder %s13, 1
    %p78 = por %p76, %p77
    %p79 = scmp.ne.s32.totalorder %s68, %s69
    %p80 = scmp.eq.s32.totalorder %s13, 0
    %p81 = por %p79, %p80
    %p82 = scmp.ne.s32.totalorder %s68, %s69
    %p83 = scmp.eq.s32.totalorder %s14, 1
    %p84 = por %p82, %p83
    %p86 = scmp.ne.s32.totalorder %s69, %s85
    %p87 = scmp.eq.s32.totalorder %s14, 0
    %p88 = por %p86, %p87
    %p89 = scmp.le.s32.totalorder 1, %s8
    %p90 = scmp.lt.s32.totalorder %s8, 3
    %p91 = pnand %p89, %p90
    %p92 = pneg %p91
    // Predicated region
    $region9: #{l0_wide_resnet_forward.15} parent=5 // pred_check
      _
    $region10: #{l0_wide_resnet_forward.15} parent=5 // pred_check_branch
      %94 = sbr.rel (%p91) target = $region12
    $region11: #{l0_wide_resnet_forward.15} parent=5 // pred_region
      %s95 = ssub.s32 %s8, 1
      // Predicated region
      $region13: #{l0_wide_resnet_forward.15} parent=11 // pred_check
        %p96 = pneg %p55
      $region14: #{l0_wide_resnet_forward.15} parent=11 // pred_check_branch
        %98 = sbr.rel (%p96) target = $region16
      $region15: #{l0_wide_resnet_forward.15} parent=11 // pred_region
        _
      $region16: #{l0_wide_resnet_forward.15} parent=11 // pred_fallthru
        _
    $region12: #{l0_wide_resnet_forward.15} parent=5 // pred_fallthru
      _
    %p99 = scmp.lt.s32.totalorder %s8, 2
    // Predicated region
    $region17: #{l0_wide_resnet_forward.15} parent=5 // pred_check
      %p100 = pneg %p99
    $region18: #{l0_wide_resnet_forward.15} parent=5 // pred_check_branch
      %102 = sbr.rel (%p100) target = $region20
    $region19: #{l0_wide_resnet_forward.15} parent=5 // pred_region
      // Predicated region
      $region21: #{l0_wide_resnet_forward.15} parent=19 // pred_check
        %p103 = pneg %p28
      $region22: #{l0_wide_resnet_forward.15} parent=19 // pred_check_branch
        %105 = sbr.rel (%p103) target = $region24
      $region23: #{l0_wide_resnet_forward.15} parent=19 // pred_region
        %s106 = smul.u32 32, %s8
        %p107 = scmp.lt.s32.totalorder %s106, 63
        %s108 = scalar_select %p107, %s106, 63
        %s109 = smul.addr %s108, 4
        %s110 = scalar_lea.vmem %s0, %s109
        %s111 = smul.u32 32, %s8
      $region24: #{l0_wide_resnet_forward.15} parent=19 // pred_fallthru
        _
    $region20: #{l0_wide_resnet_forward.15} parent=5 // pred_fallthru
      _
    %p112 = scmp.le.s32.totalorder 1, %s8
    %p113 = scmp.lt.s32.totalorder %s8, 3
    %p114 = pnand %p112, %p113
    %p115 = pneg %p114
    // Predicated region
    $region25: #{l0_wide_resnet_forward.15} parent=5 // pred_check
      _
    $region26: #{l0_wide_resnet_forward.15} parent=5 // pred_check_branch
      %117 = sbr.rel (%p114) target = $region28
    $region27: #{l0_wide_resnet_forward.15} parent=5 // pred_region
      %s118 = ssub.s32 %s8, 1
      %s119 = smul.u32 32, %s13
      %p120 = scmp.lt.s32.totalorder %s119, 63
      %s121 = scalar_select %p120, %s119, 63
      %s122 = smul.addr %s121, 4
      %s123 = scalar_lea.vmem %s0, %s122
      %p124 = pneg %p34
      %p125 = pneg %p31
      %p126 = pneg %p55
      %p127 = pneg %p52
      %p128 = pneg %p81
      %p129 = pneg %p78
      %s130 = smul.u32 32, %s13
      %p131 = scmp.lt.s32.totalorder %s130, 63
      %s132 = scalar_select %p131, %s130, 63
      %s133 = smul.addr %s132, 4
      %s134 = scalar_lea.vmem %s2, %s133
      %s135 = smul.u32 32, %s13
      %p136 = scmp.lt.s32.totalorder %s135, 63
      %s137 = scalar_select %p136, %s135, 63
      %s138 = smul.addr %s137, 4
      %s139 = scalar_lea.vmem %s0, %s138
      %s140 = smul.u32 32, %s13
      %s141 = smul.u32 32, %s13
      %p142 = scmp.lt.s32.totalorder %s141, 63
      %s143 = scalar_select %p142, %s141, 63
      %s144 = smul.addr %s143, 4
      %s145 = scalar_lea.vmem %s2, %s144
      %s146 = smul.u32 32, %s13
      %v148 = vld [vmem:[%s139] sm:$0xf]
      %v149 = vld [vmem:[%s139 + $0x4] sm:$0xf]
      %v150 = vld [vmem:[%s139 + $0x8] sm:$0xf]
      %v151 = vld [vmem:[%s139 + $0xc] sm:$0xf]
      %v152 = vld [vmem:[%s139 + $0x10] sm:$0xf]
      %v153 = vld [vmem:[%s139 + $0x14] sm:$0xf]
      %v154 = vld [vmem:[%s139 + $0x18] sm:$0xf]
      %v155 = vld [vmem:[%s139 + $0x1c] sm:$0xf]
      %v156 = vld [vmem:[%s139 + $0x20] sm:$0xf]
      %v157 = vld [vmem:[%s139 + $0x24] sm:$0xf]
      %v158 = vld [vmem:[%s139 + $0x28] sm:$0xf]
      %v159 = vld [vmem:[%s139 + $0x2c] sm:$0xf]
      %v160 = vld [vmem:[%s139 + $0x30] sm:$0xf]
      %v161 = vld [vmem:[%s139 + $0x34] sm:$0xf]
      %v162 = vld [vmem:[%s139 + $0x38] sm:$0xf]
      %v163 = vld [vmem:[%s139 + $0x3c] sm:$0xf]
      %v164 = vld [vmem:[%s139 + $0x40] sm:$0xf]
      %v165 = vld [vmem:[%s139 + $0x44] sm:$0xf]
      %v166 = vld [vmem:[%s139 + $0x48] sm:$0xf]
      %v167 = vld [vmem:[%s139 + $0x4c] sm:$0xf]
      %v168 = vld [vmem:[%s139 + $0x50] sm:$0xf]
      %v169 = vld [vmem:[%s139 + $0x54] sm:$0xf]
      %v170 = vld [vmem:[%s139 + $0x58] sm:$0xf]
      %v171 = vld [vmem:[%s139 + $0x5c] sm:$0xf]
      %v172 = vld [vmem:[%s139 + $0x60] sm:$0xf]
      %v173 = vld [vmem:[%s139 + $0x64] sm:$0xf]
      %v174 = vld [vmem:[%s139 + $0x68] sm:$0xf]
      %v175 = vld [vmem:[%s139 + $0x6c] sm:$0xf]
      %v176 = vld [vmem:[%s139 + $0x70] sm:$0xf]
      %v177 = vld [vmem:[%s139 + $0x74] sm:$0xf]
      %v178 = vld [vmem:[%s139 + $0x78] sm:$0xf]
      %v179 = vld [vmem:[%s139 + $0x7c] sm:$0xf]
      %v180 = vld [vmem:[%s1] sm:$0xf]
      %v181 = vld [vmem:[%s1 + $0x4] sm:$0xf]
      %v214 = vunpack.c.l.b16 %v148
      %v215 = vunpack.c.l.b16 %v149
      %v216 = vunpack.c.l.b16 %v150
      %v217 = vunpack.c.l.b16 %v151
      %v218 = vunpack.c.l.b16 %v152
      %v219 = vunpack.c.l.b16 %v153
      %v220 = vunpack.c.l.b16 %v154
      %v221 = vunpack.c.l.b16 %v155
      %v222 = vunpack.c.l.b16 %v156
      %v223 = vunpack.c.l.b16 %v157
      %v224 = vunpack.c.l.b16 %v158
      %v225 = vunpack.c.l.b16 %v159
      %v226 = vunpack.c.l.b16 %v160
      %v227 = vunpack.c.l.b16 %v161
      %v228 = vunpack.c.l.b16 %v162
      %v229 = vunpack.c.l.b16 %v163
      %v230 = vunpack.c.l.b16 %v164
      %v231 = vunpack.c.l.b16 %v165
      %v232 = vunpack.c.l.b16 %v166
      %v233 = vunpack.c.l.b16 %v167
      %v234 = vunpack.c.l.b16 %v168
      %v235 = vunpack.c.l.b16 %v169
      %v236 = vunpack.c.l.b16 %v170
      %v237 = vunpack.c.l.b16 %v171
      %v238 = vunpack.c.l.b16 %v172
      %v239 = vunpack.c.l.b16 %v173
      %v240 = vunpack.c.l.b16 %v174
      %v241 = vunpack.c.l.b16 %v175
      %v242 = vunpack.c.l.b16 %v176
      %v243 = vunpack.c.l.b16 %v177
      %v244 = vunpack.c.l.b16 %v178
      %v245 = vunpack.c.l.b16 %v179
      %v246 = vpack.c.b16 %v215, %v214
      %v247 = vpack.c.b16 %v217, %v216
      %v248 = vpack.c.b16 %v219, %v218
      %v249 = vpack.c.b16 %v221, %v220
      %v250 = vpack.c.b16 %v223, %v222
      %v251 = vpack.c.b16 %v225, %v224
      %v252 = vpack.c.b16 %v227, %v226
      %v253 = vpack.c.b16 %v229, %v228
      %v254 = vpack.c.b16 %v231, %v230
      %v255 = vpack.c.b16 %v233, %v232
      %v256 = vpack.c.b16 %v235, %v234
      %v257 = vpack.c.b16 %v237, %v236
      %v258 = vpack.c.b16 %v239, %v238
      %v259 = vpack.c.b16 %v241, %v240
      %v260 = vpack.c.b16 %v243, %v242
      %v261 = vpack.c.b16 %v245, %v244
      %v264 = vunpack.c.l.b16 %v180
      %v265 = vunpack.c.l.b16 %v181
      %v266 = vpack.c.b16 %v265, %v264
      %vm268 = vcmask 130048
      %v270 = vsel %vm268, %v246, 0
      %v273 = vsel %vm268, %v247, 0
      %v276 = vsel %vm268, %v248, 0
      %v279 = vsel %vm268, %v249, 0
      %v282 = vsel %vm268, %v250, 0
      %v285 = vsel %vm268, %v251, 0
      %v288 = vsel %vm268, %v252, 0
      %v291 = vsel %vm268, %v253, 0
      %v294 = vsel %vm268, %v254, 0
      %v297 = vsel %vm268, %v255, 0
      %v300 = vsel %vm268, %v256, 0
      %v303 = vsel %vm268, %v257, 0
      %v306 = vsel %vm268, %v258, 0
      %v309 = vsel %vm268, %v259, 0
      %v312 = vsel %vm268, %v260, 0
      %v315 = vsel %vm268, %v261, 0
      %317 = vmatprep.subr.bf16.mxu0 0
      %318 = vmatpush1.bf16.msra.mxu0 %v266
      %319 = vmatprep.subr.bf16.mxu0 0
      %320 = vmatpush1.bf16.msra.mxu0 0
      %321 = vmatprep.subr.bf16.mxu0 0
      %322 = vmatpush1.bf16.msra.mxu0 0
      %323 = vmatprep.subr.bf16.mxu0 0
      %324 = vmatpush1.bf16.msra.mxu0 0
      %325 = vmatprep.subr.bf16.mxu0 0
      %326 = vmatpush1.bf16.msra.mxu0 0
      %327 = vmatprep.subr.bf16.mxu0 0
      %328 = vmatpush1.bf16.msra.mxu0 0
      %329 = vmatprep.subr.bf16.mxu0 0
      %330 = vmatpush1.bf16.msra.mxu0 0
      %331 = vmatprep.subr.bf16.mxu0 0
      %332 = vmatpush1.bf16.msra.mxu0 0
      %333 = vmatprep.subr.bf16.mxu0 0
      %334 = vmatpush1.bf16.msra.mxu0 0
      %335 = vmatprep.subr.bf16.mxu0 0
      %336 = vmatpush1.bf16.msra.mxu0 0
      %337 = vmatprep.subr.bf16.mxu0 0
      %338 = vmatpush1.bf16.msra.mxu0 0
      %339 = vmatprep.subr.bf16.mxu0 0
      %340 = vmatpush1.bf16.msra.mxu0 0
      %341 = vmatprep.subr.bf16.mxu0 0
      %342 = vmatpush1.bf16.msra.mxu0 0
      %343 = vmatprep.subr.bf16.mxu0 0
      %344 = vmatpush1.bf16.msra.mxu0 0
      %345 = vmatprep.subr.bf16.mxu0 0
      %346 = vmatpush1.bf16.msra.mxu0 0
      %347 = vmatprep.subr.bf16.mxu0 0
      %348 = vmatpush1.bf16.msra.mxu0 0
      %349 = vmatprep.mubr.bf16.mxu0 0
      %350 = vmatmul.mubr.bf16.gmra.mrb[0].mxu0 %v270
      %v351 = vpop.f32.mrb[0].mxu0
      %v352 = vadd.f32 0.0, %v351
      %v353 = vpop.f32.mrb[0].mxu0
      %v354 = vpop.f32.mrb[0].mxu0
      %v355 = vadd.f32 0.0, %v354
      %v356 = vpop.f32.mrb[0].mxu0
      %357 = vmatprep.mubr.bf16.mxu0 0
      %358 = vmatmul.mubr.bf16.gmra.mrb[0].mxu0 %v273
      %v359 = vpop.f32.mrb[0].mxu0
      %v360 = vadd.f32 0.0, %v359
      %v361 = vpop.f32.mrb[0].mxu0
      %v362 = vpop.f32.mrb[0].mxu0
      %v363 = vadd.f32 0.0, %v362
      %v364 = vpop.f32.mrb[0].mxu0
      %365 = vmatprep.mubr.bf16.mxu0 0
      %366 = vmatmul.mubr.bf16.gmra.mrb[0].mxu0 %v276
      %v367 = vpop.f32.mrb[0].mxu0
      %v368 = vadd.f32 0.0, %v367
      %v369 = vpop.f32.mrb[0].mxu0
      %v370 = vpop.f32.mrb[0].mxu0
      %v371 = vadd.f32 0.0, %v370
      %v372 = vpop.f32.mrb[0].mxu0
      %373 = vmatprep.mubr.bf16.mxu0 0
      %374 = vmatmul.mubr.bf16.gmra.mrb[0].mxu0 %v279
      %v375 = vpop.f32.mrb[0].mxu0
      %v376 = vadd.f32 0.0, %v375
      %v377 = vpop.f32.mrb[0].mxu0
      %v378 = vpop.f32.mrb[0].mxu0
      %v379 = vadd.f32 0.0, %v378
      %v380 = vpop.f32.mrb[0].mxu0
      %381 = vmatprep.mubr.bf16.mxu0 0
      %382 = vmatmul.mubr.bf16.gmra.mrb[0].mxu0 %v282
      %v383 = vpop.f32.mrb[0].mxu0
      %v384 = vadd.f32 0.0, %v383
      %v385 = vpop.f32.mrb[0].mxu0
      %v386 = vpop.f32.mrb[0].mxu0
      %v387 = vadd.f32 0.0, %v386
      %v388 = vpop.f32.mrb[0].mxu0
      %389 = vmatprep.mubr.bf16.mxu0 0
      %390 = vmatmul.mubr.bf16.gmra.mrb[0].mxu0 %v285
      %v391 = vpop.f32.mrb[0].mxu0
      %v392 = vadd.f32 0.0, %v391
      %v393 = vpop.f32.mrb[0].mxu0
      %v394 = vpop.f32.mrb[0].mxu0
      %v395 = vadd.f32 0.0, %v394
      %v396 = vpop.f32.mrb[0].mxu0
      %397 = vmatprep.mubr.bf16.mxu0 0
      %398 = vmatmul.mubr.bf16.gmra.mrb[0].mxu0 %v288
      %v399 = vpop.f32.mrb[0].mxu0
      %v400 = vadd.f32 0.0, %v399
      %v401 = vpop.f32.mrb[0].mxu0
      %v402 = vpop.f32.mrb[0].mxu0
      %v403 = vadd.f32 0.0, %v402
      %v404 = vpop.f32.mrb[0].mxu0
      %405 = vmatprep.mubr.bf16.mxu0 0
      %406 = vmatmul.mubr.bf16.gmra.mrb[0].mxu0 %v291
      %v407 = vpop.f32.mrb[0].mxu0
      %v408 = vadd.f32 0.0, %v407
      %v409 = vpop.f32.mrb[0].mxu0
      %v410 = vpop.f32.mrb[0].mxu0
      %v411 = vadd.f32 0.0, %v410
      %v412 = vpop.f32.mrb[0].mxu0
      %413 = vmatprep.mubr.bf16.mxu0 0
      %414 = vmatmul.mubr.bf16.gmra.mrb[0].mxu0 %v294
      %v415 = vpop.f32.mrb[0].mxu0
      %v416 = vadd.f32 0.0, %v415
      %v417 = vpop.f32.mrb[0].mxu0
      %v418 = vpop.f32.mrb[0].mxu0
      %v419 = vadd.f32 0.0, %v418
      %v420 = vpop.f32.mrb[0].mxu0
      %421 = vmatprep.mubr.bf16.mxu0 0
      %422 = vmatmul.mubr.bf16.gmra.mrb[0].mxu0 %v297
      %v423 = vpop.f32.mrb[0].mxu0
      %v424 = vadd.f32 0.0, %v423
      %v425 = vpop.f32.mrb[0].mxu0
      %v426 = vpop.f32.mrb[0].mxu0
      %v427 = vadd.f32 0.0, %v426
      %v428 = vpop.f32.mrb[0].mxu0
      %429 = vmatprep.mubr.bf16.mxu0 0
      %430 = vmatmul.mubr.bf16.gmra.mrb[0].mxu0 %v300
      %v431 = vpop.f32.mrb[0].mxu0
      %v432 = vadd.f32 0.0, %v431
      %v433 = vpop.f32.mrb[0].mxu0
      %v434 = vpop.f32.mrb[0].mxu0
      %v435 = vadd.f32 0.0, %v434
      %v436 = vpop.f32.mrb[0].mxu0
      %437 = vmatprep.mubr.bf16.mxu0 0
      %438 = vmatmul.mubr.bf16.gmra.mrb[0].mxu0 %v303
      %v439 = vpop.f32.mrb[0].mxu0
      %v440 = vadd.f32 0.0, %v439
      %v441 = vpop.f32.mrb[0].mxu0
      %v442 = vpop.f32.mrb[0].mxu0
      %v443 = vadd.f32 0.0, %v442
      %v444 = vpop.f32.mrb[0].mxu0
      %445 = vmatprep.mubr.bf16.mxu0 0
      %446 = vmatmul.mubr.bf16.gmra.mrb[0].mxu0 %v306
      %v447 = vpop.f32.mrb[0].mxu0
      %v448 = vadd.f32 0.0, %v447
      %v449 = vpop.f32.mrb[0].mxu0
      %v450 = vpop.f32.mrb[0].mxu0
      %v451 = vadd.f32 0.0, %v450
      %v452 = vpop.f32.mrb[0].mxu0
      %453 = vmatprep.mubr.bf16.mxu0 0
      %454 = vmatmul.mubr.bf16.gmra.mrb[0].mxu0 %v309
      %v455 = vpop.f32.mrb[0].mxu0
      %v456 = vadd.f32 0.0, %v455
      %v457 = vpop.f32.mrb[0].mxu0
      %v458 = vpop.f32.mrb[0].mxu0
      %v459 = vadd.f32 0.0, %v458
      %v460 = vpop.f32.mrb[0].mxu0
      %461 = vmatprep.mubr.bf16.mxu0 0
      %462 = vmatmul.mubr.bf16.gmra.mrb[0].mxu0 %v312
      %v463 = vpop.f32.mrb[0].mxu0
      %v464 = vadd.f32 0.0, %v463
      %v465 = vpop.f32.mrb[0].mxu0
      %v466 = vpop.f32.mrb[0].mxu0
      %v467 = vadd.f32 0.0, %v466
      %v468 = vpop.f32.mrb[0].mxu0
      %469 = vmatprep.mubr.bf16.mxu0 0
      %470 = vmatmul.mubr.bf16.gmra.mrb[0].mxu0 %v315
      %v471 = vpop.f32.mrb[0].mxu0
      %v472 = vadd.f32 0.0, %v471
      %v473 = vpop.f32.mrb[0].mxu0
      %v474 = vpop.f32.mrb[0].mxu0
      %v475 = vadd.f32 0.0, %v474
      %v476 = vpop.f32.mrb[0].mxu0
      %477 = vdwg.mxu0
      %v478 = vpack.c.bf16 %v355, %v352
      %v479 = vpack.c.bf16 %v363, %v360
      %v480 = vpack.c.bf16 %v371, %v368
      %v481 = vpack.c.bf16 %v379, %v376
      %v482 = vpack.c.bf16 %v387, %v384
      %v483 = vpack.c.bf16 %v395, %v392
      %v484 = vpack.c.bf16 %v403, %v400
      %v485 = vpack.c.bf16 %v411, %v408
      %v486 = vpack.c.bf16 %v419, %v416
      %v487 = vpack.c.bf16 %v427, %v424
      %v488 = vpack.c.bf16 %v435, %v432
      %v489 = vpack.c.bf16 %v443, %v440
      %v490 = vpack.c.bf16 %v451, %v448
      %v491 = vpack.c.bf16 %v459, %v456
      %v492 = vpack.c.bf16 %v467, %v464
      %v493 = vpack.c.bf16 %v475, %v472
      %v510 = vunpack.c.l.b16 %v478
      %v511 = vunpack.c.h.b16 %v478
      %v512 = vunpack.c.l.b16 %v479
      %v513 = vunpack.c.h.b16 %v479
      %v514 = vunpack.c.l.b16 %v480
      %v515 = vunpack.c.h.b16 %v480
      %v516 = vunpack.c.l.b16 %v481
      %v517 = vunpack.c.h.b16 %v481
      %v518 = vunpack.c.l.b16 %v482
      %v519 = vunpack.c.h.b16 %v482
      %v520 = vunpack.c.l.b16 %v483
      %v521 = vunpack.c.h.b16 %v483
      %v522 = vunpack.c.l.b16 %v484
      %v523 = vunpack.c.h.b16 %v484
      %v524 = vunpack.c.l.b16 %v485
      %v525 = vunpack.c.h.b16 %v485
      %v526 = vunpack.c.l.b16 %v486
      %v527 = vunpack.c.h.b16 %v486
      %v528 = vunpack.c.l.b16 %v487
      %v529 = vunpack.c.h.b16 %v487
      %v530 = vunpack.c.l.b16 %v488
      %v531 = vunpack.c.h.b16 %v488
      %v532 = vunpack.c.l.b16 %v489
      %v533 = vunpack.c.h.b16 %v489
      %v534 = vunpack.c.l.b16 %v490
      %v535 = vunpack.c.h.b16 %v490
      %v536 = vunpack.c.l.b16 %v491
      %v537 = vunpack.c.h.b16 %v491
      %v538 = vunpack.c.l.b16 %v492
      %v539 = vunpack.c.h.b16 %v492
      %v540 = vunpack.c.l.b16 %v493
      %v541 = vunpack.c.h.b16 %v493
      %v542 = vpack.c.b16 %v510, %v510
      %v543 = vpack.c.b16 %v511, %v511
      %v544 = vpack.c.b16 %v512, %v512
      %v545 = vpack.c.b16 %v513, %v513
      %v546 = vpack.c.b16 %v514, %v514
      %v547 = vpack.c.b16 %v515, %v515
      %v548 = vpack.c.b16 %v516, %v516
      %v549 = vpack.c.b16 %v517, %v517
      %v550 = vpack.c.b16 %v518, %v518
      %v551 = vpack.c.b16 %v519, %v519
      %v552 = vpack.c.b16 %v520, %v520
      %v553 = vpack.c.b16 %v521, %v521
      %v554 = vpack.c.b16 %v522, %v522
      %v555 = vpack.c.b16 %v523, %v523
      %v556 = vpack.c.b16 %v524, %v524
      %v557 = vpack.c.b16 %v525, %v525
      %v558 = vpack.c.b16 %v526, %v526
      %v559 = vpack.c.b16 %v527, %v527
      %v560 = vpack.c.b16 %v528, %v528
      %v561 = vpack.c.b16 %v529, %v529
      %v562 = vpack.c.b16 %v530, %v530
      %v563 = vpack.c.b16 %v531, %v531
      %v564 = vpack.c.b16 %v532, %v532
      %v565 = vpack.c.b16 %v533, %v533
      %v566 = vpack.c.b16 %v534, %v534
      %v567 = vpack.c.b16 %v535, %v535
      %v568 = vpack.c.b16 %v536, %v536
      %v569 = vpack.c.b16 %v537, %v537
      %v570 = vpack.c.b16 %v538, %v538
      %v571 = vpack.c.b16 %v539, %v539
      %v572 = vpack.c.b16 %v540, %v540
      %v573 = vpack.c.b16 %v541, %v541
      %vm606 = vcmask 257024
      %607 = vst.msk [vmem:[%s145] sm:$0xf] %vm606, %v542
      %608 = vst.msk [vmem:[%s145 + $0x4] sm:$0xf] %vm606, %v543
      %609 = vst.msk [vmem:[%s145 + $0x8] sm:$0xf] %vm606, %v544
      %610 = vst.msk [vmem:[%s145 + $0xc] sm:$0xf] %vm606, %v545
      %611 = vst.msk [vmem:[%s145 + $0x10] sm:$0xf] %vm606, %v546
      %612 = vst.msk [vmem:[%s145 + $0x14] sm:$0xf] %vm606, %v547
      %613 = vst.msk [vmem:[%s145 + $0x18] sm:$0xf] %vm606, %v548
      %614 = vst.msk [vmem:[%s145 + $0x1c] sm:$0xf] %vm606, %v549
      %615 = vst.msk [vmem:[%s145 + $0x20] sm:$0xf] %vm606, %v550
      %616 = vst.msk [vmem:[%s145 + $0x24] sm:$0xf] %vm606, %v551
      %617 = vst.msk [vmem:[%s145 + $0x28] sm:$0xf] %vm606, %v552
      %618 = vst.msk [vmem:[%s145 + $0x2c] sm:$0xf] %vm606, %v553
      %619 = vst.msk [vmem:[%s145 + $0x30] sm:$0xf] %vm606, %v554
      %620 = vst.msk [vmem:[%s145 + $0x34] sm:$0xf] %vm606, %v555
      %621 = vst.msk [vmem:[%s145 + $0x38] sm:$0xf] %vm606, %v556
      %622 = vst.msk [vmem:[%s145 + $0x3c] sm:$0xf] %vm606, %v557
      %623 = vst.msk [vmem:[%s145 + $0x40] sm:$0xf] %vm606, %v558
      %624 = vst.msk [vmem:[%s145 + $0x44] sm:$0xf] %vm606, %v559
      %625 = vst.msk [vmem:[%s145 + $0x48] sm:$0xf] %vm606, %v560
      %626 = vst.msk [vmem:[%s145 + $0x4c] sm:$0xf] %vm606, %v561
      %627 = vst.msk [vmem:[%s145 + $0x50] sm:$0xf] %vm606, %v562
      %628 = vst.msk [vmem:[%s145 + $0x54] sm:$0xf] %vm606, %v563
      %629 = vst.msk [vmem:[%s145 + $0x58] sm:$0xf] %vm606, %v564
      %630 = vst.msk [vmem:[%s145 + $0x5c] sm:$0xf] %vm606, %v565
      %631 = vst.msk [vmem:[%s145 + $0x60] sm:$0xf] %vm606, %v566
      %632 = vst.msk [vmem:[%s145 + $0x64] sm:$0xf] %vm606, %v567
      %633 = vst.msk [vmem:[%s145 + $0x68] sm:$0xf] %vm606, %v568
      %634 = vst.msk [vmem:[%s145 + $0x6c] sm:$0xf] %vm606, %v569
      %635 = vst.msk [vmem:[%s145 + $0x70] sm:$0xf] %vm606, %v570
      %636 = vst.msk [vmem:[%s145 + $0x74] sm:$0xf] %vm606, %v571
      %637 = vst.msk [vmem:[%s145 + $0x78] sm:$0xf] %vm606, %v572
      %638 = vst.msk [vmem:[%s145 + $0x7c] sm:$0xf] %vm606, %v573
      %s639 = smul.u32 32, %s13
      %p640 = scmp.lt.s32.totalorder %s639, 63
      %s641 = scalar_select %p640, %s639, 63
      %s642 = smul.addr %s641, 4
      %s643 = scalar_lea.vmem %s2, %s642
      // Predicated region
      $region29: #{l0_wide_resnet_forward.15} parent=27 // pred_check
        %p644 = pneg %p78
      $region30: #{l0_wide_resnet_forward.15} parent=27 // pred_check_branch
        %646 = sbr.rel (%p644) target = $region32
      $region31: #{l0_wide_resnet_forward.15} parent=27 // pred_region
        %s647 = smul.u32 32, %s13
      $region32: #{l0_wide_resnet_forward.15} parent=27 // pred_fallthru
        _
    $region28: #{l0_wide_resnet_forward.15} parent=5 // pred_fallthru
      _
    %p648 = scmp.le.s32.totalorder 2, %s8
    // Predicated region
    $region33: #{l0_wide_resnet_forward.15} parent=5 // pred_check
      %p649 = pneg %p648
    $region34: #{l0_wide_resnet_forward.15} parent=5 // pred_check_branch
      %651 = sbr.rel (%p649) target = $region36
    $region35: #{l0_wide_resnet_forward.15} parent=5 // pred_region
      %s652 = ssub.s32 %s8, 2
      // Predicated region
      $region37: #{l0_wide_resnet_forward.15} parent=35 // pred_check
        %p653 = pneg %p84
      $region38: #{l0_wide_resnet_forward.15} parent=35 // pred_check_branch
        %655 = sbr.rel (%p653) target = $region40
      $region39: #{l0_wide_resnet_forward.15} parent=35 // pred_region
        %s656 = smul.u32 32, %s14
        %p657 = scmp.lt.s32.totalorder %s656, 63
        %s658 = scalar_select %p657, %s656, 63
        %s659 = smul.addr %s658, 4
        %s660 = scalar_lea.vmem %s2, %s659
      $region40: #{l0_wide_resnet_forward.15} parent=35 // pred_fallthru
        _
    $region36: #{l0_wide_resnet_forward.15} parent=5 // pred_fallthru
      _
  $region6: #{l0_wide_resnet_forward.15} parent=0 // loop_footer
    %s12 = sadd.s32 1, %s8
  $region7: #{l0_wide_resnet_forward.15} parent=0 // loop_footer_branch
    %7 = sbr.rel target = $region3
  $region8: #{l0_wide_resnet_forward.15} parent=0 // loop_exit
    _

// kernel: l0_wide_resnet_forward.16
$region0: #{l0_wide_resnet_forward.16}
  #allocation0 [shape = 'u32[]', space=smem, size = 0x4, offset = 0x4, fixed_abs, tag = 'smem constant byte address 0x4 - core index']
  #allocation1 [shape = 'u32[144,128]{1,0:T(1,128)}', space=vmem, size = 0x12000, scoped, tag = 'internal scratch']
  %s0 = inlined_call_operand.vmem [shape: bf16[512,288], index: 0, kind: input, shape index: {}]
  %s1 = inlined_call_operand.vmem [shape: bf16[288,32], index: 1, kind: input, shape index: {}]
  %s2 = inlined_call_operand.vmem [shape: f32[1,32], index: 2, kind: input, shape index: {}]
  %s3 = inlined_call_operand.vmem [shape: f32[1,32], index: 3, kind: input, shape index: {}]
  %s4 = inlined_call_operand.vmem [shape: bf16[512,32], index: 4, kind: input, shape index: {}]
  %s5 = inlined_call_operand.vmem [shape: bf16[512,32], index: 5, kind: output, shape index: {}]
  %s6 = sld [smem:[#allocation0]]
  $region53: #{l0_wide_resnet_forward.16} parent=0
    _
  %s8 = ssub.s32 1, %s6
  %s9 = scalar_select 0, %s8, %s6
  loop: start=0, step=1, limit=4
  $region2: #{l0_wide_resnet_forward.16} parent=0 // loop_pre_header
    _
  $region3: #{l0_wide_resnet_forward.16} parent=0 // loop_header
    %s11 = sphi 0, %s15
    %p12 = scmp.ge.s32.totalorder %s11, 4
    %s21 = sphi 0, %s23
    %s24 = sphi 0, %s21
    %s25 = sphi 0, %s24
    %s41 = sphi 0, %s25
    %s45 = sphi 0, %s45
    %s47 = sphi 0, %s45
    %s48 = sphi 0, %s47
    %s62 = sphi 0, %s48
    %s66 = sphi 0, %s66
    %s68 = sphi 0, %s66
    %s69 = sphi 0, %s68
    %s83 = sphi 0, %s69
    %s87 = sphi 0, %s87
    %s89 = sphi 0, %s87
    %s90 = sphi 0, %s89
    %s104 = sphi 0, %s90
    %s110 = sphi 0, %s112
    %s113 = sphi 0, %s110
    %s114 = sphi 0, %s113
    %s130 = sphi 0, %s114
    %s136 = sphi 0, %s138
    %s139 = sphi 0, %s136
    %s140 = sphi 0, %s139
    %s156 = sphi 0, %s140
  $region4: #{l0_wide_resnet_forward.16} parent=0 // loop_header_branch
    %14 = sbr.rel (%p12) target = $region8
  $region5: #{l0_wide_resnet_forward.16} parent=0 // loop_body
    %s16 = ssub.s32 %s11, 1
    %s17 = ssub.s32 %s11, 2
    %s18 = sadd.s32 %s11, 1
    %s19 = ssub.s32 %s11, %s18
    %p20 = scmp.eq.s32.totalorder %s19, 0
    %s22 = sadd.s32 %s21, 1
    %s23 = scalar_select %p20, %s21, %s22
    %p26 = pneg %p20
    %p27 = scmp.eq.s32.totalorder %s11, 1
    %p28 = por %p26, %p27
    %p29 = scmp.ne.s32.totalorder %s21, %s24
    %p30 = scmp.eq.s32.totalorder %s11, 0
    %p31 = por %p29, %p30
    %p32 = scmp.ne.s32.totalorder %s21, %s24
    %p33 = scmp.eq.s32.totalorder %s16, 1
    %p34 = por %p32, %p33
    %p35 = scmp.ne.s32.totalorder %s24, %s25
    %p36 = scmp.eq.s32.totalorder %s16, 0
    %p37 = por %p35, %p36
    %p38 = scmp.ne.s32.totalorder %s24, %s25
    %p39 = scmp.eq.s32.totalorder %s17, 1
    %p40 = por %p38, %p39
    %p42 = scmp.ne.s32.totalorder %s25, %s41
    %p43 = scmp.eq.s32.totalorder %s17, 0
    %p44 = por %p42, %p43
    %s46 = sadd.s32 %s45, 1
    %p49 = scmp.eq.s32.totalorder %s11, 1
    %p50 = scmp.ne.s32.totalorder %s45, %s47
    %p51 = scmp.eq.s32.totalorder %s11, 0
    %p52 = por %p50, %p51
    %p53 = scmp.ne.s32.totalorder %s45, %s47
    %p54 = scmp.eq.s32.totalorder %s16, 1
    %p55 = por %p53, %p54
    %p56 = scmp.ne.s32.totalorder %s47, %s48
    %p57 = scmp.eq.s32.totalorder %s16, 0
    %p58 = por %p56, %p57
    %p59 = scmp.ne.s32.totalorder %s47, %s48
    %p60 = scmp.eq.s32.totalorder %s17, 1
    %p61 = por %p59, %p60
    %p63 = scmp.ne.s32.totalorder %s48, %s62
    %p64 = scmp.eq.s32.totalorder %s17, 0
    %p65 = por %p63, %p64
    %s67 = sadd.s32 %s66, 1
    %p70 = scmp.eq.s32.totalorder %s11, 1
    %p71 = scmp.ne.s32.totalorder %s66, %s68
    %p72 = scmp.eq.s32.totalorder %s11, 0
    %p73 = por %p71, %p72
    %p74 = scmp.ne.s32.totalorder %s66, %s68
    %p75 = scmp.eq.s32.totalorder %s16, 1
    %p76 = por %p74, %p75
    %p77 = scmp.ne.s32.totalorder %s68, %s69
    %p78 = scmp.eq.s32.totalorder %s16, 0
    %p79 = por %p77, %p78
    %p80 = scmp.ne.s32.totalorder %s68, %s69
    %p81 = scmp.eq.s32.totalorder %s17, 1
    %p82 = por %p80, %p81
    %p84 = scmp.ne.s32.totalorder %s69, %s83
    %p85 = scmp.eq.s32.totalorder %s17, 0
    %p86 = por %p84, %p85
    %s88 = sadd.s32 %s87, 1
    %p91 = scmp.eq.s32.totalorder %s11, 1
    %p92 = scmp.ne.s32.totalorder %s87, %s89
    %p93 = scmp.eq.s32.totalorder %s11, 0
    %p94 = por %p92, %p93
    %p95 = scmp.ne.s32.totalorder %s87, %s89
    %p96 = scmp.eq.s32.totalorder %s16, 1
    %p97 = por %p95, %p96
    %p98 = scmp.ne.s32.totalorder %s89, %s90
    %p99 = scmp.eq.s32.totalorder %s16, 0
    %p100 = por %p98, %p99
    %p101 = scmp.ne.s32.totalorder %s89, %s90
    %p102 = scmp.eq.s32.totalorder %s17, 1
    %p103 = por %p101, %p102
    %p105 = scmp.ne.s32.totalorder %s90, %s104
    %p106 = scmp.eq.s32.totalorder %s17, 0
    %p107 = por %p105, %p106
    %s108 = ssub.s32 %s11, %s18
    %p109 = scmp.eq.s32.totalorder %s108, 0
    %s111 = sadd.s32 %s110, 1
    %s112 = scalar_select %p109, %s110, %s111
    %p115 = pneg %p109
    %p116 = scmp.eq.s32.totalorder %s11, 1
    %p117 = por %p115, %p116
    %p118 = scmp.ne.s32.totalorder %s110, %s113
    %p119 = scmp.eq.s32.totalorder %s11, 0
    %p120 = por %p118, %p119
    %p121 = scmp.ne.s32.totalorder %s110, %s113
    %p122 = scmp.eq.s32.totalorder %s16, 1
    %p123 = por %p121, %p122
    %p124 = scmp.ne.s32.totalorder %s113, %s114
    %p125 = scmp.eq.s32.totalorder %s16, 0
    %p126 = por %p124, %p125
    %p127 = scmp.ne.s32.totalorder %s113, %s114
    %p128 = scmp.eq.s32.totalorder %s17, 1
    %p129 = por %p127, %p128
    %p131 = scmp.ne.s32.totalorder %s114, %s130
    %p132 = scmp.eq.s32.totalorder %s17, 0
    %p133 = por %p131, %p132
    %s134 = ssub.s32 %s11, %s18
    %p135 = scmp.eq.s32.totalorder %s134, 0
    %s137 = sadd.s32 %s136, 1
    %s138 = scalar_select %p135, %s136, %s137
    %p141 = pneg %p135
    %p142 = scmp.eq.s32.totalorder %s11, 1
    %p143 = por %p141, %p142
    %p144 = scmp.ne.s32.totalorder %s136, %s139
    %p145 = scmp.eq.s32.totalorder %s11, 0
    %p146 = por %p144, %p145
    %p147 = scmp.ne.s32.totalorder %s136, %s139
    %p148 = scmp.eq.s32.totalorder %s16, 1
    %p149 = por %p147, %p148
    %p150 = scmp.ne.s32.totalorder %s139, %s140
    %p151 = scmp.eq.s32.totalorder %s16, 0
    %p152 = por %p150, %p151
    %p153 = scmp.ne.s32.totalorder %s139, %s140
    %p154 = scmp.eq.s32.totalorder %s17, 1
    %p155 = por %p153, %p154
    %p157 = scmp.ne.s32.totalorder %s140, %s156
    %p158 = scmp.eq.s32.totalorder %s17, 0
    %p159 = por %p157, %p158
    %p160 = scmp.le.s32.totalorder 1, %s11
    %p161 = scmp.lt.s32.totalorder %s11, 3
    %p162 = pnand %p160, %p161
    %p163 = pneg %p162
    // Predicated region
    $region9: #{l0_wide_resnet_forward.16} parent=5 // pred_check
      _
    $region10: #{l0_wide_resnet_forward.16} parent=5 // pred_check_branch
      %165 = sbr.rel (%p162) target = $region12
    $region11: #{l0_wide_resnet_forward.16} parent=5 // pred_region
      %s166 = ssub.s32 %s11, 1
      // Predicated region
      $region13: #{l0_wide_resnet_forward.16} parent=11 // pred_check
        %p167 = pneg %p58
      $region14: #{l0_wide_resnet_forward.16} parent=11 // pred_check_branch
        %169 = sbr.rel (%p167) target = $region16
      $region15: #{l0_wide_resnet_forward.16} parent=11 // pred_region
        _
      $region16: #{l0_wide_resnet_forward.16} parent=11 // pred_fallthru
        _
      // Predicated region
      $region17: #{l0_wide_resnet_forward.16} parent=11 // pred_check
        %p170 = pneg %p79
      $region18: #{l0_wide_resnet_forward.16} parent=11 // pred_check_branch
        %172 = sbr.rel (%p170) target = $region20
      $region19: #{l0_wide_resnet_forward.16} parent=11 // pred_region
        _
      $region20: #{l0_wide_resnet_forward.16} parent=11 // pred_fallthru
        _
      // Predicated region
      $region21: #{l0_wide_resnet_forward.16} parent=11 // pred_check
        %p173 = pneg %p100
      $region22: #{l0_wide_resnet_forward.16} parent=11 // pred_check_branch
        %175 = sbr.rel (%p173) target = $region24
      $region23: #{l0_wide_resnet_forward.16} parent=11 // pred_region
        _
      $region24: #{l0_wide_resnet_forward.16} parent=11 // pred_fallthru
        _
    $region12: #{l0_wide_resnet_forward.16} parent=5 // pred_fallthru
      _
    %p176 = scmp.lt.s32.totalorder %s11, 2
    // Predicated region
    $region25: #{l0_wide_resnet_forward.16} parent=5 // pred_check
      %p177 = pneg %p176
    $region26: #{l0_wide_resnet_forward.16} parent=5 // pred_check_branch
      %179 = sbr.rel (%p177) target = $region28
    $region27: #{l0_wide_resnet_forward.16} parent=5 // pred_region
      // Predicated region
      $region29: #{l0_wide_resnet_forward.16} parent=27 // pred_check
        %p180 = pneg %p31
      $region30: #{l0_wide_resnet_forward.16} parent=27 // pred_check_branch
        %182 = sbr.rel (%p180) target = $region32
      $region31: #{l0_wide_resnet_forward.16} parent=27 // pred_region
        %s183 = smul.u32 32, %s11
        %p184 = scmp.lt.s32.totalorder %s183, 63
        %s185 = scalar_select %p184, %s183, 63
        %s186 = smul.addr %s185, 3
        %s187 = smul.addr %s186, 4
        %s188 = scalar_lea.vmem %s0, %s187
        %s189 = smul.u32 32, %s11
      $region32: #{l0_wide_resnet_forward.16} parent=27 // pred_fallthru
        _
      // Predicated region
      $region33: #{l0_wide_resnet_forward.16} parent=27 // pred_check
        %p190 = pneg %p120
      $region34: #{l0_wide_resnet_forward.16} parent=27 // pred_check_branch
        %192 = sbr.rel (%p190) target = $region36
      $region35: #{l0_wide_resnet_forward.16} parent=27 // pred_region
        %s193 = smul.u32 32, %s11
        %p194 = scmp.lt.s32.totalorder %s193, 63
        %s195 = scalar_select %p194, %s193, 63
        %s196 = smul.addr %s195, 4
        %s197 = scalar_lea.vmem %s4, %s196
        %s198 = smul.u32 32, %s11
      $region36: #{l0_wide_resnet_forward.16} parent=27 // pred_fallthru
        _
    $region28: #{l0_wide_resnet_forward.16} parent=5 // pred_fallthru
      _
    %p199 = scmp.le.s32.totalorder 1, %s11
    %p200 = scmp.lt.s32.totalorder %s11, 3
    %p201 = pnand %p199, %p200
    %p202 = pneg %p201
    // Predicated region
    $region37: #{l0_wide_resnet_forward.16} parent=5 // pred_check
      _
    $region38: #{l0_wide_resnet_forward.16} parent=5 // pred_check_branch
      %204 = sbr.rel (%p201) target = $region40
    $region39: #{l0_wide_resnet_forward.16} parent=5 // pred_region
      %s205 = ssub.s32 %s11, 1
      %s206 = smul.u32 32, %s16
      %p207 = scmp.lt.s32.totalorder %s206, 63
      %s208 = scalar_select %p207, %s206, 63
      %s209 = smul.addr %s208, 3
      %s210 = smul.addr %s209, 4
      %s211 = scalar_lea.vmem %s0, %s210
      %p212 = pneg %p37
      %p213 = pneg %p34
      %p214 = pneg %p58
      %p215 = pneg %p55
      %p216 = pneg %p79
      %p217 = pneg %p76
      %p218 = pneg %p100
      %p219 = pneg %p97
      %s220 = smul.u32 32, %s16
      %p221 = scmp.lt.s32.totalorder %s220, 63
      %s222 = scalar_select %p221, %s220, 63
      %s223 = smul.addr %s222, 4
      %s224 = scalar_lea.vmem %s4, %s223
      %p225 = pneg %p126
      %p226 = pneg %p123
      %p227 = pneg %p152
      %p228 = pneg %p149
      %s229 = smul.u32 32, %s16
      %p230 = scmp.lt.s32.totalorder %s229, 63
      %s231 = scalar_select %p230, %s229, 63
      %s232 = smul.addr %s231, 4
      %s233 = scalar_lea.vmem %s5, %s232
      %s234 = smul.u32 32, %s16
      %p235 = scmp.lt.s32.totalorder %s234, 63
      %s236 = scalar_select %p235, %s234, 63
      %s237 = smul.addr %s236, 3
      %s238 = smul.addr %s237, 4
      %s239 = scalar_lea.vmem %s0, %s238
      %s240 = smul.u32 32, %s16
      %s241 = smul.u32 32, %s16
      %p242 = scmp.lt.s32.totalorder %s241, 63
      %s243 = scalar_select %p242, %s241, 63
      %s244 = smul.addr %s243, 4
      %s245 = scalar_lea.vmem %s4, %s244
      %s246 = smul.u32 32, %s16
      %s247 = smul.u32 32, %s16
      %p248 = scmp.lt.s32.totalorder %s247, 63
      %s249 = scalar_select %p248, %s247, 63
      %s250 = smul.addr %s249, 4
      %s251 = scalar_lea.vmem %s5, %s250
      %s252 = smul.u32 32, %s16
      %v254 = vld [vmem:[%s239] sm:$0xff]
      %v255 = vld [vmem:[%s239 + $0x8] sm:$0xf]
      %v256 = vld [vmem:[%s239 + $0xc] sm:$0xff]
      %v257 = vld [vmem:[%s239 + $0x14] sm:$0xf]
      %v258 = vld [vmem:[%s239 + $0x18] sm:$0xff]
      %v259 = vld [vmem:[%s239 + $0x20] sm:$0xf]
      %v260 = vld [vmem:[%s239 + $0x24] sm:$0xff]
      %v261 = vld [vmem:[%s239 + $0x2c] sm:$0xf]
      %v262 = vld [vmem:[%s239 + $0x30] sm:$0xff]
      %v263 = vld [vmem:[%s239 + $0x38] sm:$0xf]
      %v264 = vld [vmem:[%s239 + $0x3c] sm:$0xff]
      %v265 = vld [vmem:[%s239 + $0x44] sm:$0xf]
      %v266 = vld [vmem:[%s239 + $0x48] sm:$0xff]
      %v267 = vld [vmem:[%s239 + $0x50] sm:$0xf]
      %v268 = vld [vmem:[%s239 + $0x54] sm:$0xff]
      %v269 = vld [vmem:[%s239 + $0x5c] sm:$0xf]
      %v270 = vld [vmem:[%s239 + $0x60] sm:$0xff]
      %v271 = vld [vmem:[%s239 + $0x68] sm:$0xf]
      %v272 = vld [vmem:[%s239 + $0x6c] sm:$0xff]
      %v273 = vld [vmem:[%s239 + $0x74] sm:$0xf]
      %v274 = vld [vmem:[%s239 + $0x78] sm:$0xff]
      %v275 = vld [vmem:[%s239 + $0x80] sm:$0xf]
      %v276 = vld [vmem:[%s239 + $0x84] sm:$0xff]
      %v277 = vld [vmem:[%s239 + $0x8c] sm:$0xf]
      %v278 = vld [vmem:[%s239 + $0x90] sm:$0xff]
      %v279 = vld [vmem:[%s239 + $0x98] sm:$0xf]
      %v280 = vld [vmem:[%s239 + $0x9c] sm:$0xff]
      %v281 = vld [vmem:[%s239 + $0xa4] sm:$0xf]
      %v282 = vld [vmem:[%s239 + $0xa8] sm:$0xff]
      %v283 = vld [vmem:[%s239 + $0xb0] sm:$0xf]
      %v284 = vld [vmem:[%s239 + $0xb4] sm:$0xff]
      %v285 = vld [vmem:[%s239 + $0xbc] sm:$0xf]
      %v286 = vld [vmem:[%s239 + $0xc0] sm:$0xff]
      %v287 = vld [vmem:[%s239 + $0xc8] sm:$0xf]
      %v288 = vld [vmem:[%s239 + $0xcc] sm:$0xff]
      %v289 = vld [vmem:[%s239 + $0xd4] sm:$0xf]
      %v290 = vld [vmem:[%s239 + $0xd8] sm:$0xff]
      %v291 = vld [vmem:[%s239 + $0xe0] sm:$0xf]
      %v292 = vld [vmem:[%s239 + $0xe4] sm:$0xff]
      %v293 = vld [vmem:[%s239 + $0xec] sm:$0xf]
      %v294 = vld [vmem:[%s239 + $0xf0] sm:$0xff]
      %v295 = vld [vmem:[%s239 + $0xf8] sm:$0xf]
      %v296 = vld [vmem:[%s239 + $0xfc] sm:$0xff]
      %v297 = vld [vmem:[%s239 + $0x104] sm:$0xf]
      %v298 = vld [vmem:[%s239 + $0x108] sm:$0xff]
      %v299 = vld [vmem:[%s239 + $0x110] sm:$0xf]
      %v300 = vld [vmem:[%s239 + $0x114] sm:$0xff]
      %v301 = vld [vmem:[%s239 + $0x11c] sm:$0xf]
      %v302 = vld [vmem:[%s239 + $0x120] sm:$0xff]
      %v303 = vld [vmem:[%s239 + $0x128] sm:$0xf]
      %v304 = vld [vmem:[%s239 + $0x12c] sm:$0xff]
      %v305 = vld [vmem:[%s239 + $0x134] sm:$0xf]
      %v306 = vld [vmem:[%s239 + $0x138] sm:$0xff]
      %v307 = vld [vmem:[%s239 + $0x140] sm:$0xf]
      %v308 = vld [vmem:[%s239 + $0x144] sm:$0xff]
      %v309 = vld [vmem:[%s239 + $0x14c] sm:$0xf]
      %v310 = vld [vmem:[%s239 + $0x150] sm:$0xff]
      %v311 = vld [vmem:[%s239 + $0x158] sm:$0xf]
      %v312 = vld [vmem:[%s239 + $0x15c] sm:$0xff]
      %v313 = vld [vmem:[%s239 + $0x164] sm:$0xf]
      %v314 = vld [vmem:[%s239 + $0x168] sm:$0xff]
      %v315 = vld [vmem:[%s239 + $0x170] sm:$0xf]
      %v316 = vld [vmem:[%s239 + $0x174] sm:$0xff]
      %v317 = vld [vmem:[%s239 + $0x17c] sm:$0xf]
      %v318 = vld [vmem:[%s1] sm:$0xf]
      %v319 = vld [vmem:[%s1 + $0x4] sm:$0xf]
      %v320 = vld [vmem:[%s1 + $0x8] sm:$0xf]
      %v321 = vld [vmem:[%s1 + $0xc] sm:$0xf]
      %v322 = vld [vmem:[%s1 + $0x10] sm:$0xf]
      %v323 = vld [vmem:[%s1 + $0x14] sm:$0xf]
      %v324 = vld [vmem:[%s1 + $0x18] sm:$0xf]
      %v325 = vld [vmem:[%s1 + $0x1c] sm:$0xf]
      %v326 = vld [vmem:[%s1 + $0x20] sm:$0xf]
      %v327 = vld [vmem:[%s1 + $0x24] sm:$0xf]
      %v328 = vld [vmem:[%s1 + $0x28] sm:$0xf]
      %v329 = vld [vmem:[%s1 + $0x2c] sm:$0xf]
      %v330 = vld [vmem:[%s1 + $0x30] sm:$0xf]
      %v331 = vld [vmem:[%s1 + $0x34] sm:$0xf]
      %v332 = vld [vmem:[%s1 + $0x38] sm:$0xf]
      %v333 = vld [vmem:[%s1 + $0x3c] sm:$0xf]
      %v334 = vld [vmem:[%s1 + $0x40] sm:$0xf]
      %v335 = vld [vmem:[%s1 + $0x44] sm:$0xf]
      %v336 = vld [vmem:[%s1 + $0x48] sm:$0xf]
      %v337 = vld [vmem:[%s1 + $0x4c] sm:$0xf]
      %v338 = vld [vmem:[%s1 + $0x50] sm:$0xf]
      %v339 = vld [vmem:[%s1 + $0x54] sm:$0xf]
      %v340 = vld [vmem:[%s1 + $0x58] sm:$0xf]
      %v341 = vld [vmem:[%s1 + $0x5c] sm:$0xf]
      %v342 = vld [vmem:[%s1 + $0x60] sm:$0xf]
      %v343 = vld [vmem:[%s1 + $0x64] sm:$0xf]
      %v344 = vld [vmem:[%s1 + $0x68] sm:$0xf]
      %v345 = vld [vmem:[%s1 + $0x6c] sm:$0xf]
      %v346 = vld [vmem:[%s1 + $0x70] sm:$0xf]
      %v347 = vld [vmem:[%s1 + $0x74] sm:$0xf]
      %v348 = vld [vmem:[%s1 + $0x78] sm:$0xf]
      %v349 = vld [vmem:[%s1 + $0x7c] sm:$0xf]
      %v350 = vld [vmem:[%s1 + $0x80] sm:$0xf]
      %v351 = vld [vmem:[%s1 + $0x84] sm:$0xf]
      %v352 = vld [vmem:[%s1 + $0x88] sm:$0xf]
      %v353 = vld [vmem:[%s1 + $0x8c] sm:$0xf]
      %v354 = vld [vmem:[%s245] sm:$0xf]
      %v355 = vld [vmem:[%s245 + $0x4] sm:$0xf]
      %v356 = vld [vmem:[%s245 + $0x8] sm:$0xf]
      %v357 = vld [vmem:[%s245 + $0xc] sm:$0xf]
      %v358 = vld [vmem:[%s245 + $0x10] sm:$0xf]
      %v359 = vld [vmem:[%s245 + $0x14] sm:$0xf]
      %v360 = vld [vmem:[%s245 + $0x18] sm:$0xf]
      %v361 = vld [vmem:[%s245 + $0x1c] sm:$0xf]
      %v362 = vld [vmem:[%s245 + $0x20] sm:$0xf]
      %v363 = vld [vmem:[%s245 + $0x24] sm:$0xf]
      %v364 = vld [vmem:[%s245 + $0x28] sm:$0xf]
      %v365 = vld [vmem:[%s245 + $0x2c] sm:$0xf]
      %v366 = vld [vmem:[%s245 + $0x30] sm:$0xf]
      %v367 = vld [vmem:[%s245 + $0x34] sm:$0xf]
      %v368 = vld [vmem:[%s245 + $0x38] sm:$0xf]
      %v369 = vld [vmem:[%s245 + $0x3c] sm:$0xf]
      %v370 = vld [vmem:[%s245 + $0x40] sm:$0xf]
      %v371 = vld [vmem:[%s245 + $0x44] sm:$0xf]
      %v372 = vld [vmem:[%s245 + $0x48] sm:$0xf]
      %v373 = vld [vmem:[%s245 + $0x4c] sm:$0xf]
      %v374 = vld [vmem:[%s245 + $0x50] sm:$0xf]
      %v375 = vld [vmem:[%s245 + $0x54] sm:$0xf]
      %v376 = vld [vmem:[%s245 + $0x58] sm:$0xf]
      %v377 = vld [vmem:[%s245 + $0x5c] sm:$0xf]
      %v378 = vld [vmem:[%s245 + $0x60] sm:$0xf]
      %v379 = vld [vmem:[%s245 + $0x64] sm:$0xf]
      %v380 = vld [vmem:[%s245 + $0x68] sm:$0xf]
      %v381 = vld [vmem:[%s245 + $0x6c] sm:$0xf]
      %v382 = vld [vmem:[%s245 + $0x70] sm:$0xf]
      %v383 = vld [vmem:[%s245 + $0x74] sm:$0xf]
      %v384 = vld [vmem:[%s245 + $0x78] sm:$0xf]
      %v385 = vld [vmem:[%s245 + $0x7c] sm:$0xf]
      %v386 = vunpack.c.l.bf16 %v354
      %v387 = vunpack.c.l.bf16 %v355
      %v388 = vunpack.c.l.bf16 %v356
      %v389 = vunpack.c.l.bf16 %v357
      %v390 = vunpack.c.l.bf16 %v358
      %v391 = vunpack.c.l.bf16 %v359
      %v392 = vunpack.c.l.bf16 %v360
      %v393 = vunpack.c.l.bf16 %v361
      %v394 = vunpack.c.l.bf16 %v362
      %v395 = vunpack.c.l.bf16 %v363
      %v396 = vunpack.c.l.bf16 %v364
      %v397 = vunpack.c.l.bf16 %v365
      %v398 = vunpack.c.l.bf16 %v366
      %v399 = vunpack.c.l.bf16 %v367
      %v400 = vunpack.c.l.bf16 %v368
      %v401 = vunpack.c.l.bf16 %v369
      %v402 = vunpack.c.l.bf16 %v370
      %v403 = vunpack.c.l.bf16 %v371
      %v404 = vunpack.c.l.bf16 %v372
      %v405 = vunpack.c.l.bf16 %v373
      %v406 = vunpack.c.l.bf16 %v374
      %v407 = vunpack.c.l.bf16 %v375
      %v408 = vunpack.c.l.bf16 %v376
      %v409 = vunpack.c.l.bf16 %v377
      %v410 = vunpack.c.l.bf16 %v378
      %v411 = vunpack.c.l.bf16 %v379
      %v412 = vunpack.c.l.bf16 %v380
      %v413 = vunpack.c.l.bf16 %v381
      %v414 = vunpack.c.l.bf16 %v382
      %v415 = vunpack.c.l.bf16 %v383
      %v416 = vunpack.c.l.bf16 %v384
      %v417 = vunpack.c.l.bf16 %v385
      %v482 = vunpack.c.l.b16 %v254
      %v483 = vunpack.c.h.b16 %v254
      %v484 = vunpack.c.l.b16 %v255
      %v485 = vunpack.c.l.b16 %v256
      %v486 = vunpack.c.h.b16 %v256
      %v487 = vunpack.c.l.b16 %v257
      %v488 = vunpack.c.l.b16 %v258
      %v489 = vunpack.c.h.b16 %v258
      %v490 = vunpack.c.l.b16 %v259
      %v491 = vunpack.c.l.b16 %v260
      %v492 = vunpack.c.h.b16 %v260
      %v493 = vunpack.c.l.b16 %v261
      %v494 = vunpack.c.l.b16 %v262
      %v495 = vunpack.c.h.b16 %v262
      %v496 = vunpack.c.l.b16 %v263
      %v497 = vunpack.c.l.b16 %v264
      %v498 = vunpack.c.h.b16 %v264
      %v499 = vunpack.c.l.b16 %v265
      %v500 = vunpack.c.l.b16 %v266
      %v501 = vunpack.c.h.b16 %v266
      %v502 = vunpack.c.l.b16 %v267
      %v503 = vunpack.c.l.b16 %v268
      %v504 = vunpack.c.h.b16 %v268
      %v505 = vunpack.c.l.b16 %v269
      %v506 = vunpack.c.l.b16 %v270
      %v507 = vunpack.c.h.b16 %v270
      %v508 = vunpack.c.l.b16 %v271
      %v509 = vunpack.c.l.b16 %v272
      %v510 = vunpack.c.h.b16 %v272
      %v511 = vunpack.c.l.b16 %v273
      %v512 = vunpack.c.l.b16 %v274
      %v513 = vunpack.c.h.b16 %v274
      %v514 = vunpack.c.l.b16 %v275
      %v515 = vunpack.c.l.b16 %v276
      %v516 = vunpack.c.h.b16 %v276
      %v517 = vunpack.c.l.b16 %v277
      %v518 = vunpack.c.l.b16 %v278
      %v519 = vunpack.c.h.b16 %v278
      %v520 = vunpack.c.l.b16 %v279
      %v521 = vunpack.c.l.b16 %v280
      %v522 = vunpack.c.h.b16 %v280
      %v523 = vunpack.c.l.b16 %v281
      %v524 = vunpack.c.l.b16 %v282
      %v525 = vunpack.c.h.b16 %v282
      %v526 = vunpack.c.l.b16 %v283
      %v527 = vunpack.c.l.b16 %v284
      %v528 = vunpack.c.h.b16 %v284
      %v529 = vunpack.c.l.b16 %v285
      %v530 = vunpack.c.l.b16 %v286
      %v531 = vunpack.c.h.b16 %v286
      %v532 = vunpack.c.l.b16 %v287
      %v533 = vunpack.c.l.b16 %v288
      %v534 = vunpack.c.h.b16 %v288
      %v535 = vunpack.c.l.b16 %v289
      %v536 = vunpack.c.l.b16 %v290
      %v537 = vunpack.c.h.b16 %v290
      %v538 = vunpack.c.l.b16 %v291
      %v539 = vunpack.c.l.b16 %v292
      %v540 = vunpack.c.h.b16 %v292
      %v541 = vunpack.c.l.b16 %v293
      %v542 = vunpack.c.l.b16 %v294
      %v543 = vunpack.c.h.b16 %v294
      %v544 = vunpack.c.l.b16 %v295
      %v545 = vunpack.c.l.b16 %v296
      %v546 = vunpack.c.h.b16 %v296
      %v547 = vunpack.c.l.b16 %v297
      %v548 = vunpack.c.l.b16 %v298
      %v549 = vunpack.c.h.b16 %v298
      %v550 = vunpack.c.l.b16 %v299
      %v551 = vunpack.c.l.b16 %v300
      %v552 = vunpack.c.h.b16 %v300
      %v553 = vunpack.c.l.b16 %v301
      %v554 = vunpack.c.l.b16 %v302
      %v555 = vunpack.c.h.b16 %v302
      %v556 = vunpack.c.l.b16 %v303
      %v557 = vunpack.c.l.b16 %v304
      %v558 = vunpack.c.h.b16 %v304
      %v559 = vunpack.c.l.b16 %v305
      %v560 = vunpack.c.l.b16 %v306
      %v561 = vunpack.c.h.b16 %v306
      %v562 = vunpack.c.l.b16 %v307
      %v563 = vunpack.c.l.b16 %v308
      %v564 = vunpack.c.h.b16 %v308
      %v565 = vunpack.c.l.b16 %v309
      %v566 = vunpack.c.l.b16 %v310
      %v567 = vunpack.c.h.b16 %v310
      %v568 = vunpack.c.l.b16 %v311
      %v569 = vunpack.c.l.b16 %v312
      %v570 = vunpack.c.h.b16 %v312
      %v571 = vunpack.c.l.b16 %v313
      %v572 = vunpack.c.l.b16 %v314
      %v573 = vunpack.c.h.b16 %v314
      %v574 = vunpack.c.l.b16 %v315
      %v575 = vunpack.c.l.b16 %v316
      %v576 = vunpack.c.h.b16 %v316
      %v577 = vunpack.c.l.b16 %v317
      %v578 = vpack.c.b16 %v485, %v482
      %v579 = vpack.c.b16 %v486, %v483
      %v580 = vpack.c.b16 %v487, %v484
      %v581 = vpack.c.b16 %v491, %v488
      %v582 = vpack.c.b16 %v492, %v489
      %v583 = vpack.c.b16 %v493, %v490
      %v584 = vpack.c.b16 %v497, %v494
      %v585 = vpack.c.b16 %v498, %v495
      %v586 = vpack.c.b16 %v499, %v496
      %v587 = vpack.c.b16 %v503, %v500
      %v588 = vpack.c.b16 %v504, %v501
      %v589 = vpack.c.b16 %v505, %v502
      %v590 = vpack.c.b16 %v509, %v506
      %v591 = vpack.c.b16 %v510, %v507
      %v592 = vpack.c.b16 %v511, %v508
      %v593 = vpack.c.b16 %v515, %v512
      %v594 = vpack.c.b16 %v516, %v513
      %v595 = vpack.c.b16 %v517, %v514
      %v596 = vpack.c.b16 %v521, %v518
      %v597 = vpack.c.b16 %v522, %v519
      %v598 = vpack.c.b16 %v523, %v520
      %v599 = vpack.c.b16 %v527, %v524
      %v600 = vpack.c.b16 %v528, %v525
      %v601 = vpack.c.b16 %v529, %v526
      %v602 = vpack.c.b16 %v533, %v530
      %v603 = vpack.c.b16 %v534, %v531
      %v604 = vpack.c.b16 %v535, %v532
      %v605 = vpack.c.b16 %v539, %v536
      %v606 = vpack.c.b16 %v540, %v537
      %v607 = vpack.c.b16 %v541, %v538
      %v608 = vpack.c.b16 %v545, %v542
      %v609 = vpack.c.b16 %v546, %v543
      %v610 = vpack.c.b16 %v547, %v544
      %v611 = vpack.c.b16 %v551, %v548
      %v612 = vpack.c.b16 %v552, %v549
      %v613 = vpack.c.b16 %v553, %v550
      %v614 = vpack.c.b16 %v557, %v554
      %v615 = vpack.c.b16 %v558, %v555
      %v616 = vpack.c.b16 %v559, %v556
      %v617 = vpack.c.b16 %v563, %v560
      %v618 = vpack.c.b16 %v564, %v561
      %v619 = vpack.c.b16 %v565, %v562
      %v620 = vpack.c.b16 %v569, %v566
      %v621 = vpack.c.b16 %v570, %v567
      %v622 = vpack.c.b16 %v571, %v568
      %v623 = vpack.c.b16 %v575, %v572
      %v624 = vpack.c.b16 %v576, %v573
      %v625 = vpack.c.b16 %v577, %v574
      %v694 = vunpack.c.l.b16 %v318
      %v695 = vunpack.c.l.b16 %v319
      %v696 = vunpack.c.l.b16 %v320
      %v697 = vunpack.c.l.b16 %v321
      %v698 = vunpack.c.l.b16 %v322
      %v699 = vunpack.c.l.b16 %v323
      %v700 = vunpack.c.l.b16 %v324
      %v701 = vunpack.c.l.b16 %v325
      %v702 = vunpack.c.l.b16 %v326
      %v703 = vunpack.c.l.b16 %v327
      %v704 = vunpack.c.l.b16 %v328
      %v705 = vunpack.c.l.b16 %v329
      %v706 = vunpack.c.l.b16 %v330
      %v707 = vunpack.c.l.b16 %v331
      %v708 = vunpack.c.l.b16 %v332
      %v709 = vunpack.c.l.b16 %v333
      %v710 = vunpack.c.l.b16 %v334
      %v711 = vunpack.c.l.b16 %v335
      %v712 = vunpack.c.l.b16 %v336
      %v713 = vunpack.c.l.b16 %v337
      %v714 = vunpack.c.l.b16 %v338
      %v715 = vunpack.c.l.b16 %v339
      %v716 = vunpack.c.l.b16 %v340
      %v717 = vunpack.c.l.b16 %v341
      %v718 = vunpack.c.l.b16 %v342
      %v719 = vunpack.c.l.b16 %v343
      %v720 = vunpack.c.l.b16 %v344
      %v721 = vunpack.c.l.b16 %v345
      %v722 = vunpack.c.l.b16 %v346
      %v723 = vunpack.c.l.b16 %v347
      %v724 = vunpack.c.l.b16 %v348
      %v725 = vunpack.c.l.b16 %v349
      %v726 = vunpack.c.l.b16 %v350
      %v727 = vunpack.c.l.b16 %v351
      %v728 = vunpack.c.l.b16 %v352
      %v729 = vunpack.c.l.b16 %v353
      %v730 = vpack.c.b16 %v695, %v694
      %v731 = vpack.c.b16 %v697, %v696
      %v732 = vpack.c.b16 %v699, %v698
      %v733 = vpack.c.b16 %v701, %v700
      %v734 = vpack.c.b16 %v703, %v702
      %v735 = vpack.c.b16 %v705, %v704
      %v736 = vpack.c.b16 %v707, %v706
      %v737 = vpack.c.b16 %v709, %v708
      %v738 = vpack.c.b16 %v711, %v710
      %v739 = vpack.c.b16 %v713, %v712
      %v740 = vpack.c.b16 %v715, %v714
      %v741 = vpack.c.b16 %v717, %v716
      %v742 = vpack.c.b16 %v719, %v718
      %v743 = vpack.c.b16 %v721, %v720
      %v744 = vpack.c.b16 %v723, %v722
      %v745 = vpack.c.b16 %v725, %v724
      %v746 = vpack.c.b16 %v727, %v726
      %v747 = vpack.c.b16 %v729, %v728
      %vm766 = vcmask 261120
      %v768 = vsel %vm766, %v580, 0
      %v771 = vsel %vm766, %v583, 0
      %v774 = vsel %vm766, %v586, 0
      %v777 = vsel %vm766, %v589, 0
      %v780 = vsel %vm766, %v592, 0
      %v783 = vsel %vm766, %v595, 0
      %v786 = vsel %vm766, %v598, 0
      %v789 = vsel %vm766, %v601, 0
      %v792 = vsel %vm766, %v604, 0
      %v795 = vsel %vm766, %v607, 0
      %v798 = vsel %vm766, %v610, 0
      %v801 = vsel %vm766, %v613, 0
      %v804 = vsel %vm766, %v616, 0
      %v807 = vsel %vm766, %v619, 0
      %v810 = vsel %vm766, %v622, 0
      %v813 = vsel %vm766, %v625, 0
      %815 = vmatprep.subr.bf16.mxu0 0
      %816 = vmatpush1.bf16.msra.mxu0 %v730
      %817 = vmatprep.subr.bf16.mxu0 0
      %818 = vmatpush1.bf16.msra.mxu0 %v731
      %819 = vmatprep.subr.bf16.mxu0 0
      %820 = vmatpush1.bf16.msra.mxu0 %v732
      %821 = vmatprep.subr.bf16.mxu0 0
      %822 = vmatpush1.bf16.msra.mxu0 %v733
      %823 = vmatprep.subr.bf16.mxu0 0
      %824 = vmatpush1.bf16.msra.mxu0 %v734
      %825 = vmatprep.subr.bf16.mxu0 0
      %826 = vmatpush1.bf16.msra.mxu0 %v735
      %827 = vmatprep.subr.bf16.mxu0 0
      %828 = vmatpush1.bf16.msra.mxu0 %v736
      %829 = vmatprep.subr.bf16.mxu0 0
      %830 = vmatpush1.bf16.msra.mxu0 %v737
      %831 = vmatprep.subr.bf16.mxu0 0
      %832 = vmatpush1.bf16.msra.mxu0 %v738
      %833 = vmatprep.subr.bf16.mxu0 0
      %834 = vmatpush1.bf16.msra.mxu0 %v739
      %835 = vmatprep.subr.bf16.mxu0 0
      %836 = vmatpush1.bf16.msra.mxu0 %v740
      %837 = vmatprep.subr.bf16.mxu0 0
      %838 = vmatpush1.bf16.msra.mxu0 %v741
      %839 = vmatprep.subr.bf16.mxu0 0
      %840 = vmatpush1.bf16.msra.mxu0 %v742
      %841 = vmatprep.subr.bf16.mxu0 0
      %842 = vmatpush1.bf16.msra.mxu0 %v743
      %843 = vmatprep.subr.bf16.mxu0 0
      %844 = vmatpush1.bf16.msra.mxu0 %v744
      %845 = vmatprep.subr.bf16.mxu0 0
      %846 = vmatpush1.bf16.msra.mxu0 %v745
      %847 = vmatprep.mubr.bf16.mxu0 %v579
      %848 = vmatmul.mubr.bf16.gmra.mrb[0].mxu0 %v578
      %v849 = vpop.f32.mrb[0].mxu0
      %v850 = vadd.f32 %v386, %v849
      %v851 = vpop.f32.mrb[0].mxu0
      %v852 = vpop.f32.mrb[0].mxu0
      %v853 = vadd.f32 %v387, %v852
      %v854 = vpop.f32.mrb[0].mxu0
      %855 = vmatprep.mubr.bf16.mxu0 %v582
      %856 = vmatmul.mubr.bf16.gmra.mrb[0].mxu0 %v581
      %v857 = vpop.f32.mrb[0].mxu0
      %v858 = vadd.f32 %v388, %v857
      %v859 = vpop.f32.mrb[0].mxu0
      %v860 = vpop.f32.mrb[0].mxu0
      %v861 = vadd.f32 %v389, %v860
      %v862 = vpop.f32.mrb[0].mxu0
      %863 = vmatprep.mubr.bf16.mxu0 %v585
      %864 = vmatmul.mubr.bf16.gmra.mrb[0].mxu0 %v584
      %v865 = vpop.f32.mrb[0].mxu0
      %v866 = vadd.f32 %v390, %v865
      %v867 = vpop.f32.mrb[0].mxu0
      %v868 = vpop.f32.mrb[0].mxu0
      %v869 = vadd.f32 %v391, %v868
      %v870 = vpop.f32.mrb[0].mxu0
      %871 = vmatprep.mubr.bf16.mxu0 %v588
      %872 = vmatmul.mubr.bf16.gmra.mrb[0].mxu0 %v587
      %v873 = vpop.f32.mrb[0].mxu0
      %v874 = vadd.f32 %v392, %v873
      %v875 = vpop.f32.mrb[0].mxu0
      %v876 = vpop.f32.mrb[0].mxu0
      %v877 = vadd.f32 %v393, %v876
      %v878 = vpop.f32.mrb[0].mxu0
      %879 = vmatprep.mubr.bf16.mxu0 %v591
      %880 = vmatmul.mubr.bf16.gmra.mrb[0].mxu0 %v590
      %v881 = vpop.f32.mrb[0].mxu0
      %v882 = vadd.f32 %v394, %v881
      %v883 = vpop.f32.mrb[0].mxu0
      %v884 = vpop.f32.mrb[0].mxu0
      %v885 = vadd.f32 %v395, %v884
      %v886 = vpop.f32.mrb[0].mxu0
      %887 = vmatprep.mubr.bf16.mxu0 %v594
      %888 = vmatmul.mubr.bf16.gmra.mrb[0].mxu0 %v593
      %v889 = vpop.f32.mrb[0].mxu0
      %v890 = vadd.f32 %v396, %v889
      %v891 = vpop.f32.mrb[0].mxu0
      %v892 = vpop.f32.mrb[0].mxu0
      %v893 = vadd.f32 %v397, %v892
      %v894 = vpop.f32.mrb[0].mxu0
      %895 = vmatprep.mubr.bf16.mxu0 %v597
      %896 = vmatmul.mubr.bf16.gmra.mrb[0].mxu0 %v596
      %v897 = vpop.f32.mrb[0].mxu0
      %v898 = vadd.f32 %v398, %v897
      %v899 = vpop.f32.mrb[0].mxu0
      %v900 = vpop.f32.mrb[0].mxu0
      %v901 = vadd.f32 %v399, %v900
      %v902 = vpop.f32.mrb[0].mxu0
      %903 = vmatprep.mubr.bf16.mxu0 %v600
      %904 = vmatmul.mubr.bf16.gmra.mrb[0].mxu0 %v599
      %v905 = vpop.f32.mrb[0].mxu0
      %v906 = vadd.f32 %v400, %v905
      %v907 = vpop.f32.mrb[0].mxu0
      %v908 = vpop.f32.mrb[0].mxu0
      %v909 = vadd.f32 %v401, %v908
      %v910 = vpop.f32.mrb[0].mxu0
      %911 = vmatprep.mubr.bf16.mxu0 %v603
      %912 = vmatmul.mubr.bf16.gmra.mrb[0].mxu0 %v602
      %v913 = vpop.f32.mrb[0].mxu0
      %v914 = vadd.f32 %v402, %v913
      %v915 = vpop.f32.mrb[0].mxu0
      %v916 = vpop.f32.mrb[0].mxu0
      %v917 = vadd.f32 %v403, %v916
      %v918 = vpop.f32.mrb[0].mxu0
      %919 = vmatprep.mubr.bf16.mxu0 %v606
      %920 = vmatmul.mubr.bf16.gmra.mrb[0].mxu0 %v605
      %v921 = vpop.f32.mrb[0].mxu0
      %v922 = vadd.f32 %v404, %v921
      %v923 = vpop.f32.mrb[0].mxu0
      %v924 = vpop.f32.mrb[0].mxu0
      %v925 = vadd.f32 %v405, %v924
      %v926 = vpop.f32.mrb[0].mxu0
      %927 = vmatprep.mubr.bf16.mxu0 %v609
      %928 = vmatmul.mubr.bf16.gmra.mrb[0].mxu0 %v608
      %v929 = vpop.f32.mrb[0].mxu0
      %v930 = vadd.f32 %v406, %v929
      %v931 = vpop.f32.mrb[0].mxu0
      %v932 = vpop.f32.mrb[0].mxu0
      %v933 = vadd.f32 %v407, %v932
      %v934 = vpop.f32.mrb[0].mxu0
      %935 = vmatprep.mubr.bf16.mxu0 %v612
      %936 = vmatmul.mubr.bf16.gmra.mrb[0].mxu0 %v611
      %v937 = vpop.f32.mrb[0].mxu0
      %v938 = vadd.f32 %v408, %v937
      %v939 = vpop.f32.mrb[0].mxu0
      %v940 = vpop.f32.mrb[0].mxu0
      %v941 = vadd.f32 %v409, %v940
      %v942 = vpop.f32.mrb[0].mxu0
      %943 = vmatprep.mubr.bf16.mxu0 %v615
      %944 = vmatmul.mubr.bf16.gmra.mrb[0].mxu0 %v614
      %v945 = vpop.f32.mrb[0].mxu0
      %v946 = vadd.f32 %v410, %v945
      %v947 = vpop.f32.mrb[0].mxu0
      %v948 = vpop.f32.mrb[0].mxu0
      %v949 = vadd.f32 %v411, %v948
      %v950 = vpop.f32.mrb[0].mxu0
      %951 = vmatprep.mubr.bf16.mxu0 %v618
      %952 = vmatmul.mubr.bf16.gmra.mrb[0].mxu0 %v617
      %v953 = vpop.f32.mrb[0].mxu0
      %v954 = vadd.f32 %v412, %v953
      %v955 = vpop.f32.mrb[0].mxu0
      %v956 = vpop.f32.mrb[0].mxu0
      %v957 = vadd.f32 %v413, %v956
      %v958 = vpop.f32.mrb[0].mxu0
      %959 = vmatprep.mubr.bf16.mxu0 %v621
      %960 = vmatmul.mubr.bf16.gmra.mrb[0].mxu0 %v620
      %v961 = vpop.f32.mrb[0].mxu0
      %v962 = vadd.f32 %v414, %v961
      %v963 = vpop.f32.mrb[0].mxu0
      %v964 = vpop.f32.mrb[0].mxu0
      %v965 = vadd.f32 %v415, %v964
      %v966 = vpop.f32.mrb[0].mxu0
      %967 = vmatprep.mubr.bf16.mxu0 %v624
      %968 = vmatmul.mubr.bf16.gmra.mrb[0].mxu0 %v623
      %v969 = vpop.f32.mrb[0].mxu0
      %v970 = vadd.f32 %v416, %v969
      %v971 = vpop.f32.mrb[0].mxu0
      %v972 = vpop.f32.mrb[0].mxu0
      %v973 = vadd.f32 %v417, %v972
      %v974 = vpop.f32.mrb[0].mxu0
      %975 = vdwg.mxu0
      %976 = vmatprep.subr.bf16.mxu0 0
      %977 = vmatpush1.bf16.msra.mxu0 %v746
      %978 = vmatprep.subr.bf16.mxu0 0
      %979 = vmatpush1.bf16.msra.mxu0 %v747
      %980 = vmatprep.subr.bf16.mxu0 0
      %981 = vmatpush1.bf16.msra.mxu0 0
      %982 = vmatprep.subr.bf16.mxu0 0
      %983 = vmatpush1.bf16.msra.mxu0 0
      %984 = vmatprep.subr.bf16.mxu0 0
      %985 = vmatpush1.bf16.msra.mxu0 0
      %986 = vmatprep.subr.bf16.mxu0 0
      %987 = vmatpush1.bf16.msra.mxu0 0
      %988 = vmatprep.subr.bf16.mxu0 0
      %989 = vmatpush1.bf16.msra.mxu0 0
      %990 = vmatprep.subr.bf16.mxu0 0
      %991 = vmatpush1.bf16.msra.mxu0 0
      %992 = vmatprep.subr.bf16.mxu0 0
      %993 = vmatpush1.bf16.msra.mxu0 0
      %994 = vmatprep.subr.bf16.mxu0 0
      %995 = vmatpush1.bf16.msra.mxu0 0
      %996 = vmatprep.subr.bf16.mxu0 0
      %997 = vmatpush1.bf16.msra.mxu0 0
      %998 = vmatprep.subr.bf16.mxu0 0
      %999 = vmatpush1.bf16.msra.mxu0 0
      %1000 = vmatprep.subr.bf16.mxu0 0
      %1001 = vmatpush1.bf16.msra.mxu0 0
      %1002 = vmatprep.subr.bf16.mxu0 0
      %1003 = vmatpush1.bf16.msra.mxu0 0
      %1004 = vmatprep.subr.bf16.mxu0 0
      %1005 = vmatpush1.bf16.msra.mxu0 0
      %1006 = vmatprep.subr.bf16.mxu0 0
      %1007 = vmatpush1.bf16.msra.mxu0 0
      %1008 = vmatprep.mubr.bf16.mxu0 0
      %1009 = vmatmul.mubr.bf16.gmra.mrb[0].mxu0 %v768
      %v1010 = vpop.f32.mrb[0].mxu0
      %v1011 = vadd.f32 %v850, %v1010
      %v1012 = vpop.f32.mrb[0].mxu0
      %v1013 = vpop.f32.mrb[0].mxu0
      %v1014 = vadd.f32 %v853, %v1013
      %v1015 = vpop.f32.mrb[0].mxu0
      %1016 = vmatprep.mubr.bf16.mxu0 0
      %1017 = vmatmul.mubr.bf16.gmra.mrb[0].mxu0 %v771
      %v1018 = vpop.f32.mrb[0].mxu0
      %v1019 = vadd.f32 %v858, %v1018
      %v1020 = vpop.f32.mrb[0].mxu0
      %v1021 = vpop.f32.mrb[0].mxu0
      %v1022 = vadd.f32 %v861, %v1021
      %v1023 = vpop.f32.mrb[0].mxu0
      %1024 = vmatprep.mubr.bf16.mxu0 0
      %1025 = vmatmul.mubr.bf16.gmra.mrb[0].mxu0 %v774
      %v1026 = vpop.f32.mrb[0].mxu0
      %v1027 = vadd.f32 %v866, %v1026
      %v1028 = vpop.f32.mrb[0].mxu0
      %v1029 = vpop.f32.mrb[0].mxu0
      %v1030 = vadd.f32 %v869, %v1029
      %v1031 = vpop.f32.mrb[0].mxu0
      %1032 = vmatprep.mubr.bf16.mxu0 0
      %1033 = vmatmul.mubr.bf16.gmra.mrb[0].mxu0 %v777
      %v1034 = vpop.f32.mrb[0].mxu0
      %v1035 = vadd.f32 %v874, %v1034
      %v1036 = vpop.f32.mrb[0].mxu0
      %v1037 = vpop.f32.mrb[0].mxu0
      %v1038 = vadd.f32 %v877, %v1037
      %v1039 = vpop.f32.mrb[0].mxu0
      %1040 = vmatprep.mubr.bf16.mxu0 0
      %1041 = vmatmul.mubr.bf16.gmra.mrb[0].mxu0 %v780
      %v1042 = vpop.f32.mrb[0].mxu0
      %v1043 = vadd.f32 %v882, %v1042
      %v1044 = vpop.f32.mrb[0].mxu0
      %v1045 = vpop.f32.mrb[0].mxu0
      %v1046 = vadd.f32 %v885, %v1045
      %v1047 = vpop.f32.mrb[0].mxu0
      %1048 = vmatprep.mubr.bf16.mxu0 0
      %1049 = vmatmul.mubr.bf16.gmra.mrb[0].mxu0 %v783
      %v1050 = vpop.f32.mrb[0].mxu0
      %v1051 = vadd.f32 %v890, %v1050
      %v1052 = vpop.f32.mrb[0].mxu0
      %v1053 = vpop.f32.mrb[0].mxu0
      %v1054 = vadd.f32 %v893, %v1053
      %v1055 = vpop.f32.mrb[0].mxu0
      %1056 = vmatprep.mubr.bf16.mxu0 0
      %1057 = vmatmul.mubr.bf16.gmra.mrb[0].mxu0 %v786
      %v1058 = vpop.f32.mrb[0].mxu0
      %v1059 = vadd.f32 %v898, %v1058
      %v1060 = vpop.f32.mrb[0].mxu0
      %v1061 = vpop.f32.mrb[0].mxu0
      %v1062 = vadd.f32 %v901, %v1061
      %v1063 = vpop.f32.mrb[0].mxu0
      %1064 = vmatprep.mubr.bf16.mxu0 0
      %1065 = vmatmul.mubr.bf16.gmra.mrb[0].mxu0 %v789
      %v1066 = vpop.f32.mrb[0].mxu0
      %v1067 = vadd.f32 %v906, %v1066
      %v1068 = vpop.f32.mrb[0].mxu0
      %v1069 = vpop.f32.mrb[0].mxu0
      %v1070 = vadd.f32 %v909, %v1069
      %v1071 = vpop.f32.mrb[0].mxu0
      %1072 = vmatprep.mubr.bf16.mxu0 0
      %1073 = vmatmul.mubr.bf16.gmra.mrb[0].mxu0 %v792
      %v1074 = vpop.f32.mrb[0].mxu0
      %v1075 = vadd.f32 %v914, %v1074
      %v1076 = vpop.f32.mrb[0].mxu0
      %v1077 = vpop.f32.mrb[0].mxu0
      %v1078 = vadd.f32 %v917, %v1077
      %v1079 = vpop.f32.mrb[0].mxu0
      %1080 = vmatprep.mubr.bf16.mxu0 0
      %1081 = vmatmul.mubr.bf16.gmra.mrb[0].mxu0 %v795
      %v1082 = vpop.f32.mrb[0].mxu0
      %v1083 = vadd.f32 %v922, %v1082
      %v1084 = vpop.f32.mrb[0].mxu0
      %v1085 = vpop.f32.mrb[0].mxu0
      %v1086 = vadd.f32 %v925, %v1085
      %v1087 = vpop.f32.mrb[0].mxu0
      %1088 = vmatprep.mubr.bf16.mxu0 0
      %1089 = vmatmul.mubr.bf16.gmra.mrb[0].mxu0 %v798
      %v1090 = vpop.f32.mrb[0].mxu0
      %v1091 = vadd.f32 %v930, %v1090
      %v1092 = vpop.f32.mrb[0].mxu0
      %v1093 = vpop.f32.mrb[0].mxu0
      %v1094 = vadd.f32 %v933, %v1093
      %v1095 = vpop.f32.mrb[0].mxu0
      %1096 = vmatprep.mubr.bf16.mxu0 0
      %1097 = vmatmul.mubr.bf16.gmra.mrb[0].mxu0 %v801
      %v1098 = vpop.f32.mrb[0].mxu0
      %v1099 = vadd.f32 %v938, %v1098
      %v1100 = vpop.f32.mrb[0].mxu0
      %v1101 = vpop.f32.mrb[0].mxu0
      %v1102 = vadd.f32 %v941, %v1101
      %v1103 = vpop.f32.mrb[0].mxu0
      %1104 = vmatprep.mubr.bf16.mxu0 0
      %1105 = vmatmul.mubr.bf16.gmra.mrb[0].mxu0 %v804
      %v1106 = vpop.f32.mrb[0].mxu0
      %v1107 = vadd.f32 %v946, %v1106
      %v1108 = vpop.f32.mrb[0].mxu0
      %v1109 = vpop.f32.mrb[0].mxu0
      %v1110 = vadd.f32 %v949, %v1109
      %v1111 = vpop.f32.mrb[0].mxu0
      %1112 = vmatprep.mubr.bf16.mxu0 0
      %1113 = vmatmul.mubr.bf16.gmra.mrb[0].mxu0 %v807
      %v1114 = vpop.f32.mrb[0].mxu0
      %v1115 = vadd.f32 %v954, %v1114
      %v1116 = vpop.f32.mrb[0].mxu0
      %v1117 = vpop.f32.mrb[0].mxu0
      %v1118 = vadd.f32 %v957, %v1117
      %v1119 = vpop.f32.mrb[0].mxu0
      %1120 = vmatprep.mubr.bf16.mxu0 0
      %1121 = vmatmul.mubr.bf16.gmra.mrb[0].mxu0 %v810
      %v1122 = vpop.f32.mrb[0].mxu0
      %v1123 = vadd.f32 %v962, %v1122
      %v1124 = vpop.f32.mrb[0].mxu0
      %v1125 = vpop.f32.mrb[0].mxu0
      %v1126 = vadd.f32 %v965, %v1125
      %v1127 = vpop.f32.mrb[0].mxu0
      %1128 = vmatprep.mubr.bf16.mxu0 0
      %1129 = vmatmul.mubr.bf16.gmra.mrb[0].mxu0 %v813
      %v1130 = vpop.f32.mrb[0].mxu0
      %v1131 = vadd.f32 %v970, %v1130
      %v1132 = vpop.f32.mrb[0].mxu0
      %v1133 = vpop.f32.mrb[0].mxu0
      %v1134 = vadd.f32 %v973, %v1133
      %v1135 = vpop.f32.mrb[0].mxu0
      %1136 = vdwg.mxu0
      %v1137 = vld [vmem:[%s2] sm:$0x1]
      %v1139 = vlaneseq
      %v1140 = vshrl.u32 %v1139, 7
      %v1141 = vsub.s32 0, %v1140
      %v1142 = vrot.slane %v1137, %v1141
      %v1144 = vmul.f32 %v1011, %v1142
      %v1145 = vmul.f32 %v1014, %v1142
      %v1146 = vmul.f32 %v1019, %v1142
      %v1147 = vmul.f32 %v1022, %v1142
      %v1148 = vmul.f32 %v1027, %v1142
      %v1149 = vmul.f32 %v1030, %v1142
      %v1150 = vmul.f32 %v1035, %v1142
      %v1151 = vmul.f32 %v1038, %v1142
      %v1152 = vmul.f32 %v1043, %v1142
      %v1153 = vmul.f32 %v1046, %v1142
      %v1154 = vmul.f32 %v1051, %v1142
      %v1155 = vmul.f32 %v1054, %v1142
      %v1156 = vmul.f32 %v1059, %v1142
      %v1157 = vmul.f32 %v1062, %v1142
      %v1158 = vmul.f32 %v1067, %v1142
      %v1159 = vmul.f32 %v1070, %v1142
      %v1160 = vmul.f32 %v1075, %v1142
      %v1161 = vmul.f32 %v1078, %v1142
      %v1162 = vmul.f32 %v1083, %v1142
      %v1163 = vmul.f32 %v1086, %v1142
      %v1164 = vmul.f32 %v1091, %v1142
      %v1165 = vmul.f32 %v1094, %v1142
      %v1166 = vmul.f32 %v1099, %v1142
      %v1167 = vmul.f32 %v1102, %v1142
      %v1168 = vmul.f32 %v1107, %v1142
      %v1169 = vmul.f32 %v1110, %v1142
      %v1170 = vmul.f32 %v1115, %v1142
      %v1171 = vmul.f32 %v1118, %v1142
      %v1172 = vmul.f32 %v1123, %v1142
      %v1173 = vmul.f32 %v1126, %v1142
      %v1174 = vmul.f32 %v1131, %v1142
      %v1175 = vmul.f32 %v1134, %v1142
      %v1176 = vld [vmem:[%s3] sm:$0x1]
      %v1178 = vlaneseq
      %v1179 = vshrl.u32 %v1178, 7
      %v1180 = vsub.s32 0, %v1179
      %v1181 = vrot.slane %v1176, %v1180
      %v1183 = vadd.f32 %v1144, %v1181
      %v1184 = vadd.f32 %v1145, %v1181
      %v1185 = vadd.f32 %v1146, %v1181
      %v1186 = vadd.f32 %v1147, %v1181
      %v1187 = vadd.f32 %v1148, %v1181
      %v1188 = vadd.f32 %v1149, %v1181
      %v1189 = vadd.f32 %v1150, %v1181
      %v1190 = vadd.f32 %v1151, %v1181
      %v1191 = vadd.f32 %v1152, %v1181
      %v1192 = vadd.f32 %v1153, %v1181
      %v1193 = vadd.f32 %v1154, %v1181
      %v1194 = vadd.f32 %v1155, %v1181
      %v1195 = vadd.f32 %v1156, %v1181
      %v1196 = vadd.f32 %v1157, %v1181
      %v1197 = vadd.f32 %v1158, %v1181
      %v1198 = vadd.f32 %v1159, %v1181
      %v1199 = vadd.f32 %v1160, %v1181
      %v1200 = vadd.f32 %v1161, %v1181
      %v1201 = vadd.f32 %v1162, %v1181
      %v1202 = vadd.f32 %v1163, %v1181
      %v1203 = vadd.f32 %v1164, %v1181
      %v1204 = vadd.f32 %v1165, %v1181
      %v1205 = vadd.f32 %v1166, %v1181
      %v1206 = vadd.f32 %v1167, %v1181
      %v1207 = vadd.f32 %v1168, %v1181
      %v1208 = vadd.f32 %v1169, %v1181
      %v1209 = vadd.f32 %v1170, %v1181
      %v1210 = vadd.f32 %v1171, %v1181
      %v1211 = vadd.f32 %v1172, %v1181
      %v1212 = vadd.f32 %v1173, %v1181
      %v1213 = vadd.f32 %v1174, %v1181
      %v1214 = vadd.f32 %v1175, %v1181
      %v1215 = vmax.f32 %v1183, 0.0
      %v1216 = vmax.f32 %v1184, 0.0
      %v1217 = vmax.f32 %v1185, 0.0
      %v1218 = vmax.f32 %v1186, 0.0
      %v1219 = vmax.f32 %v1187, 0.0
      %v1220 = vmax.f32 %v1188, 0.0
      %v1221 = vmax.f32 %v1189, 0.0
      %v1222 = vmax.f32 %v1190, 0.0
      %v1223 = vmax.f32 %v1191, 0.0
      %v1224 = vmax.f32 %v1192, 0.0
      %v1225 = vmax.f32 %v1193, 0.0
      %v1226 = vmax.f32 %v1194, 0.0
      %v1227 = vmax.f32 %v1195, 0.0
      %v1228 = vmax.f32 %v1196, 0.0
      %v1229 = vmax.f32 %v1197, 0.0
      %v1230 = vmax.f32 %v1198, 0.0
      %v1231 = vmax.f32 %v1199, 0.0
      %v1232 = vmax.f32 %v1200, 0.0
      %v1233 = vmax.f32 %v1201, 0.0
      %v1234 = vmax.f32 %v1202, 0.0
      %v1235 = vmax.f32 %v1203, 0.0
      %v1236 = vmax.f32 %v1204, 0.0
      %v1237 = vmax.f32 %v1205, 0.0
      %v1238 = vmax.f32 %v1206, 0.0
      %v1239 = vmax.f32 %v1207, 0.0
      %v1240 = vmax.f32 %v1208, 0.0
      %v1241 = vmax.f32 %v1209, 0.0
      %v1242 = vmax.f32 %v1210, 0.0
      %v1243 = vmax.f32 %v1211, 0.0
      %v1244 = vmax.f32 %v1212, 0.0
      %v1245 = vmax.f32 %v1213, 0.0
      %v1246 = vmax.f32 %v1214, 0.0
      %v1247 = vpack.c.bf16 %v1216, %v1215
      %v1248 = vpack.c.bf16 %v1218, %v1217
      %v1249 = vpack.c.bf16 %v1220, %v1219
      %v1250 = vpack.c.bf16 %v1222, %v1221
      %v1251 = vpack.c.bf16 %v1224, %v1223
      %v1252 = vpack.c.bf16 %v1226, %v1225
      %v1253 = vpack.c.bf16 %v1228, %v1227
      %v1254 = vpack.c.bf16 %v1230, %v1229
      %v1255 = vpack.c.bf16 %v1232, %v1231
      %v1256 = vpack.c.bf16 %v1234, %v1233
      %v1257 = vpack.c.bf16 %v1236, %v1235
      %v1258 = vpack.c.bf16 %v1238, %v1237
      %v1259 = vpack.c.bf16 %v1240, %v1239
      %v1260 = vpack.c.bf16 %v1242, %v1241
      %v1261 = vpack.c.bf16 %v1244, %v1243
      %v1262 = vpack.c.bf16 %v1246, %v1245
      %v1279 = vunpack.c.l.b16 %v1247
      %v1280 = vunpack.c.h.b16 %v1247
      %v1281 = vunpack.c.l.b16 %v1248
      %v1282 = vunpack.c.h.b16 %v1248
      %v1283 = vunpack.c.l.b16 %v1249
      %v1284 = vunpack.c.h.b16 %v1249
      %v1285 = vunpack.c.l.b16 %v1250
      %v1286 = vunpack.c.h.b16 %v1250
      %v1287 = vunpack.c.l.b16 %v1251
      %v1288 = vunpack.c.h.b16 %v1251
      %v1289 = vunpack.c.l.b16 %v1252
      %v1290 = vunpack.c.h.b16 %v1252
      %v1291 = vunpack.c.l.b16 %v1253
      %v1292 = vunpack.c.h.b16 %v1253
      %v1293 = vunpack.c.l.b16 %v1254
      %v1294 = vunpack.c.h.b16 %v1254
      %v1295 = vunpack.c.l.b16 %v1255
      %v1296 = vunpack.c.h.b16 %v1255
      %v1297 = vunpack.c.l.b16 %v1256
      %v1298 = vunpack.c.h.b16 %v1256
      %v1299 = vunpack.c.l.b16 %v1257
      %v1300 = vunpack.c.h.b16 %v1257
      %v1301 = vunpack.c.l.b16 %v1258
      %v1302 = vunpack.c.h.b16 %v1258
      %v1303 = vunpack.c.l.b16 %v1259
      %v1304 = vunpack.c.h.b16 %v1259
      %v1305 = vunpack.c.l.b16 %v1260
      %v1306 = vunpack.c.h.b16 %v1260
      %v1307 = vunpack.c.l.b16 %v1261
      %v1308 = vunpack.c.h.b16 %v1261
      %v1309 = vunpack.c.l.b16 %v1262
      %v1310 = vunpack.c.h.b16 %v1262
      %v1311 = vpack.c.b16 %v1279, %v1279
      %v1312 = vpack.c.b16 %v1280, %v1280
      %v1313 = vpack.c.b16 %v1281, %v1281
      %v1314 = vpack.c.b16 %v1282, %v1282
      %v1315 = vpack.c.b16 %v1283, %v1283
      %v1316 = vpack.c.b16 %v1284, %v1284
      %v1317 = vpack.c.b16 %v1285, %v1285
      %v1318 = vpack.c.b16 %v1286, %v1286
      %v1319 = vpack.c.b16 %v1287, %v1287
      %v1320 = vpack.c.b16 %v1288, %v1288
      %v1321 = vpack.c.b16 %v1289, %v1289
      %v1322 = vpack.c.b16 %v1290, %v1290
      %v1323 = vpack.c.b16 %v1291, %v1291
      %v1324 = vpack.c.b16 %v1292, %v1292
      %v1325 = vpack.c.b16 %v1293, %v1293
      %v1326 = vpack.c.b16 %v1294, %v1294
      %v1327 = vpack.c.b16 %v1295, %v1295
      %v1328 = vpack.c.b16 %v1296, %v1296
      %v1329 = vpack.c.b16 %v1297, %v1297
      %v1330 = vpack.c.b16 %v1298, %v1298
      %v1331 = vpack.c.b16 %v1299, %v1299
      %v1332 = vpack.c.b16 %v1300, %v1300
      %v1333 = vpack.c.b16 %v1301, %v1301
      %v1334 = vpack.c.b16 %v1302, %v1302
      %v1335 = vpack.c.b16 %v1303, %v1303
      %v1336 = vpack.c.b16 %v1304, %v1304
      %v1337 = vpack.c.b16 %v1305, %v1305
      %v1338 = vpack.c.b16 %v1306, %v1306
      %v1339 = vpack.c.b16 %v1307, %v1307
      %v1340 = vpack.c.b16 %v1308, %v1308
      %v1341 = vpack.c.b16 %v1309, %v1309
      %v1342 = vpack.c.b16 %v1310, %v1310
      %vm1375 = vcmask 257024
      %1376 = vst.msk [vmem:[%s251] sm:$0xf] %vm1375, %v1311
      %1377 = vst.msk [vmem:[%s251 + $0x4] sm:$0xf] %vm1375, %v1312
      %1378 = vst.msk [vmem:[%s251 + $0x8] sm:$0xf] %vm1375, %v1313
      %1379 = vst.msk [vmem:[%s251 + $0xc] sm:$0xf] %vm1375, %v1314
      %1380 = vst.msk [vmem:[%s251 + $0x10] sm:$0xf] %vm1375, %v1315
      %1381 = vst.msk [vmem:[%s251 + $0x14] sm:$0xf] %vm1375, %v1316
      %1382 = vst.msk [vmem:[%s251 + $0x18] sm:$0xf] %vm1375, %v1317
      %1383 = vst.msk [vmem:[%s251 + $0x1c] sm:$0xf] %vm1375, %v1318
      %1384 = vst.msk [vmem:[%s251 + $0x20] sm:$0xf] %vm1375, %v1319
      %1385 = vst.msk [vmem:[%s251 + $0x24] sm:$0xf] %vm1375, %v1320
      %1386 = vst.msk [vmem:[%s251 + $0x28] sm:$0xf] %vm1375, %v1321
      %1387 = vst.msk [vmem:[%s251 + $0x2c] sm:$0xf] %vm1375, %v1322
      %1388 = vst.msk [vmem:[%s251 + $0x30] sm:$0xf] %vm1375, %v1323
      %1389 = vst.msk [vmem:[%s251 + $0x34] sm:$0xf] %vm1375, %v1324
      %1390 = vst.msk [vmem:[%s251 + $0x38] sm:$0xf] %vm1375, %v1325
      %1391 = vst.msk [vmem:[%s251 + $0x3c] sm:$0xf] %vm1375, %v1326
      %1392 = vst.msk [vmem:[%s251 + $0x40] sm:$0xf] %vm1375, %v1327
      %1393 = vst.msk [vmem:[%s251 + $0x44] sm:$0xf] %vm1375, %v1328
      %1394 = vst.msk [vmem:[%s251 + $0x48] sm:$0xf] %vm1375, %v1329
      %1395 = vst.msk [vmem:[%s251 + $0x4c] sm:$0xf] %vm1375, %v1330
      %1396 = vst.msk [vmem:[%s251 + $0x50] sm:$0xf] %vm1375, %v1331
      %1397 = vst.msk [vmem:[%s251 + $0x54] sm:$0xf] %vm1375, %v1332
      %1398 = vst.msk [vmem:[%s251 + $0x58] sm:$0xf] %vm1375, %v1333
      %1399 = vst.msk [vmem:[%s251 + $0x5c] sm:$0xf] %vm1375, %v1334
      %1400 = vst.msk [vmem:[%s251 + $0x60] sm:$0xf] %vm1375, %v1335
      %1401 = vst.msk [vmem:[%s251 + $0x64] sm:$0xf] %vm1375, %v1336
      %1402 = vst.msk [vmem:[%s251 + $0x68] sm:$0xf] %vm1375, %v1337
      %1403 = vst.msk [vmem:[%s251 + $0x6c] sm:$0xf] %vm1375, %v1338
      %1404 = vst.msk [vmem:[%s251 + $0x70] sm:$0xf] %vm1375, %v1339
      %1405 = vst.msk [vmem:[%s251 + $0x74] sm:$0xf] %vm1375, %v1340
      %1406 = vst.msk [vmem:[%s251 + $0x78] sm:$0xf] %vm1375, %v1341
      %1407 = vst.msk [vmem:[%s251 + $0x7c] sm:$0xf] %vm1375, %v1342
      %s1408 = smul.u32 32, %s16
      %p1409 = scmp.lt.s32.totalorder %s1408, 63
      %s1410 = scalar_select %p1409, %s1408, 63
      %s1411 = smul.addr %s1410, 4
      %s1412 = scalar_lea.vmem %s5, %s1411
      // Predicated region
      $region41: #{l0_wide_resnet_forward.16} parent=39 // pred_check
        %p1413 = pneg %p149
      $region42: #{l0_wide_resnet_forward.16} parent=39 // pred_check_branch
        %1415 = sbr.rel (%p1413) target = $region44
      $region43: #{l0_wide_resnet_forward.16} parent=39 // pred_region
        %s1416 = smul.u32 32, %s16
      $region44: #{l0_wide_resnet_forward.16} parent=39 // pred_fallthru
        _
    $region40: #{l0_wide_resnet_forward.16} parent=5 // pred_fallthru
      _
    %p1417 = scmp.le.s32.totalorder 2, %s11
    // Predicated region
    $region45: #{l0_wide_resnet_forward.16} parent=5 // pred_check
      %p1418 = pneg %p1417
    $region46: #{l0_wide_resnet_forward.16} parent=5 // pred_check_branch
      %1420 = sbr.rel (%p1418) target = $region48
    $region47: #{l0_wide_resnet_forward.16} parent=5 // pred_region
      %s1421 = ssub.s32 %s11, 2
      // Predicated region
      $region49: #{l0_wide_resnet_forward.16} parent=47 // pred_check
        %p1422 = pneg %p155
      $region50: #{l0_wide_resnet_forward.16} parent=47 // pred_check_branch
        %1424 = sbr.rel (%p1422) target = $region52
      $region51: #{l0_wide_resnet_forward.16} parent=47 // pred_region
        %s1425 = smul.u32 32, %s17
        %p1426 = scmp.lt.s32.totalorder %s1425, 63
        %s1427 = scalar_select %p1426, %s1425, 63
        %s1428 = smul.addr %s1427, 4
        %s1429 = scalar_lea.vmem %s5, %s1428
      $region52: #{l0_wide_resnet_forward.16} parent=47 // pred_fallthru
        _
    $region48: #{l0_wide_resnet_forward.16} parent=5 // pred_fallthru
      _
  $region6: #{l0_wide_resnet_forward.16} parent=0 // loop_footer
    %s15 = sadd.s32 1, %s11
  $region7: #{l0_wide_resnet_forward.16} parent=0 // loop_footer_branch
    %10 = sbr.rel target = $region3
  $region8: #{l0_wide_resnet_forward.16} parent=0 // loop_exit
    _

// kernel: l0_wide_resnet_forward.17
$region0: #{l0_wide_resnet_forward.17}
  #allocation0 [shape = 'u32[]', space=smem, size = 0x4, offset = 0x4, fixed_abs, tag = 'smem constant byte address 0x4 - core index']
  #allocation1 [shape = 'u32[144,128]{1,0:T(1,128)}', space=vmem, size = 0x12000, scoped, tag = 'internal scratch']
  %s0 = inlined_call_operand.vmem [shape: bf16[512,288], index: 0, kind: input, shape index: {}]
  %s1 = inlined_call_operand.vmem [shape: bf16[288,64], index: 1, kind: input, shape index: {}]
  %s2 = inlined_call_operand.vmem [shape: f32[1,64], index: 2, kind: input, shape index: {}]
  %s3 = inlined_call_operand.vmem [shape: f32[1,64], index: 3, kind: input, shape index: {}]
  %s4 = inlined_call_operand.vmem [shape: bf16[512,64], index: 4, kind: output, shape index: {}]
  %s5 = sld [smem:[#allocation0]]
  $region49: #{l0_wide_resnet_forward.17} parent=0
    _
  %s7 = ssub.s32 1, %s5
  %s8 = scalar_select 0, %s7, %s5
  loop: start=0, step=1, limit=4
  $region2: #{l0_wide_resnet_forward.17} parent=0 // loop_pre_header
    _
  $region3: #{l0_wide_resnet_forward.17} parent=0 // loop_header
    %s10 = sphi 0, %s14
    %p11 = scmp.ge.s32.totalorder %s10, 4
    %s20 = sphi 0, %s22
    %s23 = sphi 0, %s20
    %s24 = sphi 0, %s23
    %s40 = sphi 0, %s24
    %s44 = sphi 0, %s44
    %s46 = sphi 0, %s44
    %s47 = sphi 0, %s46
    %s61 = sphi 0, %s47
    %s65 = sphi 0, %s65
    %s67 = sphi 0, %s65
    %s68 = sphi 0, %s67
    %s82 = sphi 0, %s68
    %s86 = sphi 0, %s86
    %s88 = sphi 0, %s86
    %s89 = sphi 0, %s88
    %s103 = sphi 0, %s89
    %s109 = sphi 0, %s111
    %s112 = sphi 0, %s109
    %s113 = sphi 0, %s112
    %s129 = sphi 0, %s113
  $region4: #{l0_wide_resnet_forward.17} parent=0 // loop_header_branch
    %13 = sbr.rel (%p11) target = $region8
  $region5: #{l0_wide_resnet_forward.17} parent=0 // loop_body
    %s15 = ssub.s32 %s10, 1
    %s16 = ssub.s32 %s10, 2
    %s17 = sadd.s32 %s10, 1
    %s18 = ssub.s32 %s10, %s17
    %p19 = scmp.eq.s32.totalorder %s18, 0
    %s21 = sadd.s32 %s20, 1
    %s22 = scalar_select %p19, %s20, %s21
    %p25 = pneg %p19
    %p26 = scmp.eq.s32.totalorder %s10, 1
    %p27 = por %p25, %p26
    %p28 = scmp.ne.s32.totalorder %s20, %s23
    %p29 = scmp.eq.s32.totalorder %s10, 0
    %p30 = por %p28, %p29
    %p31 = scmp.ne.s32.totalorder %s20, %s23
    %p32 = scmp.eq.s32.totalorder %s15, 1
    %p33 = por %p31, %p32
    %p34 = scmp.ne.s32.totalorder %s23, %s24
    %p35 = scmp.eq.s32.totalorder %s15, 0
    %p36 = por %p34, %p35
    %p37 = scmp.ne.s32.totalorder %s23, %s24
    %p38 = scmp.eq.s32.totalorder %s16, 1
    %p39 = por %p37, %p38
    %p41 = scmp.ne.s32.totalorder %s24, %s40
    %p42 = scmp.eq.s32.totalorder %s16, 0
    %p43 = por %p41, %p42
    %s45 = sadd.s32 %s44, 1
    %p48 = scmp.eq.s32.totalorder %s10, 1
    %p49 = scmp.ne.s32.totalorder %s44, %s46
    %p50 = scmp.eq.s32.totalorder %s10, 0
    %p51 = por %p49, %p50
    %p52 = scmp.ne.s32.totalorder %s44, %s46
    %p53 = scmp.eq.s32.totalorder %s15, 1
    %p54 = por %p52, %p53
    %p55 = scmp.ne.s32.totalorder %s46, %s47
    %p56 = scmp.eq.s32.totalorder %s15, 0
    %p57 = por %p55, %p56
    %p58 = scmp.ne.s32.totalorder %s46, %s47
    %p59 = scmp.eq.s32.totalorder %s16, 1
    %p60 = por %p58, %p59
    %p62 = scmp.ne.s32.totalorder %s47, %s61
    %p63 = scmp.eq.s32.totalorder %s16, 0
    %p64 = por %p62, %p63
    %s66 = sadd.s32 %s65, 1
    %p69 = scmp.eq.s32.totalorder %s10, 1
    %p70 = scmp.ne.s32.totalorder %s65, %s67
    %p71 = scmp.eq.s32.totalorder %s10, 0
    %p72 = por %p70, %p71
    %p73 = scmp.ne.s32.totalorder %s65, %s67
    %p74 = scmp.eq.s32.totalorder %s15, 1
    %p75 = por %p73, %p74
    %p76 = scmp.ne.s32.totalorder %s67, %s68
    %p77 = scmp.eq.s32.totalorder %s15, 0
    %p78 = por %p76, %p77
    %p79 = scmp.ne.s32.totalorder %s67, %s68
    %p80 = scmp.eq.s32.totalorder %s16, 1
    %p81 = por %p79, %p80
    %p83 = scmp.ne.s32.totalorder %s68, %s82
    %p84 = scmp.eq.s32.totalorder %s16, 0
    %p85 = por %p83, %p84
    %s87 = sadd.s32 %s86, 1
    %p90 = scmp.eq.s32.totalorder %s10, 1
    %p91 = scmp.ne.s32.totalorder %s86, %s88
    %p92 = scmp.eq.s32.totalorder %s10, 0
    %p93 = por %p91, %p92
    %p94 = scmp.ne.s32.totalorder %s86, %s88
    %p95 = scmp.eq.s32.totalorder %s15, 1
    %p96 = por %p94, %p95
    %p97 = scmp.ne.s32.totalorder %s88, %s89
    %p98 = scmp.eq.s32.totalorder %s15, 0
    %p99 = por %p97, %p98
    %p100 = scmp.ne.s32.totalorder %s88, %s89
    %p101 = scmp.eq.s32.totalorder %s16, 1
    %p102 = por %p100, %p101
    %p104 = scmp.ne.s32.totalorder %s89, %s103
    %p105 = scmp.eq.s32.totalorder %s16, 0
    %p106 = por %p104, %p105
    %s107 = ssub.s32 %s10, %s17
    %p108 = scmp.eq.s32.totalorder %s107, 0
    %s110 = sadd.s32 %s109, 1
    %s111 = scalar_select %p108, %s109, %s110
    %p114 = pneg %p108
    %p115 = scmp.eq.s32.totalorder %s10, 1
    %p116 = por %p114, %p115
    %p117 = scmp.ne.s32.totalorder %s109, %s112
    %p118 = scmp.eq.s32.totalorder %s10, 0
    %p119 = por %p117, %p118
    %p120 = scmp.ne.s32.totalorder %s109, %s112
    %p121 = scmp.eq.s32.totalorder %s15, 1
    %p122 = por %p120, %p121
    %p123 = scmp.ne.s32.totalorder %s112, %s113
    %p124 = scmp.eq.s32.totalorder %s15, 0
    %p125 = por %p123, %p124
    %p126 = scmp.ne.s32.totalorder %s112, %s113
    %p127 = scmp.eq.s32.totalorder %s16, 1
    %p128 = por %p126, %p127
    %p130 = scmp.ne.s32.totalorder %s113, %s129
    %p131 = scmp.eq.s32.totalorder %s16, 0
    %p132 = por %p130, %p131
    %p133 = scmp.le.s32.totalorder 1, %s10
    %p134 = scmp.lt.s32.totalorder %s10, 3
    %p135 = pnand %p133, %p134
    %p136 = pneg %p135
    // Predicated region
    $region9: #{l0_wide_resnet_forward.17} parent=5 // pred_check
      _
    $region10: #{l0_wide_resnet_forward.17} parent=5 // pred_check_branch
      %138 = sbr.rel (%p135) target = $region12
    $region11: #{l0_wide_resnet_forward.17} parent=5 // pred_region
      %s139 = ssub.s32 %s10, 1
      // Predicated region
      $region13: #{l0_wide_resnet_forward.17} parent=11 // pred_check
        %p140 = pneg %p57
      $region14: #{l0_wide_resnet_forward.17} parent=11 // pred_check_branch
        %142 = sbr.rel (%p140) target = $region16
      $region15: #{l0_wide_resnet_forward.17} parent=11 // pred_region
        _
      $region16: #{l0_wide_resnet_forward.17} parent=11 // pred_fallthru
        _
      // Predicated region
      $region17: #{l0_wide_resnet_forward.17} parent=11 // pred_check
        %p143 = pneg %p78
      $region18: #{l0_wide_resnet_forward.17} parent=11 // pred_check_branch
        %145 = sbr.rel (%p143) target = $region20
      $region19: #{l0_wide_resnet_forward.17} parent=11 // pred_region
        _
      $region20: #{l0_wide_resnet_forward.17} parent=11 // pred_fallthru
        _
      // Predicated region
      $region21: #{l0_wide_resnet_forward.17} parent=11 // pred_check
        %p146 = pneg %p99
      $region22: #{l0_wide_resnet_forward.17} parent=11 // pred_check_branch
        %148 = sbr.rel (%p146) target = $region24
      $region23: #{l0_wide_resnet_forward.17} parent=11 // pred_region
        _
      $region24: #{l0_wide_resnet_forward.17} parent=11 // pred_fallthru
        _
    $region12: #{l0_wide_resnet_forward.17} parent=5 // pred_fallthru
      _
    %p149 = scmp.lt.s32.totalorder %s10, 2
    // Predicated region
    $region25: #{l0_wide_resnet_forward.17} parent=5 // pred_check
      %p150 = pneg %p149
    $region26: #{l0_wide_resnet_forward.17} parent=5 // pred_check_branch
      %152 = sbr.rel (%p150) target = $region28
    $region27: #{l0_wide_resnet_forward.17} parent=5 // pred_region
      // Predicated region
      $region29: #{l0_wide_resnet_forward.17} parent=27 // pred_check
        %p153 = pneg %p30
      $region30: #{l0_wide_resnet_forward.17} parent=27 // pred_check_branch
        %155 = sbr.rel (%p153) target = $region32
      $region31: #{l0_wide_resnet_forward.17} parent=27 // pred_region
        %s156 = smul.u32 32, %s10
        %p157 = scmp.lt.s32.totalorder %s156, 63
        %s158 = scalar_select %p157, %s156, 63
        %s159 = smul.addr %s158, 3
        %s160 = smul.addr %s159, 4
        %s161 = scalar_lea.vmem %s0, %s160
        %s162 = smul.u32 32, %s10
      $region32: #{l0_wide_resnet_forward.17} parent=27 // pred_fallthru
        _
    $region28: #{l0_wide_resnet_forward.17} parent=5 // pred_fallthru
      _
    %p163 = scmp.le.s32.totalorder 1, %s10
    %p164 = scmp.lt.s32.totalorder %s10, 3
    %p165 = pnand %p163, %p164
    %p166 = pneg %p165
    // Predicated region
    $region33: #{l0_wide_resnet_forward.17} parent=5 // pred_check
      _
    $region34: #{l0_wide_resnet_forward.17} parent=5 // pred_check_branch
      %168 = sbr.rel (%p165) target = $region36
    $region35: #{l0_wide_resnet_forward.17} parent=5 // pred_region
      %s169 = ssub.s32 %s10, 1
      %s170 = smul.u32 32, %s15
      %p171 = scmp.lt.s32.totalorder %s170, 63
      %s172 = scalar_select %p171, %s170, 63
      %s173 = smul.addr %s172, 3
      %s174 = smul.addr %s173, 4
      %s175 = scalar_lea.vmem %s0, %s174
      %p176 = pneg %p36
      %p177 = pneg %p33
      %p178 = pneg %p57
      %p179 = pneg %p54
      %p180 = pneg %p78
      %p181 = pneg %p75
      %p182 = pneg %p99
      %p183 = pneg %p96
      %p184 = pneg %p125
      %p185 = pneg %p122
      %s186 = smul.u32 32, %s15
      %p187 = scmp.lt.s32.totalorder %s186, 63
      %s188 = scalar_select %p187, %s186, 63
      %s189 = smul.addr %s188, 4
      %s190 = scalar_lea.vmem %s4, %s189
      %s191 = smul.u32 32, %s15
      %p192 = scmp.lt.s32.totalorder %s191, 63
      %s193 = scalar_select %p192, %s191, 63
      %s194 = smul.addr %s193, 3
      %s195 = smul.addr %s194, 4
      %s196 = scalar_lea.vmem %s0, %s195
      %s197 = smul.u32 32, %s15
      %s198 = smul.u32 32, %s15
      %p199 = scmp.lt.s32.totalorder %s198, 63
      %s200 = scalar_select %p199, %s198, 63
      %s201 = smul.addr %s200, 4
      %s202 = scalar_lea.vmem %s4, %s201
      %s203 = smul.u32 32, %s15
      %v205 = vld [vmem:[%s196] sm:$0xff]
      %v206 = vld [vmem:[%s196 + $0x8] sm:$0xf]
      %v207 = vld [vmem:[%s196 + $0xc] sm:$0xff]
      %v208 = vld [vmem:[%s196 + $0x14] sm:$0xf]
      %v209 = vld [vmem:[%s196 + $0x18] sm:$0xff]
      %v210 = vld [vmem:[%s196 + $0x20] sm:$0xf]
      %v211 = vld [vmem:[%s196 + $0x24] sm:$0xff]
      %v212 = vld [vmem:[%s196 + $0x2c] sm:$0xf]
      %v213 = vld [vmem:[%s196 + $0x30] sm:$0xff]
      %v214 = vld [vmem:[%s196 + $0x38] sm:$0xf]
      %v215 = vld [vmem:[%s196 + $0x3c] sm:$0xff]
      %v216 = vld [vmem:[%s196 + $0x44] sm:$0xf]
      %v217 = vld [vmem:[%s196 + $0x48] sm:$0xff]
      %v218 = vld [vmem:[%s196 + $0x50] sm:$0xf]
      %v219 = vld [vmem:[%s196 + $0x54] sm:$0xff]
      %v220 = vld [vmem:[%s196 + $0x5c] sm:$0xf]
      %v221 = vld [vmem:[%s196 + $0x60] sm:$0xff]
      %v222 = vld [vmem:[%s196 + $0x68] sm:$0xf]
      %v223 = vld [vmem:[%s196 + $0x6c] sm:$0xff]
      %v224 = vld [vmem:[%s196 + $0x74] sm:$0xf]
      %v225 = vld [vmem:[%s196 + $0x78] sm:$0xff]
      %v226 = vld [vmem:[%s196 + $0x80] sm:$0xf]
      %v227 = vld [vmem:[%s196 + $0x84] sm:$0xff]
      %v228 = vld [vmem:[%s196 + $0x8c] sm:$0xf]
      %v229 = vld [vmem:[%s196 + $0x90] sm:$0xff]
      %v230 = vld [vmem:[%s196 + $0x98] sm:$0xf]
      %v231 = vld [vmem:[%s196 + $0x9c] sm:$0xff]
      %v232 = vld [vmem:[%s196 + $0xa4] sm:$0xf]
      %v233 = vld [vmem:[%s196 + $0xa8] sm:$0xff]
      %v234 = vld [vmem:[%s196 + $0xb0] sm:$0xf]
      %v235 = vld [vmem:[%s196 + $0xb4] sm:$0xff]
      %v236 = vld [vmem:[%s196 + $0xbc] sm:$0xf]
      %v237 = vld [vmem:[%s196 + $0xc0] sm:$0xff]
      %v238 = vld [vmem:[%s196 + $0xc8] sm:$0xf]
      %v239 = vld [vmem:[%s196 + $0xcc] sm:$0xff]
      %v240 = vld [vmem:[%s196 + $0xd4] sm:$0xf]
      %v241 = vld [vmem:[%s196 + $0xd8] sm:$0xff]
      %v242 = vld [vmem:[%s196 + $0xe0] sm:$0xf]
      %v243 = vld [vmem:[%s196 + $0xe4] sm:$0xff]
      %v244 = vld [vmem:[%s196 + $0xec] sm:$0xf]
      %v245 = vld [vmem:[%s196 + $0xf0] sm:$0xff]
      %v246 = vld [vmem:[%s196 + $0xf8] sm:$0xf]
      %v247 = vld [vmem:[%s196 + $0xfc] sm:$0xff]
      %v248 = vld [vmem:[%s196 + $0x104] sm:$0xf]
      %v249 = vld [vmem:[%s196 + $0x108] sm:$0xff]
      %v250 = vld [vmem:[%s196 + $0x110] sm:$0xf]
      %v251 = vld [vmem:[%s196 + $0x114] sm:$0xff]
      %v252 = vld [vmem:[%s196 + $0x11c] sm:$0xf]
      %v253 = vld [vmem:[%s196 + $0x120] sm:$0xff]
      %v254 = vld [vmem:[%s196 + $0x128] sm:$0xf]
      %v255 = vld [vmem:[%s196 + $0x12c] sm:$0xff]
      %v256 = vld [vmem:[%s196 + $0x134] sm:$0xf]
      %v257 = vld [vmem:[%s196 + $0x138] sm:$0xff]
      %v258 = vld [vmem:[%s196 + $0x140] sm:$0xf]
      %v259 = vld [vmem:[%s196 + $0x144] sm:$0xff]
      %v260 = vld [vmem:[%s196 + $0x14c] sm:$0xf]
      %v261 = vld [vmem:[%s196 + $0x150] sm:$0xff]
      %v262 = vld [vmem:[%s196 + $0x158] sm:$0xf]
      %v263 = vld [vmem:[%s196 + $0x15c] sm:$0xff]
      %v264 = vld [vmem:[%s196 + $0x164] sm:$0xf]
      %v265 = vld [vmem:[%s196 + $0x168] sm:$0xff]
      %v266 = vld [vmem:[%s196 + $0x170] sm:$0xf]
      %v267 = vld [vmem:[%s196 + $0x174] sm:$0xff]
      %v268 = vld [vmem:[%s196 + $0x17c] sm:$0xf]
      %v269 = vld [vmem:[%s1] sm:$0xf]
      %v270 = vld [vmem:[%s1 + $0x4] sm:$0xf]
      %v271 = vld [vmem:[%s1 + $0x8] sm:$0xf]
      %v272 = vld [vmem:[%s1 + $0xc] sm:$0xf]
      %v273 = vld [vmem:[%s1 + $0x10] sm:$0xf]
      %v274 = vld [vmem:[%s1 + $0x14] sm:$0xf]
      %v275 = vld [vmem:[%s1 + $0x18] sm:$0xf]
      %v276 = vld [vmem:[%s1 + $0x1c] sm:$0xf]
      %v277 = vld [vmem:[%s1 + $0x20] sm:$0xf]
      %v278 = vld [vmem:[%s1 + $0x24] sm:$0xf]
      %v279 = vld [vmem:[%s1 + $0x28] sm:$0xf]
      %v280 = vld [vmem:[%s1 + $0x2c] sm:$0xf]
      %v281 = vld [vmem:[%s1 + $0x30] sm:$0xf]
      %v282 = vld [vmem:[%s1 + $0x34] sm:$0xf]
      %v283 = vld [vmem:[%s1 + $0x38] sm:$0xf]
      %v284 = vld [vmem:[%s1 + $0x3c] sm:$0xf]
      %v285 = vld [vmem:[%s1 + $0x40] sm:$0xf]
      %v286 = vld [vmem:[%s1 + $0x44] sm:$0xf]
      %v287 = vld [vmem:[%s1 + $0x48] sm:$0xf]
      %v288 = vld [vmem:[%s1 + $0x4c] sm:$0xf]
      %v289 = vld [vmem:[%s1 + $0x50] sm:$0xf]
      %v290 = vld [vmem:[%s1 + $0x54] sm:$0xf]
      %v291 = vld [vmem:[%s1 + $0x58] sm:$0xf]
      %v292 = vld [vmem:[%s1 + $0x5c] sm:$0xf]
      %v293 = vld [vmem:[%s1 + $0x60] sm:$0xf]
      %v294 = vld [vmem:[%s1 + $0x64] sm:$0xf]
      %v295 = vld [vmem:[%s1 + $0x68] sm:$0xf]
      %v296 = vld [vmem:[%s1 + $0x6c] sm:$0xf]
      %v297 = vld [vmem:[%s1 + $0x70] sm:$0xf]
      %v298 = vld [vmem:[%s1 + $0x74] sm:$0xf]
      %v299 = vld [vmem:[%s1 + $0x78] sm:$0xf]
      %v300 = vld [vmem:[%s1 + $0x7c] sm:$0xf]
      %v301 = vld [vmem:[%s1 + $0x80] sm:$0xf]
      %v302 = vld [vmem:[%s1 + $0x84] sm:$0xf]
      %v303 = vld [vmem:[%s1 + $0x88] sm:$0xf]
      %v304 = vld [vmem:[%s1 + $0x8c] sm:$0xf]
      %v369 = vunpack.c.l.b16 %v205
      %v370 = vunpack.c.h.b16 %v205
      %v371 = vunpack.c.l.b16 %v206
      %v372 = vunpack.c.l.b16 %v207
      %v373 = vunpack.c.h.b16 %v207
      %v374 = vunpack.c.l.b16 %v208
      %v375 = vunpack.c.l.b16 %v209
      %v376 = vunpack.c.h.b16 %v209
      %v377 = vunpack.c.l.b16 %v210
      %v378 = vunpack.c.l.b16 %v211
      %v379 = vunpack.c.h.b16 %v211
      %v380 = vunpack.c.l.b16 %v212
      %v381 = vunpack.c.l.b16 %v213
      %v382 = vunpack.c.h.b16 %v213
      %v383 = vunpack.c.l.b16 %v214
      %v384 = vunpack.c.l.b16 %v215
      %v385 = vunpack.c.h.b16 %v215
      %v386 = vunpack.c.l.b16 %v216
      %v387 = vunpack.c.l.b16 %v217
      %v388 = vunpack.c.h.b16 %v217
      %v389 = vunpack.c.l.b16 %v218
      %v390 = vunpack.c.l.b16 %v219
      %v391 = vunpack.c.h.b16 %v219
      %v392 = vunpack.c.l.b16 %v220
      %v393 = vunpack.c.l.b16 %v221
      %v394 = vunpack.c.h.b16 %v221
      %v395 = vunpack.c.l.b16 %v222
      %v396 = vunpack.c.l.b16 %v223
      %v397 = vunpack.c.h.b16 %v223
      %v398 = vunpack.c.l.b16 %v224
      %v399 = vunpack.c.l.b16 %v225
      %v400 = vunpack.c.h.b16 %v225
      %v401 = vunpack.c.l.b16 %v226
      %v402 = vunpack.c.l.b16 %v227
      %v403 = vunpack.c.h.b16 %v227
      %v404 = vunpack.c.l.b16 %v228
      %v405 = vunpack.c.l.b16 %v229
      %v406 = vunpack.c.h.b16 %v229
      %v407 = vunpack.c.l.b16 %v230
      %v408 = vunpack.c.l.b16 %v231
      %v409 = vunpack.c.h.b16 %v231
      %v410 = vunpack.c.l.b16 %v232
      %v411 = vunpack.c.l.b16 %v233
      %v412 = vunpack.c.h.b16 %v233
      %v413 = vunpack.c.l.b16 %v234
      %v414 = vunpack.c.l.b16 %v235
      %v415 = vunpack.c.h.b16 %v235
      %v416 = vunpack.c.l.b16 %v236
      %v417 = vunpack.c.l.b16 %v237
      %v418 = vunpack.c.h.b16 %v237
      %v419 = vunpack.c.l.b16 %v238
      %v420 = vunpack.c.l.b16 %v239
      %v421 = vunpack.c.h.b16 %v239
      %v422 = vunpack.c.l.b16 %v240
      %v423 = vunpack.c.l.b16 %v241
      %v424 = vunpack.c.h.b16 %v241
      %v425 = vunpack.c.l.b16 %v242
      %v426 = vunpack.c.l.b16 %v243
      %v427 = vunpack.c.h.b16 %v243
      %v428 = vunpack.c.l.b16 %v244
      %v429 = vunpack.c.l.b16 %v245
      %v430 = vunpack.c.h.b16 %v245
      %v431 = vunpack.c.l.b16 %v246
      %v432 = vunpack.c.l.b16 %v247
      %v433 = vunpack.c.h.b16 %v247
      %v434 = vunpack.c.l.b16 %v248
      %v435 = vunpack.c.l.b16 %v249
      %v436 = vunpack.c.h.b16 %v249
      %v437 = vunpack.c.l.b16 %v250
      %v438 = vunpack.c.l.b16 %v251
      %v439 = vunpack.c.h.b16 %v251
      %v440 = vunpack.c.l.b16 %v252
      %v441 = vunpack.c.l.b16 %v253
      %v442 = vunpack.c.h.b16 %v253
      %v443 = vunpack.c.l.b16 %v254
      %v444 = vunpack.c.l.b16 %v255
      %v445 = vunpack.c.h.b16 %v255
      %v446 = vunpack.c.l.b16 %v256
      %v447 = vunpack.c.l.b16 %v257
      %v448 = vunpack.c.h.b16 %v257
      %v449 = vunpack.c.l.b16 %v258
      %v450 = vunpack.c.l.b16 %v259
      %v451 = vunpack.c.h.b16 %v259
      %v452 = vunpack.c.l.b16 %v260
      %v453 = vunpack.c.l.b16 %v261
      %v454 = vunpack.c.h.b16 %v261
      %v455 = vunpack.c.l.b16 %v262
      %v456 = vunpack.c.l.b16 %v263
      %v457 = vunpack.c.h.b16 %v263
      %v458 = vunpack.c.l.b16 %v264
      %v459 = vunpack.c.l.b16 %v265
      %v460 = vunpack.c.h.b16 %v265
      %v461 = vunpack.c.l.b16 %v266
      %v462 = vunpack.c.l.b16 %v267
      %v463 = vunpack.c.h.b16 %v267
      %v464 = vunpack.c.l.b16 %v268
      %v465 = vpack.c.b16 %v372, %v369
      %v466 = vpack.c.b16 %v373, %v370
      %v467 = vpack.c.b16 %v374, %v371
      %v468 = vpack.c.b16 %v378, %v375
      %v469 = vpack.c.b16 %v379, %v376
      %v470 = vpack.c.b16 %v380, %v377
      %v471 = vpack.c.b16 %v384, %v381
      %v472 = vpack.c.b16 %v385, %v382
      %v473 = vpack.c.b16 %v386, %v383
      %v474 = vpack.c.b16 %v390, %v387
      %v475 = vpack.c.b16 %v391, %v388
      %v476 = vpack.c.b16 %v392, %v389
      %v477 = vpack.c.b16 %v396, %v393
      %v478 = vpack.c.b16 %v397, %v394
      %v479 = vpack.c.b16 %v398, %v395
      %v480 = vpack.c.b16 %v402, %v399
      %v481 = vpack.c.b16 %v403, %v400
      %v482 = vpack.c.b16 %v404, %v401
      %v483 = vpack.c.b16 %v408, %v405
      %v484 = vpack.c.b16 %v409, %v406
      %v485 = vpack.c.b16 %v410, %v407
      %v486 = vpack.c.b16 %v414, %v411
      %v487 = vpack.c.b16 %v415, %v412
      %v488 = vpack.c.b16 %v416, %v413
      %v489 = vpack.c.b16 %v420, %v417
      %v490 = vpack.c.b16 %v421, %v418
      %v491 = vpack.c.b16 %v422, %v419
      %v492 = vpack.c.b16 %v426, %v423
      %v493 = vpack.c.b16 %v427, %v424
      %v494 = vpack.c.b16 %v428, %v425
      %v495 = vpack.c.b16 %v432, %v429
      %v496 = vpack.c.b16 %v433, %v430
      %v497 = vpack.c.b16 %v434, %v431
      %v498 = vpack.c.b16 %v438, %v435
      %v499 = vpack.c.b16 %v439, %v436
      %v500 = vpack.c.b16 %v440, %v437
      %v501 = vpack.c.b16 %v444, %v441
      %v502 = vpack.c.b16 %v445, %v442
      %v503 = vpack.c.b16 %v446, %v443
      %v504 = vpack.c.b16 %v450, %v447
      %v505 = vpack.c.b16 %v451, %v448
      %v506 = vpack.c.b16 %v452, %v449
      %v507 = vpack.c.b16 %v456, %v453
      %v508 = vpack.c.b16 %v457, %v454
      %v509 = vpack.c.b16 %v458, %v455
      %v510 = vpack.c.b16 %v462, %v459
      %v511 = vpack.c.b16 %v463, %v460
      %v512 = vpack.c.b16 %v464, %v461
      %v581 = vunpack.c.l.b16 %v269
      %v582 = vunpack.c.l.b16 %v270
      %v583 = vunpack.c.l.b16 %v271
      %v584 = vunpack.c.l.b16 %v272
      %v585 = vunpack.c.l.b16 %v273
      %v586 = vunpack.c.l.b16 %v274
      %v587 = vunpack.c.l.b16 %v275
      %v588 = vunpack.c.l.b16 %v276
      %v589 = vunpack.c.l.b16 %v277
      %v590 = vunpack.c.l.b16 %v278
      %v591 = vunpack.c.l.b16 %v279
      %v592 = vunpack.c.l.b16 %v280
      %v593 = vunpack.c.l.b16 %v281
      %v594 = vunpack.c.l.b16 %v282
      %v595 = vunpack.c.l.b16 %v283
      %v596 = vunpack.c.l.b16 %v284
      %v597 = vunpack.c.l.b16 %v285
      %v598 = vunpack.c.l.b16 %v286
      %v599 = vunpack.c.l.b16 %v287
      %v600 = vunpack.c.l.b16 %v288
      %v601 = vunpack.c.l.b16 %v289
      %v602 = vunpack.c.l.b16 %v290
      %v603 = vunpack.c.l.b16 %v291
      %v604 = vunpack.c.l.b16 %v292
      %v605 = vunpack.c.l.b16 %v293
      %v606 = vunpack.c.l.b16 %v294
      %v607 = vunpack.c.l.b16 %v295
      %v608 = vunpack.c.l.b16 %v296
      %v609 = vunpack.c.l.b16 %v297
      %v610 = vunpack.c.l.b16 %v298
      %v611 = vunpack.c.l.b16 %v299
      %v612 = vunpack.c.l.b16 %v300
      %v613 = vunpack.c.l.b16 %v301
      %v614 = vunpack.c.l.b16 %v302
      %v615 = vunpack.c.l.b16 %v303
      %v616 = vunpack.c.l.b16 %v304
      %v617 = vpack.c.b16 %v582, %v581
      %v618 = vpack.c.b16 %v584, %v583
      %v619 = vpack.c.b16 %v586, %v585
      %v620 = vpack.c.b16 %v588, %v587
      %v621 = vpack.c.b16 %v590, %v589
      %v622 = vpack.c.b16 %v592, %v591
      %v623 = vpack.c.b16 %v594, %v593
      %v624 = vpack.c.b16 %v596, %v595
      %v625 = vpack.c.b16 %v598, %v597
      %v626 = vpack.c.b16 %v600, %v599
      %v627 = vpack.c.b16 %v602, %v601
      %v628 = vpack.c.b16 %v604, %v603
      %v629 = vpack.c.b16 %v606, %v605
      %v630 = vpack.c.b16 %v608, %v607
      %v631 = vpack.c.b16 %v610, %v609
      %v632 = vpack.c.b16 %v612, %v611
      %v633 = vpack.c.b16 %v614, %v613
      %v634 = vpack.c.b16 %v616, %v615
      %vm653 = vcmask 261120
      %v655 = vsel %vm653, %v467, 0
      %v658 = vsel %vm653, %v470, 0
      %v661 = vsel %vm653, %v473, 0
      %v664 = vsel %vm653, %v476, 0
      %v667 = vsel %vm653, %v479, 0
      %v670 = vsel %vm653, %v482, 0
      %v673 = vsel %vm653, %v485, 0
      %v676 = vsel %vm653, %v488, 0
      %v679 = vsel %vm653, %v491, 0
      %v682 = vsel %vm653, %v494, 0
      %v685 = vsel %vm653, %v497, 0
      %v688 = vsel %vm653, %v500, 0
      %v691 = vsel %vm653, %v503, 0
      %v694 = vsel %vm653, %v506, 0
      %v697 = vsel %vm653, %v509, 0
      %v700 = vsel %vm653, %v512, 0
      %702 = vmatprep.subr.bf16.mxu0 0
      %703 = vmatpush1.bf16.msra.mxu0 %v617
      %704 = vmatprep.subr.bf16.mxu0 0
      %705 = vmatpush1.bf16.msra.mxu0 %v618
      %706 = vmatprep.subr.bf16.mxu0 0
      %707 = vmatpush1.bf16.msra.mxu0 %v619
      %708 = vmatprep.subr.bf16.mxu0 0
      %709 = vmatpush1.bf16.msra.mxu0 %v620
      %710 = vmatprep.subr.bf16.mxu0 0
      %711 = vmatpush1.bf16.msra.mxu0 %v621
      %712 = vmatprep.subr.bf16.mxu0 0
      %713 = vmatpush1.bf16.msra.mxu0 %v622
      %714 = vmatprep.subr.bf16.mxu0 0
      %715 = vmatpush1.bf16.msra.mxu0 %v623
      %716 = vmatprep.subr.bf16.mxu0 0
      %717 = vmatpush1.bf16.msra.mxu0 %v624
      %718 = vmatprep.subr.bf16.mxu0 0
      %719 = vmatpush1.bf16.msra.mxu0 %v625
      %720 = vmatprep.subr.bf16.mxu0 0
      %721 = vmatpush1.bf16.msra.mxu0 %v626
      %722 = vmatprep.subr.bf16.mxu0 0
      %723 = vmatpush1.bf16.msra.mxu0 %v627
      %724 = vmatprep.subr.bf16.mxu0 0
      %725 = vmatpush1.bf16.msra.mxu0 %v628
      %726 = vmatprep.subr.bf16.mxu0 0
      %727 = vmatpush1.bf16.msra.mxu0 %v629
      %728 = vmatprep.subr.bf16.mxu0 0
      %729 = vmatpush1.bf16.msra.mxu0 %v630
      %730 = vmatprep.subr.bf16.mxu0 0
      %731 = vmatpush1.bf16.msra.mxu0 %v631
      %732 = vmatprep.subr.bf16.mxu0 0
      %733 = vmatpush1.bf16.msra.mxu0 %v632
      %734 = vmatprep.mubr.bf16.mxu0 %v466
      %735 = vmatmul.mubr.bf16.gmra.mrb[0].mxu0 %v465
      %v736 = vpop.f32.mrb[0].mxu0
      %v737 = vadd.f32 0.0, %v736
      %v738 = vpop.f32.mrb[0].mxu0
      %v739 = vpop.f32.mrb[0].mxu0
      %v740 = vadd.f32 0.0, %v739
      %v741 = vpop.f32.mrb[0].mxu0
      %742 = vmatprep.mubr.bf16.mxu0 %v469
      %743 = vmatmul.mubr.bf16.gmra.mrb[0].mxu0 %v468
      %v744 = vpop.f32.mrb[0].mxu0
      %v745 = vadd.f32 0.0, %v744
      %v746 = vpop.f32.mrb[0].mxu0
      %v747 = vpop.f32.mrb[0].mxu0
      %v748 = vadd.f32 0.0, %v747
      %v749 = vpop.f32.mrb[0].mxu0
      %750 = vmatprep.mubr.bf16.mxu0 %v472
      %751 = vmatmul.mubr.bf16.gmra.mrb[0].mxu0 %v471
      %v752 = vpop.f32.mrb[0].mxu0
      %v753 = vadd.f32 0.0, %v752
      %v754 = vpop.f32.mrb[0].mxu0
      %v755 = vpop.f32.mrb[0].mxu0
      %v756 = vadd.f32 0.0, %v755
      %v757 = vpop.f32.mrb[0].mxu0
      %758 = vmatprep.mubr.bf16.mxu0 %v475
      %759 = vmatmul.mubr.bf16.gmra.mrb[0].mxu0 %v474
      %v760 = vpop.f32.mrb[0].mxu0
      %v761 = vadd.f32 0.0, %v760
      %v762 = vpop.f32.mrb[0].mxu0
      %v763 = vpop.f32.mrb[0].mxu0
      %v764 = vadd.f32 0.0, %v763
      %v765 = vpop.f32.mrb[0].mxu0
      %766 = vmatprep.mubr.bf16.mxu0 %v478
      %767 = vmatmul.mubr.bf16.gmra.mrb[0].mxu0 %v477
      %v768 = vpop.f32.mrb[0].mxu0
      %v769 = vadd.f32 0.0, %v768
      %v770 = vpop.f32.mrb[0].mxu0
      %v771 = vpop.f32.mrb[0].mxu0
      %v772 = vadd.f32 0.0, %v771
      %v773 = vpop.f32.mrb[0].mxu0
      %774 = vmatprep.mubr.bf16.mxu0 %v481
      %775 = vmatmul.mubr.bf16.gmra.mrb[0].mxu0 %v480
      %v776 = vpop.f32.mrb[0].mxu0
      %v777 = vadd.f32 0.0, %v776
      %v778 = vpop.f32.mrb[0].mxu0
      %v779 = vpop.f32.mrb[0].mxu0
      %v780 = vadd.f32 0.0, %v779
      %v781 = vpop.f32.mrb[0].mxu0
      %782 = vmatprep.mubr.bf16.mxu0 %v484
      %783 = vmatmul.mubr.bf16.gmra.mrb[0].mxu0 %v483
      %v784 = vpop.f32.mrb[0].mxu0
      %v785 = vadd.f32 0.0, %v784
      %v786 = vpop.f32.mrb[0].mxu0
      %v787 = vpop.f32.mrb[0].mxu0
      %v788 = vadd.f32 0.0, %v787
      %v789 = vpop.f32.mrb[0].mxu0
      %790 = vmatprep.mubr.bf16.mxu0 %v487
      %791 = vmatmul.mubr.bf16.gmra.mrb[0].mxu0 %v486
      %v792 = vpop.f32.mrb[0].mxu0
      %v793 = vadd.f32 0.0, %v792
      %v794 = vpop.f32.mrb[0].mxu0
      %v795 = vpop.f32.mrb[0].mxu0
      %v796 = vadd.f32 0.0, %v795
      %v797 = vpop.f32.mrb[0].mxu0
      %798 = vmatprep.mubr.bf16.mxu0 %v490
      %799 = vmatmul.mubr.bf16.gmra.mrb[0].mxu0 %v489
      %v800 = vpop.f32.mrb[0].mxu0
      %v801 = vadd.f32 0.0, %v800
      %v802 = vpop.f32.mrb[0].mxu0
      %v803 = vpop.f32.mrb[0].mxu0
      %v804 = vadd.f32 0.0, %v803
      %v805 = vpop.f32.mrb[0].mxu0
      %806 = vmatprep.mubr.bf16.mxu0 %v493
      %807 = vmatmul.mubr.bf16.gmra.mrb[0].mxu0 %v492
      %v808 = vpop.f32.mrb[0].mxu0
      %v809 = vadd.f32 0.0, %v808
      %v810 = vpop.f32.mrb[0].mxu0
      %v811 = vpop.f32.mrb[0].mxu0
      %v812 = vadd.f32 0.0, %v811
      %v813 = vpop.f32.mrb[0].mxu0
      %814 = vmatprep.mubr.bf16.mxu0 %v496
      %815 = vmatmul.mubr.bf16.gmra.mrb[0].mxu0 %v495
      %v816 = vpop.f32.mrb[0].mxu0
      %v817 = vadd.f32 0.0, %v816
      %v818 = vpop.f32.mrb[0].mxu0
      %v819 = vpop.f32.mrb[0].mxu0
      %v820 = vadd.f32 0.0, %v819
      %v821 = vpop.f32.mrb[0].mxu0
      %822 = vmatprep.mubr.bf16.mxu0 %v499
      %823 = vmatmul.mubr.bf16.gmra.mrb[0].mxu0 %v498
      %v824 = vpop.f32.mrb[0].mxu0
      %v825 = vadd.f32 0.0, %v824
      %v826 = vpop.f32.mrb[0].mxu0
      %v827 = vpop.f32.mrb[0].mxu0
      %v828 = vadd.f32 0.0, %v827
      %v829 = vpop.f32.mrb[0].mxu0
      %830 = vmatprep.mubr.bf16.mxu0 %v502
      %831 = vmatmul.mubr.bf16.gmra.mrb[0].mxu0 %v501
      %v832 = vpop.f32.mrb[0].mxu0
      %v833 = vadd.f32 0.0, %v832
      %v834 = vpop.f32.mrb[0].mxu0
      %v835 = vpop.f32.mrb[0].mxu0
      %v836 = vadd.f32 0.0, %v835
      %v837 = vpop.f32.mrb[0].mxu0
      %838 = vmatprep.mubr.bf16.mxu0 %v505
      %839 = vmatmul.mubr.bf16.gmra.mrb[0].mxu0 %v504
      %v840 = vpop.f32.mrb[0].mxu0
      %v841 = vadd.f32 0.0, %v840
      %v842 = vpop.f32.mrb[0].mxu0
      %v843 = vpop.f32.mrb[0].mxu0
      %v844 = vadd.f32 0.0, %v843
      %v845 = vpop.f32.mrb[0].mxu0
      %846 = vmatprep.mubr.bf16.mxu0 %v508
      %847 = vmatmul.mubr.bf16.gmra.mrb[0].mxu0 %v507
      %v848 = vpop.f32.mrb[0].mxu0
      %v849 = vadd.f32 0.0, %v848
      %v850 = vpop.f32.mrb[0].mxu0
      %v851 = vpop.f32.mrb[0].mxu0
      %v852 = vadd.f32 0.0, %v851
      %v853 = vpop.f32.mrb[0].mxu0
      %854 = vmatprep.mubr.bf16.mxu0 %v511
      %855 = vmatmul.mubr.bf16.gmra.mrb[0].mxu0 %v510
      %v856 = vpop.f32.mrb[0].mxu0
      %v857 = vadd.f32 0.0, %v856
      %v858 = vpop.f32.mrb[0].mxu0
      %v859 = vpop.f32.mrb[0].mxu0
      %v860 = vadd.f32 0.0, %v859
      %v861 = vpop.f32.mrb[0].mxu0
      %862 = vdwg.mxu0
      %863 = vmatprep.subr.bf16.mxu0 0
      %864 = vmatpush1.bf16.msra.mxu0 %v633
      %865 = vmatprep.subr.bf16.mxu0 0
      %866 = vmatpush1.bf16.msra.mxu0 %v634
      %867 = vmatprep.subr.bf16.mxu0 0
      %868 = vmatpush1.bf16.msra.mxu0 0
      %869 = vmatprep.subr.bf16.mxu0 0
      %870 = vmatpush1.bf16.msra.mxu0 0
      %871 = vmatprep.subr.bf16.mxu0 0
      %872 = vmatpush1.bf16.msra.mxu0 0
      %873 = vmatprep.subr.bf16.mxu0 0
      %874 = vmatpush1.bf16.msra.mxu0 0
      %875 = vmatprep.subr.bf16.mxu0 0
      %876 = vmatpush1.bf16.msra.mxu0 0
      %877 = vmatprep.subr.bf16.mxu0 0
      %878 = vmatpush1.bf16.msra.mxu0 0
      %879 = vmatprep.subr.bf16.mxu0 0
      %880 = vmatpush1.bf16.msra.mxu0 0
      %881 = vmatprep.subr.bf16.mxu0 0
      %882 = vmatpush1.bf16.msra.mxu0 0
      %883 = vmatprep.subr.bf16.mxu0 0
      %884 = vmatpush1.bf16.msra.mxu0 0
      %885 = vmatprep.subr.bf16.mxu0 0
      %886 = vmatpush1.bf16.msra.mxu0 0
      %887 = vmatprep.subr.bf16.mxu0 0
      %888 = vmatpush1.bf16.msra.mxu0 0
      %889 = vmatprep.subr.bf16.mxu0 0
      %890 = vmatpush1.bf16.msra.mxu0 0
      %891 = vmatprep.subr.bf16.mxu0 0
      %892 = vmatpush1.bf16.msra.mxu0 0
      %893 = vmatprep.subr.bf16.mxu0 0
      %894 = vmatpush1.bf16.msra.mxu0 0
      %895 = vmatprep.mubr.bf16.mxu0 0
      %896 = vmatmul.mubr.bf16.gmra.mrb[0].mxu0 %v655
      %v897 = vpop.f32.mrb[0].mxu0
      %v898 = vadd.f32 %v737, %v897
      %v899 = vpop.f32.mrb[0].mxu0
      %v900 = vpop.f32.mrb[0].mxu0
      %v901 = vadd.f32 %v740, %v900
      %v902 = vpop.f32.mrb[0].mxu0
      %903 = vmatprep.mubr.bf16.mxu0 0
      %904 = vmatmul.mubr.bf16.gmra.mrb[0].mxu0 %v658
      %v905 = vpop.f32.mrb[0].mxu0
      %v906 = vadd.f32 %v745, %v905
      %v907 = vpop.f32.mrb[0].mxu0
      %v908 = vpop.f32.mrb[0].mxu0
      %v909 = vadd.f32 %v748, %v908
      %v910 = vpop.f32.mrb[0].mxu0
      %911 = vmatprep.mubr.bf16.mxu0 0
      %912 = vmatmul.mubr.bf16.gmra.mrb[0].mxu0 %v661
      %v913 = vpop.f32.mrb[0].mxu0
      %v914 = vadd.f32 %v753, %v913
      %v915 = vpop.f32.mrb[0].mxu0
      %v916 = vpop.f32.mrb[0].mxu0
      %v917 = vadd.f32 %v756, %v916
      %v918 = vpop.f32.mrb[0].mxu0
      %919 = vmatprep.mubr.bf16.mxu0 0
      %920 = vmatmul.mubr.bf16.gmra.mrb[0].mxu0 %v664
      %v921 = vpop.f32.mrb[0].mxu0
      %v922 = vadd.f32 %v761, %v921
      %v923 = vpop.f32.mrb[0].mxu0
      %v924 = vpop.f32.mrb[0].mxu0
      %v925 = vadd.f32 %v764, %v924
      %v926 = vpop.f32.mrb[0].mxu0
      %927 = vmatprep.mubr.bf16.mxu0 0
      %928 = vmatmul.mubr.bf16.gmra.mrb[0].mxu0 %v667
      %v929 = vpop.f32.mrb[0].mxu0
      %v930 = vadd.f32 %v769, %v929
      %v931 = vpop.f32.mrb[0].mxu0
      %v932 = vpop.f32.mrb[0].mxu0
      %v933 = vadd.f32 %v772, %v932
      %v934 = vpop.f32.mrb[0].mxu0
      %935 = vmatprep.mubr.bf16.mxu0 0
      %936 = vmatmul.mubr.bf16.gmra.mrb[0].mxu0 %v670
      %v937 = vpop.f32.mrb[0].mxu0
      %v938 = vadd.f32 %v777, %v937
      %v939 = vpop.f32.mrb[0].mxu0
      %v940 = vpop.f32.mrb[0].mxu0
      %v941 = vadd.f32 %v780, %v940
      %v942 = vpop.f32.mrb[0].mxu0
      %943 = vmatprep.mubr.bf16.mxu0 0
      %944 = vmatmul.mubr.bf16.gmra.mrb[0].mxu0 %v673
      %v945 = vpop.f32.mrb[0].mxu0
      %v946 = vadd.f32 %v785, %v945
      %v947 = vpop.f32.mrb[0].mxu0
      %v948 = vpop.f32.mrb[0].mxu0
      %v949 = vadd.f32 %v788, %v948
      %v950 = vpop.f32.mrb[0].mxu0
      %951 = vmatprep.mubr.bf16.mxu0 0
      %952 = vmatmul.mubr.bf16.gmra.mrb[0].mxu0 %v676
      %v953 = vpop.f32.mrb[0].mxu0
      %v954 = vadd.f32 %v793, %v953
      %v955 = vpop.f32.mrb[0].mxu0
      %v956 = vpop.f32.mrb[0].mxu0
      %v957 = vadd.f32 %v796, %v956
      %v958 = vpop.f32.mrb[0].mxu0
      %959 = vmatprep.mubr.bf16.mxu0 0
      %960 = vmatmul.mubr.bf16.gmra.mrb[0].mxu0 %v679
      %v961 = vpop.f32.mrb[0].mxu0
      %v962 = vadd.f32 %v801, %v961
      %v963 = vpop.f32.mrb[0].mxu0
      %v964 = vpop.f32.mrb[0].mxu0
      %v965 = vadd.f32 %v804, %v964
      %v966 = vpop.f32.mrb[0].mxu0
      %967 = vmatprep.mubr.bf16.mxu0 0
      %968 = vmatmul.mubr.bf16.gmra.mrb[0].mxu0 %v682
      %v969 = vpop.f32.mrb[0].mxu0
      %v970 = vadd.f32 %v809, %v969
      %v971 = vpop.f32.mrb[0].mxu0
      %v972 = vpop.f32.mrb[0].mxu0
      %v973 = vadd.f32 %v812, %v972
      %v974 = vpop.f32.mrb[0].mxu0
      %975 = vmatprep.mubr.bf16.mxu0 0
      %976 = vmatmul.mubr.bf16.gmra.mrb[0].mxu0 %v685
      %v977 = vpop.f32.mrb[0].mxu0
      %v978 = vadd.f32 %v817, %v977
      %v979 = vpop.f32.mrb[0].mxu0
      %v980 = vpop.f32.mrb[0].mxu0
      %v981 = vadd.f32 %v820, %v980
      %v982 = vpop.f32.mrb[0].mxu0
      %983 = vmatprep.mubr.bf16.mxu0 0
      %984 = vmatmul.mubr.bf16.gmra.mrb[0].mxu0 %v688
      %v985 = vpop.f32.mrb[0].mxu0
      %v986 = vadd.f32 %v825, %v985
      %v987 = vpop.f32.mrb[0].mxu0
      %v988 = vpop.f32.mrb[0].mxu0
      %v989 = vadd.f32 %v828, %v988
      %v990 = vpop.f32.mrb[0].mxu0
      %991 = vmatprep.mubr.bf16.mxu0 0
      %992 = vmatmul.mubr.bf16.gmra.mrb[0].mxu0 %v691
      %v993 = vpop.f32.mrb[0].mxu0
      %v994 = vadd.f32 %v833, %v993
      %v995 = vpop.f32.mrb[0].mxu0
      %v996 = vpop.f32.mrb[0].mxu0
      %v997 = vadd.f32 %v836, %v996
      %v998 = vpop.f32.mrb[0].mxu0
      %999 = vmatprep.mubr.bf16.mxu0 0
      %1000 = vmatmul.mubr.bf16.gmra.mrb[0].mxu0 %v694
      %v1001 = vpop.f32.mrb[0].mxu0
      %v1002 = vadd.f32 %v841, %v1001
      %v1003 = vpop.f32.mrb[0].mxu0
      %v1004 = vpop.f32.mrb[0].mxu0
      %v1005 = vadd.f32 %v844, %v1004
      %v1006 = vpop.f32.mrb[0].mxu0
      %1007 = vmatprep.mubr.bf16.mxu0 0
      %1008 = vmatmul.mubr.bf16.gmra.mrb[0].mxu0 %v697
      %v1009 = vpop.f32.mrb[0].mxu0
      %v1010 = vadd.f32 %v849, %v1009
      %v1011 = vpop.f32.mrb[0].mxu0
      %v1012 = vpop.f32.mrb[0].mxu0
      %v1013 = vadd.f32 %v852, %v1012
      %v1014 = vpop.f32.mrb[0].mxu0
      %1015 = vmatprep.mubr.bf16.mxu0 0
      %1016 = vmatmul.mubr.bf16.gmra.mrb[0].mxu0 %v700
      %v1017 = vpop.f32.mrb[0].mxu0
      %v1018 = vadd.f32 %v857, %v1017
      %v1019 = vpop.f32.mrb[0].mxu0
      %v1020 = vpop.f32.mrb[0].mxu0
      %v1021 = vadd.f32 %v860, %v1020
      %v1022 = vpop.f32.mrb[0].mxu0
      %1023 = vdwg.mxu0
      %v1024 = vld [vmem:[%s2] sm:$0x1]
      %v1026 = vlaneseq
      %v1027 = vshrl.u32 %v1026, 7
      %v1028 = vsub.s32 0, %v1027
      %v1029 = vrot.slane %v1024, %v1028
      %v1031 = vmul.f32 %v898, %v1029
      %v1032 = vmul.f32 %v901, %v1029
      %v1033 = vmul.f32 %v906, %v1029
      %v1034 = vmul.f32 %v909, %v1029
      %v1035 = vmul.f32 %v914, %v1029
      %v1036 = vmul.f32 %v917, %v1029
      %v1037 = vmul.f32 %v922, %v1029
      %v1038 = vmul.f32 %v925, %v1029
      %v1039 = vmul.f32 %v930, %v1029
      %v1040 = vmul.f32 %v933, %v1029
      %v1041 = vmul.f32 %v938, %v1029
      %v1042 = vmul.f32 %v941, %v1029
      %v1043 = vmul.f32 %v946, %v1029
      %v1044 = vmul.f32 %v949, %v1029
      %v1045 = vmul.f32 %v954, %v1029
      %v1046 = vmul.f32 %v957, %v1029
      %v1047 = vmul.f32 %v962, %v1029
      %v1048 = vmul.f32 %v965, %v1029
      %v1049 = vmul.f32 %v970, %v1029
      %v1050 = vmul.f32 %v973, %v1029
      %v1051 = vmul.f32 %v978, %v1029
      %v1052 = vmul.f32 %v981, %v1029
      %v1053 = vmul.f32 %v986, %v1029
      %v1054 = vmul.f32 %v989, %v1029
      %v1055 = vmul.f32 %v994, %v1029
      %v1056 = vmul.f32 %v997, %v1029
      %v1057 = vmul.f32 %v1002, %v1029
      %v1058 = vmul.f32 %v1005, %v1029
      %v1059 = vmul.f32 %v1010, %v1029
      %v1060 = vmul.f32 %v1013, %v1029
      %v1061 = vmul.f32 %v1018, %v1029
      %v1062 = vmul.f32 %v1021, %v1029
      %v1063 = vld [vmem:[%s3] sm:$0x1]
      %v1065 = vlaneseq
      %v1066 = vshrl.u32 %v1065, 7
      %v1067 = vsub.s32 0, %v1066
      %v1068 = vrot.slane %v1063, %v1067
      %v1070 = vadd.f32 %v1031, %v1068
      %v1071 = vadd.f32 %v1032, %v1068
      %v1072 = vadd.f32 %v1033, %v1068
      %v1073 = vadd.f32 %v1034, %v1068
      %v1074 = vadd.f32 %v1035, %v1068
      %v1075 = vadd.f32 %v1036, %v1068
      %v1076 = vadd.f32 %v1037, %v1068
      %v1077 = vadd.f32 %v1038, %v1068
      %v1078 = vadd.f32 %v1039, %v1068
      %v1079 = vadd.f32 %v1040, %v1068
      %v1080 = vadd.f32 %v1041, %v1068
      %v1081 = vadd.f32 %v1042, %v1068
      %v1082 = vadd.f32 %v1043, %v1068
      %v1083 = vadd.f32 %v1044, %v1068
      %v1084 = vadd.f32 %v1045, %v1068
      %v1085 = vadd.f32 %v1046, %v1068
      %v1086 = vadd.f32 %v1047, %v1068
      %v1087 = vadd.f32 %v1048, %v1068
      %v1088 = vadd.f32 %v1049, %v1068
      %v1089 = vadd.f32 %v1050, %v1068
      %v1090 = vadd.f32 %v1051, %v1068
      %v1091 = vadd.f32 %v1052, %v1068
      %v1092 = vadd.f32 %v1053, %v1068
      %v1093 = vadd.f32 %v1054, %v1068
      %v1094 = vadd.f32 %v1055, %v1068
      %v1095 = vadd.f32 %v1056, %v1068
      %v1096 = vadd.f32 %v1057, %v1068
      %v1097 = vadd.f32 %v1058, %v1068
      %v1098 = vadd.f32 %v1059, %v1068
      %v1099 = vadd.f32 %v1060, %v1068
      %v1100 = vadd.f32 %v1061, %v1068
      %v1101 = vadd.f32 %v1062, %v1068
      %v1102 = vmax.f32 %v1070, 0.0
      %v1103 = vmax.f32 %v1071, 0.0
      %v1104 = vmax.f32 %v1072, 0.0
      %v1105 = vmax.f32 %v1073, 0.0
      %v1106 = vmax.f32 %v1074, 0.0
      %v1107 = vmax.f32 %v1075, 0.0
      %v1108 = vmax.f32 %v1076, 0.0
      %v1109 = vmax.f32 %v1077, 0.0
      %v1110 = vmax.f32 %v1078, 0.0
      %v1111 = vmax.f32 %v1079, 0.0
      %v1112 = vmax.f32 %v1080, 0.0
      %v1113 = vmax.f32 %v1081, 0.0
      %v1114 = vmax.f32 %v1082, 0.0
      %v1115 = vmax.f32 %v1083, 0.0
      %v1116 = vmax.f32 %v1084, 0.0
      %v1117 = vmax.f32 %v1085, 0.0
      %v1118 = vmax.f32 %v1086, 0.0
      %v1119 = vmax.f32 %v1087, 0.0
      %v1120 = vmax.f32 %v1088, 0.0
      %v1121 = vmax.f32 %v1089, 0.0
      %v1122 = vmax.f32 %v1090, 0.0
      %v1123 = vmax.f32 %v1091, 0.0
      %v1124 = vmax.f32 %v1092, 0.0
      %v1125 = vmax.f32 %v1093, 0.0
      %v1126 = vmax.f32 %v1094, 0.0
      %v1127 = vmax.f32 %v1095, 0.0
      %v1128 = vmax.f32 %v1096, 0.0
      %v1129 = vmax.f32 %v1097, 0.0
      %v1130 = vmax.f32 %v1098, 0.0
      %v1131 = vmax.f32 %v1099, 0.0
      %v1132 = vmax.f32 %v1100, 0.0
      %v1133 = vmax.f32 %v1101, 0.0
      %v1134 = vpack.c.bf16 %v1103, %v1102
      %v1135 = vpack.c.bf16 %v1105, %v1104
      %v1136 = vpack.c.bf16 %v1107, %v1106
      %v1137 = vpack.c.bf16 %v1109, %v1108
      %v1138 = vpack.c.bf16 %v1111, %v1110
      %v1139 = vpack.c.bf16 %v1113, %v1112
      %v1140 = vpack.c.bf16 %v1115, %v1114
      %v1141 = vpack.c.bf16 %v1117, %v1116
      %v1142 = vpack.c.bf16 %v1119, %v1118
      %v1143 = vpack.c.bf16 %v1121, %v1120
      %v1144 = vpack.c.bf16 %v1123, %v1122
      %v1145 = vpack.c.bf16 %v1125, %v1124
      %v1146 = vpack.c.bf16 %v1127, %v1126
      %v1147 = vpack.c.bf16 %v1129, %v1128
      %v1148 = vpack.c.bf16 %v1131, %v1130
      %v1149 = vpack.c.bf16 %v1133, %v1132
      %v1166 = vunpack.c.l.b16 %v1134
      %v1167 = vunpack.c.h.b16 %v1134
      %v1168 = vunpack.c.l.b16 %v1135
      %v1169 = vunpack.c.h.b16 %v1135
      %v1170 = vunpack.c.l.b16 %v1136
      %v1171 = vunpack.c.h.b16 %v1136
      %v1172 = vunpack.c.l.b16 %v1137
      %v1173 = vunpack.c.h.b16 %v1137
      %v1174 = vunpack.c.l.b16 %v1138
      %v1175 = vunpack.c.h.b16 %v1138
      %v1176 = vunpack.c.l.b16 %v1139
      %v1177 = vunpack.c.h.b16 %v1139
      %v1178 = vunpack.c.l.b16 %v1140
      %v1179 = vunpack.c.h.b16 %v1140
      %v1180 = vunpack.c.l.b16 %v1141
      %v1181 = vunpack.c.h.b16 %v1141
      %v1182 = vunpack.c.l.b16 %v1142
      %v1183 = vunpack.c.h.b16 %v1142
      %v1184 = vunpack.c.l.b16 %v1143
      %v1185 = vunpack.c.h.b16 %v1143
      %v1186 = vunpack.c.l.b16 %v1144
      %v1187 = vunpack.c.h.b16 %v1144
      %v1188 = vunpack.c.l.b16 %v1145
      %v1189 = vunpack.c.h.b16 %v1145
      %v1190 = vunpack.c.l.b16 %v1146
      %v1191 = vunpack.c.h.b16 %v1146
      %v1192 = vunpack.c.l.b16 %v1147
      %v1193 = vunpack.c.h.b16 %v1147
      %v1194 = vunpack.c.l.b16 %v1148
      %v1195 = vunpack.c.h.b16 %v1148
      %v1196 = vunpack.c.l.b16 %v1149
      %v1197 = vunpack.c.h.b16 %v1149
      %v1198 = vpack.c.b16 %v1166, %v1166
      %v1199 = vpack.c.b16 %v1167, %v1167
      %v1200 = vpack.c.b16 %v1168, %v1168
      %v1201 = vpack.c.b16 %v1169, %v1169
      %v1202 = vpack.c.b16 %v1170, %v1170
      %v1203 = vpack.c.b16 %v1171, %v1171
      %v1204 = vpack.c.b16 %v1172, %v1172
      %v1205 = vpack.c.b16 %v1173, %v1173
      %v1206 = vpack.c.b16 %v1174, %v1174
      %v1207 = vpack.c.b16 %v1175, %v1175
      %v1208 = vpack.c.b16 %v1176, %v1176
      %v1209 = vpack.c.b16 %v1177, %v1177
      %v1210 = vpack.c.b16 %v1178, %v1178
      %v1211 = vpack.c.b16 %v1179, %v1179
      %v1212 = vpack.c.b16 %v1180, %v1180
      %v1213 = vpack.c.b16 %v1181, %v1181
      %v1214 = vpack.c.b16 %v1182, %v1182
      %v1215 = vpack.c.b16 %v1183, %v1183
      %v1216 = vpack.c.b16 %v1184, %v1184
      %v1217 = vpack.c.b16 %v1185, %v1185
      %v1218 = vpack.c.b16 %v1186, %v1186
      %v1219 = vpack.c.b16 %v1187, %v1187
      %v1220 = vpack.c.b16 %v1188, %v1188
      %v1221 = vpack.c.b16 %v1189, %v1189
      %v1222 = vpack.c.b16 %v1190, %v1190
      %v1223 = vpack.c.b16 %v1191, %v1191
      %v1224 = vpack.c.b16 %v1192, %v1192
      %v1225 = vpack.c.b16 %v1193, %v1193
      %v1226 = vpack.c.b16 %v1194, %v1194
      %v1227 = vpack.c.b16 %v1195, %v1195
      %v1228 = vpack.c.b16 %v1196, %v1196
      %v1229 = vpack.c.b16 %v1197, %v1197
      %vm1262 = vcmask 519168
      %1263 = vst.msk [vmem:[%s202] sm:$0xf] %vm1262, %v1198
      %1264 = vst.msk [vmem:[%s202 + $0x4] sm:$0xf] %vm1262, %v1199
      %1265 = vst.msk [vmem:[%s202 + $0x8] sm:$0xf] %vm1262, %v1200
      %1266 = vst.msk [vmem:[%s202 + $0xc] sm:$0xf] %vm1262, %v1201
      %1267 = vst.msk [vmem:[%s202 + $0x10] sm:$0xf] %vm1262, %v1202
      %1268 = vst.msk [vmem:[%s202 + $0x14] sm:$0xf] %vm1262, %v1203
      %1269 = vst.msk [vmem:[%s202 + $0x18] sm:$0xf] %vm1262, %v1204
      %1270 = vst.msk [vmem:[%s202 + $0x1c] sm:$0xf] %vm1262, %v1205
      %1271 = vst.msk [vmem:[%s202 + $0x20] sm:$0xf] %vm1262, %v1206
      %1272 = vst.msk [vmem:[%s202 + $0x24] sm:$0xf] %vm1262, %v1207
      %1273 = vst.msk [vmem:[%s202 + $0x28] sm:$0xf] %vm1262, %v1208
      %1274 = vst.msk [vmem:[%s202 + $0x2c] sm:$0xf] %vm1262, %v1209
      %1275 = vst.msk [vmem:[%s202 + $0x30] sm:$0xf] %vm1262, %v1210
      %1276 = vst.msk [vmem:[%s202 + $0x34] sm:$0xf] %vm1262, %v1211
      %1277 = vst.msk [vmem:[%s202 + $0x38] sm:$0xf] %vm1262, %v1212
      %1278 = vst.msk [vmem:[%s202 + $0x3c] sm:$0xf] %vm1262, %v1213
      %1279 = vst.msk [vmem:[%s202 + $0x40] sm:$0xf] %vm1262, %v1214
      %1280 = vst.msk [vmem:[%s202 + $0x44] sm:$0xf] %vm1262, %v1215
      %1281 = vst.msk [vmem:[%s202 + $0x48] sm:$0xf] %vm1262, %v1216
      %1282 = vst.msk [vmem:[%s202 + $0x4c] sm:$0xf] %vm1262, %v1217
      %1283 = vst.msk [vmem:[%s202 + $0x50] sm:$0xf] %vm1262, %v1218
      %1284 = vst.msk [vmem:[%s202 + $0x54] sm:$0xf] %vm1262, %v1219
      %1285 = vst.msk [vmem:[%s202 + $0x58] sm:$0xf] %vm1262, %v1220
      %1286 = vst.msk [vmem:[%s202 + $0x5c] sm:$0xf] %vm1262, %v1221
      %1287 = vst.msk [vmem:[%s202 + $0x60] sm:$0xf] %vm1262, %v1222
      %1288 = vst.msk [vmem:[%s202 + $0x64] sm:$0xf] %vm1262, %v1223
      %1289 = vst.msk [vmem:[%s202 + $0x68] sm:$0xf] %vm1262, %v1224
      %1290 = vst.msk [vmem:[%s202 + $0x6c] sm:$0xf] %vm1262, %v1225
      %1291 = vst.msk [vmem:[%s202 + $0x70] sm:$0xf] %vm1262, %v1226
      %1292 = vst.msk [vmem:[%s202 + $0x74] sm:$0xf] %vm1262, %v1227
      %1293 = vst.msk [vmem:[%s202 + $0x78] sm:$0xf] %vm1262, %v1228
      %1294 = vst.msk [vmem:[%s202 + $0x7c] sm:$0xf] %vm1262, %v1229
      %s1295 = smul.u32 32, %s15
      %p1296 = scmp.lt.s32.totalorder %s1295, 63
      %s1297 = scalar_select %p1296, %s1295, 63
      %s1298 = smul.addr %s1297, 4
      %s1299 = scalar_lea.vmem %s4, %s1298
      // Predicated region
      $region37: #{l0_wide_resnet_forward.17} parent=35 // pred_check
        %p1300 = pneg %p122
      $region38: #{l0_wide_resnet_forward.17} parent=35 // pred_check_branch
        %1302 = sbr.rel (%p1300) target = $region40
      $region39: #{l0_wide_resnet_forward.17} parent=35 // pred_region
        %s1303 = smul.u32 32, %s15
      $region40: #{l0_wide_resnet_forward.17} parent=35 // pred_fallthru
        _
    $region36: #{l0_wide_resnet_forward.17} parent=5 // pred_fallthru
      _
    %p1304 = scmp.le.s32.totalorder 2, %s10
    // Predicated region
    $region41: #{l0_wide_resnet_forward.17} parent=5 // pred_check
      %p1305 = pneg %p1304
    $region42: #{l0_wide_resnet_forward.17} parent=5 // pred_check_branch
      %1307 = sbr.rel (%p1305) target = $region44
    $region43: #{l0_wide_resnet_forward.17} parent=5 // pred_region
      %s1308 = ssub.s32 %s10, 2
      // Predicated region
      $region45: #{l0_wide_resnet_forward.17} parent=43 // pred_check
        %p1309 = pneg %p128
      $region46: #{l0_wide_resnet_forward.17} parent=43 // pred_check_branch
        %1311 = sbr.rel (%p1309) target = $region48
      $region47: #{l0_wide_resnet_forward.17} parent=43 // pred_region
        %s1312 = smul.u32 32, %s16
        %p1313 = scmp.lt.s32.totalorder %s1312, 63
        %s1314 = scalar_select %p1313, %s1312, 63
        %s1315 = smul.addr %s1314, 4
        %s1316 = scalar_lea.vmem %s4, %s1315
      $region48: #{l0_wide_resnet_forward.17} parent=43 // pred_fallthru
        _
    $region44: #{l0_wide_resnet_forward.17} parent=5 // pred_fallthru
      _
  $region6: #{l0_wide_resnet_forward.17} parent=0 // loop_footer
    %s14 = sadd.s32 1, %s10
  $region7: #{l0_wide_resnet_forward.17} parent=0 // loop_footer_branch
    %9 = sbr.rel target = $region3
  $region8: #{l0_wide_resnet_forward.17} parent=0 // loop_exit
    _

// kernel: l0_wide_resnet_forward.18
$region0: #{l0_wide_resnet_forward.18}
  #allocation0 [shape = 'u32[]', space=smem, size = 0x4, offset = 0x4, fixed_abs, tag = 'smem constant byte address 0x4 - core index']
  #allocation1 [shape = 'u32[144,128]{1,0:T(1,128)}', space=vmem, size = 0x12000, scoped, tag = 'internal scratch']
  %s0 = inlined_call_operand.vmem [shape: bf16[128,32], index: 0, kind: input, shape index: {}]
  %s1 = inlined_call_operand.vmem [shape: bf16[32,64], index: 1, kind: input, shape index: {}]
  %s2 = inlined_call_operand.vmem [shape: bf16[128,64], index: 2, kind: output, shape index: {}]
  %s3 = sld [smem:[#allocation0]]
  $region41: #{l0_wide_resnet_forward.18} parent=0
    _
  %s5 = ssub.s32 1, %s3
  %s6 = scalar_select 0, %s5, %s3
  loop: start=0, step=1, limit=4
  $region2: #{l0_wide_resnet_forward.18} parent=0 // loop_pre_header
    _
  $region3: #{l0_wide_resnet_forward.18} parent=0 // loop_header
    %s8 = sphi 0, %s12
    %p9 = scmp.ge.s32.totalorder %s8, 4
    %s18 = sphi 0, %s20
    %s21 = sphi 0, %s18
    %s22 = sphi 0, %s21
    %s38 = sphi 0, %s22
    %s42 = sphi 0, %s42
    %s44 = sphi 0, %s42
    %s45 = sphi 0, %s44
    %s59 = sphi 0, %s45
    %s65 = sphi 0, %s67
    %s68 = sphi 0, %s65
    %s69 = sphi 0, %s68
    %s85 = sphi 0, %s69
  $region4: #{l0_wide_resnet_forward.18} parent=0 // loop_header_branch
    %11 = sbr.rel (%p9) target = $region8
  $region5: #{l0_wide_resnet_forward.18} parent=0 // loop_body
    %s13 = ssub.s32 %s8, 1
    %s14 = ssub.s32 %s8, 2
    %s15 = sadd.s32 %s8, 1
    %s16 = ssub.s32 %s8, %s15
    %p17 = scmp.eq.s32.totalorder %s16, 0
    %s19 = sadd.s32 %s18, 1
    %s20 = scalar_select %p17, %s18, %s19
    %p23 = pneg %p17
    %p24 = scmp.eq.s32.totalorder %s8, 1
    %p25 = por %p23, %p24
    %p26 = scmp.ne.s32.totalorder %s18, %s21
    %p27 = scmp.eq.s32.totalorder %s8, 0
    %p28 = por %p26, %p27
    %p29 = scmp.ne.s32.totalorder %s18, %s21
    %p30 = scmp.eq.s32.totalorder %s13, 1
    %p31 = por %p29, %p30
    %p32 = scmp.ne.s32.totalorder %s21, %s22
    %p33 = scmp.eq.s32.totalorder %s13, 0
    %p34 = por %p32, %p33
    %p35 = scmp.ne.s32.totalorder %s21, %s22
    %p36 = scmp.eq.s32.totalorder %s14, 1
    %p37 = por %p35, %p36
    %p39 = scmp.ne.s32.totalorder %s22, %s38
    %p40 = scmp.eq.s32.totalorder %s14, 0
    %p41 = por %p39, %p40
    %s43 = sadd.s32 %s42, 1
    %p46 = scmp.eq.s32.totalorder %s8, 1
    %p47 = scmp.ne.s32.totalorder %s42, %s44
    %p48 = scmp.eq.s32.totalorder %s8, 0
    %p49 = por %p47, %p48
    %p50 = scmp.ne.s32.totalorder %s42, %s44
    %p51 = scmp.eq.s32.totalorder %s13, 1
    %p52 = por %p50, %p51
    %p53 = scmp.ne.s32.totalorder %s44, %s45
    %p54 = scmp.eq.s32.totalorder %s13, 0
    %p55 = por %p53, %p54
    %p56 = scmp.ne.s32.totalorder %s44, %s45
    %p57 = scmp.eq.s32.totalorder %s14, 1
    %p58 = por %p56, %p57
    %p60 = scmp.ne.s32.totalorder %s45, %s59
    %p61 = scmp.eq.s32.totalorder %s14, 0
    %p62 = por %p60, %p61
    %s63 = ssub.s32 %s8, %s15
    %p64 = scmp.eq.s32.totalorder %s63, 0
    %s66 = sadd.s32 %s65, 1
    %s67 = scalar_select %p64, %s65, %s66
    %p70 = pneg %p64
    %p71 = scmp.eq.s32.totalorder %s8, 1
    %p72 = por %p70, %p71
    %p73 = scmp.ne.s32.totalorder %s65, %s68
    %p74 = scmp.eq.s32.totalorder %s8, 0
    %p75 = por %p73, %p74
    %p76 = scmp.ne.s32.totalorder %s65, %s68
    %p77 = scmp.eq.s32.totalorder %s13, 1
    %p78 = por %p76, %p77
    %p79 = scmp.ne.s32.totalorder %s68, %s69
    %p80 = scmp.eq.s32.totalorder %s13, 0
    %p81 = por %p79, %p80
    %p82 = scmp.ne.s32.totalorder %s68, %s69
    %p83 = scmp.eq.s32.totalorder %s14, 1
    %p84 = por %p82, %p83
    %p86 = scmp.ne.s32.totalorder %s69, %s85
    %p87 = scmp.eq.s32.totalorder %s14, 0
    %p88 = por %p86, %p87
    %p89 = scmp.le.s32.totalorder 1, %s8
    %p90 = scmp.lt.s32.totalorder %s8, 3
    %p91 = pnand %p89, %p90
    %p92 = pneg %p91
    // Predicated region
    $region9: #{l0_wide_resnet_forward.18} parent=5 // pred_check
      _
    $region10: #{l0_wide_resnet_forward.18} parent=5 // pred_check_branch
      %94 = sbr.rel (%p91) target = $region12
    $region11: #{l0_wide_resnet_forward.18} parent=5 // pred_region
      %s95 = ssub.s32 %s8, 1
      // Predicated region
      $region13: #{l0_wide_resnet_forward.18} parent=11 // pred_check
        %p96 = pneg %p55
      $region14: #{l0_wide_resnet_forward.18} parent=11 // pred_check_branch
        %98 = sbr.rel (%p96) target = $region16
      $region15: #{l0_wide_resnet_forward.18} parent=11 // pred_region
        _
      $region16: #{l0_wide_resnet_forward.18} parent=11 // pred_fallthru
        _
    $region12: #{l0_wide_resnet_forward.18} parent=5 // pred_fallthru
      _
    %p99 = scmp.lt.s32.totalorder %s8, 2
    // Predicated region
    $region17: #{l0_wide_resnet_forward.18} parent=5 // pred_check
      %p100 = pneg %p99
    $region18: #{l0_wide_resnet_forward.18} parent=5 // pred_check_branch
      %102 = sbr.rel (%p100) target = $region20
    $region19: #{l0_wide_resnet_forward.18} parent=5 // pred_region
      // Predicated region
      $region21: #{l0_wide_resnet_forward.18} parent=19 // pred_check
        %p103 = pneg %p28
      $region22: #{l0_wide_resnet_forward.18} parent=19 // pred_check_branch
        %105 = sbr.rel (%p103) target = $region24
      $region23: #{l0_wide_resnet_forward.18} parent=19 // pred_region
        %s106 = smul.u32 8, %s8
        %p107 = scmp.lt.s32.totalorder %s106, 15
        %s108 = scalar_select %p107, %s106, 15
        %s109 = smul.addr %s108, 4
        %s110 = scalar_lea.vmem %s0, %s109
        %s111 = smul.u32 8, %s8
      $region24: #{l0_wide_resnet_forward.18} parent=19 // pred_fallthru
        _
    $region20: #{l0_wide_resnet_forward.18} parent=5 // pred_fallthru
      _
    %p112 = scmp.le.s32.totalorder 1, %s8
    %p113 = scmp.lt.s32.totalorder %s8, 3
    %p114 = pnand %p112, %p113
    %p115 = pneg %p114
    // Predicated region
    $region25: #{l0_wide_resnet_forward.18} parent=5 // pred_check
      _
    $region26: #{l0_wide_resnet_forward.18} parent=5 // pred_check_branch
      %117 = sbr.rel (%p114) target = $region28
    $region27: #{l0_wide_resnet_forward.18} parent=5 // pred_region
      %s118 = ssub.s32 %s8, 1
      %s119 = smul.u32 8, %s13
      %p120 = scmp.lt.s32.totalorder %s119, 15
      %s121 = scalar_select %p120, %s119, 15
      %s122 = smul.addr %s121, 4
      %s123 = scalar_lea.vmem %s0, %s122
      %p124 = pneg %p34
      %p125 = pneg %p31
      %p126 = pneg %p55
      %p127 = pneg %p52
      %p128 = pneg %p81
      %p129 = pneg %p78
      %s130 = smul.u32 8, %s13
      %p131 = scmp.lt.s32.totalorder %s130, 15
      %s132 = scalar_select %p131, %s130, 15
      %s133 = smul.addr %s132, 4
      %s134 = scalar_lea.vmem %s2, %s133
      %s135 = smul.u32 8, %s13
      %p136 = scmp.lt.s32.totalorder %s135, 15
      %s137 = scalar_select %p136, %s135, 15
      %s138 = smul.addr %s137, 4
      %s139 = scalar_lea.vmem %s0, %s138
      %s140 = smul.u32 8, %s13
      %s141 = smul.u32 8, %s13
      %p142 = scmp.lt.s32.totalorder %s141, 15
      %s143 = scalar_select %p142, %s141, 15
      %s144 = smul.addr %s143, 4
      %s145 = scalar_lea.vmem %s2, %s144
      %s146 = smul.u32 8, %s13
      %v148 = vld [vmem:[%s139] sm:$0xf]
      %v149 = vld [vmem:[%s139 + $0x4] sm:$0xf]
      %v150 = vld [vmem:[%s139 + $0x8] sm:$0xf]
      %v151 = vld [vmem:[%s139 + $0xc] sm:$0xf]
      %v152 = vld [vmem:[%s139 + $0x10] sm:$0xf]
      %v153 = vld [vmem:[%s139 + $0x14] sm:$0xf]
      %v154 = vld [vmem:[%s139 + $0x18] sm:$0xf]
      %v155 = vld [vmem:[%s139 + $0x1c] sm:$0xf]
      %v156 = vld [vmem:[%s1] sm:$0xf]
      %v157 = vld [vmem:[%s1 + $0x4] sm:$0xf]
      %v158 = vld [vmem:[%s1 + $0x8] sm:$0xf]
      %v159 = vld [vmem:[%s1 + $0xc] sm:$0xf]
      %v168 = vunpack.c.l.b16 %v148
      %v169 = vunpack.c.l.b16 %v149
      %v170 = vunpack.c.l.b16 %v150
      %v171 = vunpack.c.l.b16 %v151
      %v172 = vunpack.c.l.b16 %v152
      %v173 = vunpack.c.l.b16 %v153
      %v174 = vunpack.c.l.b16 %v154
      %v175 = vunpack.c.l.b16 %v155
      %v176 = vpack.c.b16 %v169, %v168
      %v177 = vpack.c.b16 %v171, %v170
      %v178 = vpack.c.b16 %v173, %v172
      %v179 = vpack.c.b16 %v175, %v174
      %v184 = vunpack.c.l.b16 %v156
      %v185 = vunpack.c.l.b16 %v157
      %v186 = vunpack.c.l.b16 %v158
      %v187 = vunpack.c.l.b16 %v159
      %v188 = vpack.c.b16 %v185, %v184
      %v189 = vpack.c.b16 %v187, %v186
      %vm192 = vcmask 261120
      %v194 = vsel %vm192, %v176, 0
      %v197 = vsel %vm192, %v177, 0
      %v200 = vsel %vm192, %v178, 0
      %v203 = vsel %vm192, %v179, 0
      %205 = vmatprep.subr.bf16.mxu0 0
      %206 = vmatpush1.bf16.msra.mxu0 %v188
      %207 = vmatprep.subr.bf16.mxu0 0
      %208 = vmatpush1.bf16.msra.mxu0 %v189
      %209 = vmatprep.subr.bf16.mxu0 0
      %210 = vmatpush1.bf16.msra.mxu0 0
      %211 = vmatprep.subr.bf16.mxu0 0
      %212 = vmatpush1.bf16.msra.mxu0 0
      %213 = vmatprep.subr.bf16.mxu0 0
      %214 = vmatpush1.bf16.msra.mxu0 0
      %215 = vmatprep.subr.bf16.mxu0 0
      %216 = vmatpush1.bf16.msra.mxu0 0
      %217 = vmatprep.subr.bf16.mxu0 0
      %218 = vmatpush1.bf16.msra.mxu0 0
      %219 = vmatprep.subr.bf16.mxu0 0
      %220 = vmatpush1.bf16.msra.mxu0 0
      %221 = vmatprep.subr.bf16.mxu0 0
      %222 = vmatpush1.bf16.msra.mxu0 0
      %223 = vmatprep.subr.bf16.mxu0 0
      %224 = vmatpush1.bf16.msra.mxu0 0
      %225 = vmatprep.subr.bf16.mxu0 0
      %226 = vmatpush1.bf16.msra.mxu0 0
      %227 = vmatprep.subr.bf16.mxu0 0
      %228 = vmatpush1.bf16.msra.mxu0 0
      %229 = vmatprep.subr.bf16.mxu0 0
      %230 = vmatpush1.bf16.msra.mxu0 0
      %231 = vmatprep.subr.bf16.mxu0 0
      %232 = vmatpush1.bf16.msra.mxu0 0
      %233 = vmatprep.subr.bf16.mxu0 0
      %234 = vmatpush1.bf16.msra.mxu0 0
      %235 = vmatprep.subr.bf16.mxu0 0
      %236 = vmatpush1.bf16.msra.mxu0 0
      %237 = vmatprep.mubr.bf16.mxu0 0
      %238 = vmatmul.mubr.bf16.gmra.mrb[0].mxu0 %v194
      %v239 = vpop.f32.mrb[0].mxu0
      %v240 = vadd.f32 0.0, %v239
      %v241 = vpop.f32.mrb[0].mxu0
      %v242 = vpop.f32.mrb[0].mxu0
      %v243 = vadd.f32 0.0, %v242
      %v244 = vpop.f32.mrb[0].mxu0
      %245 = vmatprep.mubr.bf16.mxu0 0
      %246 = vmatmul.mubr.bf16.gmra.mrb[0].mxu0 %v197
      %v247 = vpop.f32.mrb[0].mxu0
      %v248 = vadd.f32 0.0, %v247
      %v249 = vpop.f32.mrb[0].mxu0
      %v250 = vpop.f32.mrb[0].mxu0
      %v251 = vadd.f32 0.0, %v250
      %v252 = vpop.f32.mrb[0].mxu0
      %253 = vmatprep.mubr.bf16.mxu0 0
      %254 = vmatmul.mubr.bf16.gmra.mrb[0].mxu0 %v200
      %v255 = vpop.f32.mrb[0].mxu0
      %v256 = vadd.f32 0.0, %v255
      %v257 = vpop.f32.mrb[0].mxu0
      %v258 = vpop.f32.mrb[0].mxu0
      %v259 = vadd.f32 0.0, %v258
      %v260 = vpop.f32.mrb[0].mxu0
      %261 = vmatprep.mubr.bf16.mxu0 0
      %262 = vmatmul.mubr.bf16.gmra.mrb[0].mxu0 %v203
      %v263 = vpop.f32.mrb[0].mxu0
      %v264 = vadd.f32 0.0, %v263
      %v265 = vpop.f32.mrb[0].mxu0
      %v266 = vpop.f32.mrb[0].mxu0
      %v267 = vadd.f32 0.0, %v266
      %v268 = vpop.f32.mrb[0].mxu0
      %269 = vdwg.mxu0
      %v270 = vpack.c.bf16 %v243, %v240
      %v271 = vpack.c.bf16 %v251, %v248
      %v272 = vpack.c.bf16 %v259, %v256
      %v273 = vpack.c.bf16 %v267, %v264
      %v278 = vunpack.c.l.b16 %v270
      %v279 = vunpack.c.h.b16 %v270
      %v280 = vunpack.c.l.b16 %v271
      %v281 = vunpack.c.h.b16 %v271
      %v282 = vunpack.c.l.b16 %v272
      %v283 = vunpack.c.h.b16 %v272
      %v284 = vunpack.c.l.b16 %v273
      %v285 = vunpack.c.h.b16 %v273
      %v286 = vpack.c.b16 %v278, %v278
      %v287 = vpack.c.b16 %v279, %v279
      %v288 = vpack.c.b16 %v280, %v280
      %v289 = vpack.c.b16 %v281, %v281
      %v290 = vpack.c.b16 %v282, %v282
      %v291 = vpack.c.b16 %v283, %v283
      %v292 = vpack.c.b16 %v284, %v284
      %v293 = vpack.c.b16 %v285, %v285
      %vm302 = vcmask 519168
      %303 = vst.msk [vmem:[%s145] sm:$0xf] %vm302, %v286
      %304 = vst.msk [vmem:[%s145 + $0x4] sm:$0xf] %vm302, %v287
      %305 = vst.msk [vmem:[%s145 + $0x8] sm:$0xf] %vm302, %v288
      %306 = vst.msk [vmem:[%s145 + $0xc] sm:$0xf] %vm302, %v289
      %307 = vst.msk [vmem:[%s145 + $0x10] sm:$0xf] %vm302, %v290
      %308 = vst.msk [vmem:[%s145 + $0x14] sm:$0xf] %vm302, %v291
      %309 = vst.msk [vmem:[%s145 + $0x18] sm:$0xf] %vm302, %v292
      %310 = vst.msk [vmem:[%s145 + $0x1c] sm:$0xf] %vm302, %v293
      %s311 = smul.u32 8, %s13
      %p312 = scmp.lt.s32.totalorder %s311, 15
      %s313 = scalar_select %p312, %s311, 15
      %s314 = smul.addr %s313, 4
      %s315 = scalar_lea.vmem %s2, %s314
      // Predicated region
      $region29: #{l0_wide_resnet_forward.18} parent=27 // pred_check
        %p316 = pneg %p78
      $region30: #{l0_wide_resnet_forward.18} parent=27 // pred_check_branch
        %318 = sbr.rel (%p316) target = $region32
      $region31: #{l0_wide_resnet_forward.18} parent=27 // pred_region
        %s319 = smul.u32 8, %s13
      $region32: #{l0_wide_resnet_forward.18} parent=27 // pred_fallthru
        _
    $region28: #{l0_wide_resnet_forward.18} parent=5 // pred_fallthru
      _
    %p320 = scmp.le.s32.totalorder 2, %s8
    // Predicated region
    $region33: #{l0_wide_resnet_forward.18} parent=5 // pred_check
      %p321 = pneg %p320
    $region34: #{l0_wide_resnet_forward.18} parent=5 // pred_check_branch
      %323 = sbr.rel (%p321) target = $region36
    $region35: #{l0_wide_resnet_forward.18} parent=5 // pred_region
      %s324 = ssub.s32 %s8, 2
      // Predicated region
      $region37: #{l0_wide_resnet_forward.18} parent=35 // pred_check
        %p325 = pneg %p84
      $region38: #{l0_wide_resnet_forward.18} parent=35 // pred_check_branch
        %327 = sbr.rel (%p325) target = $region40
      $region39: #{l0_wide_resnet_forward.18} parent=35 // pred_region
        %s328 = smul.u32 8, %s14
        %p329 = scmp.lt.s32.totalorder %s328, 15
        %s330 = scalar_select %p329, %s328, 15
        %s331 = smul.addr %s330, 4
        %s332 = scalar_lea.vmem %s2, %s331
      $region40: #{l0_wide_resnet_forward.18} parent=35 // pred_fallthru
        _
    $region36: #{l0_wide_resnet_forward.18} parent=5 // pred_fallthru
      _
  $region6: #{l0_wide_resnet_forward.18} parent=0 // loop_footer
    %s12 = sadd.s32 1, %s8
  $region7: #{l0_wide_resnet_forward.18} parent=0 // loop_footer_branch
    %7 = sbr.rel target = $region3
  $region8: #{l0_wide_resnet_forward.18} parent=0 // loop_exit
    _

// kernel: l0_wide_resnet_forward.19
$region0: #{l0_wide_resnet_forward.19}
  #allocation0 [shape = 'u32[]', space=smem, size = 0x4, offset = 0x4, fixed_abs, tag = 'smem constant byte address 0x4 - core index']
  #allocation1 [shape = 'u32[144,128]{1,0:T(1,128)}', space=vmem, size = 0x12000, scoped, tag = 'internal scratch']
  %s0 = inlined_call_operand.vmem [shape: bf16[128,576], index: 0, kind: input, shape index: {}]
  %s1 = inlined_call_operand.vmem [shape: bf16[576,64], index: 1, kind: input, shape index: {}]
  %s2 = inlined_call_operand.vmem [shape: f32[1,64], index: 2, kind: input, shape index: {}]
  %s3 = inlined_call_operand.vmem [shape: f32[1,64], index: 3, kind: input, shape index: {}]
  %s4 = inlined_call_operand.vmem [shape: bf16[128,64], index: 4, kind: input, shape index: {}]
  %s5 = inlined_call_operand.vmem [shape: bf16[128,64], index: 5, kind: output, shape index: {}]
  %s6 = sld [smem:[#allocation0]]
  $region53: #{l0_wide_resnet_forward.19} parent=0
    _
  %s8 = ssub.s32 1, %s6
  %s9 = scalar_select 0, %s8, %s6
  loop: start=0, step=1, limit=4
  $region2: #{l0_wide_resnet_forward.19} parent=0 // loop_pre_header
    _
  $region3: #{l0_wide_resnet_forward.19} parent=0 // loop_header
    %s11 = sphi 0, %s15
    %p12 = scmp.ge.s32.totalorder %s11, 4
    %s21 = sphi 0, %s23
    %s24 = sphi 0, %s21
    %s25 = sphi 0, %s24
    %s41 = sphi 0, %s25
    %s45 = sphi 0, %s45
    %s47 = sphi 0, %s45
    %s48 = sphi 0, %s47
    %s62 = sphi 0, %s48
    %s66 = sphi 0, %s66
    %s68 = sphi 0, %s66
    %s69 = sphi 0, %s68
    %s83 = sphi 0, %s69
    %s87 = sphi 0, %s87
    %s89 = sphi 0, %s87
    %s90 = sphi 0, %s89
    %s104 = sphi 0, %s90
    %s110 = sphi 0, %s112
    %s113 = sphi 0, %s110
    %s114 = sphi 0, %s113
    %s130 = sphi 0, %s114
    %s136 = sphi 0, %s138
    %s139 = sphi 0, %s136
    %s140 = sphi 0, %s139
    %s156 = sphi 0, %s140
  $region4: #{l0_wide_resnet_forward.19} parent=0 // loop_header_branch
    %14 = sbr.rel (%p12) target = $region8
  $region5: #{l0_wide_resnet_forward.19} parent=0 // loop_body
    %s16 = ssub.s32 %s11, 1
    %s17 = ssub.s32 %s11, 2
    %s18 = sadd.s32 %s11, 1
    %s19 = ssub.s32 %s11, %s18
    %p20 = scmp.eq.s32.totalorder %s19, 0
    %s22 = sadd.s32 %s21, 1
    %s23 = scalar_select %p20, %s21, %s22
    %p26 = pneg %p20
    %p27 = scmp.eq.s32.totalorder %s11, 1
    %p28 = por %p26, %p27
    %p29 = scmp.ne.s32.totalorder %s21, %s24
    %p30 = scmp.eq.s32.totalorder %s11, 0
    %p31 = por %p29, %p30
    %p32 = scmp.ne.s32.totalorder %s21, %s24
    %p33 = scmp.eq.s32.totalorder %s16, 1
    %p34 = por %p32, %p33
    %p35 = scmp.ne.s32.totalorder %s24, %s25
    %p36 = scmp.eq.s32.totalorder %s16, 0
    %p37 = por %p35, %p36
    %p38 = scmp.ne.s32.totalorder %s24, %s25
    %p39 = scmp.eq.s32.totalorder %s17, 1
    %p40 = por %p38, %p39
    %p42 = scmp.ne.s32.totalorder %s25, %s41
    %p43 = scmp.eq.s32.totalorder %s17, 0
    %p44 = por %p42, %p43
    %s46 = sadd.s32 %s45, 1
    %p49 = scmp.eq.s32.totalorder %s11, 1
    %p50 = scmp.ne.s32.totalorder %s45, %s47
    %p51 = scmp.eq.s32.totalorder %s11, 0
    %p52 = por %p50, %p51
    %p53 = scmp.ne.s32.totalorder %s45, %s47
    %p54 = scmp.eq.s32.totalorder %s16, 1
    %p55 = por %p53, %p54
    %p56 = scmp.ne.s32.totalorder %s47, %s48
    %p57 = scmp.eq.s32.totalorder %s16, 0
    %p58 = por %p56, %p57
    %p59 = scmp.ne.s32.totalorder %s47, %s48
    %p60 = scmp.eq.s32.totalorder %s17, 1
    %p61 = por %p59, %p60
    %p63 = scmp.ne.s32.totalorder %s48, %s62
    %p64 = scmp.eq.s32.totalorder %s17, 0
    %p65 = por %p63, %p64
    %s67 = sadd.s32 %s66, 1
    %p70 = scmp.eq.s32.totalorder %s11, 1
    %p71 = scmp.ne.s32.totalorder %s66, %s68
    %p72 = scmp.eq.s32.totalorder %s11, 0
    %p73 = por %p71, %p72
    %p74 = scmp.ne.s32.totalorder %s66, %s68
    %p75 = scmp.eq.s32.totalorder %s16, 1
    %p76 = por %p74, %p75
    %p77 = scmp.ne.s32.totalorder %s68, %s69
    %p78 = scmp.eq.s32.totalorder %s16, 0
    %p79 = por %p77, %p78
    %p80 = scmp.ne.s32.totalorder %s68, %s69
    %p81 = scmp.eq.s32.totalorder %s17, 1
    %p82 = por %p80, %p81
    %p84 = scmp.ne.s32.totalorder %s69, %s83
    %p85 = scmp.eq.s32.totalorder %s17, 0
    %p86 = por %p84, %p85
    %s88 = sadd.s32 %s87, 1
    %p91 = scmp.eq.s32.totalorder %s11, 1
    %p92 = scmp.ne.s32.totalorder %s87, %s89
    %p93 = scmp.eq.s32.totalorder %s11, 0
    %p94 = por %p92, %p93
    %p95 = scmp.ne.s32.totalorder %s87, %s89
    %p96 = scmp.eq.s32.totalorder %s16, 1
    %p97 = por %p95, %p96
    %p98 = scmp.ne.s32.totalorder %s89, %s90
    %p99 = scmp.eq.s32.totalorder %s16, 0
    %p100 = por %p98, %p99
    %p101 = scmp.ne.s32.totalorder %s89, %s90
    %p102 = scmp.eq.s32.totalorder %s17, 1
    %p103 = por %p101, %p102
    %p105 = scmp.ne.s32.totalorder %s90, %s104
    %p106 = scmp.eq.s32.totalorder %s17, 0
    %p107 = por %p105, %p106
    %s108 = ssub.s32 %s11, %s18
    %p109 = scmp.eq.s32.totalorder %s108, 0
    %s111 = sadd.s32 %s110, 1
    %s112 = scalar_select %p109, %s110, %s111
    %p115 = pneg %p109
    %p116 = scmp.eq.s32.totalorder %s11, 1
    %p117 = por %p115, %p116
    %p118 = scmp.ne.s32.totalorder %s110, %s113
    %p119 = scmp.eq.s32.totalorder %s11, 0
    %p120 = por %p118, %p119
    %p121 = scmp.ne.s32.totalorder %s110, %s113
    %p122 = scmp.eq.s32.totalorder %s16, 1
    %p123 = por %p121, %p122
    %p124 = scmp.ne.s32.totalorder %s113, %s114
    %p125 = scmp.eq.s32.totalorder %s16, 0
    %p126 = por %p124, %p125
    %p127 = scmp.ne.s32.totalorder %s113, %s114
    %p128 = scmp.eq.s32.totalorder %s17, 1
    %p129 = por %p127, %p128
    %p131 = scmp.ne.s32.totalorder %s114, %s130
    %p132 = scmp.eq.s32.totalorder %s17, 0
    %p133 = por %p131, %p132
    %s134 = ssub.s32 %s11, %s18
    %p135 = scmp.eq.s32.totalorder %s134, 0
    %s137 = sadd.s32 %s136, 1
    %s138 = scalar_select %p135, %s136, %s137
    %p141 = pneg %p135
    %p142 = scmp.eq.s32.totalorder %s11, 1
    %p143 = por %p141, %p142
    %p144 = scmp.ne.s32.totalorder %s136, %s139
    %p145 = scmp.eq.s32.totalorder %s11, 0
    %p146 = por %p144, %p145
    %p147 = scmp.ne.s32.totalorder %s136, %s139
    %p148 = scmp.eq.s32.totalorder %s16, 1
    %p149 = por %p147, %p148
    %p150 = scmp.ne.s32.totalorder %s139, %s140
    %p151 = scmp.eq.s32.totalorder %s16, 0
    %p152 = por %p150, %p151
    %p153 = scmp.ne.s32.totalorder %s139, %s140
    %p154 = scmp.eq.s32.totalorder %s17, 1
    %p155 = por %p153, %p154
    %p157 = scmp.ne.s32.totalorder %s140, %s156
    %p158 = scmp.eq.s32.totalorder %s17, 0
    %p159 = por %p157, %p158
    %p160 = scmp.le.s32.totalorder 1, %s11
    %p161 = scmp.lt.s32.totalorder %s11, 3
    %p162 = pnand %p160, %p161
    %p163 = pneg %p162
    // Predicated region
    $region9: #{l0_wide_resnet_forward.19} parent=5 // pred_check
      _
    $region10: #{l0_wide_resnet_forward.19} parent=5 // pred_check_branch
      %165 = sbr.rel (%p162) target = $region12
    $region11: #{l0_wide_resnet_forward.19} parent=5 // pred_region
      %s166 = ssub.s32 %s11, 1
      // Predicated region
      $region13: #{l0_wide_resnet_forward.19} parent=11 // pred_check
        %p167 = pneg %p58
      $region14: #{l0_wide_resnet_forward.19} parent=11 // pred_check_branch
        %169 = sbr.rel (%p167) target = $region16
      $region15: #{l0_wide_resnet_forward.19} parent=11 // pred_region
        _
      $region16: #{l0_wide_resnet_forward.19} parent=11 // pred_fallthru
        _
      // Predicated region
      $region17: #{l0_wide_resnet_forward.19} parent=11 // pred_check
        %p170 = pneg %p79
      $region18: #{l0_wide_resnet_forward.19} parent=11 // pred_check_branch
        %172 = sbr.rel (%p170) target = $region20
      $region19: #{l0_wide_resnet_forward.19} parent=11 // pred_region
        _
      $region20: #{l0_wide_resnet_forward.19} parent=11 // pred_fallthru
        _
      // Predicated region
      $region21: #{l0_wide_resnet_forward.19} parent=11 // pred_check
        %p173 = pneg %p100
      $region22: #{l0_wide_resnet_forward.19} parent=11 // pred_check_branch
        %175 = sbr.rel (%p173) target = $region24
      $region23: #{l0_wide_resnet_forward.19} parent=11 // pred_region
        _
      $region24: #{l0_wide_resnet_forward.19} parent=11 // pred_fallthru
        _
    $region12: #{l0_wide_resnet_forward.19} parent=5 // pred_fallthru
      _
    %p176 = scmp.lt.s32.totalorder %s11, 2
    // Predicated region
    $region25: #{l0_wide_resnet_forward.19} parent=5 // pred_check
      %p177 = pneg %p176
    $region26: #{l0_wide_resnet_forward.19} parent=5 // pred_check_branch
      %179 = sbr.rel (%p177) target = $region28
    $region27: #{l0_wide_resnet_forward.19} parent=5 // pred_region
      // Predicated region
      $region29: #{l0_wide_resnet_forward.19} parent=27 // pred_check
        %p180 = pneg %p31
      $region30: #{l0_wide_resnet_forward.19} parent=27 // pred_check_branch
        %182 = sbr.rel (%p180) target = $region32
      $region31: #{l0_wide_resnet_forward.19} parent=27 // pred_region
        %s183 = smul.u32 8, %s11
        %p184 = scmp.lt.s32.totalorder %s183, 15
        %s185 = scalar_select %p184, %s183, 15
        %s186 = smul.addr %s185, 5
        %s187 = smul.addr %s186, 4
        %s188 = scalar_lea.vmem %s0, %s187
        %s189 = smul.u32 8, %s11
      $region32: #{l0_wide_resnet_forward.19} parent=27 // pred_fallthru
        _
      // Predicated region
      $region33: #{l0_wide_resnet_forward.19} parent=27 // pred_check
        %p190 = pneg %p120
      $region34: #{l0_wide_resnet_forward.19} parent=27 // pred_check_branch
        %192 = sbr.rel (%p190) target = $region36
      $region35: #{l0_wide_resnet_forward.19} parent=27 // pred_region
        %s193 = smul.u32 8, %s11
        %p194 = scmp.lt.s32.totalorder %s193, 15
        %s195 = scalar_select %p194, %s193, 15
        %s196 = smul.addr %s195, 4
        %s197 = scalar_lea.vmem %s4, %s196
        %s198 = smul.u32 8, %s11
      $region36: #{l0_wide_resnet_forward.19} parent=27 // pred_fallthru
        _
    $region28: #{l0_wide_resnet_forward.19} parent=5 // pred_fallthru
      _
    %p199 = scmp.le.s32.totalorder 1, %s11
    %p200 = scmp.lt.s32.totalorder %s11, 3
    %p201 = pnand %p199, %p200
    %p202 = pneg %p201
    // Predicated region
    $region37: #{l0_wide_resnet_forward.19} parent=5 // pred_check
      _
    $region38: #{l0_wide_resnet_forward.19} parent=5 // pred_check_branch
      %204 = sbr.rel (%p201) target = $region40
    $region39: #{l0_wide_resnet_forward.19} parent=5 // pred_region
      %s205 = ssub.s32 %s11, 1
      %s206 = smul.u32 8, %s16
      %p207 = scmp.lt.s32.totalorder %s206, 15
      %s208 = scalar_select %p207, %s206, 15
      %s209 = smul.addr %s208, 5
      %s210 = smul.addr %s209, 4
      %s211 = scalar_lea.vmem %s0, %s210
      %p212 = pneg %p37
      %p213 = pneg %p34
      %p214 = pneg %p58
      %p215 = pneg %p55
      %p216 = pneg %p79
      %p217 = pneg %p76
      %p218 = pneg %p100
      %p219 = pneg %p97
      %s220 = smul.u32 8, %s16
      %p221 = scmp.lt.s32.totalorder %s220, 15
      %s222 = scalar_select %p221, %s220, 15
      %s223 = smul.addr %s222, 4
      %s224 = scalar_lea.vmem %s4, %s223
      %p225 = pneg %p126
      %p226 = pneg %p123
      %p227 = pneg %p152
      %p228 = pneg %p149
      %s229 = smul.u32 8, %s16
      %p230 = scmp.lt.s32.totalorder %s229, 15
      %s231 = scalar_select %p230, %s229, 15
      %s232 = smul.addr %s231, 4
      %s233 = scalar_lea.vmem %s5, %s232
      %s234 = smul.u32 8, %s16
      %p235 = scmp.lt.s32.totalorder %s234, 15
      %s236 = scalar_select %p235, %s234, 15
      %s237 = smul.addr %s236, 5
      %s238 = smul.addr %s237, 4
      %s239 = scalar_lea.vmem %s0, %s238
      %s240 = smul.u32 8, %s16
      %s241 = smul.u32 8, %s16
      %p242 = scmp.lt.s32.totalorder %s241, 15
      %s243 = scalar_select %p242, %s241, 15
      %s244 = smul.addr %s243, 4
      %s245 = scalar_lea.vmem %s4, %s244
      %s246 = smul.u32 8, %s16
      %s247 = smul.u32 8, %s16
      %p248 = scmp.lt.s32.totalorder %s247, 15
      %s249 = scalar_select %p248, %s247, 15
      %s250 = smul.addr %s249, 4
      %s251 = scalar_lea.vmem %s5, %s250
      %s252 = smul.u32 8, %s16
      %v254 = vld [vmem:[%s239] sm:$0xff]
      %v255 = vld [vmem:[%s239 + $0x8] sm:$0xff]
      %v256 = vld [vmem:[%s239 + $0x10] sm:$0xf]
      %v257 = vld [vmem:[%s239 + $0x14] sm:$0xff]
      %v258 = vld [vmem:[%s239 + $0x1c] sm:$0xff]
      %v259 = vld [vmem:[%s239 + $0x24] sm:$0xf]
      %v260 = vld [vmem:[%s239 + $0x28] sm:$0xff]
      %v261 = vld [vmem:[%s239 + $0x30] sm:$0xff]
      %v262 = vld [vmem:[%s239 + $0x38] sm:$0xf]
      %v263 = vld [vmem:[%s239 + $0x3c] sm:$0xff]
      %v264 = vld [vmem:[%s239 + $0x44] sm:$0xff]
      %v265 = vld [vmem:[%s239 + $0x4c] sm:$0xf]
      %v266 = vld [vmem:[%s239 + $0x50] sm:$0xff]
      %v267 = vld [vmem:[%s239 + $0x58] sm:$0xff]
      %v268 = vld [vmem:[%s239 + $0x60] sm:$0xf]
      %v269 = vld [vmem:[%s239 + $0x64] sm:$0xff]
      %v270 = vld [vmem:[%s239 + $0x6c] sm:$0xff]
      %v271 = vld [vmem:[%s239 + $0x74] sm:$0xf]
      %v272 = vld [vmem:[%s239 + $0x78] sm:$0xff]
      %v273 = vld [vmem:[%s239 + $0x80] sm:$0xff]
      %v274 = vld [vmem:[%s239 + $0x88] sm:$0xf]
      %v275 = vld [vmem:[%s239 + $0x8c] sm:$0xff]
      %v276 = vld [vmem:[%s239 + $0x94] sm:$0xff]
      %v277 = vld [vmem:[%s239 + $0x9c] sm:$0xf]
      %v278 = vld [vmem:[%s1] sm:$0xf]
      %v279 = vld [vmem:[%s1 + $0x4] sm:$0xf]
      %v280 = vld [vmem:[%s1 + $0x8] sm:$0xf]
      %v281 = vld [vmem:[%s1 + $0xc] sm:$0xf]
      %v282 = vld [vmem:[%s1 + $0x10] sm:$0xf]
      %v283 = vld [vmem:[%s1 + $0x14] sm:$0xf]
      %v284 = vld [vmem:[%s1 + $0x18] sm:$0xf]
      %v285 = vld [vmem:[%s1 + $0x1c] sm:$0xf]
      %v286 = vld [vmem:[%s1 + $0x20] sm:$0xf]
      %v287 = vld [vmem:[%s1 + $0x24] sm:$0xf]
      %v288 = vld [vmem:[%s1 + $0x28] sm:$0xf]
      %v289 = vld [vmem:[%s1 + $0x2c] sm:$0xf]
      %v290 = vld [vmem:[%s1 + $0x30] sm:$0xf]
      %v291 = vld [vmem:[%s1 + $0x34] sm:$0xf]
      %v292 = vld [vmem:[%s1 + $0x38] sm:$0xf]
      %v293 = vld [vmem:[%s1 + $0x3c] sm:$0xf]
      %v294 = vld [vmem:[%s1 + $0x40] sm:$0xf]
      %v295 = vld [vmem:[%s1 + $0x44] sm:$0xf]
      %v296 = vld [vmem:[%s1 + $0x48] sm:$0xf]
      %v297 = vld [vmem:[%s1 + $0x4c] sm:$0xf]
      %v298 = vld [vmem:[%s1 + $0x50] sm:$0xf]
      %v299 = vld [vmem:[%s1 + $0x54] sm:$0xf]
      %v300 = vld [vmem:[%s1 + $0x58] sm:$0xf]
      %v301 = vld [vmem:[%s1 + $0x5c] sm:$0xf]
      %v302 = vld [vmem:[%s1 + $0x60] sm:$0xf]
      %v303 = vld [vmem:[%s1 + $0x64] sm:$0xf]
      %v304 = vld [vmem:[%s1 + $0x68] sm:$0xf]
      %v305 = vld [vmem:[%s1 + $0x6c] sm:$0xf]
      %v306 = vld [vmem:[%s1 + $0x70] sm:$0xf]
      %v307 = vld [vmem:[%s1 + $0x74] sm:$0xf]
      %v308 = vld [vmem:[%s1 + $0x78] sm:$0xf]
      %v309 = vld [vmem:[%s1 + $0x7c] sm:$0xf]
      %v310 = vld [vmem:[%s1 + $0x80] sm:$0xf]
      %v311 = vld [vmem:[%s1 + $0x84] sm:$0xf]
      %v312 = vld [vmem:[%s1 + $0x88] sm:$0xf]
      %v313 = vld [vmem:[%s1 + $0x8c] sm:$0xf]
      %v314 = vld [vmem:[%s1 + $0x90] sm:$0xf]
      %v315 = vld [vmem:[%s1 + $0x94] sm:$0xf]
      %v316 = vld [vmem:[%s1 + $0x98] sm:$0xf]
      %v317 = vld [vmem:[%s1 + $0x9c] sm:$0xf]
      %v318 = vld [vmem:[%s1 + $0xa0] sm:$0xf]
      %v319 = vld [vmem:[%s1 + $0xa4] sm:$0xf]
      %v320 = vld [vmem:[%s1 + $0xa8] sm:$0xf]
      %v321 = vld [vmem:[%s1 + $0xac] sm:$0xf]
      %v322 = vld [vmem:[%s1 + $0xb0] sm:$0xf]
      %v323 = vld [vmem:[%s1 + $0xb4] sm:$0xf]
      %v324 = vld [vmem:[%s1 + $0xb8] sm:$0xf]
      %v325 = vld [vmem:[%s1 + $0xbc] sm:$0xf]
      %v326 = vld [vmem:[%s1 + $0xc0] sm:$0xf]
      %v327 = vld [vmem:[%s1 + $0xc4] sm:$0xf]
      %v328 = vld [vmem:[%s1 + $0xc8] sm:$0xf]
      %v329 = vld [vmem:[%s1 + $0xcc] sm:$0xf]
      %v330 = vld [vmem:[%s1 + $0xd0] sm:$0xf]
      %v331 = vld [vmem:[%s1 + $0xd4] sm:$0xf]
      %v332 = vld [vmem:[%s1 + $0xd8] sm:$0xf]
      %v333 = vld [vmem:[%s1 + $0xdc] sm:$0xf]
      %v334 = vld [vmem:[%s1 + $0xe0] sm:$0xf]
      %v335 = vld [vmem:[%s1 + $0xe4] sm:$0xf]
      %v336 = vld [vmem:[%s1 + $0xe8] sm:$0xf]
      %v337 = vld [vmem:[%s1 + $0xec] sm:$0xf]
      %v338 = vld [vmem:[%s1 + $0xf0] sm:$0xf]
      %v339 = vld [vmem:[%s1 + $0xf4] sm:$0xf]
      %v340 = vld [vmem:[%s1 + $0xf8] sm:$0xf]
      %v341 = vld [vmem:[%s1 + $0xfc] sm:$0xf]
      %v342 = vld [vmem:[%s1 + $0x100] sm:$0xf]
      %v343 = vld [vmem:[%s1 + $0x104] sm:$0xf]
      %v344 = vld [vmem:[%s1 + $0x108] sm:$0xf]
      %v345 = vld [vmem:[%s1 + $0x10c] sm:$0xf]
      %v346 = vld [vmem:[%s1 + $0x110] sm:$0xf]
      %v347 = vld [vmem:[%s1 + $0x114] sm:$0xf]
      %v348 = vld [vmem:[%s1 + $0x118] sm:$0xf]
      %v349 = vld [vmem:[%s1 + $0x11c] sm:$0xf]
      %v350 = vld [vmem:[%s245] sm:$0xf]
      %v351 = vld [vmem:[%s245 + $0x4] sm:$0xf]
      %v352 = vld [vmem:[%s245 + $0x8] sm:$0xf]
      %v353 = vld [vmem:[%s245 + $0xc] sm:$0xf]
      %v354 = vld [vmem:[%s245 + $0x10] sm:$0xf]
      %v355 = vld [vmem:[%s245 + $0x14] sm:$0xf]
      %v356 = vld [vmem:[%s245 + $0x18] sm:$0xf]
      %v357 = vld [vmem:[%s245 + $0x1c] sm:$0xf]
      %v358 = vunpack.c.l.bf16 %v350
      %v359 = vunpack.c.l.bf16 %v351
      %v360 = vunpack.c.l.bf16 %v352
      %v361 = vunpack.c.l.bf16 %v353
      %v362 = vunpack.c.l.bf16 %v354
      %v363 = vunpack.c.l.bf16 %v355
      %v364 = vunpack.c.l.bf16 %v356
      %v365 = vunpack.c.l.bf16 %v357
      %v390 = vunpack.c.l.b16 %v254
      %v391 = vunpack.c.h.b16 %v254
      %v392 = vunpack.c.l.b16 %v255
      %v393 = vunpack.c.h.b16 %v255
      %v394 = vunpack.c.l.b16 %v256
      %v395 = vunpack.c.l.b16 %v257
      %v396 = vunpack.c.h.b16 %v257
      %v397 = vunpack.c.l.b16 %v258
      %v398 = vunpack.c.h.b16 %v258
      %v399 = vunpack.c.l.b16 %v259
      %v400 = vunpack.c.l.b16 %v260
      %v401 = vunpack.c.h.b16 %v260
      %v402 = vunpack.c.l.b16 %v261
      %v403 = vunpack.c.h.b16 %v261
      %v404 = vunpack.c.l.b16 %v262
      %v405 = vunpack.c.l.b16 %v263
      %v406 = vunpack.c.h.b16 %v263
      %v407 = vunpack.c.l.b16 %v264
      %v408 = vunpack.c.h.b16 %v264
      %v409 = vunpack.c.l.b16 %v265
      %v410 = vunpack.c.l.b16 %v266
      %v411 = vunpack.c.h.b16 %v266
      %v412 = vunpack.c.l.b16 %v267
      %v413 = vunpack.c.h.b16 %v267
      %v414 = vunpack.c.l.b16 %v268
      %v415 = vunpack.c.l.b16 %v269
      %v416 = vunpack.c.h.b16 %v269
      %v417 = vunpack.c.l.b16 %v270
      %v418 = vunpack.c.h.b16 %v270
      %v419 = vunpack.c.l.b16 %v271
      %v420 = vunpack.c.l.b16 %v272
      %v421 = vunpack.c.h.b16 %v272
      %v422 = vunpack.c.l.b16 %v273
      %v423 = vunpack.c.h.b16 %v273
      %v424 = vunpack.c.l.b16 %v274
      %v425 = vunpack.c.l.b16 %v275
      %v426 = vunpack.c.h.b16 %v275
      %v427 = vunpack.c.l.b16 %v276
      %v428 = vunpack.c.h.b16 %v276
      %v429 = vunpack.c.l.b16 %v277
      %v430 = vpack.c.b16 %v395, %v390
      %v431 = vpack.c.b16 %v396, %v391
      %v432 = vpack.c.b16 %v397, %v392
      %v433 = vpack.c.b16 %v398, %v393
      %v434 = vpack.c.b16 %v399, %v394
      %v435 = vpack.c.b16 %v405, %v400
      %v436 = vpack.c.b16 %v406, %v401
      %v437 = vpack.c.b16 %v407, %v402
      %v438 = vpack.c.b16 %v408, %v403
      %v439 = vpack.c.b16 %v409, %v404
      %v440 = vpack.c.b16 %v415, %v410
      %v441 = vpack.c.b16 %v416, %v411
      %v442 = vpack.c.b16 %v417, %v412
      %v443 = vpack.c.b16 %v418, %v413
      %v444 = vpack.c.b16 %v419, %v414
      %v445 = vpack.c.b16 %v425, %v420
      %v446 = vpack.c.b16 %v426, %v421
      %v447 = vpack.c.b16 %v427, %v422
      %v448 = vpack.c.b16 %v428, %v423
      %v449 = vpack.c.b16 %v429, %v424
      %v538 = vunpack.c.l.b16 %v278
      %v539 = vunpack.c.l.b16 %v279
      %v540 = vunpack.c.l.b16 %v280
      %v541 = vunpack.c.l.b16 %v281
      %v542 = vunpack.c.l.b16 %v282
      %v543 = vunpack.c.l.b16 %v283
      %v544 = vunpack.c.l.b16 %v284
      %v545 = vunpack.c.l.b16 %v285
      %v546 = vunpack.c.l.b16 %v286
      %v547 = vunpack.c.l.b16 %v287
      %v548 = vunpack.c.l.b16 %v288
      %v549 = vunpack.c.l.b16 %v289
      %v550 = vunpack.c.l.b16 %v290
      %v551 = vunpack.c.l.b16 %v291
      %v552 = vunpack.c.l.b16 %v292
      %v553 = vunpack.c.l.b16 %v293
      %v554 = vunpack.c.l.b16 %v294
      %v555 = vunpack.c.l.b16 %v295
      %v556 = vunpack.c.l.b16 %v296
      %v557 = vunpack.c.l.b16 %v297
      %v558 = vunpack.c.l.b16 %v298
      %v559 = vunpack.c.l.b16 %v299
      %v560 = vunpack.c.l.b16 %v300
      %v561 = vunpack.c.l.b16 %v301
      %v562 = vunpack.c.l.b16 %v302
      %v563 = vunpack.c.l.b16 %v303
      %v564 = vunpack.c.l.b16 %v304
      %v565 = vunpack.c.l.b16 %v305
      %v566 = vunpack.c.l.b16 %v306
      %v567 = vunpack.c.l.b16 %v307
      %v568 = vunpack.c.l.b16 %v308
      %v569 = vunpack.c.l.b16 %v309
      %v570 = vunpack.c.l.b16 %v310
      %v571 = vunpack.c.l.b16 %v311
      %v572 = vunpack.c.l.b16 %v312
      %v573 = vunpack.c.l.b16 %v313
      %v574 = vunpack.c.l.b16 %v314
      %v575 = vunpack.c.l.b16 %v315
      %v576 = vunpack.c.l.b16 %v316
      %v577 = vunpack.c.l.b16 %v317
      %v578 = vunpack.c.l.b16 %v318
      %v579 = vunpack.c.l.b16 %v319
      %v580 = vunpack.c.l.b16 %v320
      %v581 = vunpack.c.l.b16 %v321
      %v582 = vunpack.c.l.b16 %v322
      %v583 = vunpack.c.l.b16 %v323
      %v584 = vunpack.c.l.b16 %v324
      %v585 = vunpack.c.l.b16 %v325
      %v586 = vunpack.c.l.b16 %v326
      %v587 = vunpack.c.l.b16 %v327
      %v588 = vunpack.c.l.b16 %v328
      %v589 = vunpack.c.l.b16 %v329
      %v590 = vunpack.c.l.b16 %v330
      %v591 = vunpack.c.l.b16 %v331
      %v592 = vunpack.c.l.b16 %v332
      %v593 = vunpack.c.l.b16 %v333
      %v594 = vunpack.c.l.b16 %v334
      %v595 = vunpack.c.l.b16 %v335
      %v596 = vunpack.c.l.b16 %v336
      %v597 = vunpack.c.l.b16 %v337
      %v598 = vunpack.c.l.b16 %v338
      %v599 = vunpack.c.l.b16 %v339
      %v600 = vunpack.c.l.b16 %v340
      %v601 = vunpack.c.l.b16 %v341
      %v602 = vunpack.c.l.b16 %v342
      %v603 = vunpack.c.l.b16 %v343
      %v604 = vunpack.c.l.b16 %v344
      %v605 = vunpack.c.l.b16 %v345
      %v606 = vunpack.c.l.b16 %v346
      %v607 = vunpack.c.l.b16 %v347
      %v608 = vunpack.c.l.b16 %v348
      %v609 = vunpack.c.l.b16 %v349
      %v610 = vpack.c.b16 %v539, %v538
      %v611 = vpack.c.b16 %v541, %v540
      %v612 = vpack.c.b16 %v543, %v542
      %v613 = vpack.c.b16 %v545, %v544
      %v614 = vpack.c.b16 %v547, %v546
      %v615 = vpack.c.b16 %v549, %v548
      %v616 = vpack.c.b16 %v551, %v550
      %v617 = vpack.c.b16 %v553, %v552
      %v618 = vpack.c.b16 %v555, %v554
      %v619 = vpack.c.b16 %v557, %v556
      %v620 = vpack.c.b16 %v559, %v558
      %v621 = vpack.c.b16 %v561, %v560
      %v622 = vpack.c.b16 %v563, %v562
      %v623 = vpack.c.b16 %v565, %v564
      %v624 = vpack.c.b16 %v567, %v566
      %v625 = vpack.c.b16 %v569, %v568
      %v626 = vpack.c.b16 %v571, %v570
      %v627 = vpack.c.b16 %v573, %v572
      %v628 = vpack.c.b16 %v575, %v574
      %v629 = vpack.c.b16 %v577, %v576
      %v630 = vpack.c.b16 %v579, %v578
      %v631 = vpack.c.b16 %v581, %v580
      %v632 = vpack.c.b16 %v583, %v582
      %v633 = vpack.c.b16 %v585, %v584
      %v634 = vpack.c.b16 %v587, %v586
      %v635 = vpack.c.b16 %v589, %v588
      %v636 = vpack.c.b16 %v591, %v590
      %v637 = vpack.c.b16 %v593, %v592
      %v638 = vpack.c.b16 %v595, %v594
      %v639 = vpack.c.b16 %v597, %v596
      %v640 = vpack.c.b16 %v599, %v598
      %v641 = vpack.c.b16 %v601, %v600
      %v642 = vpack.c.b16 %v603, %v602
      %v643 = vpack.c.b16 %v605, %v604
      %v644 = vpack.c.b16 %v607, %v606
      %v645 = vpack.c.b16 %v609, %v608
      %vm682 = vcmask 523264
      %v684 = vsel %vm682, %v434, 0
      %v687 = vsel %vm682, %v439, 0
      %v690 = vsel %vm682, %v444, 0
      %v693 = vsel %vm682, %v449, 0
      %695 = vmatprep.subr.bf16.mxu0 0
      %696 = vmatpush1.bf16.msra.mxu0 %v610
      %697 = vmatprep.subr.bf16.mxu0 0
      %698 = vmatpush1.bf16.msra.mxu0 %v611
      %699 = vmatprep.subr.bf16.mxu0 0
      %700 = vmatpush1.bf16.msra.mxu0 %v612
      %701 = vmatprep.subr.bf16.mxu0 0
      %702 = vmatpush1.bf16.msra.mxu0 %v613
      %703 = vmatprep.subr.bf16.mxu0 0
      %704 = vmatpush1.bf16.msra.mxu0 %v614
      %705 = vmatprep.subr.bf16.mxu0 0
      %706 = vmatpush1.bf16.msra.mxu0 %v615
      %707 = vmatprep.subr.bf16.mxu0 0
      %708 = vmatpush1.bf16.msra.mxu0 %v616
      %709 = vmatprep.subr.bf16.mxu0 0
      %710 = vmatpush1.bf16.msra.mxu0 %v617
      %711 = vmatprep.subr.bf16.mxu0 0
      %712 = vmatpush1.bf16.msra.mxu0 %v618
      %713 = vmatprep.subr.bf16.mxu0 0
      %714 = vmatpush1.bf16.msra.mxu0 %v619
      %715 = vmatprep.subr.bf16.mxu0 0
      %716 = vmatpush1.bf16.msra.mxu0 %v620
      %717 = vmatprep.subr.bf16.mxu0 0
      %718 = vmatpush1.bf16.msra.mxu0 %v621
      %719 = vmatprep.subr.bf16.mxu0 0
      %720 = vmatpush1.bf16.msra.mxu0 %v622
      %721 = vmatprep.subr.bf16.mxu0 0
      %722 = vmatpush1.bf16.msra.mxu0 %v623
      %723 = vmatprep.subr.bf16.mxu0 0
      %724 = vmatpush1.bf16.msra.mxu0 %v624
      %725 = vmatprep.subr.bf16.mxu0 0
      %726 = vmatpush1.bf16.msra.mxu0 %v625
      %727 = vmatprep.mubr.bf16.mxu0 %v431
      %728 = vmatmul.mubr.bf16.gmra.mrb[0].mxu0 %v430
      %v729 = vpop.f32.mrb[0].mxu0
      %v730 = vadd.f32 %v358, %v729
      %v731 = vpop.f32.mrb[0].mxu0
      %v732 = vpop.f32.mrb[0].mxu0
      %v733 = vadd.f32 %v359, %v732
      %v734 = vpop.f32.mrb[0].mxu0
      %735 = vmatprep.mubr.bf16.mxu0 %v436
      %736 = vmatmul.mubr.bf16.gmra.mrb[0].mxu0 %v435
      %v737 = vpop.f32.mrb[0].mxu0
      %v738 = vadd.f32 %v360, %v737
      %v739 = vpop.f32.mrb[0].mxu0
      %v740 = vpop.f32.mrb[0].mxu0
      %v741 = vadd.f32 %v361, %v740
      %v742 = vpop.f32.mrb[0].mxu0
      %743 = vmatprep.mubr.bf16.mxu0 %v441
      %744 = vmatmul.mubr.bf16.gmra.mrb[0].mxu0 %v440
      %v745 = vpop.f32.mrb[0].mxu0
      %v746 = vadd.f32 %v362, %v745
      %v747 = vpop.f32.mrb[0].mxu0
      %v748 = vpop.f32.mrb[0].mxu0
      %v749 = vadd.f32 %v363, %v748
      %v750 = vpop.f32.mrb[0].mxu0
      %751 = vmatprep.mubr.bf16.mxu0 %v446
      %752 = vmatmul.mubr.bf16.gmra.mrb[0].mxu0 %v445
      %v753 = vpop.f32.mrb[0].mxu0
      %v754 = vadd.f32 %v364, %v753
      %v755 = vpop.f32.mrb[0].mxu0
      %v756 = vpop.f32.mrb[0].mxu0
      %v757 = vadd.f32 %v365, %v756
      %v758 = vpop.f32.mrb[0].mxu0
      %759 = vdwg.mxu0
      %760 = vmatprep.subr.bf16.mxu0 0
      %761 = vmatpush1.bf16.msra.mxu0 %v626
      %762 = vmatprep.subr.bf16.mxu0 0
      %763 = vmatpush1.bf16.msra.mxu0 %v627
      %764 = vmatprep.subr.bf16.mxu0 0
      %765 = vmatpush1.bf16.msra.mxu0 %v628
      %766 = vmatprep.subr.bf16.mxu0 0
      %767 = vmatpush1.bf16.msra.mxu0 %v629
      %768 = vmatprep.subr.bf16.mxu0 0
      %769 = vmatpush1.bf16.msra.mxu0 %v630
      %770 = vmatprep.subr.bf16.mxu0 0
      %771 = vmatpush1.bf16.msra.mxu0 %v631
      %772 = vmatprep.subr.bf16.mxu0 0
      %773 = vmatpush1.bf16.msra.mxu0 %v632
      %774 = vmatprep.subr.bf16.mxu0 0
      %775 = vmatpush1.bf16.msra.mxu0 %v633
      %776 = vmatprep.subr.bf16.mxu0 0
      %777 = vmatpush1.bf16.msra.mxu0 %v634
      %778 = vmatprep.subr.bf16.mxu0 0
      %779 = vmatpush1.bf16.msra.mxu0 %v635
      %780 = vmatprep.subr.bf16.mxu0 0
      %781 = vmatpush1.bf16.msra.mxu0 %v636
      %782 = vmatprep.subr.bf16.mxu0 0
      %783 = vmatpush1.bf16.msra.mxu0 %v637
      %784 = vmatprep.subr.bf16.mxu0 0
      %785 = vmatpush1.bf16.msra.mxu0 %v638
      %786 = vmatprep.subr.bf16.mxu0 0
      %787 = vmatpush1.bf16.msra.mxu0 %v639
      %788 = vmatprep.subr.bf16.mxu0 0
      %789 = vmatpush1.bf16.msra.mxu0 %v640
      %790 = vmatprep.subr.bf16.mxu0 0
      %791 = vmatpush1.bf16.msra.mxu0 %v641
      %792 = vmatprep.mubr.bf16.mxu0 %v433
      %793 = vmatmul.mubr.bf16.gmra.mrb[0].mxu0 %v432
      %v794 = vpop.f32.mrb[0].mxu0
      %v795 = vadd.f32 %v730, %v794
      %v796 = vpop.f32.mrb[0].mxu0
      %v797 = vpop.f32.mrb[0].mxu0
      %v798 = vadd.f32 %v733, %v797
      %v799 = vpop.f32.mrb[0].mxu0
      %800 = vmatprep.mubr.bf16.mxu0 %v438
      %801 = vmatmul.mubr.bf16.gmra.mrb[0].mxu0 %v437
      %v802 = vpop.f32.mrb[0].mxu0
      %v803 = vadd.f32 %v738, %v802
      %v804 = vpop.f32.mrb[0].mxu0
      %v805 = vpop.f32.mrb[0].mxu0
      %v806 = vadd.f32 %v741, %v805
      %v807 = vpop.f32.mrb[0].mxu0
      %808 = vmatprep.mubr.bf16.mxu0 %v443
      %809 = vmatmul.mubr.bf16.gmra.mrb[0].mxu0 %v442
      %v810 = vpop.f32.mrb[0].mxu0
      %v811 = vadd.f32 %v746, %v810
      %v812 = vpop.f32.mrb[0].mxu0
      %v813 = vpop.f32.mrb[0].mxu0
      %v814 = vadd.f32 %v749, %v813
      %v815 = vpop.f32.mrb[0].mxu0
      %816 = vmatprep.mubr.bf16.mxu0 %v448
      %817 = vmatmul.mubr.bf16.gmra.mrb[0].mxu0 %v447
      %v818 = vpop.f32.mrb[0].mxu0
      %v819 = vadd.f32 %v754, %v818
      %v820 = vpop.f32.mrb[0].mxu0
      %v821 = vpop.f32.mrb[0].mxu0
      %v822 = vadd.f32 %v757, %v821
      %v823 = vpop.f32.mrb[0].mxu0
      %824 = vdwg.mxu0
      %825 = vmatprep.subr.bf16.mxu0 0
      %826 = vmatpush1.bf16.msra.mxu0 %v642
      %827 = vmatprep.subr.bf16.mxu0 0
      %828 = vmatpush1.bf16.msra.mxu0 %v643
      %829 = vmatprep.subr.bf16.mxu0 0
      %830 = vmatpush1.bf16.msra.mxu0 %v644
      %831 = vmatprep.subr.bf16.mxu0 0
      %832 = vmatpush1.bf16.msra.mxu0 %v645
      %833 = vmatprep.subr.bf16.mxu0 0
      %834 = vmatpush1.bf16.msra.mxu0 0
      %835 = vmatprep.subr.bf16.mxu0 0
      %836 = vmatpush1.bf16.msra.mxu0 0
      %837 = vmatprep.subr.bf16.mxu0 0
      %838 = vmatpush1.bf16.msra.mxu0 0
      %839 = vmatprep.subr.bf16.mxu0 0
      %840 = vmatpush1.bf16.msra.mxu0 0
      %841 = vmatprep.subr.bf16.mxu0 0
      %842 = vmatpush1.bf16.msra.mxu0 0
      %843 = vmatprep.subr.bf16.mxu0 0
      %844 = vmatpush1.bf16.msra.mxu0 0
      %845 = vmatprep.subr.bf16.mxu0 0
      %846 = vmatpush1.bf16.msra.mxu0 0
      %847 = vmatprep.subr.bf16.mxu0 0
      %848 = vmatpush1.bf16.msra.mxu0 0
      %849 = vmatprep.subr.bf16.mxu0 0
      %850 = vmatpush1.bf16.msra.mxu0 0
      %851 = vmatprep.subr.bf16.mxu0 0
      %852 = vmatpush1.bf16.msra.mxu0 0
      %853 = vmatprep.subr.bf16.mxu0 0
      %854 = vmatpush1.bf16.msra.mxu0 0
      %855 = vmatprep.subr.bf16.mxu0 0
      %856 = vmatpush1.bf16.msra.mxu0 0
      %857 = vmatprep.mubr.bf16.mxu0 0
      %858 = vmatmul.mubr.bf16.gmra.mrb[0].mxu0 %v684
      %v859 = vpop.f32.mrb[0].mxu0
      %v860 = vadd.f32 %v795, %v859
      %v861 = vpop.f32.mrb[0].mxu0
      %v862 = vpop.f32.mrb[0].mxu0
      %v863 = vadd.f32 %v798, %v862
      %v864 = vpop.f32.mrb[0].mxu0
      %865 = vmatprep.mubr.bf16.mxu0 0
      %866 = vmatmul.mubr.bf16.gmra.mrb[0].mxu0 %v687
      %v867 = vpop.f32.mrb[0].mxu0
      %v868 = vadd.f32 %v803, %v867
      %v869 = vpop.f32.mrb[0].mxu0
      %v870 = vpop.f32.mrb[0].mxu0
      %v871 = vadd.f32 %v806, %v870
      %v872 = vpop.f32.mrb[0].mxu0
      %873 = vmatprep.mubr.bf16.mxu0 0
      %874 = vmatmul.mubr.bf16.gmra.mrb[0].mxu0 %v690
      %v875 = vpop.f32.mrb[0].mxu0
      %v876 = vadd.f32 %v811, %v875
      %v877 = vpop.f32.mrb[0].mxu0
      %v878 = vpop.f32.mrb[0].mxu0
      %v879 = vadd.f32 %v814, %v878
      %v880 = vpop.f32.mrb[0].mxu0
      %881 = vmatprep.mubr.bf16.mxu0 0
      %882 = vmatmul.mubr.bf16.gmra.mrb[0].mxu0 %v693
      %v883 = vpop.f32.mrb[0].mxu0
      %v884 = vadd.f32 %v819, %v883
      %v885 = vpop.f32.mrb[0].mxu0
      %v886 = vpop.f32.mrb[0].mxu0
      %v887 = vadd.f32 %v822, %v886
      %v888 = vpop.f32.mrb[0].mxu0
      %889 = vdwg.mxu0
      %v890 = vld [vmem:[%s2] sm:$0x1]
      %v892 = vlaneseq
      %v893 = vshrl.u32 %v892, 7
      %v894 = vsub.s32 0, %v893
      %v895 = vrot.slane %v890, %v894
      %v897 = vmul.f32 %v860, %v895
      %v898 = vmul.f32 %v863, %v895
      %v899 = vmul.f32 %v868, %v895
      %v900 = vmul.f32 %v871, %v895
      %v901 = vmul.f32 %v876, %v895
      %v902 = vmul.f32 %v879, %v895
      %v903 = vmul.f32 %v884, %v895
      %v904 = vmul.f32 %v887, %v895
      %v905 = vld [vmem:[%s3] sm:$0x1]
      %v907 = vlaneseq
      %v908 = vshrl.u32 %v907, 7
      %v909 = vsub.s32 0, %v908
      %v910 = vrot.slane %v905, %v909
      %v912 = vadd.f32 %v897, %v910
      %v913 = vadd.f32 %v898, %v910
      %v914 = vadd.f32 %v899, %v910
      %v915 = vadd.f32 %v900, %v910
      %v916 = vadd.f32 %v901, %v910
      %v917 = vadd.f32 %v902, %v910
      %v918 = vadd.f32 %v903, %v910
      %v919 = vadd.f32 %v904, %v910
      %v920 = vmax.f32 %v912, 0.0
      %v921 = vmax.f32 %v913, 0.0
      %v922 = vmax.f32 %v914, 0.0
      %v923 = vmax.f32 %v915, 0.0
      %v924 = vmax.f32 %v916, 0.0
      %v925 = vmax.f32 %v917, 0.0
      %v926 = vmax.f32 %v918, 0.0
      %v927 = vmax.f32 %v919, 0.0
      %v928 = vpack.c.bf16 %v921, %v920
      %v929 = vpack.c.bf16 %v923, %v922
      %v930 = vpack.c.bf16 %v925, %v924
      %v931 = vpack.c.bf16 %v927, %v926
      %v936 = vunpack.c.l.b16 %v928
      %v937 = vunpack.c.h.b16 %v928
      %v938 = vunpack.c.l.b16 %v929
      %v939 = vunpack.c.h.b16 %v929
      %v940 = vunpack.c.l.b16 %v930
      %v941 = vunpack.c.h.b16 %v930
      %v942 = vunpack.c.l.b16 %v931
      %v943 = vunpack.c.h.b16 %v931
      %v944 = vpack.c.b16 %v936, %v936
      %v945 = vpack.c.b16 %v937, %v937
      %v946 = vpack.c.b16 %v938, %v938
      %v947 = vpack.c.b16 %v939, %v939
      %v948 = vpack.c.b16 %v940, %v940
      %v949 = vpack.c.b16 %v941, %v941
      %v950 = vpack.c.b16 %v942, %v942
      %v951 = vpack.c.b16 %v943, %v943
      %vm960 = vcmask 519168
      %961 = vst.msk [vmem:[%s251] sm:$0xf] %vm960, %v944
      %962 = vst.msk [vmem:[%s251 + $0x4] sm:$0xf] %vm960, %v945
      %963 = vst.msk [vmem:[%s251 + $0x8] sm:$0xf] %vm960, %v946
      %964 = vst.msk [vmem:[%s251 + $0xc] sm:$0xf] %vm960, %v947
      %965 = vst.msk [vmem:[%s251 + $0x10] sm:$0xf] %vm960, %v948
      %966 = vst.msk [vmem:[%s251 + $0x14] sm:$0xf] %vm960, %v949
      %967 = vst.msk [vmem:[%s251 + $0x18] sm:$0xf] %vm960, %v950
      %968 = vst.msk [vmem:[%s251 + $0x1c] sm:$0xf] %vm960, %v951
      %s969 = smul.u32 8, %s16
      %p970 = scmp.lt.s32.totalorder %s969, 15
      %s971 = scalar_select %p970, %s969, 15
      %s972 = smul.addr %s971, 4
      %s973 = scalar_lea.vmem %s5, %s972
      // Predicated region
      $region41: #{l0_wide_resnet_forward.19} parent=39 // pred_check
        %p974 = pneg %p149
      $region42: #{l0_wide_resnet_forward.19} parent=39 // pred_check_branch
        %976 = sbr.rel (%p974) target = $region44
      $region43: #{l0_wide_resnet_forward.19} parent=39 // pred_region
        %s977 = smul.u32 8, %s16
      $region44: #{l0_wide_resnet_forward.19} parent=39 // pred_fallthru
        _
    $region40: #{l0_wide_resnet_forward.19} parent=5 // pred_fallthru
      _
    %p978 = scmp.le.s32.totalorder 2, %s11
    // Predicated region
    $region45: #{l0_wide_resnet_forward.19} parent=5 // pred_check
      %p979 = pneg %p978
    $region46: #{l0_wide_resnet_forward.19} parent=5 // pred_check_branch
      %981 = sbr.rel (%p979) target = $region48
    $region47: #{l0_wide_resnet_forward.19} parent=5 // pred_region
      %s982 = ssub.s32 %s11, 2
      // Predicated region
      $region49: #{l0_wide_resnet_forward.19} parent=47 // pred_check
        %p983 = pneg %p155
      $region50: #{l0_wide_resnet_forward.19} parent=47 // pred_check_branch
        %985 = sbr.rel (%p983) target = $region52
      $region51: #{l0_wide_resnet_forward.19} parent=47 // pred_region
        %s986 = smul.u32 8, %s17
        %p987 = scmp.lt.s32.totalorder %s986, 15
        %s988 = scalar_select %p987, %s986, 15
        %s989 = smul.addr %s988, 4
        %s990 = scalar_lea.vmem %s5, %s989
      $region52: #{l0_wide_resnet_forward.19} parent=47 // pred_fallthru
        _
    $region48: #{l0_wide_resnet_forward.19} parent=5 // pred_fallthru
      _
  $region6: #{l0_wide_resnet_forward.19} parent=0 // loop_footer
    %s15 = sadd.s32 1, %s11
  $region7: #{l0_wide_resnet_forward.19} parent=0 // loop_footer_branch
    %10 = sbr.rel target = $region3
  $region8: #{l0_wide_resnet_forward.19} parent=0 // loop_exit
    _

</llo_original>
